<compile_context>
chip_gen: v6e
topology: v6e:2x2x1
jax: 0.10.0
libtpu: 0.0.40
codegen_flags: <defaults>
</compile_context>

<pallas_src>
import functools
import math

import jax
import jax.numpy as jnp
from jax.experimental import pallas as pl
from jax.experimental.pallas import tpu as pltpu

N_STATE = 16  # ssm state size 'n'


def _silu(x):
    return x * (1.0 / (1.0 + jnp.exp(-x)))


def _pick_row_tile(n_rows, candidates=(1024, 512, 256, 128, 64, 32, 16, 8)):
    for t in candidates:
        if t <= n_rows and n_rows % t == 0:
            return t
    return n_rows


def _const_spec(arr):
    zeros = (0,) * arr.ndim
    return pl.BlockSpec(arr.shape, lambda i, _z=zeros: _z)


# ----------------------- kernel 1: Linear (+bias), row tiled -----------------
def _linear_bias_kernel(x_ref, w_ref, b_ref, o_ref):
    o_ref[...] = (
        jnp.dot(x_ref[...].astype(jnp.bfloat16),
                w_ref[...].astype(jnp.bfloat16),
                preferred_element_type=jnp.float32)
        + b_ref[...]
    )


def linear_bias(x, w_t, b_row):
    n_rows, c_in = x.shape
    n_out = w_t.shape[1]
    tm = _pick_row_tile(n_rows)
    return pl.pallas_call(
        _linear_bias_kernel,
        out_shape=jax.ShapeDtypeStruct((n_rows, n_out), jnp.float32),
        grid=(n_rows // tm,),
        in_specs=[pl.BlockSpec((tm, c_in), lambda i: (i, 0)),
                  _const_spec(w_t), _const_spec(b_row)],
        out_specs=pl.BlockSpec((tm, n_out), lambda i: (i, 0)),
        compiler_params=pltpu.CompilerParams(dimension_semantics=("parallel",)),
    )(x, w_t, b_row)


# --------- kernel 2: depthwise 3x3 conv (pad=1) + SiLU, per-batch grid -------
def _dwconv_silu_kernel(x_ref, w_ref, b_ref, o_ref):
    H, W, D = x_ref.shape
    x = x_ref[...]
    w = w_ref[...]                                        # (9, D), row = ky*3+kx
    col = jax.lax.broadcasted_iota(jnp.int32, (H, W, D), 1)
    zrow = jnp.zeros((1, W, D), jnp.float32)

    # horizontal shifts on the W (sublane) axis: XLU roll + boundary mask
    x_right = jnp.where(col < W - 1, pltpu.roll(x, shift=W - 1, axis=1), 0.0)  # x[:, w+1]
    x_left = jnp.where(col >= 1, pltpu.roll(x, shift=1, axis=1), 0.0)          # x[:, w-1]
    shifted_w = {-1: x_left, 0: x, 1: x_right}

    acc = jnp.zeros((H, W, D), jnp.float32)
    for dy in (-1, 0, 1):
        for dx in (-1, 0, 1):
            xs = shifted_w[dx]
            if dy == 1:      # needs x[h+1, ...]
                xs = jnp.concatenate([xs[1:], zrow], axis=0)
            elif dy == -1:   # needs x[h-1, ...]
                xs = jnp.concatenate([zrow, xs[:-1]], axis=0)
            acc = acc + xs * w[(dy + 1) * 3 + (dx + 1)]
    acc = acc + b_ref[...]                                # (1, D) broadcast
    o_ref[...] = _silu(acc)


def dwconv_silu(x_nhwc, w9, b_row):
    B, H, W, D = x_nhwc.shape
    return pl.pallas_call(
        _dwconv_silu_kernel,
        out_shape=jax.ShapeDtypeStruct((B, H, W, D), jnp.float32),
        grid=(B,),
        in_specs=[pl.BlockSpec((None, H, W, D), lambda i: (i, 0, 0, 0)),
                  _const_spec(w9), _const_spec(b_row)],
        out_specs=pl.BlockSpec((None, H, W, D), lambda i: (i, 0, 0, 0)),
        compiler_params=pltpu.CompilerParams(dimension_semantics=("parallel",)),
    )(x_nhwc, w9, b_row)


# -------- kernel 3: fused x_proj / delta / softplus / selective scan ---------
def _ssm_kernel(x1_ref, x2_ref, x3_ref, x4_ref,
                wbc_ref, wdl_ref, bd_ref, A_ref, D_ref,
                y1_ref, y2_ref, y3_ref, y4_ref,
                u_s, dl_s, B_s, C_s, ych_s, *, chunk):
    L, d = x1_ref.shape
    D4, n = A_ref.shape

    # u = [x1 | x2 | x3 | x4]  (L, 4d) == (L, D4); keep resident in VMEM
    u = jnp.concatenate([x1_ref[...], x2_ref[...], x3_ref[...], x4_ref[...]],
                        axis=-1)
    u_s[...] = u
    u_bf = u.astype(jnp.bfloat16)

    # fused x_proj (B, C columns): one (L, D4) x (D4, 2n) MXU pass
    bc = jnp.dot(u_bf, wbc_ref[...].astype(jnp.bfloat16),
                 preferred_element_type=jnp.float32)      # (L, 2n)
    B_s[...] = bc[:, :n]
    C_s[...] = bc[:, n:]

    # delta path with pre-folded W_delta = Wx[:, :dr] @ Wdelta.T : (L,D4)x(D4,D4)
    dpre = (jnp.dot(u_bf, wdl_ref[...].astype(jnp.bfloat16),
                    preferred_element_type=jnp.float32)
            + bd_ref[...])                                # (L, D4)
    # softplus (torch threshold 20), log1p for precision
    dl_s[...] = jnp.where(dpre > 20.0, dpre,
                          jnp.log1p(jnp.exp(jnp.minimum(dpre, 20.0))))

    A = A_ref[...]                                        # (D4, n)
    Dvec = D_ref[0]                                       # (D4,)

    def chunk_body(ci, h):
        base = pl.multiple_of(ci * chunk, chunk)
        dl_c = dl_s[pl.ds(base, chunk), :]                # (chunk, D4)
        u_c = u_s[pl.ds(base, chunk), :]                  # (chunk, D4)
        B_c = B_s[pl.ds(base, chunk), :]                  # (chunk, n)
        C_c = C_s[pl.ds(base, chunk), :]                  # (chunk, n)
        for j in range(chunk):                            # unrolled in the trace
            # discretize on the fly (no (L,D4,n) scratches): exp -> EUP slot
            dA_j = jnp.exp(dl_c[j][:, None] * A)                      # (D4, n)
            dBu_j = (dl_c[j] * u_c[j])[:, None] * B_c[j][None, :]     # (D4, n)
            h = dA_j * h + dBu_j
            ych_s[j, :] = jnp.sum(h * C_c[j][None, :], axis=1) + u_c[j] * Dvec
        ych = ych_s[...]                                  # (chunk, D4)
        # batched (chunk-row) stores, split back into the 4 scan directions
        y1_ref[pl.ds(base, chunk), :] = ych[:, 0 * d:1 * d]
        y2_ref[pl.ds(base, chunk), :] = ych[:, 1 * d:2 * d]
        y3_ref[pl.ds(base, chunk), :] = ych[:, 2 * d:3 * d]
        y4_ref[pl.ds(base, chunk), :] = ych[:, 3 * d:4 * d]
        return h

    jax.lax.fori_loop(0, L // chunk, chunk_body,
                      jnp.zeros((D4, n), jnp.float32))


def ssm_scan(x1, x2, x3, x4, wbc, wdelta, bd_row, A, D_row):
    b, L, d = x1.shape
    D4, n = A.shape
    chunk = 1
    for cand in (8, 4, 2):
        if L % cand == 0:
            chunk = cand
            break

    def dir_spec():
        return pl.BlockSpec((None, L, d), lambda i: (i, 0, 0))

    out_shapes = tuple(jax.ShapeDtypeStruct((b, L, d), jnp.float32)
                       for _ in range(4))
    return pl.pallas_call(
        functools.partial(_ssm_kernel, chunk=chunk),
        out_shape=out_shapes,
        grid=(b,),
        in_specs=[dir_spec(), dir_spec(), dir_spec(), dir_spec(),
                  _const_spec(wbc), _const_spec(wdelta), _const_spec(bd_row),
                  _const_spec(A), _const_spec(D_row)],
        out_specs=tuple(dir_spec() for _ in range(4)),
        scratch_shapes=[
            pltpu.VMEM((L, D4), jnp.float32),       # u
            pltpu.VMEM((L, D4), jnp.float32),       # delta
            pltpu.VMEM((L, n), jnp.float32),        # B
            pltpu.VMEM((L, n), jnp.float32),        # C
            pltpu.VMEM((chunk, D4), jnp.float32),   # y chunk staging
        ],
        compiler_params=pltpu.CompilerParams(
            dimension_semantics=("parallel",),       # batch shards across TCs (v7x)
            vmem_limit_bytes=64 * 1024 * 1024,
        ),
    )(x1, x2, x3, x4, wbc, wdelta, bd_row, A, D_row)


# ------- kernel 4: sum of 4 scans + LayerNorm + SiLU gate + out_proj ---------
def _out_head_kernel(y1_ref, y2_ref, y3_ref, y4_ref, z_ref,
                     g_ref, bt_ref, w_ref, o_ref):
    ys = y1_ref[...] + y2_ref[...] + y3_ref[...] + y4_ref[...]    # (TM, d)
    mean = jnp.mean(ys, axis=-1, keepdims=True)
    ctr = ys - mean
    var = jnp.mean(ctr * ctr, axis=-1, keepdims=True)
    xn = ctr * jax.lax.rsqrt(var + 1e-5)
    xn = xn * g_ref[...] + bt_ref[...]
    gated = xn * _silu(z_ref[...])
    o_ref[...] = jnp.dot(gated.astype(jnp.bfloat16),
                         w_ref[...].astype(jnp.bfloat16),
                         preferred_element_type=jnp.float32)


def out_head(y1, y2, y3, y4, z, gamma_row, beta_row, w_out_t):
    n_rows, d = y1.shape
    c_out = w_out_t.shape[1]
    tm = _pick_row_tile(n_rows)

    def row_spec(feat):
        return pl.BlockSpec((tm, feat), lambda i: (i, 0))

    return pl.pallas_call(
        _out_head_kernel,
        out_shape=jax.ShapeDtypeStruct((n_rows, c_out), jnp.float32),
        grid=(n_rows // tm,),
        in_specs=[row_spec(d)] * 5 + [_const_spec(gamma_row),
                                      _const_spec(beta_row),
                                      _const_spec(w_out_t)],
        out_specs=row_spec(c_out),
        compiler_params=pltpu.CompilerParams(dimension_semantics=("parallel",)),
    )(y1, y2, y3, y4, z, gamma_row, beta_row, w_out_t)


# ---------------------------- parameters ------------------------------------
def init_params(key, in_channels, n=N_STATE):
    c = in_channels
    d = 2 * c
    D4 = 4 * d
    dr = math.ceil(c / 16)
    ks = jax.random.split(key, 8)
    w_in = 0.2 * jax.random.normal(ks[0], (2 * d, c), jnp.float32)      # (out, in)
    b_in = 0.05 * jax.random.normal(ks[1], (2 * d,), jnp.float32)
    w_conv = 0.2 * jax.random.normal(ks[2], (d, 3, 3), jnp.float32)     # depthwise
    b_conv = 0.05 * jax.random.normal(ks[3], (d,), jnp.float32)
    w_xproj = 0.2 * jax.random.normal(ks[4], (dr + 2 * n, D4), jnp.float32)
    w_dproj = 0.2 * jax.random.normal(ks[5], (D4, dr), jnp.float32)
    b_dproj = 0.05 * jax.random.normal(ks[6], (D4,), jnp.float32)
    w_out = 0.2 * jax.random.normal(ks[7], (c, d), jnp.float32)
    A_log = jnp.log(jnp.tile(jnp.arange(1, n + 1, dtype=jnp.float32)[None, :],
                             (D4, 1)))

    wx_t = w_xproj.T                                  # (D4, dr + 2n)
    wdelta = wx_t[:, :dr] @ w_dproj.T                 # folded x_proj[:, :dr] . delta_proj
    return dict(
        w_in_t=w_in.T, b_in_row=b_in.reshape(1, -1),
        w_conv9=w_conv.reshape(d, 9).T, b_conv_row=b_conv.reshape(1, -1),
        wbc=wx_t[:, dr:], wdelta=wdelta, bd_row=b_dproj.reshape(1, -1),
        A=-jnp.exp(A_log), D_row=jnp.ones((1, D4), jnp.float32),
        gamma_row=jnp.ones((1, d), jnp.float32),
        beta_row=jnp.zeros((1, d), jnp.float32),
        w_out_t=w_out.T,
    )


# ------------------------------ forward -------------------------------------
def spectral_mamba_forward(x_nchw, params):
    b, c, H, W = x_nchw.shape
    d = 2 * c
    L = H * W
    Nr = b * L
    s = 8 if (H in (8, 16, 32, 64) and W % 8 == 0) else 1
    Wp = W // s

    # in_proj on NHWC rows, split into (x, z)
    x_rows = jnp.transpose(x_nchw, (0, 2, 3, 1)).reshape(Nr, c)
    proj = linear_bias(x_rows, params["w_in_t"], params["b_in_row"])    # (Nr, 2d)
    x_part = proj[:, :d].reshape(b, H, W, d)
    z_rows = proj[:, d:]                                                # (Nr, d)

    # depthwise 3x3 conv + SiLU, stays NHWC
    xc = dwconv_silu(x_part, params["w_conv9"], params["b_conv_row"])   # (b,H,W,d)

    # four scan orderings as (b, L, d): x2 is a free reshape of NHWC,
    # x1 is one 5-D transpose, x3/x4 are L-reversals of x1/x2.
    x2 = xc.reshape(b, L, d)
    x1 = xc.reshape(b, H, s, Wp, d).transpose(0, 2, 1, 3, 4).reshape(b, L, d)
    x3 = x1[:, ::-1, :]
    x4 = x2[:, ::-1, :]

    y1, y2, y3, y4 = ssm_scan(x1, x2, x3, x4, params["wbc"], params["wdelta"],
                              params["bd_row"], params["A"], params["D_row"])

    # reference "undo" passes h=H, w=W => plain row-major reshape, + flips 3/4
    y3 = y3[:, ::-1, :]
    y4 = y4[:, ::-1, :]

    out_rows = out_head(y1.reshape(Nr, d), y2.reshape(Nr, d),
                        y3.reshape(Nr, d), y4.reshape(Nr, d),
                        z_rows, params["gamma_row"], params["beta_row"],
                        params["w_out_t"])                              # (Nr, c)
    return jnp.transpose(out_rows.reshape(b, H, W, c), (0, 3, 1, 2))


if __name__ == "__main__":
    b, c, H, W = 2, 4, 16, 16
    x = jax.random.normal(jax.random.PRNGKey(0), (b, c, H, W), jnp.float32)
    params = init_params(jax.random.PRNGKey(42), c)
    fwd = jax.jit(spectral_mamba_forward)
    out = jax.block_until_ready(fwd(x, params))
    assert out.shape == (b, c, H, W)
    assert bool(jnp.all(jnp.isfinite(out)))
    print("KERNEL_OK")
</pallas_src>

<mosaic_0001>
module attributes {stable_mosaic.version = 11 : i64} {
  func.func @_linear_bias_kernel(%arg0: i32, %arg1: memref<512x4xf32, #tpu.memory_space<vmem>>, %arg2: memref<4x16xf32, #tpu.memory_space<vmem>>, %arg3: memref<1x16xf32, #tpu.memory_space<vmem>>, %arg4: memref<512x16xf32, #tpu.memory_space<vmem>>) attributes {dimension_semantics = [#tpu.dimension_semantics<parallel>], iteration_bounds = array<i64: 1>, scalar_prefetch = 0 : i64, scratch_operands = 0 : i64, tpu.core_type = #tpu.core_type<tc>, window_params = [{transform_indices = @transform_0, window_bounds = array<i64: 512, 4>}, {pipeline_mode = #tpu.pipeline_mode<synchronous>, transform_indices = @transform_1, window_bounds = array<i64: 4, 16>}, {pipeline_mode = #tpu.pipeline_mode<synchronous>, transform_indices = @transform_2, window_bounds = array<i64: 1, 16>}, {transform_indices = @transform_3, window_bounds = array<i64: 512, 16>}]} {
    %c0 = arith.constant 0 : index
    %c0_0 = arith.constant 0 : index
    %0 = vector.load %arg1[%c0, %c0_0] : memref<512x4xf32, #tpu.memory_space<vmem>>, vector<512x4xf32>
    %1 = arith.truncf %0 : vector<512x4xf32> to vector<512x4xbf16>
    %c0_1 = arith.constant 0 : index
    %c0_2 = arith.constant 0 : index
    %2 = vector.load %arg2[%c0_1, %c0_2] : memref<4x16xf32, #tpu.memory_space<vmem>>, vector<4x16xf32>
    %3 = arith.truncf %2 : vector<4x16xf32> to vector<4x16xbf16>
    %cst = arith.constant dense<0.000000e+00> : vector<512x16xf32>
    %4 = tpu.matmul %1, %3, %cst {dimension_numbers = #tpu.dot_dimension_numbers<[1], [0], [0], [1], [0, 0, 1, 1], [], []>} : vector<512x4xbf16>, vector<4x16xbf16>, vector<512x16xf32> -> vector<512x16xf32>
    %c0_3 = arith.constant 0 : index
    %c0_4 = arith.constant 0 : index
    %5 = vector.load %arg3[%c0_3, %c0_4] : memref<1x16xf32, #tpu.memory_space<vmem>>, vector<1x16xf32>
    %6 = vector.broadcast %5 : vector<1x16xf32> to vector<512x16xf32>
    %7 = arith.addf %4, %6 : vector<512x16xf32>
    %c0_5 = arith.constant 0 : index
    %c0_6 = arith.constant 0 : index
    %8 = vector.load %arg4[%c0_5, %c0_6] : memref<512x16xf32, #tpu.memory_space<vmem>>, vector<512x16xf32>
    tpu.vector_store %arg4[%c0_5, %c0_6], %7 {strides = array<i32>} : memref<512x16xf32, #tpu.memory_space<vmem>>, vector<512x16xf32>,
    return
  }
  func.func @transform_0(%arg0: i32) -> (i32, i32) {
    %c0_i32 = arith.constant 0 : i32
    %c0_i32_0 = arith.constant 0 : i32
    return %arg0, %c0_i32 : i32, i32
  }
  func.func @transform_1(%arg0: i32) -> (i32, i32) {
    %c0_i32 = arith.constant 0 : i32
    %c0_i32_0 = arith.constant 0 : i32
    %c0_i32_1 = arith.constant 0 : i32
    return %c0_i32, %c0_i32_0 : i32, i32
  }
  func.func @transform_2(%arg0: i32) -> (i32, i32) {
    %c0_i32 = arith.constant 0 : i32
    %c0_i32_0 = arith.constant 0 : i32
    %c0_i32_1 = arith.constant 0 : i32
    return %c0_i32, %c0_i32_0 : i32, i32
  }
  func.func @transform_3(%arg0: i32) -> (i32, i32) {
    %c0_i32 = arith.constant 0 : i32
    %c0_i32_0 = arith.constant 0 : i32
    return %arg0, %c0_i32 : i32, i32
  }
}

module attributes {stable_mosaic.version = 11 : i64} {
  func.func @_dwconv_silu_kernel(%arg0: i32, %arg1: memref<1x16x16x8xf32, #tpu.memory_space<vmem>>, %arg2: memref<9x8xf32, #tpu.memory_space<vmem>>, %arg3: memref<1x8xf32, #tpu.memory_space<vmem>>, %arg4: memref<1x16x16x8xf32, #tpu.memory_space<vmem>>) attributes {dimension_semantics = [#tpu.dimension_semantics<parallel>], iteration_bounds = array<i64: 2>, scalar_prefetch = 0 : i64, scratch_operands = 0 : i64, tpu.core_type = #tpu.core_type<tc>, window_params = [{transform_indices = @transform_0, window_bounds = array<i64: 1, 16, 16, 8>}, {pipeline_mode = #tpu.pipeline_mode<synchronous>, transform_indices = @transform_1, window_bounds = array<i64: 9, 8>}, {pipeline_mode = #tpu.pipeline_mode<synchronous>, transform_indices = @transform_2, window_bounds = array<i64: 1, 8>}, {transform_indices = @transform_3, window_bounds = array<i64: 1, 16, 16, 8>}]} {
    %c0 = arith.constant 0 : index
    %c0_0 = arith.constant 0 : index
    %c0_1 = arith.constant 0 : index
    %c0_2 = arith.constant 0 : index
    %0 = vector.load %arg1[%c0, %c0_0, %c0_1, %c0_2] : memref<1x16x16x8xf32, #tpu.memory_space<vmem>>, vector<1x16x16x8xf32>
    %1 = vector.shape_cast %0 : vector<1x16x16x8xf32> to vector<16x16x8xf32>
    %c0_3 = arith.constant 0 : index
    %c0_4 = arith.constant 0 : index
    %2 = vector.load %arg2[%c0_3, %c0_4] : memref<9x8xf32, #tpu.memory_space<vmem>>, vector<9x8xf32>
    %3 = tpu.iota {dimensions = array<i32: 1>} : vector<16x16x8xi32>
    %cst = arith.constant 0.000000e+00 : f32
    %4 = vector.broadcast %cst : f32 to vector<1x16x8xf32>
    %c15_i32 = arith.constant 15 : i32
    %5 = vector.broadcast %c15_i32 : i32 to vector<16x16x8xi32>
    %6 = arith.cmpi slt, %3, %5 : vector<16x16x8xi32>
    %c15_i32_5 = arith.constant 15 : i32
    %7 = tpu.dynamic_rotate %1 by %c15_i32_5 dim 1 : vector<16x16x8xf32>, i32 -> vector<16x16x8xf32>
    %cst_6 = arith.constant 0.000000e+00 : f32
    %8 = vector.broadcast %cst_6 : f32 to vector<16x16x8xf32>
    %9 = arith.select %6, %7, %8 : vector<16x16x8xi1>, vector<16x16x8xf32>
    %c1_i32 = arith.constant 1 : i32
    %10 = vector.broadcast %c1_i32 : i32 to vector<16x16x8xi32>
    %11 = arith.cmpi sge, %3, %10 : vector<16x16x8xi32>
    %c1_i32_7 = arith.constant 1 : i32
    %12 = tpu.dynamic_rotate %1 by %c1_i32_7 dim 1 : vector<16x16x8xf32>, i32 -> vector<16x16x8xf32>
    %cst_8 = arith.constant 0.000000e+00 : f32
    %13 = vector.broadcast %cst_8 : f32 to vector<16x16x8xf32>
    %14 = arith.select %11, %12, %13 : vector<16x16x8xi1>, vector<16x16x8xf32>
    %cst_9 = arith.constant 0.000000e+00 : f32
    %15 = vector.broadcast %cst_9 : f32 to vector<16x16x8xf32>
    %16 = vector.extract_strided_slice %14 {offsets = [0, 0, 0], sizes = [15, 16, 8], strides = [1, 1, 1]} : vector<16x16x8xf32> to vector<15x16x8xf32>
    %17 = tpu.concatenate %4, %16 in 0 : vector<1x16x8xf32>, vector<15x16x8xf32> -> vector<16x16x8xf32>
    %18 = vector.extract_strided_slice %2 {offsets = [0, 0], sizes = [1, 8], strides = [1, 1]} : vector<9x8xf32> to vector<1x8xf32>
    %19 = vector.shape_cast %18 : vector<1x8xf32> to vector<8xf32>
    %20 = vector.shape_cast %19 : vector<8xf32> to vector<1x1x8xf32>
    %21 = vector.broadcast %20 : vector<1x1x8xf32> to vector<16x16x8xf32>
    %22 = arith.mulf %17, %21 : vector<16x16x8xf32>
    %23 = arith.addf %15, %22 : vector<16x16x8xf32>
    %24 = vector.extract_strided_slice %1 {offsets = [0, 0, 0], sizes = [15, 16, 8], strides = [1, 1, 1]} : vector<16x16x8xf32> to vector<15x16x8xf32>
    %25 = tpu.concatenate %4, %24 in 0 : vector<1x16x8xf32>, vector<15x16x8xf32> -> vector<16x16x8xf32>
    %26 = vector.extract_strided_slice %2 {offsets = [1, 0], sizes = [1, 8], strides = [1, 1]} : vector<9x8xf32> to vector<1x8xf32>
    %27 = vector.shape_cast %26 : vector<1x8xf32> to vector<8xf32>
    %28 = vector.shape_cast %27 : vector<8xf32> to vector<1x1x8xf32>
    %29 = vector.broadcast %28 : vector<1x1x8xf32> to vector<16x16x8xf32>
    %30 = arith.mulf %25, %29 : vector<16x16x8xf32>
    %31 = arith.addf %23, %30 : vector<16x16x8xf32>
    %32 = vector.extract_strided_slice %9 {offsets = [0, 0, 0], sizes = [15, 16, 8], strides = [1, 1, 1]} : vector<16x16x8xf32> to vector<15x16x8xf32>
    %33 = tpu.concatenate %4, %32 in 0 : vector<1x16x8xf32>, vector<15x16x8xf32> -> vector<16x16x8xf32>
    %34 = vector.extract_strided_slice %2 {offsets = [2, 0], sizes = [1, 8], strides = [1, 1]} : vector<9x8xf32> to vector<1x8xf32>
    %35 = vector.shape_cast %34 : vector<1x8xf32> to vector<8xf32>
    %36 = vector.shape_cast %35 : vector<8xf32> to vector<1x1x8xf32>
    %37 = vector.broadcast %36 : vector<1x1x8xf32> to vector<16x16x8xf32>
    %38 = arith.mulf %33, %37 : vector<16x16x8xf32>
    %39 = arith.addf %31, %38 : vector<16x16x8xf32>
    %40 = vector.extract_strided_slice %2 {offsets = [3, 0], sizes = [1, 8], strides = [1, 1]} : vector<9x8xf32> to vector<1x8xf32>
    %41 = vector.shape_cast %40 : vector<1x8xf32> to vector<8xf32>
    %42 = vector.shape_cast %41 : vector<8xf32> to vector<1x1x8xf32>
    %43 = vector.broadcast %42 : vector<1x1x8xf32> to vector<16x16x8xf32>
    %44 = arith.mulf %14, %43 : vector<16x16x8xf32>
    %45 = arith.addf %39, %44 : vector<16x16x8xf32>
    %46 = vector.extract_strided_slice %2 {offsets = [4, 0], sizes = [1, 8], strides = [1, 1]} : vector<9x8xf32> to vector<1x8xf32>
    %47 = vector.shape_cast %46 : vector<1x8xf32> to vector<8xf32>
    %48 = vector.shape_cast %47 : vector<8xf32> to vector<1x1x8xf32>
    %49 = vector.broadcast %48 : vector<1x1x8xf32> to vector<16x16x8xf32>
    %50 = arith.mulf %1, %49 : vector<16x16x8xf32>
    %51 = arith.addf %45, %50 : vector<16x16x8xf32>
    %52 = vector.extract_strided_slice %2 {offsets = [5, 0], sizes = [1, 8], strides = [1, 1]} : vector<9x8xf32> to vector<1x8xf32>
    %53 = vector.shape_cast %52 : vector<1x8xf32> to vector<8xf32>
    %54 = vector.shape_cast %53 : vector<8xf32> to vector<1x1x8xf32>
    %55 = vector.broadcast %54 : vector<1x1x8xf32> to vector<16x16x8xf32>
    %56 = arith.mulf %9, %55 : vector<16x16x8xf32>
    %57 = arith.addf %51, %56 : vector<16x16x8xf32>
    %58 = vector.extract_strided_slice %14 {offsets = [1, 0, 0], sizes = [15, 16, 8], strides = [1, 1, 1]} : vector<16x16x8xf32> to vector<15x16x8xf32>
    %59 = tpu.concatenate %58, %4 in 0 : vector<15x16x8xf32>, vector<1x16x8xf32> -> vector<16x16x8xf32>
    %60 = vector.extract_strided_slice %2 {offsets = [6, 0], sizes = [1, 8], strides = [1, 1]} : vector<9x8xf32> to vector<1x8xf32>
    %61 = vector.shape_cast %60 : vector<1x8xf32> to vector<8xf32>
    %62 = vector.shape_cast %61 : vector<8xf32> to vector<1x1x8xf32>
    %63 = vector.broadcast %62 : vector<1x1x8xf32> to vector<16x16x8xf32>
    %64 = arith.mulf %59, %63 : vector<16x16x8xf32>
    %65 = arith.addf %57, %64 : vector<16x16x8xf32>
    %66 = vector.extract_strided_slice %1 {offsets = [1, 0, 0], sizes = [15, 16, 8], strides = [1, 1, 1]} : vector<16x16x8xf32> to vector<15x16x8xf32>
    %67 = tpu.concatenate %66, %4 in 0 : vector<15x16x8xf32>, vector<1x16x8xf32> -> vector<16x16x8xf32>
    %68 = vector.extract_strided_slice %2 {offsets = [7, 0], sizes = [1, 8], strides = [1, 1]} : vector<9x8xf32> to vector<1x8xf32>
    %69 = vector.shape_cast %68 : vector<1x8xf32> to vector<8xf32>
    %70 = vector.shape_cast %69 : vector<8xf32> to vector<1x1x8xf32>
    %71 = vector.broadcast %70 : vector<1x1x8xf32> to vector<16x16x8xf32>
    %72 = arith.mulf %67, %71 : vector<16x16x8xf32>
    %73 = arith.addf %65, %72 : vector<16x16x8xf32>
    %74 = vector.extract_strided_slice %9 {offsets = [1, 0, 0], sizes = [15, 16, 8], strides = [1, 1, 1]} : vector<16x16x8xf32> to vector<15x16x8xf32>
    %75 = tpu.concatenate %74, %4 in 0 : vector<15x16x8xf32>, vector<1x16x8xf32> -> vector<16x16x8xf32>
    %76 = vector.extract_strided_slice %2 {offsets = [8, 0], sizes = [1, 8], strides = [1, 1]} : vector<9x8xf32> to vector<1x8xf32>
    %77 = vector.shape_cast %76 : vector<1x8xf32> to vector<8xf32>
    %78 = vector.shape_cast %77 : vector<8xf32> to vector<1x1x8xf32>
    %79 = vector.broadcast %78 : vector<1x1x8xf32> to vector<16x16x8xf32>
    %80 = arith.mulf %75, %79 : vector<16x16x8xf32>
    %81 = arith.addf %73, %80 : vector<16x16x8xf32>
    %c0_10 = arith.constant 0 : index
    %c0_11 = arith.constant 0 : index
    %82 = vector.load %arg3[%c0_10, %c0_11] : memref<1x8xf32, #tpu.memory_space<vmem>>, vector<1x8xf32>
    %83 = vector.shape_cast %82 : vector<1x8xf32> to vector<1x1x8xf32>
    %84 = vector.broadcast %83 : vector<1x1x8xf32> to vector<16x16x8xf32>
    %85 = arith.addf %81, %84 : vector<16x16x8xf32>
    %cst_12 = arith.constant 0.000000e+00 : f32
    %86 = vector.broadcast %cst_12 : f32 to vector<16x16x8xf32>
    %87 = arith.subf %86, %85 : vector<16x16x8xf32>
    %88 = math.exp %87 : vector<16x16x8xf32>
    %cst_13 = arith.constant 1.000000e+00 : f32
    %89 = vector.broadcast %cst_13 : f32 to vector<16x16x8xf32>
    %90 = arith.addf %89, %88 : vector<16x16x8xf32>
    %cst_14 = arith.constant 1.000000e+00 : f32
    %91 = vector.broadcast %cst_14 : f32 to vector<16x16x8xf32>
    %92 = arith.divf %91, %90 : vector<16x16x8xf32>
    %93 = arith.mulf %85, %92 : vector<16x16x8xf32>
    %c0_15 = arith.constant 0 : index
    %c0_16 = arith.constant 0 : index
    %c0_17 = arith.constant 0 : index
    %c0_18 = arith.constant 0 : index
    %94 = vector.load %arg4[%c0_15, %c0_16, %c0_17, %c0_18] : memref<1x16x16x8xf32, #tpu.memory_space<vmem>>, vector<1x16x16x8xf32>
    %95 = vector.shape_cast %94 : vector<1x16x16x8xf32> to vector<16x16x8xf32>
    %96 = vector.shape_cast %93 : vector<16x16x8xf32> to vector<1x16x16x8xf32>
    tpu.vector_store %arg4[%c0_15, %c0_16, %c0_17, %c0_18], %96 {strides = array<i32>} : memref<1x16x16x8xf32, #tpu.memory_space<vmem>>, vector<1x16x16x8xf32>,
    return
  }
  func.func @transform_0(%arg0: i32) -> (i32, i32, i32, i32) {
    %c0_i32 = arith.constant 0 : i32
    %c0_i32_0 = arith.constant 0 : i32
    %c0_i32_1 = arith.constant 0 : i32
    %c0_i32_2 = arith.constant 0 : i32
    return %arg0, %c0_i32, %c0_i32_0, %c0_i32_1 : i32, i32, i32, i32
  }
  func.func @transform_1(%arg0: i32) -> (i32, i32) {
    %c0_i32 = arith.constant 0 : i32
    %c0_i32_0 = arith.constant 0 : i32
    %c0_i32_1 = arith.constant 0 : i32
    return %c0_i32, %c0_i32_0 : i32, i32
  }
  func.func @transform_2(%arg0: i32) -> (i32, i32) {
    %c0_i32 = arith.constant 0 : i32
    %c0_i32_0 = arith.constant 0 : i32
    %c0_i32_1 = arith.constant 0 : i32
    return %c0_i32, %c0_i32_0 : i32, i32
  }
  func.func @transform_3(%arg0: i32) -> (i32, i32, i32, i32) {
    %c0_i32 = arith.constant 0 : i32
    %c0_i32_0 = arith.constant 0 : i32
    %c0_i32_1 = arith.constant 0 : i32
    %c0_i32_2 = arith.constant 0 : i32
    return %arg0, %c0_i32, %c0_i32_0, %c0_i32_1 : i32, i32, i32, i32
  }
}

module attributes {stable_mosaic.version = 11 : i64} {
  func.func @_ssm_kernel(%arg0: i32, %arg1: memref<1x256x8xf32, #tpu.memory_space<vmem>>, %arg2: memref<1x256x8xf32, #tpu.memory_space<vmem>>, %arg3: memref<1x256x8xf32, #tpu.memory_space<vmem>>, %arg4: memref<1x256x8xf32, #tpu.memory_space<vmem>>, %arg5: memref<32x32xf32, #tpu.memory_space<vmem>>, %arg6: memref<32x32xf32, #tpu.memory_space<vmem>>, %arg7: memref<1x32xf32, #tpu.memory_space<vmem>>, %arg8: memref<32x16xf32, #tpu.memory_space<vmem>>, %arg9: memref<1x32xf32, #tpu.memory_space<vmem>>, %arg10: memref<1x256x8xf32, #tpu.memory_space<vmem>>, %arg11: memref<1x256x8xf32, #tpu.memory_space<vmem>>, %arg12: memref<1x256x8xf32, #tpu.memory_space<vmem>>, %arg13: memref<1x256x8xf32, #tpu.memory_space<vmem>>, %arg14: memref<256x32xf32, #tpu.memory_space<vmem>>, %arg15: memref<256x32xf32, #tpu.memory_space<vmem>>, %arg16: memref<256x16xf32, #tpu.memory_space<vmem>>, %arg17: memref<256x16xf32, #tpu.memory_space<vmem>>, %arg18: memref<8x32xf32, #tpu.memory_space<vmem>>) attributes {dimension_semantics = [#tpu.dimension_semantics<parallel>], iteration_bounds = array<i64: 2>, scalar_prefetch = 0 : i64, scratch_operands = 5 : i64, tpu.core_type = #tpu.core_type<tc>, window_params = [{transform_indices = @transform_0, window_bounds = array<i64: 1, 256, 8>}, {transform_indices = @transform_1, window_bounds = array<i64: 1, 256, 8>}, {transform_indices = @transform_2, window_bounds = array<i64: 1, 256, 8>}, {transform_indices = @transform_3, window_bounds = array<i64: 1, 256, 8>}, {pipeline_mode = #tpu.pipeline_mode<synchronous>, transform_indices = @transform_4, window_bounds = array<i64: 32, 32>}, {pipeline_mode = #tpu.pipeline_mode<synchronous>, transform_indices = @transform_5, window_bounds = array<i64: 32, 32>}, {pipeline_mode = #tpu.pipeline_mode<synchronous>, transform_indices = @transform_6, window_bounds = array<i64: 1, 32>}, {pipeline_mode = #tpu.pipeline_mode<synchronous>, transform_indices = @transform_7, window_bounds = array<i64: 32, 16>}, {pipeline_mode = #tpu.pipeline_mode<synchronous>, transform_indices = @transform_8, window_bounds = array<i64: 1, 32>}, {transform_indices = @transform_9, window_bounds = array<i64: 1, 256, 8>}, {transform_indices = @transform_10, window_bounds = array<i64: 1, 256, 8>}, {transform_indices = @transform_11, window_bounds = array<i64: 1, 256, 8>}, {transform_indices = @transform_12, window_bounds = array<i64: 1, 256, 8>}]} {
    %c0 = arith.constant 0 : index
    %c0_0 = arith.constant 0 : index
    %c0_1 = arith.constant 0 : index
    %0 = vector.load %arg1[%c0, %c0_0, %c0_1] : memref<1x256x8xf32, #tpu.memory_space<vmem>>, vector<1x256x8xf32>
    %1 = vector.shape_cast %0 : vector<1x256x8xf32> to vector<256x8xf32>
    %c0_2 = arith.constant 0 : index
    %c0_3 = arith.constant 0 : index
    %c0_4 = arith.constant 0 : index
    %2 = vector.load %arg2[%c0_2, %c0_3, %c0_4] : memref<1x256x8xf32, #tpu.memory_space<vmem>>, vector<1x256x8xf32>
    %3 = vector.shape_cast %2 : vector<1x256x8xf32> to vector<256x8xf32>
    %c0_5 = arith.constant 0 : index
    %c0_6 = arith.constant 0 : index
    %c0_7 = arith.constant 0 : index
    %4 = vector.load %arg3[%c0_5, %c0_6, %c0_7] : memref<1x256x8xf32, #tpu.memory_space<vmem>>, vector<1x256x8xf32>
    %5 = vector.shape_cast %4 : vector<1x256x8xf32> to vector<256x8xf32>
    %c0_8 = arith.constant 0 : index
    %c0_9 = arith.constant 0 : index
    %c0_10 = arith.constant 0 : index
    %6 = vector.load %arg4[%c0_8, %c0_9, %c0_10] : memref<1x256x8xf32, #tpu.memory_space<vmem>>, vector<1x256x8xf32>
    %7 = vector.shape_cast %6 : vector<1x256x8xf32> to vector<256x8xf32>
    %8 = tpu.concatenate %1, %3, %5, %7 in 1 : vector<256x8xf32>, vector<256x8xf32>, vector<256x8xf32>, vector<256x8xf32> -> vector<256x32xf32>
    %c0_11 = arith.constant 0 : index
    %c0_12 = arith.constant 0 : index
    %9 = vector.load %arg14[%c0_11, %c0_12] : memref<256x32xf32, #tpu.memory_space<vmem>>, vector<256x32xf32>
    tpu.vector_store %arg14[%c0_11, %c0_12], %8 {strides = array<i32>} : memref<256x32xf32, #tpu.memory_space<vmem>>, vector<256x32xf32>,
    %10 = arith.truncf %8 : vector<256x32xf32> to vector<256x32xbf16>
    %c0_13 = arith.constant 0 : index
    %c0_14 = arith.constant 0 : index
    %11 = vector.load %arg5[%c0_13, %c0_14] : memref<32x32xf32, #tpu.memory_space<vmem>>, vector<32x32xf32>
    %12 = arith.truncf %11 : vector<32x32xf32> to vector<32x32xbf16>
    %cst = arith.constant dense<0.000000e+00> : vector<256x32xf32>
    %13 = tpu.matmul %10, %12, %cst {dimension_numbers = #tpu.dot_dimension_numbers<[1], [0], [0], [1], [0, 0, 1, 1], [], []>} : vector<256x32xbf16>, vector<32x32xbf16>, vector<256x32xf32> -> vector<256x32xf32>
    %14 = vector.extract_strided_slice %13 {offsets = [0, 0], sizes = [256, 16], strides = [1, 1]} : vector<256x32xf32> to vector<256x16xf32>
    %c0_15 = arith.constant 0 : index
    %c0_16 = arith.constant 0 : index
    %15 = vector.load %arg16[%c0_15, %c0_16] : memref<256x16xf32, #tpu.memory_space<vmem>>, vector<256x16xf32>
    tpu.vector_store %arg16[%c0_15, %c0_16], %14 {strides = array<i32>} : memref<256x16xf32, #tpu.memory_space<vmem>>, vector<256x16xf32>,
    %16 = vector.extract_strided_slice %13 {offsets = [0, 16], sizes = [256, 16], strides = [1, 1]} : vector<256x32xf32> to vector<256x16xf32>
    %c0_17 = arith.constant 0 : index
    %c0_18 = arith.constant 0 : index
    %17 = vector.load %arg17[%c0_17, %c0_18] : memref<256x16xf32, #tpu.memory_space<vmem>>, vector<256x16xf32>
    tpu.vector_store %arg17[%c0_17, %c0_18], %16 {strides = array<i32>} : memref<256x16xf32, #tpu.memory_space<vmem>>, vector<256x16xf32>,
    %c0_19 = arith.constant 0 : index
    %c0_20 = arith.constant 0 : index
    %18 = vector.load %arg6[%c0_19, %c0_20] : memref<32x32xf32, #tpu.memory_space<vmem>>, vector<32x32xf32>
    %19 = arith.truncf %18 : vector<32x32xf32> to vector<32x32xbf16>
    %cst_21 = arith.constant dense<0.000000e+00> : vector<256x32xf32>
    %20 = tpu.matmul %10, %19, %cst_21 {dimension_numbers = #tpu.dot_dimension_numbers<[1], [0], [0], [1], [0, 0, 1, 1], [], []>} : vector<256x32xbf16>, vector<32x32xbf16>, vector<256x32xf32> -> vector<256x32xf32>
    %c0_22 = arith.constant 0 : index
    %c0_23 = arith.constant 0 : index
    %21 = vector.load %arg7[%c0_22, %c0_23] : memref<1x32xf32, #tpu.memory_space<vmem>>, vector<1x32xf32>
    %22 = vector.broadcast %21 : vector<1x32xf32> to vector<256x32xf32>
    %23 = arith.addf %20, %22 : vector<256x32xf32>
    %cst_24 = arith.constant 2.000000e+01 : f32
    %24 = vector.broadcast %cst_24 : f32 to vector<256x32xf32>
    %25 = arith.cmpf ogt, %23, %24 : vector<256x32xf32>
    %cst_25 = arith.constant 2.000000e+01 : f32
    %26 = vector.broadcast %cst_25 : f32 to vector<256x32xf32>
    %27 = arith.minimumf %23, %26 : vector<256x32xf32>
    %28 = math.exp %27 : vector<256x32xf32>
    %29 = math.log1p %28 : vector<256x32xf32>
    %30 = arith.select %25, %23, %29 : vector<256x32xi1>, vector<256x32xf32>
    %c0_26 = arith.constant 0 : index
    %c0_27 = arith.constant 0 : index
    %31 = vector.load %arg15[%c0_26, %c0_27] : memref<256x32xf32, #tpu.memory_space<vmem>>, vector<256x32xf32>
    tpu.vector_store %arg15[%c0_26, %c0_27], %30 {strides = array<i32>} : memref<256x32xf32, #tpu.memory_space<vmem>>, vector<256x32xf32>,
    %c0_28 = arith.constant 0 : index
    %c0_29 = arith.constant 0 : index
    %32 = vector.load %arg8[%c0_28, %c0_29] : memref<32x16xf32, #tpu.memory_space<vmem>>, vector<32x16xf32>
    %c0_30 = arith.constant 0 : index
    %c0_31 = arith.constant 0 : index
    %33 = vector.load %arg9[%c0_30, %c0_31] : memref<1x32xf32, #tpu.memory_space<vmem>>, vector<1x32xf32>
    %34 = vector.shape_cast %33 : vector<1x32xf32> to vector<32xf32>
    %cst_32 = arith.constant 0.000000e+00 : f32
    %35 = vector.broadcast %cst_32 : f32 to vector<32x16xf32>
    %c0_i32 = arith.constant 0 : i32
    %c32_i32 = arith.constant 32 : i32
    %36 = arith.addi %c0_i32, %c32_i32 : i32
    %c1_i32 = arith.constant 1 : i32
    %37 = scf.for %arg19 = %c0_i32 to %36 step %c1_i32 iter_args(%arg20 = %35) -> (vector<32x16xf32>)  : i32 {
      %c8_i32 = arith.constant 8 : i32
      %38 = arith.muli %arg19, %c8_i32 : i32
      %39 = tpu.assume_multiple %38, 8 : i32
      %40 = arith.index_cast %39 : i32 to index
      %c0_34 = arith.constant 0 : index
      %41 = vector.load %arg15[%40, %c0_34] : memref<256x32xf32, #tpu.memory_space<vmem>>, vector<8x32xf32>
      %42 = arith.index_cast %39 : i32 to index
      %c0_35 = arith.constant 0 : index
      %43 = vector.load %arg14[%42, %c0_35] : memref<256x32xf32, #tpu.memory_space<vmem>>, vector<8x32xf32>
      %44 = arith.index_cast %39 : i32 to index
      %c0_36 = arith.constant 0 : index
      %45 = vector.load %arg16[%44, %c0_36] : memref<256x16xf32, #tpu.memory_space<vmem>>, vector<8x16xf32>
      %46 = arith.index_cast %39 : i32 to index
      %c0_37 = arith.constant 0 : index
      %47 = vector.load %arg17[%46, %c0_37] : memref<256x16xf32, #tpu.memory_space<vmem>>, vector<8x16xf32>
      %48 = vector.extract_strided_slice %41 {offsets = [0, 0], sizes = [1, 32], strides = [1, 1]} : vector<8x32xf32> to vector<1x32xf32>
      %49 = vector.shape_cast %48 : vector<1x32xf32> to vector<32xf32>
      %50 = vector.shape_cast %49 : vector<32xf32> to vector<32x1xf32>
      %51 = vector.broadcast %50 : vector<32x1xf32> to vector<32x16xf32>
      %52 = arith.mulf %51, %32 : vector<32x16xf32>
      %53 = math.exp %52 : vector<32x16xf32>
      %54 = vector.extract_strided_slice %41 {offsets = [0, 0], sizes = [1, 32], strides = [1, 1]} : vector<8x32xf32> to vector<1x32xf32>
      %55 = vector.shape_cast %54 : vector<1x32xf32> to vector<32xf32>
      %56 = vector.extract_strided_slice %43 {offsets = [0, 0], sizes = [1, 32], strides = [1, 1]} : vector<8x32xf32> to vector<1x32xf32>
      %57 = vector.shape_cast %56 : vector<1x32xf32> to vector<32xf32>
      %58 = arith.mulf %55, %57 : vector<32xf32>
      %59 = vector.shape_cast %58 : vector<32xf32> to vector<32x1xf32>
      %60 = vector.extract_strided_slice %45 {offsets = [0, 0], sizes = [1, 16], strides = [1, 1]} : vector<8x16xf32> to vector<1x16xf32>
      %61 = vector.shape_cast %60 : vector<1x16xf32> to vector<16xf32>
      %62 = vector.shape_cast %61 : vector<16xf32> to vector<1x16xf32>
      %63 = vector.broadcast %59 : vector<32x1xf32> to vector<32x16xf32>
      %64 = vector.broadcast %62 : vector<1x16xf32> to vector<32x16xf32>
      %65 = arith.mulf %63, %64 : vector<32x16xf32>
      %66 = arith.mulf %53, %arg20 : vector<32x16xf32>
      %67 = arith.addf %66, %65 : vector<32x16xf32>
      %68 = vector.extract_strided_slice %47 {offsets = [0, 0], sizes = [1, 16], strides = [1, 1]} : vector<8x16xf32> to vector<1x16xf32>
      %69 = vector.shape_cast %68 : vector<1x16xf32> to vector<16xf32>
      %70 = vector.shape_cast %69 : vector<16xf32> to vector<1x16xf32>
      %71 = vector.broadcast %70 : vector<1x16xf32> to vector<32x16xf32>
      %72 = arith.mulf %67, %71 : vector<32x16xf32>
      %cst_38 = arith.constant dense<0.000000e+00> : vector<32xf32>
      %73 = vector.multi_reduction <add>, %72, %cst_38 [1] : vector<32x16xf32> to vector<32xf32>
      %74 = vector.extract_strided_slice %43 {offsets = [0, 0], sizes = [1, 32], strides = [1, 1]} : vector<8x32xf32> to vector<1x32xf32>
      %75 = vector.shape_cast %74 : vector<1x32xf32> to vector<32xf32>
      %76 = arith.mulf %75, %34 : vector<32xf32>
      %77 = arith.addf %73, %76 : vector<32xf32>
      %c0_39 = arith.constant 0 : index
      %c0_40 = arith.constant 0 : index
      %78 = vector.load %arg18[%c0_39, %c0_40] : memref<8x32xf32, #tpu.memory_space<vmem>>, vector<1x32xf32>
      %79 = vector.shape_cast %78 : vector<1x32xf32> to vector<32xf32>
      %80 = vector.shape_cast %77 : vector<32xf32> to vector<1x32xf32>
      tpu.vector_store %arg18[%c0_39, %c0_40], %80 {strides = array<i32>} : memref<8x32xf32, #tpu.memory_space<vmem>>, vector<1x32xf32>,
      %81 = vector.extract_strided_slice %41 {offsets = [1, 0], sizes = [1, 32], strides = [1, 1]} : vector<8x32xf32> to vector<1x32xf32>
      %82 = vector.shape_cast %81 : vector<1x32xf32> to vector<32xf32>
      %83 = vector.shape_cast %82 : vector<32xf32> to vector<32x1xf32>
      %84 = vector.broadcast %83 : vector<32x1xf32> to vector<32x16xf32>
      %85 = arith.mulf %84, %32 : vector<32x16xf32>
      %86 = math.exp %85 : vector<32x16xf32>
      %87 = vector.extract_strided_slice %41 {offsets = [1, 0], sizes = [1, 32], strides = [1, 1]} : vector<8x32xf32> to vector<1x32xf32>
      %88 = vector.shape_cast %87 : vector<1x32xf32> to vector<32xf32>
      %89 = vector.extract_strided_slice %43 {offsets = [1, 0], sizes = [1, 32], strides = [1, 1]} : vector<8x32xf32> to vector<1x32xf32>
      %90 = vector.shape_cast %89 : vector<1x32xf32> to vector<32xf32>
      %91 = arith.mulf %88, %90 : vector<32xf32>
      %92 = vector.shape_cast %91 : vector<32xf32> to vector<32x1xf32>
      %93 = vector.extract_strided_slice %45 {offsets = [1, 0], sizes = [1, 16], strides = [1, 1]} : vector<8x16xf32> to vector<1x16xf32>
      %94 = vector.shape_cast %93 : vector<1x16xf32> to vector<16xf32>
      %95 = vector.shape_cast %94 : vector<16xf32> to vector<1x16xf32>
      %96 = vector.broadcast %92 : vector<32x1xf32> to vector<32x16xf32>
      %97 = vector.broadcast %95 : vector<1x16xf32> to vector<32x16xf32>
      %98 = arith.mulf %96, %97 : vector<32x16xf32>
      %99 = arith.mulf %86, %67 : vector<32x16xf32>
      %100 = arith.addf %99, %98 : vector<32x16xf32>
      %101 = vector.extract_strided_slice %47 {offsets = [1, 0], sizes = [1, 16], strides = [1, 1]} : vector<8x16xf32> to vector<1x16xf32>
      %102 = vector.shape_cast %101 : vector<1x16xf32> to vector<16xf32>
      %103 = vector.shape_cast %102 : vector<16xf32> to vector<1x16xf32>
      %104 = vector.broadcast %103 : vector<1x16xf32> to vector<32x16xf32>
      %105 = arith.mulf %100, %104 : vector<32x16xf32>
      %cst_41 = arith.constant dense<0.000000e+00> : vector<32xf32>
      %106 = vector.multi_reduction <add>, %105, %cst_41 [1] : vector<32x16xf32> to vector<32xf32>
      %107 = vector.extract_strided_slice %43 {offsets = [1, 0], sizes = [1, 32], strides = [1, 1]} : vector<8x32xf32> to vector<1x32xf32>
      %108 = vector.shape_cast %107 : vector<1x32xf32> to vector<32xf32>
      %109 = arith.mulf %108, %34 : vector<32xf32>
      %110 = arith.addf %106, %109 : vector<32xf32>
      %c1 = arith.constant 1 : index
      %c0_42 = arith.constant 0 : index
      %111 = vector.load %arg18[%c1, %c0_42] : memref<8x32xf32, #tpu.memory_space<vmem>>, vector<1x32xf32>
      %112 = vector.shape_cast %111 : vector<1x32xf32> to vector<32xf32>
      %113 = vector.shape_cast %110 : vector<32xf32> to vector<1x32xf32>
      tpu.vector_store %arg18[%c1, %c0_42], %113 {strides = array<i32>} : memref<8x32xf32, #tpu.memory_space<vmem>>, vector<1x32xf32>,
      %114 = vector.extract_strided_slice %41 {offsets = [2, 0], sizes = [1, 32], strides = [1, 1]} : vector<8x32xf32> to vector<1x32xf32>
      %115 = vector.shape_cast %114 : vector<1x32xf32> to vector<32xf32>
      %116 = vector.shape_cast %115 : vector<32xf32> to vector<32x1xf32>
      %117 = vector.broadcast %116 : vector<32x1xf32> to vector<32x16xf32>
      %118 = arith.mulf %117, %32 : vector<32x16xf32>
      %119 = math.exp %118 : vector<32x16xf32>
      %120 = vector.extract_strided_slice %41 {offsets = [2, 0], sizes = [1, 32], strides = [1, 1]} : vector<8x32xf32> to vector<1x32xf32>
      %121 = vector.shape_cast %120 : vector<1x32xf32> to vector<32xf32>
      %122 = vector.extract_strided_slice %43 {offsets = [2, 0], sizes = [1, 32], strides = [1, 1]} : vector<8x32xf32> to vector<1x32xf32>
      %123 = vector.shape_cast %122 : vector<1x32xf32> to vector<32xf32>
      %124 = arith.mulf %121, %123 : vector<32xf32>
      %125 = vector.shape_cast %124 : vector<32xf32> to vector<32x1xf32>
      %126 = vector.extract_strided_slice %45 {offsets = [2, 0], sizes = [1, 16], strides = [1, 1]} : vector<8x16xf32> to vector<1x16xf32>
      %127 = vector.shape_cast %126 : vector<1x16xf32> to vector<16xf32>
      %128 = vector.shape_cast %127 : vector<16xf32> to vector<1x16xf32>
      %129 = vector.broadcast %125 : vector<32x1xf32> to vector<32x16xf32>
      %130 = vector.broadcast %128 : vector<1x16xf32> to vector<32x16xf32>
      %131 = arith.mulf %129, %130 : vector<32x16xf32>
      %132 = arith.mulf %119, %100 : vector<32x16xf32>
      %133 = arith.addf %132, %131 : vector<32x16xf32>
      %134 = vector.extract_strided_slice %47 {offsets = [2, 0], sizes = [1, 16], strides = [1, 1]} : vector<8x16xf32> to vector<1x16xf32>
      %135 = vector.shape_cast %134 : vector<1x16xf32> to vector<16xf32>
      %136 = vector.shape_cast %135 : vector<16xf32> to vector<1x16xf32>
      %137 = vector.broadcast %136 : vector<1x16xf32> to vector<32x16xf32>
      %138 = arith.mulf %133, %137 : vector<32x16xf32>
      %cst_43 = arith.constant dense<0.000000e+00> : vector<32xf32>
      %139 = vector.multi_reduction <add>, %138, %cst_43 [1] : vector<32x16xf32> to vector<32xf32>
      %140 = vector.extract_strided_slice %43 {offsets = [2, 0], sizes = [1, 32], strides = [1, 1]} : vector<8x32xf32> to vector<1x32xf32>
      %141 = vector.shape_cast %140 : vector<1x32xf32> to vector<32xf32>
      %142 = arith.mulf %141, %34 : vector<32xf32>
      %143 = arith.addf %139, %142 : vector<32xf32>
      %c2 = arith.constant 2 : index
      %c0_44 = arith.constant 0 : index
      %144 = vector.load %arg18[%c2, %c0_44] : memref<8x32xf32, #tpu.memory_space<vmem>>, vector<1x32xf32>
      %145 = vector.shape_cast %144 : vector<1x32xf32> to vector<32xf32>
      %146 = vector.shape_cast %143 : vector<32xf32> to vector<1x32xf32>
      tpu.vector_store %arg18[%c2, %c0_44], %146 {strides = array<i32>} : memref<8x32xf32, #tpu.memory_space<vmem>>, vector<1x32xf32>,
      %147 = vector.extract_strided_slice %41 {offsets = [3, 0], sizes = [1, 32], strides = [1, 1]} : vector<8x32xf32> to vector<1x32xf32>
      %148 = vector.shape_cast %147 : vector<1x32xf32> to vector<32xf32>
      %149 = vector.shape_cast %148 : vector<32xf32> to vector<32x1xf32>
      %150 = vector.broadcast %149 : vector<32x1xf32> to vector<32x16xf32>
      %151 = arith.mulf %150, %32 : vector<32x16xf32>
      %152 = math.exp %151 : vector<32x16xf32>
      %153 = vector.extract_strided_slice %41 {offsets = [3, 0], sizes = [1, 32], strides = [1, 1]} : vector<8x32xf32> to vector<1x32xf32>
      %154 = vector.shape_cast %153 : vector<1x32xf32> to vector<32xf32>
      %155 = vector.extract_strided_slice %43 {offsets = [3, 0], sizes = [1, 32], strides = [1, 1]} : vector<8x32xf32> to vector<1x32xf32>
      %156 = vector.shape_cast %155 : vector<1x32xf32> to vector<32xf32>
      %157 = arith.mulf %154, %156 : vector<32xf32>
      %158 = vector.shape_cast %157 : vector<32xf32> to vector<32x1xf32>
      %159 = vector.extract_strided_slice %45 {offsets = [3, 0], sizes = [1, 16], strides = [1, 1]} : vector<8x16xf32> to vector<1x16xf32>
      %160 = vector.shape_cast %159 : vector<1x16xf32> to vector<16xf32>
      %161 = vector.shape_cast %160 : vector<16xf32> to vector<1x16xf32>
      %162 = vector.broadcast %158 : vector<32x1xf32> to vector<32x16xf32>
      %163 = vector.broadcast %161 : vector<1x16xf32> to vector<32x16xf32>
      %164 = arith.mulf %162, %163 : vector<32x16xf32>
      %165 = arith.mulf %152, %133 : vector<32x16xf32>
      %166 = arith.addf %165, %164 : vector<32x16xf32>
      %167 = vector.extract_strided_slice %47 {offsets = [3, 0], sizes = [1, 16], strides = [1, 1]} : vector<8x16xf32> to vector<1x16xf32>
      %168 = vector.shape_cast %167 : vector<1x16xf32> to vector<16xf32>
      %169 = vector.shape_cast %168 : vector<16xf32> to vector<1x16xf32>
      %170 = vector.broadcast %169 : vector<1x16xf32> to vector<32x16xf32>
      %171 = arith.mulf %166, %170 : vector<32x16xf32>
      %cst_45 = arith.constant dense<0.000000e+00> : vector<32xf32>
      %172 = vector.multi_reduction <add>, %171, %cst_45 [1] : vector<32x16xf32> to vector<32xf32>
      %173 = vector.extract_strided_slice %43 {offsets = [3, 0], sizes = [1, 32], strides = [1, 1]} : vector<8x32xf32> to vector<1x32xf32>
      %174 = vector.shape_cast %173 : vector<1x32xf32> to vector<32xf32>
      %175 = arith.mulf %174, %34 : vector<32xf32>
      %176 = arith.addf %172, %175 : vector<32xf32>
      %c3 = arith.constant 3 : index
      %c0_46 = arith.constant 0 : index
      %177 = vector.load %arg18[%c3, %c0_46] : memref<8x32xf32, #tpu.memory_space<vmem>>, vector<1x32xf32>
      %178 = vector.shape_cast %177 : vector<1x32xf32> to vector<32xf32>
      %179 = vector.shape_cast %176 : vector<32xf32> to vector<1x32xf32>
      tpu.vector_store %arg18[%c3, %c0_46], %179 {strides = array<i32>} : memref<8x32xf32, #tpu.memory_space<vmem>>, vector<1x32xf32>,
      %180 = vector.extract_strided_slice %41 {offsets = [4, 0], sizes = [1, 32], strides = [1, 1]} : vector<8x32xf32> to vector<1x32xf32>
      %181 = vector.shape_cast %180 : vector<1x32xf32> to vector<32xf32>
      %182 = vector.shape_cast %181 : vector<32xf32> to vector<32x1xf32>
      %183 = vector.broadcast %182 : vector<32x1xf32> to vector<32x16xf32>
      %184 = arith.mulf %183, %32 : vector<32x16xf32>
      %185 = math.exp %184 : vector<32x16xf32>
      %186 = vector.extract_strided_slice %41 {offsets = [4, 0], sizes = [1, 32], strides = [1, 1]} : vector<8x32xf32> to vector<1x32xf32>
      %187 = vector.shape_cast %186 : vector<1x32xf32> to vector<32xf32>
      %188 = vector.extract_strided_slice %43 {offsets = [4, 0], sizes = [1, 32], strides = [1, 1]} : vector<8x32xf32> to vector<1x32xf32>
      %189 = vector.shape_cast %188 : vector<1x32xf32> to vector<32xf32>
      %190 = arith.mulf %187, %189 : vector<32xf32>
      %191 = vector.shape_cast %190 : vector<32xf32> to vector<32x1xf32>
      %192 = vector.extract_strided_slice %45 {offsets = [4, 0], sizes = [1, 16], strides = [1, 1]} : vector<8x16xf32> to vector<1x16xf32>
      %193 = vector.shape_cast %192 : vector<1x16xf32> to vector<16xf32>
      %194 = vector.shape_cast %193 : vector<16xf32> to vector<1x16xf32>
      %195 = vector.broadcast %191 : vector<32x1xf32> to vector<32x16xf32>
      %196 = vector.broadcast %194 : vector<1x16xf32> to vector<32x16xf32>
      %197 = arith.mulf %195, %196 : vector<32x16xf32>
      %198 = arith.mulf %185, %166 : vector<32x16xf32>
      %199 = arith.addf %198, %197 : vector<32x16xf32>
      %200 = vector.extract_strided_slice %47 {offsets = [4, 0], sizes = [1, 16], strides = [1, 1]} : vector<8x16xf32> to vector<1x16xf32>
      %201 = vector.shape_cast %200 : vector<1x16xf32> to vector<16xf32>
      %202 = vector.shape_cast %201 : vector<16xf32> to vector<1x16xf32>
      %203 = vector.broadcast %202 : vector<1x16xf32> to vector<32x16xf32>
      %204 = arith.mulf %199, %203 : vector<32x16xf32>
      %cst_47 = arith.constant dense<0.000000e+00> : vector<32xf32>
      %205 = vector.multi_reduction <add>, %204, %cst_47 [1] : vector<32x16xf32> to vector<32xf32>
      %206 = vector.extract_strided_slice %43 {offsets = [4, 0], sizes = [1, 32], strides = [1, 1]} : vector<8x32xf32> to vector<1x32xf32>
      %207 = vector.shape_cast %206 : vector<1x32xf32> to vector<32xf32>
      %208 = arith.mulf %207, %34 : vector<32xf32>
      %209 = arith.addf %205, %208 : vector<32xf32>
      %c4 = arith.constant 4 : index
      %c0_48 = arith.constant 0 : index
      %210 = vector.load %arg18[%c4, %c0_48] : memref<8x32xf32, #tpu.memory_space<vmem>>, vector<1x32xf32>
      %211 = vector.shape_cast %210 : vector<1x32xf32> to vector<32xf32>
      %212 = vector.shape_cast %209 : vector<32xf32> to vector<1x32xf32>
      tpu.vector_store %arg18[%c4, %c0_48], %212 {strides = array<i32>} : memref<8x32xf32, #tpu.memory_space<vmem>>, vector<1x32xf32>,
      %213 = vector.extract_strided_slice %41 {offsets = [5, 0], sizes = [1, 32], strides = [1, 1]} : vector<8x32xf32> to vector<1x32xf32>
      %214 = vector.shape_cast %213 : vector<1x32xf32> to vector<32xf32>
      %215 = vector.shape_cast %214 : vector<32xf32> to vector<32x1xf32>
      %216 = vector.broadcast %215 : vector<32x1xf32> to vector<32x16xf32>
      %217 = arith.mulf %216, %32 : vector<32x16xf32>
      %218 = math.exp %217 : vector<32x16xf32>
      %219 = vector.extract_strided_slice %41 {offsets = [5, 0], sizes = [1, 32], strides = [1, 1]} : vector<8x32xf32> to vector<1x32xf32>
      %220 = vector.shape_cast %219 : vector<1x32xf32> to vector<32xf32>
      %221 = vector.extract_strided_slice %43 {offsets = [5, 0], sizes = [1, 32], strides = [1, 1]} : vector<8x32xf32> to vector<1x32xf32>
      %222 = vector.shape_cast %221 : vector<1x32xf32> to vector<32xf32>
      %223 = arith.mulf %220, %222 : vector<32xf32>
      %224 = vector.shape_cast %223 : vector<32xf32> to vector<32x1xf32>
      %225 = vector.extract_strided_slice %45 {offsets = [5, 0], sizes = [1, 16], strides = [1, 1]} : vector<8x16xf32> to vector<1x16xf32>
      %226 = vector.shape_cast %225 : vector<1x16xf32> to vector<16xf32>
      %227 = vector.shape_cast %226 : vector<16xf32> to vector<1x16xf32>
      %228 = vector.broadcast %224 : vector<32x1xf32> to vector<32x16xf32>
      %229 = vector.broadcast %227 : vector<1x16xf32> to vector<32x16xf32>
      %230 = arith.mulf %228, %229 : vector<32x16xf32>
      %231 = arith.mulf %218, %199 : vector<32x16xf32>
      %232 = arith.addf %231, %230 : vector<32x16xf32>
      %233 = vector.extract_strided_slice %47 {offsets = [5, 0], sizes = [1, 16], strides = [1, 1]} : vector<8x16xf32> to vector<1x16xf32>
      %234 = vector.shape_cast %233 : vector<1x16xf32> to vector<16xf32>
      %235 = vector.shape_cast %234 : vector<16xf32> to vector<1x16xf32>
      %236 = vector.broadcast %235 : vector<1x16xf32> to vector<32x16xf32>
      %237 = arith.mulf %232, %236 : vector<32x16xf32>
      %cst_49 = arith.constant dense<0.000000e+00> : vector<32xf32>
      %238 = vector.multi_reduction <add>, %237, %cst_49 [1] : vector<32x16xf32> to vector<32xf32>
      %239 = vector.extract_strided_slice %43 {offsets = [5, 0], sizes = [1, 32], strides = [1, 1]} : vector<8x32xf32> to vector<1x32xf32>
      %240 = vector.shape_cast %239 : vector<1x32xf32> to vector<32xf32>
      %241 = arith.mulf %240, %34 : vector<32xf32>
      %242 = arith.addf %238, %241 : vector<32xf32>
      %c5 = arith.constant 5 : index
      %c0_50 = arith.constant 0 : index
      %243 = vector.load %arg18[%c5, %c0_50] : memref<8x32xf32, #tpu.memory_space<vmem>>, vector<1x32xf32>
      %244 = vector.shape_cast %243 : vector<1x32xf32> to vector<32xf32>
      %245 = vector.shape_cast %242 : vector<32xf32> to vector<1x32xf32>
      tpu.vector_store %arg18[%c5, %c0_50], %245 {strides = array<i32>} : memref<8x32xf32, #tpu.memory_space<vmem>>, vector<1x32xf32>,
      %246 = vector.extract_strided_slice %41 {offsets = [6, 0], sizes = [1, 32], strides = [1, 1]} : vector<8x32xf32> to vector<1x32xf32>
      %247 = vector.shape_cast %246 : vector<1x32xf32> to vector<32xf32>
      %248 = vector.shape_cast %247 : vector<32xf32> to vector<32x1xf32>
      %249 = vector.broadcast %248 : vector<32x1xf32> to vector<32x16xf32>
      %250 = arith.mulf %249, %32 : vector<32x16xf32>
      %251 = math.exp %250 : vector<32x16xf32>
      %252 = vector.extract_strided_slice %41 {offsets = [6, 0], sizes = [1, 32], strides = [1, 1]} : vector<8x32xf32> to vector<1x32xf32>
      %253 = vector.shape_cast %252 : vector<1x32xf32> to vector<32xf32>
      %254 = vector.extract_strided_slice %43 {offsets = [6, 0], sizes = [1, 32], strides = [1, 1]} : vector<8x32xf32> to vector<1x32xf32>
      %255 = vector.shape_cast %254 : vector<1x32xf32> to vector<32xf32>
      %256 = arith.mulf %253, %255 : vector<32xf32>
      %257 = vector.shape_cast %256 : vector<32xf32> to vector<32x1xf32>
      %258 = vector.extract_strided_slice %45 {offsets = [6, 0], sizes = [1, 16], strides = [1, 1]} : vector<8x16xf32> to vector<1x16xf32>
      %259 = vector.shape_cast %258 : vector<1x16xf32> to vector<16xf32>
      %260 = vector.shape_cast %259 : vector<16xf32> to vector<1x16xf32>
      %261 = vector.broadcast %257 : vector<32x1xf32> to vector<32x16xf32>
      %262 = vector.broadcast %260 : vector<1x16xf32> to vector<32x16xf32>
      %263 = arith.mulf %261, %262 : vector<32x16xf32>
      %264 = arith.mulf %251, %232 : vector<32x16xf32>
      %265 = arith.addf %264, %263 : vector<32x16xf32>
      %266 = vector.extract_strided_slice %47 {offsets = [6, 0], sizes = [1, 16], strides = [1, 1]} : vector<8x16xf32> to vector<1x16xf32>
      %267 = vector.shape_cast %266 : vector<1x16xf32> to vector<16xf32>
      %268 = vector.shape_cast %267 : vector<16xf32> to vector<1x16xf32>
      %269 = vector.broadcast %268 : vector<1x16xf32> to vector<32x16xf32>
      %270 = arith.mulf %265, %269 : vector<32x16xf32>
      %cst_51 = arith.constant dense<0.000000e+00> : vector<32xf32>
      %271 = vector.multi_reduction <add>, %270, %cst_51 [1] : vector<32x16xf32> to vector<32xf32>
      %272 = vector.extract_strided_slice %43 {offsets = [6, 0], sizes = [1, 32], strides = [1, 1]} : vector<8x32xf32> to vector<1x32xf32>
      %273 = vector.shape_cast %272 : vector<1x32xf32> to vector<32xf32>
      %274 = arith.mulf %273, %34 : vector<32xf32>
      %275 = arith.addf %271, %274 : vector<32xf32>
      %c6 = arith.constant 6 : index
      %c0_52 = arith.constant 0 : index
      %276 = vector.load %arg18[%c6, %c0_52] : memref<8x32xf32, #tpu.memory_space<vmem>>, vector<1x32xf32>
      %277 = vector.shape_cast %276 : vector<1x32xf32> to vector<32xf32>
      %278 = vector.shape_cast %275 : vector<32xf32> to vector<1x32xf32>
      tpu.vector_store %arg18[%c6, %c0_52], %278 {strides = array<i32>} : memref<8x32xf32, #tpu.memory_space<vmem>>, vector<1x32xf32>,
      %279 = vector.extract_strided_slice %41 {offsets = [7, 0], sizes = [1, 32], strides = [1, 1]} : vector<8x32xf32> to vector<1x32xf32>
      %280 = vector.shape_cast %279 : vector<1x32xf32> to vector<32xf32>
      %281 = vector.shape_cast %280 : vector<32xf32> to vector<32x1xf32>
      %282 = vector.broadcast %281 : vector<32x1xf32> to vector<32x16xf32>
      %283 = arith.mulf %282, %32 : vector<32x16xf32>
      %284 = math.exp %283 : vector<32x16xf32>
      %285 = vector.extract_strided_slice %41 {offsets = [7, 0], sizes = [1, 32], strides = [1, 1]} : vector<8x32xf32> to vector<1x32xf32>
      %286 = vector.shape_cast %285 : vector<1x32xf32> to vector<32xf32>
      %287 = vector.extract_strided_slice %43 {offsets = [7, 0], sizes = [1, 32], strides = [1, 1]} : vector<8x32xf32> to vector<1x32xf32>
      %288 = vector.shape_cast %287 : vector<1x32xf32> to vector<32xf32>
      %289 = arith.mulf %286, %288 : vector<32xf32>
      %290 = vector.shape_cast %289 : vector<32xf32> to vector<32x1xf32>
      %291 = vector.extract_strided_slice %45 {offsets = [7, 0], sizes = [1, 16], strides = [1, 1]} : vector<8x16xf32> to vector<1x16xf32>
      %292 = vector.shape_cast %291 : vector<1x16xf32> to vector<16xf32>
      %293 = vector.shape_cast %292 : vector<16xf32> to vector<1x16xf32>
      %294 = vector.broadcast %290 : vector<32x1xf32> to vector<32x16xf32>
      %295 = vector.broadcast %293 : vector<1x16xf32> to vector<32x16xf32>
      %296 = arith.mulf %294, %295 : vector<32x16xf32>
      %297 = arith.mulf %284, %265 : vector<32x16xf32>
      %298 = arith.addf %297, %296 : vector<32x16xf32>
      %299 = vector.extract_strided_slice %47 {offsets = [7, 0], sizes = [1, 16], strides = [1, 1]} : vector<8x16xf32> to vector<1x16xf32>
      %300 = vector.shape_cast %299 : vector<1x16xf32> to vector<16xf32>
      %301 = vector.shape_cast %300 : vector<16xf32> to vector<1x16xf32>
      %302 = vector.broadcast %301 : vector<1x16xf32> to vector<32x16xf32>
      %303 = arith.mulf %298, %302 : vector<32x16xf32>
      %cst_53 = arith.constant dense<0.000000e+00> : vector<32xf32>
      %304 = vector.multi_reduction <add>, %303, %cst_53 [1] : vector<32x16xf32> to vector<32xf32>
      %305 = vector.extract_strided_slice %43 {offsets = [7, 0], sizes = [1, 32], strides = [1, 1]} : vector<8x32xf32> to vector<1x32xf32>
      %306 = vector.shape_cast %305 : vector<1x32xf32> to vector<32xf32>
      %307 = arith.mulf %306, %34 : vector<32xf32>
      %308 = arith.addf %304, %307 : vector<32xf32>
      %c7 = arith.constant 7 : index
      %c0_54 = arith.constant 0 : index
      %309 = vector.load %arg18[%c7, %c0_54] : memref<8x32xf32, #tpu.memory_space<vmem>>, vector<1x32xf32>
      %310 = vector.shape_cast %309 : vector<1x32xf32> to vector<32xf32>
      %311 = vector.shape_cast %308 : vector<32xf32> to vector<1x32xf32>
      tpu.vector_store %arg18[%c7, %c0_54], %311 {strides = array<i32>} : memref<8x32xf32, #tpu.memory_space<vmem>>, vector<1x32xf32>,
      %c0_55 = arith.constant 0 : index
      %c0_56 = arith.constant 0 : index
      %312 = vector.load %arg18[%c0_55, %c0_56] : memref<8x32xf32, #tpu.memory_space<vmem>>, vector<8x32xf32>
      %313 = vector.extract_strided_slice %312 {offsets = [0, 0], sizes = [8, 8], strides = [1, 1]} : vector<8x32xf32> to vector<8x8xf32>
      %c0_57 = arith.constant 0 : index
      %314 = arith.index_cast %39 : i32 to index
      %c0_58 = arith.constant 0 : index
      %315 = vector.load %arg10[%c0_57, %314, %c0_58] : memref<1x256x8xf32, #tpu.memory_space<vmem>>, vector<1x8x8xf32>
      %316 = vector.shape_cast %315 : vector<1x8x8xf32> to vector<8x8xf32>
      %317 = vector.shape_cast %313 : vector<8x8xf32> to vector<1x8x8xf32>
      tpu.vector_store %arg10[%c0_57, %314, %c0_58], %317 {strides = array<i32>} : memref<1x256x8xf32, #tpu.memory_space<vmem>>, vector<1x8x8xf32>,
      %318 = vector.extract_strided_slice %312 {offsets = [0, 8], sizes = [8, 8], strides = [1, 1]} : vector<8x32xf32> to vector<8x8xf32>
      %c0_59 = arith.constant 0 : index
      %319 = arith.index_cast %39 : i32 to index
      %c0_60 = arith.constant 0 : index
      %320 = vector.load %arg11[%c0_59, %319, %c0_60] : memref<1x256x8xf32, #tpu.memory_space<vmem>>, vector<1x8x8xf32>
      %321 = vector.shape_cast %320 : vector<1x8x8xf32> to vector<8x8xf32>
      %322 = vector.shape_cast %318 : vector<8x8xf32> to vector<1x8x8xf32>
      tpu.vector_store %arg11[%c0_59, %319, %c0_60], %322 {strides = array<i32>} : memref<1x256x8xf32, #tpu.memory_space<vmem>>, vector<1x8x8xf32>,
      %323 = vector.extract_strided_slice %312 {offsets = [0, 16], sizes = [8, 8], strides = [1, 1]} : vector<8x32xf32> to vector<8x8xf32>
      %c0_61 = arith.constant 0 : index
      %324 = arith.index_cast %39 : i32 to index
      %c0_62 = arith.constant 0 : index
      %325 = vector.load %arg12[%c0_61, %324, %c0_62] : memref<1x256x8xf32, #tpu.memory_space<vmem>>, vector<1x8x8xf32>
      %326 = vector.shape_cast %325 : vector<1x8x8xf32> to vector<8x8xf32>
      %327 = vector.shape_cast %323 : vector<8x8xf32> to vector<1x8x8xf32>
      tpu.vector_store %arg12[%c0_61, %324, %c0_62], %327 {strides = array<i32>} : memref<1x256x8xf32, #tpu.memory_space<vmem>>, vector<1x8x8xf32>,
      %328 = vector.extract_strided_slice %312 {offsets = [0, 24], sizes = [8, 8], strides = [1, 1]} : vector<8x32xf32> to vector<8x8xf32>
      %c0_63 = arith.constant 0 : index
      %329 = arith.index_cast %39 : i32 to index
      %c0_64 = arith.constant 0 : index
      %330 = vector.load %arg13[%c0_63, %329, %c0_64] : memref<1x256x8xf32, #tpu.memory_space<vmem>>, vector<1x8x8xf32>
      %331 = vector.shape_cast %330 : vector<1x8x8xf32> to vector<8x8xf32>
      %332 = vector.shape_cast %328 : vector<8x8xf32> to vector<1x8x8xf32>
      tpu.vector_store %arg13[%c0_63, %329, %c0_64], %332 {strides = array<i32>} : memref<1x256x8xf32, #tpu.memory_space<vmem>>, vector<1x8x8xf32>,
      scf.yield %298 : vector<32x16xf32>
    }
    %c32_i32_33 = arith.constant 32 : i32
    return
  }
  func.func @transform_0(%arg0: i32) -> (i32, i32, i32) {
    %c0_i32 = arith.constant 0 : i32
    %c0_i32_0 = arith.constant 0 : i32
    %c0_i32_1 = arith.constant 0 : i32
    return %arg0, %c0_i32, %c0_i32_0 : i32, i32, i32
  }
  func.func @transform_1(%arg0: i32) -> (i32, i32, i32) {
    %c0_i32 = arith.constant 0 : i32
    %c0_i32_0 = arith.constant 0 : i32
    %c0_i32_1 = arith.constant 0 : i32
    return %arg0, %c0_i32, %c0_i32_0 : i32, i32, i32
  }
  func.func @transform_2(%arg0: i32) -> (i32, i32, i32) {
    %c0_i32 = arith.constant 0 : i32
    %c0_i32_0 = arith.constant 0 : i32
    %c0_i32_1 = arith.constant 0 : i32
    return %arg0, %c0_i32, %c0_i32_0 : i32, i32, i32
  }
  func.func @transform_3(%arg0: i32) -> (i32, i32, i32) {
    %c0_i32 = arith.constant 0 : i32
    %c0_i32_0 = arith.constant 0 : i32
    %c0_i32_1 = arith.constant 0 : i32
    return %arg0, %c0_i32, %c0_i32_0 : i32, i32, i32
  }
  func.func @transform_4(%arg0: i32) -> (i32, i32) {
    %c0_i32 = arith.constant 0 : i32
    %c0_i32_0 = arith.constant 0 : i32
    %c0_i32_1 = arith.constant 0 : i32
    return %c0_i32, %c0_i32_0 : i32, i32
  }
  func.func @transform_5(%arg0: i32) -> (i32, i32) {
    %c0_i32 = arith.constant 0 : i32
    %c0_i32_0 = arith.constant 0 : i32
    %c0_i32_1 = arith.constant 0 : i32
    return %c0_i32, %c0_i32_0 : i32, i32
  }
  func.func @transform_6(%arg0: i32) -> (i32, i32) {
    %c0_i32 = arith.constant 0 : i32
    %c0_i32_0 = arith.constant 0 : i32
    %c0_i32_1 = arith.constant 0 : i32
    return %c0_i32, %c0_i32_0 : i32, i32
  }
  func.func @transform_7(%arg0: i32) -> (i32, i32) {
    %c0_i32 = arith.constant 0 : i32
    %c0_i32_0 = arith.constant 0 : i32
    %c0_i32_1 = arith.constant 0 : i32
    return %c0_i32, %c0_i32_0 : i32, i32
  }
  func.func @transform_8(%arg0: i32) -> (i32, i32) {
    %c0_i32 = arith.constant 0 : i32
    %c0_i32_0 = arith.constant 0 : i32
    %c0_i32_1 = arith.constant 0 : i32
    return %c0_i32, %c0_i32_0 : i32, i32
  }
  func.func @transform_9(%arg0: i32) -> (i32, i32, i32) {
    %c0_i32 = arith.constant 0 : i32
    %c0_i32_0 = arith.constant 0 : i32
    %c0_i32_1 = arith.constant 0 : i32
    return %arg0, %c0_i32, %c0_i32_0 : i32, i32, i32
  }
  func.func @transform_10(%arg0: i32) -> (i32, i32, i32) {
    %c0_i32 = arith.constant 0 : i32
    %c0_i32_0 = arith.constant 0 : i32
    %c0_i32_1 = arith.constant 0 : i32
    return %arg0, %c0_i32, %c0_i32_0 : i32, i32, i32
  }
  func.func @transform_11(%arg0: i32) -> (i32, i32, i32) {
    %c0_i32 = arith.constant 0 : i32
    %c0_i32_0 = arith.constant 0 : i32
    %c0_i32_1 = arith.constant 0 : i32
    return %arg0, %c0_i32, %c0_i32_0 : i32, i32, i32
  }
  func.func @transform_12(%arg0: i32) -> (i32, i32, i32) {
    %c0_i32 = arith.constant 0 : i32
    %c0_i32_0 = arith.constant 0 : i32
    %c0_i32_1 = arith.constant 0 : i32
    return %arg0, %c0_i32, %c0_i32_0 : i32, i32, i32
  }
}

module attributes {stable_mosaic.version = 11 : i64} {
  func.func @_out_head_kernel(%arg0: i32, %arg1: memref<512x8xf32, #tpu.memory_space<vmem>>, %arg2: memref<512x8xf32, #tpu.memory_space<vmem>>, %arg3: memref<512x8xf32, #tpu.memory_space<vmem>>, %arg4: memref<512x8xf32, #tpu.memory_space<vmem>>, %arg5: memref<512x8xf32, #tpu.memory_space<vmem>>, %arg6: memref<1x8xf32, #tpu.memory_space<vmem>>, %arg7: memref<1x8xf32, #tpu.memory_space<vmem>>, %arg8: memref<8x4xf32, #tpu.memory_space<vmem>>, %arg9: memref<512x4xf32, #tpu.memory_space<vmem>>) attributes {dimension_semantics = [#tpu.dimension_semantics<parallel>], iteration_bounds = array<i64: 1>, scalar_prefetch = 0 : i64, scratch_operands = 0 : i64, tpu.core_type = #tpu.core_type<tc>, window_params = [{transform_indices = @transform_0, window_bounds = array<i64: 512, 8>}, {transform_indices = @transform_1, window_bounds = array<i64: 512, 8>}, {transform_indices = @transform_2, window_bounds = array<i64: 512, 8>}, {transform_indices = @transform_3, window_bounds = array<i64: 512, 8>}, {transform_indices = @transform_4, window_bounds = array<i64: 512, 8>}, {pipeline_mode = #tpu.pipeline_mode<synchronous>, transform_indices = @transform_5, window_bounds = array<i64: 1, 8>}, {pipeline_mode = #tpu.pipeline_mode<synchronous>, transform_indices = @transform_6, window_bounds = array<i64: 1, 8>}, {pipeline_mode = #tpu.pipeline_mode<synchronous>, transform_indices = @transform_7, window_bounds = array<i64: 8, 4>}, {transform_indices = @transform_8, window_bounds = array<i64: 512, 4>}]} {
    %c0 = arith.constant 0 : index
    %c0_0 = arith.constant 0 : index
    %0 = vector.load %arg1[%c0, %c0_0] : memref<512x8xf32, #tpu.memory_space<vmem>>, vector<512x8xf32>
    %c0_1 = arith.constant 0 : index
    %c0_2 = arith.constant 0 : index
    %1 = vector.load %arg2[%c0_1, %c0_2] : memref<512x8xf32, #tpu.memory_space<vmem>>, vector<512x8xf32>
    %2 = arith.addf %0, %1 : vector<512x8xf32>
    %c0_3 = arith.constant 0 : index
    %c0_4 = arith.constant 0 : index
    %3 = vector.load %arg3[%c0_3, %c0_4] : memref<512x8xf32, #tpu.memory_space<vmem>>, vector<512x8xf32>
    %4 = arith.addf %2, %3 : vector<512x8xf32>
    %c0_5 = arith.constant 0 : index
    %c0_6 = arith.constant 0 : index
    %5 = vector.load %arg4[%c0_5, %c0_6] : memref<512x8xf32, #tpu.memory_space<vmem>>, vector<512x8xf32>
    %6 = arith.addf %4, %5 : vector<512x8xf32>
    %cst = arith.constant dense<0.000000e+00> : vector<512xf32>
    %7 = vector.multi_reduction <add>, %6, %cst [1] : vector<512x8xf32> to vector<512xf32>
    %8 = vector.shape_cast %7 : vector<512xf32> to vector<512x1xf32>
    %cst_7 = arith.constant 8.000000e+00 : f32
    %9 = vector.broadcast %cst_7 : f32 to vector<512x1xf32>
    %10 = arith.divf %8, %9 : vector<512x1xf32>
    %11 = vector.broadcast %10 : vector<512x1xf32> to vector<512x8xf32>
    %12 = arith.subf %6, %11 : vector<512x8xf32>
    %13 = arith.mulf %12, %12 : vector<512x8xf32>
    %cst_8 = arith.constant dense<0.000000e+00> : vector<512xf32>
    %14 = vector.multi_reduction <add>, %13, %cst_8 [1] : vector<512x8xf32> to vector<512xf32>
    %15 = vector.shape_cast %14 : vector<512xf32> to vector<512x1xf32>
    %cst_9 = arith.constant 8.000000e+00 : f32
    %16 = vector.broadcast %cst_9 : f32 to vector<512x1xf32>
    %17 = arith.divf %15, %16 : vector<512x1xf32>
    %cst_10 = arith.constant 9.99999974E-6 : f32
    %18 = vector.broadcast %cst_10 : f32 to vector<512x1xf32>
    %19 = arith.addf %17, %18 : vector<512x1xf32>
    %20 = math.rsqrt %19 : vector<512x1xf32>
    %21 = vector.broadcast %20 : vector<512x1xf32> to vector<512x8xf32>
    %22 = arith.mulf %12, %21 : vector<512x8xf32>
    %c0_11 = arith.constant 0 : index
    %c0_12 = arith.constant 0 : index
    %23 = vector.load %arg6[%c0_11, %c0_12] : memref<1x8xf32, #tpu.memory_space<vmem>>, vector<1x8xf32>
    %24 = vector.broadcast %23 : vector<1x8xf32> to vector<512x8xf32>
    %25 = arith.mulf %22, %24 : vector<512x8xf32>
    %c0_13 = arith.constant 0 : index
    %c0_14 = arith.constant 0 : index
    %26 = vector.load %arg7[%c0_13, %c0_14] : memref<1x8xf32, #tpu.memory_space<vmem>>, vector<1x8xf32>
    %27 = vector.broadcast %26 : vector<1x8xf32> to vector<512x8xf32>
    %28 = arith.addf %25, %27 : vector<512x8xf32>
    %c0_15 = arith.constant 0 : index
    %c0_16 = arith.constant 0 : index
    %29 = vector.load %arg5[%c0_15, %c0_16] : memref<512x8xf32, #tpu.memory_space<vmem>>, vector<512x8xf32>
    %cst_17 = arith.constant 0.000000e+00 : f32
    %30 = vector.broadcast %cst_17 : f32 to vector<512x8xf32>
    %31 = arith.subf %30, %29 : vector<512x8xf32>
    %32 = math.exp %31 : vector<512x8xf32>
    %cst_18 = arith.constant 1.000000e+00 : f32
    %33 = vector.broadcast %cst_18 : f32 to vector<512x8xf32>
    %34 = arith.addf %33, %32 : vector<512x8xf32>
    %cst_19 = arith.constant 1.000000e+00 : f32
    %35 = vector.broadcast %cst_19 : f32 to vector<512x8xf32>
    %36 = arith.divf %35, %34 : vector<512x8xf32>
    %37 = arith.mulf %29, %36 : vector<512x8xf32>
    %38 = arith.mulf %28, %37 : vector<512x8xf32>
    %39 = arith.truncf %38 : vector<512x8xf32> to vector<512x8xbf16>
    %c0_20 = arith.constant 0 : index
    %c0_21 = arith.constant 0 : index
    %40 = vector.load %arg8[%c0_20, %c0_21] : memref<8x4xf32, #tpu.memory_space<vmem>>, vector<8x4xf32>
    %41 = arith.truncf %40 : vector<8x4xf32> to vector<8x4xbf16>
    %cst_22 = arith.constant dense<0.000000e+00> : vector<512x4xf32>
    %42 = tpu.matmul %39, %41, %cst_22 {dimension_numbers = #tpu.dot_dimension_numbers<[1], [0], [0], [1], [0, 0, 1, 1], [], []>} : vector<512x8xbf16>, vector<8x4xbf16>, vector<512x4xf32> -> vector<512x4xf32>
    %c0_23 = arith.constant 0 : index
    %c0_24 = arith.constant 0 : index
    %43 = vector.load %arg9[%c0_23, %c0_24] : memref<512x4xf32, #tpu.memory_space<vmem>>, vector<512x4xf32>
    tpu.vector_store %arg9[%c0_23, %c0_24], %42 {strides = array<i32>} : memref<512x4xf32, #tpu.memory_space<vmem>>, vector<512x4xf32>,
    return
  }
  func.func @transform_0(%arg0: i32) -> (i32, i32) {
    %c0_i32 = arith.constant 0 : i32
    %c0_i32_0 = arith.constant 0 : i32
    return %arg0, %c0_i32 : i32, i32
  }
  func.func @transform_1(%arg0: i32) -> (i32, i32) {
    %c0_i32 = arith.constant 0 : i32
    %c0_i32_0 = arith.constant 0 : i32
    return %arg0, %c0_i32 : i32, i32
  }
  func.func @transform_2(%arg0: i32) -> (i32, i32) {
    %c0_i32 = arith.constant 0 : i32
    %c0_i32_0 = arith.constant 0 : i32
    return %arg0, %c0_i32 : i32, i32
  }
  func.func @transform_3(%arg0: i32) -> (i32, i32) {
    %c0_i32 = arith.constant 0 : i32
    %c0_i32_0 = arith.constant 0 : i32
    return %arg0, %c0_i32 : i32, i32
  }
  func.func @transform_4(%arg0: i32) -> (i32, i32) {
    %c0_i32 = arith.constant 0 : i32
    %c0_i32_0 = arith.constant 0 : i32
    return %arg0, %c0_i32 : i32, i32
  }
  func.func @transform_5(%arg0: i32) -> (i32, i32) {
    %c0_i32 = arith.constant 0 : i32
    %c0_i32_0 = arith.constant 0 : i32
    %c0_i32_1 = arith.constant 0 : i32
    return %c0_i32, %c0_i32_0 : i32, i32
  }
  func.func @transform_6(%arg0: i32) -> (i32, i32) {
    %c0_i32 = arith.constant 0 : i32
    %c0_i32_0 = arith.constant 0 : i32
    %c0_i32_1 = arith.constant 0 : i32
    return %c0_i32, %c0_i32_0 : i32, i32
  }
  func.func @transform_7(%arg0: i32) -> (i32, i32) {
    %c0_i32 = arith.constant 0 : i32
    %c0_i32_0 = arith.constant 0 : i32
    %c0_i32_1 = arith.constant 0 : i32
    return %c0_i32, %c0_i32_0 : i32, i32
  }
  func.func @transform_8(%arg0: i32) -> (i32, i32) {
    %c0_i32 = arith.constant 0 : i32
    %c0_i32_0 = arith.constant 0 : i32
    return %arg0, %c0_i32 : i32, i32
  }
}

</mosaic_0001>

<llo_original>
// kernel: spectral_mamba_forward.4
$region0: #{spectral_mamba_forward.4}
  #allocation0 [shape = 'u32[]', space=smem, size = 0x4, offset = 0x4, fixed_abs, tag = 'smem constant byte address 0x4 - core index']
  #allocation1 [shape = 'u32[144,128]{1,0:T(1,128)}', space=vmem, size = 0x12000, scoped, tag = 'internal scratch']
  %s0 = inlined_call_operand.vmem [shape: f32[512,4], index: 0, kind: input, shape index: {}]
  %s1 = inlined_call_operand.vmem [shape: f32[4,16], index: 1, kind: input, shape index: {}]
  %s2 = inlined_call_operand.vmem [shape: f32[1,16], index: 2, kind: input, shape index: {}]
  %s3 = inlined_call_operand.vmem [shape: f32[512,16], index: 3, kind: output, shape index: {}]
  %s4 = sld [smem:[#allocation0]]
  $region22: #{spectral_mamba_forward.4} parent=0
    _
  %s6 = ssub.s32 1, %s4
  %s7 = scalar_select 0, %s6, %s4
  // Predicated region
  $region2: #{spectral_mamba_forward.4} parent=0 // pred_check
    _
  $region3: #{spectral_mamba_forward.4} parent=0 // pred_check_branch
    %9 = sbr.rel (0) target = $region5
  $region4: #{spectral_mamba_forward.4} parent=0 // pred_region
    _
  $region5: #{spectral_mamba_forward.4} parent=0 // pred_fallthru
    _
  // Predicated region
  $region6: #{spectral_mamba_forward.4} parent=0 // pred_check
    _
  $region7: #{spectral_mamba_forward.4} parent=0 // pred_check_branch
    %11 = sbr.rel (0) target = $region9
  $region8: #{spectral_mamba_forward.4} parent=0 // pred_region
    _
  $region9: #{spectral_mamba_forward.4} parent=0 // pred_fallthru
    _
  // Predicated region
  $region10: #{spectral_mamba_forward.4} parent=0 // pred_check
    _
  $region11: #{spectral_mamba_forward.4} parent=0 // pred_check_branch
    %13 = sbr.rel (0) target = $region13
  $region12: #{spectral_mamba_forward.4} parent=0 // pred_region
    _
  $region13: #{spectral_mamba_forward.4} parent=0 // pred_fallthru
    _
  %v15 = vld [vmem:[%s0] sm:$0xff]
  %v16 = vld [vmem:[%s0 + $0x8] sm:$0xff]
  %v17 = vld [vmem:[%s0 + $0x10] sm:$0xff]
  %v18 = vld [vmem:[%s0 + $0x18] sm:$0xff]
  %v19 = vld [vmem:[%s0 + $0x20] sm:$0xff]
  %v20 = vld [vmem:[%s0 + $0x28] sm:$0xff]
  %v21 = vld [vmem:[%s0 + $0x30] sm:$0xff]
  %v22 = vld [vmem:[%s0 + $0x38] sm:$0xff]
  %v23 = vld [vmem:[%s0 + $0x40] sm:$0xff]
  %v24 = vld [vmem:[%s0 + $0x48] sm:$0xff]
  %v25 = vld [vmem:[%s0 + $0x50] sm:$0xff]
  %v26 = vld [vmem:[%s0 + $0x58] sm:$0xff]
  %v27 = vld [vmem:[%s0 + $0x60] sm:$0xff]
  %v28 = vld [vmem:[%s0 + $0x68] sm:$0xff]
  %v29 = vld [vmem:[%s0 + $0x70] sm:$0xff]
  %v30 = vld [vmem:[%s0 + $0x78] sm:$0xff]
  %v31 = vld [vmem:[%s0 + $0x80] sm:$0xff]
  %v32 = vld [vmem:[%s0 + $0x88] sm:$0xff]
  %v33 = vld [vmem:[%s0 + $0x90] sm:$0xff]
  %v34 = vld [vmem:[%s0 + $0x98] sm:$0xff]
  %v35 = vld [vmem:[%s0 + $0xa0] sm:$0xff]
  %v36 = vld [vmem:[%s0 + $0xa8] sm:$0xff]
  %v37 = vld [vmem:[%s0 + $0xb0] sm:$0xff]
  %v38 = vld [vmem:[%s0 + $0xb8] sm:$0xff]
  %v39 = vld [vmem:[%s0 + $0xc0] sm:$0xff]
  %v40 = vld [vmem:[%s0 + $0xc8] sm:$0xff]
  %v41 = vld [vmem:[%s0 + $0xd0] sm:$0xff]
  %v42 = vld [vmem:[%s0 + $0xd8] sm:$0xff]
  %v43 = vld [vmem:[%s0 + $0xe0] sm:$0xff]
  %v44 = vld [vmem:[%s0 + $0xe8] sm:$0xff]
  %v45 = vld [vmem:[%s0 + $0xf0] sm:$0xff]
  %v46 = vld [vmem:[%s0 + $0xf8] sm:$0xff]
  %v47 = vld [vmem:[%s0 + $0x100] sm:$0xff]
  %v48 = vld [vmem:[%s0 + $0x108] sm:$0xff]
  %v49 = vld [vmem:[%s0 + $0x110] sm:$0xff]
  %v50 = vld [vmem:[%s0 + $0x118] sm:$0xff]
  %v51 = vld [vmem:[%s0 + $0x120] sm:$0xff]
  %v52 = vld [vmem:[%s0 + $0x128] sm:$0xff]
  %v53 = vld [vmem:[%s0 + $0x130] sm:$0xff]
  %v54 = vld [vmem:[%s0 + $0x138] sm:$0xff]
  %v55 = vld [vmem:[%s0 + $0x140] sm:$0xff]
  %v56 = vld [vmem:[%s0 + $0x148] sm:$0xff]
  %v57 = vld [vmem:[%s0 + $0x150] sm:$0xff]
  %v58 = vld [vmem:[%s0 + $0x158] sm:$0xff]
  %v59 = vld [vmem:[%s0 + $0x160] sm:$0xff]
  %v60 = vld [vmem:[%s0 + $0x168] sm:$0xff]
  %v61 = vld [vmem:[%s0 + $0x170] sm:$0xff]
  %v62 = vld [vmem:[%s0 + $0x178] sm:$0xff]
  %v63 = vld [vmem:[%s0 + $0x180] sm:$0xff]
  %v64 = vld [vmem:[%s0 + $0x188] sm:$0xff]
  %v65 = vld [vmem:[%s0 + $0x190] sm:$0xff]
  %v66 = vld [vmem:[%s0 + $0x198] sm:$0xff]
  %v67 = vld [vmem:[%s0 + $0x1a0] sm:$0xff]
  %v68 = vld [vmem:[%s0 + $0x1a8] sm:$0xff]
  %v69 = vld [vmem:[%s0 + $0x1b0] sm:$0xff]
  %v70 = vld [vmem:[%s0 + $0x1b8] sm:$0xff]
  %v71 = vld [vmem:[%s0 + $0x1c0] sm:$0xff]
  %v72 = vld [vmem:[%s0 + $0x1c8] sm:$0xff]
  %v73 = vld [vmem:[%s0 + $0x1d0] sm:$0xff]
  %v74 = vld [vmem:[%s0 + $0x1d8] sm:$0xff]
  %v75 = vld [vmem:[%s0 + $0x1e0] sm:$0xff]
  %v76 = vld [vmem:[%s0 + $0x1e8] sm:$0xff]
  %v77 = vld [vmem:[%s0 + $0x1f0] sm:$0xff]
  %v78 = vld [vmem:[%s0 + $0x1f8] sm:$0xff]
  %v79 = vpack.c.bf16 %v16, %v15
  %v80 = vpack.c.bf16 %v18, %v17
  %v81 = vpack.c.bf16 %v20, %v19
  %v82 = vpack.c.bf16 %v22, %v21
  %v83 = vpack.c.bf16 %v24, %v23
  %v84 = vpack.c.bf16 %v26, %v25
  %v85 = vpack.c.bf16 %v28, %v27
  %v86 = vpack.c.bf16 %v30, %v29
  %v87 = vpack.c.bf16 %v32, %v31
  %v88 = vpack.c.bf16 %v34, %v33
  %v89 = vpack.c.bf16 %v36, %v35
  %v90 = vpack.c.bf16 %v38, %v37
  %v91 = vpack.c.bf16 %v40, %v39
  %v92 = vpack.c.bf16 %v42, %v41
  %v93 = vpack.c.bf16 %v44, %v43
  %v94 = vpack.c.bf16 %v46, %v45
  %v95 = vpack.c.bf16 %v48, %v47
  %v96 = vpack.c.bf16 %v50, %v49
  %v97 = vpack.c.bf16 %v52, %v51
  %v98 = vpack.c.bf16 %v54, %v53
  %v99 = vpack.c.bf16 %v56, %v55
  %v100 = vpack.c.bf16 %v58, %v57
  %v101 = vpack.c.bf16 %v60, %v59
  %v102 = vpack.c.bf16 %v62, %v61
  %v103 = vpack.c.bf16 %v64, %v63
  %v104 = vpack.c.bf16 %v66, %v65
  %v105 = vpack.c.bf16 %v68, %v67
  %v106 = vpack.c.bf16 %v70, %v69
  %v107 = vpack.c.bf16 %v72, %v71
  %v108 = vpack.c.bf16 %v74, %v73
  %v109 = vpack.c.bf16 %v76, %v75
  %v110 = vpack.c.bf16 %v78, %v77
  %v111 = vld [vmem:[%s1] sm:$0xf]
  %v112 = vpack.c.bf16 %v111, %v111
  %v113 = vld [vmem:[%s2] sm:$0x1]
  %v115 = vlaneseq
  %v116 = vshrl.u32 %v115, 7
  %v117 = vsub.s32 0, %v116
  %v118 = vrot.slane %v113, %v117
  %vm120 = vcmask 31744
  %v122 = vsel %vm120, %v79, 0
  %v125 = vsel %vm120, %v80, 0
  %v128 = vsel %vm120, %v81, 0
  %v131 = vsel %vm120, %v82, 0
  %v134 = vsel %vm120, %v83, 0
  %v137 = vsel %vm120, %v84, 0
  %v140 = vsel %vm120, %v85, 0
  %v143 = vsel %vm120, %v86, 0
  %v146 = vsel %vm120, %v87, 0
  %v149 = vsel %vm120, %v88, 0
  %v152 = vsel %vm120, %v89, 0
  %v155 = vsel %vm120, %v90, 0
  %v158 = vsel %vm120, %v91, 0
  %v161 = vsel %vm120, %v92, 0
  %v164 = vsel %vm120, %v93, 0
  %v167 = vsel %vm120, %v94, 0
  %v170 = vsel %vm120, %v95, 0
  %v173 = vsel %vm120, %v96, 0
  %v176 = vsel %vm120, %v97, 0
  %v179 = vsel %vm120, %v98, 0
  %v182 = vsel %vm120, %v99, 0
  %v185 = vsel %vm120, %v100, 0
  %v188 = vsel %vm120, %v101, 0
  %v191 = vsel %vm120, %v102, 0
  %v194 = vsel %vm120, %v103, 0
  %v197 = vsel %vm120, %v104, 0
  %v200 = vsel %vm120, %v105, 0
  %v203 = vsel %vm120, %v106, 0
  %v206 = vsel %vm120, %v107, 0
  %v209 = vsel %vm120, %v108, 0
  %v212 = vsel %vm120, %v109, 0
  %v215 = vsel %vm120, %v110, 0
  %vm217 = vcmask 1041408
  %v219 = vsel %vm217, %v112, 0
  %221 = vmatprep.subr.bf16.mxu0 0
  %222 = vmatpush1.bf16.msra.mxu0 0
  %223 = vmatprep.subr.bf16.mxu0 0
  %224 = vmatpush1.bf16.msra.mxu0 0
  %225 = vmatprep.subr.bf16.mxu0 0
  %226 = vmatpush1.bf16.msra.mxu0 0
  %227 = vmatprep.subr.bf16.mxu0 0
  %228 = vmatpush1.bf16.msra.mxu0 0
  %229 = vmatprep.subr.bf16.mxu0 0
  %230 = vmatpush1.bf16.msra.mxu0 0
  %231 = vmatprep.subr.bf16.mxu0 0
  %232 = vmatpush1.bf16.msra.mxu0 0
  %233 = vmatprep.subr.bf16.mxu0 0
  %234 = vmatpush1.bf16.msra.mxu0 0
  %235 = vmatprep.subr.bf16.mxu0 0
  %236 = vmatpush1.bf16.msra.mxu0 %v219
  %237 = vmatprep.subr.bf16.mxu0 0
  %238 = vmatpush2.bf16.msra.mxu0 0
  %239 = vmatprep.subr.bf16.mxu0 0
  %240 = vmatpush2.bf16.msra.mxu0 0
  %241 = vmatprep.subr.bf16.mxu0 0
  %242 = vmatpush2.bf16.msra.mxu0 0
  %243 = vmatprep.subr.bf16.mxu0 0
  %244 = vmatpush2.bf16.msra.mxu0 0
  %245 = vmatprep.subr.bf16.mxu0 0
  %246 = vmatpush2.bf16.msra.mxu0 0
  %247 = vmatprep.subr.bf16.mxu0 0
  %248 = vmatpush2.bf16.msra.mxu0 0
  %249 = vmatprep.subr.bf16.mxu0 0
  %250 = vmatpush2.bf16.msra.mxu0 0
  %251 = vmatprep.subr.bf16.mxu0 0
  %252 = vmatpush2.bf16.msra.mxu0 0
  %253 = vmatprep.mubr.bf16.mxu0 0
  %254 = vmatmul.mubr.bf16.gmra.mxu0 %v122
  %v255 = vpop.f32.mrf.mxu0
  %v256 = vadd.f32 %v118, %v255
  %v257 = vpop.f32.mrf.mxu0
  %v258 = vpop.f32.mrf.mxu0
  %v259 = vadd.f32 %v118, %v258
  %v260 = vpop.f32.mrf.mxu0
  %261 = vmatprep.mubr.bf16.mxu0 0
  %262 = vmatmul.mubr.bf16.gmra.mxu0 %v125
  %v263 = vpop.f32.mrf.mxu0
  %v264 = vadd.f32 %v118, %v263
  %v265 = vpop.f32.mrf.mxu0
  %v266 = vpop.f32.mrf.mxu0
  %v267 = vadd.f32 %v118, %v266
  %v268 = vpop.f32.mrf.mxu0
  %269 = vmatprep.mubr.bf16.mxu0 0
  %270 = vmatmul.mubr.bf16.gmra.mxu0 %v128
  %v271 = vpop.f32.mrf.mxu0
  %v272 = vadd.f32 %v118, %v271
  %v273 = vpop.f32.mrf.mxu0
  %v274 = vpop.f32.mrf.mxu0
  %v275 = vadd.f32 %v118, %v274
  %v276 = vpop.f32.mrf.mxu0
  %277 = vmatprep.mubr.bf16.mxu0 0
  %278 = vmatmul.mubr.bf16.gmra.mxu0 %v131
  %v279 = vpop.f32.mrf.mxu0
  %v280 = vadd.f32 %v118, %v279
  %v281 = vpop.f32.mrf.mxu0
  %v282 = vpop.f32.mrf.mxu0
  %v283 = vadd.f32 %v118, %v282
  %v284 = vpop.f32.mrf.mxu0
  %285 = vmatprep.mubr.bf16.mxu0 0
  %286 = vmatmul.mubr.bf16.gmra.mxu0 %v134
  %v287 = vpop.f32.mrf.mxu0
  %v288 = vadd.f32 %v118, %v287
  %v289 = vpop.f32.mrf.mxu0
  %v290 = vpop.f32.mrf.mxu0
  %v291 = vadd.f32 %v118, %v290
  %v292 = vpop.f32.mrf.mxu0
  %293 = vmatprep.mubr.bf16.mxu0 0
  %294 = vmatmul.mubr.bf16.gmra.mxu0 %v137
  %v295 = vpop.f32.mrf.mxu0
  %v296 = vadd.f32 %v118, %v295
  %v297 = vpop.f32.mrf.mxu0
  %v298 = vpop.f32.mrf.mxu0
  %v299 = vadd.f32 %v118, %v298
  %v300 = vpop.f32.mrf.mxu0
  %301 = vmatprep.mubr.bf16.mxu0 0
  %302 = vmatmul.mubr.bf16.gmra.mxu0 %v140
  %v303 = vpop.f32.mrf.mxu0
  %v304 = vadd.f32 %v118, %v303
  %v305 = vpop.f32.mrf.mxu0
  %v306 = vpop.f32.mrf.mxu0
  %v307 = vadd.f32 %v118, %v306
  %v308 = vpop.f32.mrf.mxu0
  %309 = vmatprep.mubr.bf16.mxu0 0
  %310 = vmatmul.mubr.bf16.gmra.mxu0 %v143
  %v311 = vpop.f32.mrf.mxu0
  %v312 = vadd.f32 %v118, %v311
  %v313 = vpop.f32.mrf.mxu0
  %v314 = vpop.f32.mrf.mxu0
  %v315 = vadd.f32 %v118, %v314
  %v316 = vpop.f32.mrf.mxu0
  %317 = vmatprep.mubr.bf16.mxu0 0
  %318 = vmatmul.mubr.bf16.gmra.mxu0 %v146
  %v319 = vpop.f32.mrf.mxu0
  %v320 = vadd.f32 %v118, %v319
  %v321 = vpop.f32.mrf.mxu0
  %v322 = vpop.f32.mrf.mxu0
  %v323 = vadd.f32 %v118, %v322
  %v324 = vpop.f32.mrf.mxu0
  %325 = vmatprep.mubr.bf16.mxu0 0
  %326 = vmatmul.mubr.bf16.gmra.mxu0 %v149
  %v327 = vpop.f32.mrf.mxu0
  %v328 = vadd.f32 %v118, %v327
  %v329 = vpop.f32.mrf.mxu0
  %v330 = vpop.f32.mrf.mxu0
  %v331 = vadd.f32 %v118, %v330
  %v332 = vpop.f32.mrf.mxu0
  %333 = vmatprep.mubr.bf16.mxu0 0
  %334 = vmatmul.mubr.bf16.gmra.mxu0 %v152
  %v335 = vpop.f32.mrf.mxu0
  %v336 = vadd.f32 %v118, %v335
  %v337 = vpop.f32.mrf.mxu0
  %v338 = vpop.f32.mrf.mxu0
  %v339 = vadd.f32 %v118, %v338
  %v340 = vpop.f32.mrf.mxu0
  %341 = vmatprep.mubr.bf16.mxu0 0
  %342 = vmatmul.mubr.bf16.gmra.mxu0 %v155
  %v343 = vpop.f32.mrf.mxu0
  %v344 = vadd.f32 %v118, %v343
  %v345 = vpop.f32.mrf.mxu0
  %v346 = vpop.f32.mrf.mxu0
  %v347 = vadd.f32 %v118, %v346
  %v348 = vpop.f32.mrf.mxu0
  %349 = vmatprep.mubr.bf16.mxu0 0
  %350 = vmatmul.mubr.bf16.gmra.mxu0 %v158
  %v351 = vpop.f32.mrf.mxu0
  %v352 = vadd.f32 %v118, %v351
  %v353 = vpop.f32.mrf.mxu0
  %v354 = vpop.f32.mrf.mxu0
  %v355 = vadd.f32 %v118, %v354
  %v356 = vpop.f32.mrf.mxu0
  %357 = vmatprep.mubr.bf16.mxu0 0
  %358 = vmatmul.mubr.bf16.gmra.mxu0 %v161
  %v359 = vpop.f32.mrf.mxu0
  %v360 = vadd.f32 %v118, %v359
  %v361 = vpop.f32.mrf.mxu0
  %v362 = vpop.f32.mrf.mxu0
  %v363 = vadd.f32 %v118, %v362
  %v364 = vpop.f32.mrf.mxu0
  %365 = vmatprep.mubr.bf16.mxu0 0
  %366 = vmatmul.mubr.bf16.gmra.mxu0 %v164
  %v367 = vpop.f32.mrf.mxu0
  %v368 = vadd.f32 %v118, %v367
  %v369 = vpop.f32.mrf.mxu0
  %v370 = vpop.f32.mrf.mxu0
  %v371 = vadd.f32 %v118, %v370
  %v372 = vpop.f32.mrf.mxu0
  %373 = vmatprep.mubr.bf16.mxu0 0
  %374 = vmatmul.mubr.bf16.gmra.mxu0 %v167
  %v375 = vpop.f32.mrf.mxu0
  %v376 = vadd.f32 %v118, %v375
  %v377 = vpop.f32.mrf.mxu0
  %v378 = vpop.f32.mrf.mxu0
  %v379 = vadd.f32 %v118, %v378
  %v380 = vpop.f32.mrf.mxu0
  %381 = vmatprep.mubr.bf16.mxu0 0
  %382 = vmatmul.mubr.bf16.gmra.mxu0 %v170
  %v383 = vpop.f32.mrf.mxu0
  %v384 = vadd.f32 %v118, %v383
  %v385 = vpop.f32.mrf.mxu0
  %v386 = vpop.f32.mrf.mxu0
  %v387 = vadd.f32 %v118, %v386
  %v388 = vpop.f32.mrf.mxu0
  %389 = vmatprep.mubr.bf16.mxu0 0
  %390 = vmatmul.mubr.bf16.gmra.mxu0 %v173
  %v391 = vpop.f32.mrf.mxu0
  %v392 = vadd.f32 %v118, %v391
  %v393 = vpop.f32.mrf.mxu0
  %v394 = vpop.f32.mrf.mxu0
  %v395 = vadd.f32 %v118, %v394
  %v396 = vpop.f32.mrf.mxu0
  %397 = vmatprep.mubr.bf16.mxu0 0
  %398 = vmatmul.mubr.bf16.gmra.mxu0 %v176
  %v399 = vpop.f32.mrf.mxu0
  %v400 = vadd.f32 %v118, %v399
  %v401 = vpop.f32.mrf.mxu0
  %v402 = vpop.f32.mrf.mxu0
  %v403 = vadd.f32 %v118, %v402
  %v404 = vpop.f32.mrf.mxu0
  %405 = vmatprep.mubr.bf16.mxu0 0
  %406 = vmatmul.mubr.bf16.gmra.mxu0 %v179
  %v407 = vpop.f32.mrf.mxu0
  %v408 = vadd.f32 %v118, %v407
  %v409 = vpop.f32.mrf.mxu0
  %v410 = vpop.f32.mrf.mxu0
  %v411 = vadd.f32 %v118, %v410
  %v412 = vpop.f32.mrf.mxu0
  %413 = vmatprep.mubr.bf16.mxu0 0
  %414 = vmatmul.mubr.bf16.gmra.mxu0 %v182
  %v415 = vpop.f32.mrf.mxu0
  %v416 = vadd.f32 %v118, %v415
  %v417 = vpop.f32.mrf.mxu0
  %v418 = vpop.f32.mrf.mxu0
  %v419 = vadd.f32 %v118, %v418
  %v420 = vpop.f32.mrf.mxu0
  %421 = vmatprep.mubr.bf16.mxu0 0
  %422 = vmatmul.mubr.bf16.gmra.mxu0 %v185
  %v423 = vpop.f32.mrf.mxu0
  %v424 = vadd.f32 %v118, %v423
  %v425 = vpop.f32.mrf.mxu0
  %v426 = vpop.f32.mrf.mxu0
  %v427 = vadd.f32 %v118, %v426
  %v428 = vpop.f32.mrf.mxu0
  %429 = vmatprep.mubr.bf16.mxu0 0
  %430 = vmatmul.mubr.bf16.gmra.mxu0 %v188
  %v431 = vpop.f32.mrf.mxu0
  %v432 = vadd.f32 %v118, %v431
  %v433 = vpop.f32.mrf.mxu0
  %v434 = vpop.f32.mrf.mxu0
  %v435 = vadd.f32 %v118, %v434
  %v436 = vpop.f32.mrf.mxu0
  %437 = vmatprep.mubr.bf16.mxu0 0
  %438 = vmatmul.mubr.bf16.gmra.mxu0 %v191
  %v439 = vpop.f32.mrf.mxu0
  %v440 = vadd.f32 %v118, %v439
  %v441 = vpop.f32.mrf.mxu0
  %v442 = vpop.f32.mrf.mxu0
  %v443 = vadd.f32 %v118, %v442
  %v444 = vpop.f32.mrf.mxu0
  %445 = vmatprep.mubr.bf16.mxu0 0
  %446 = vmatmul.mubr.bf16.gmra.mxu0 %v194
  %v447 = vpop.f32.mrf.mxu0
  %v448 = vadd.f32 %v118, %v447
  %v449 = vpop.f32.mrf.mxu0
  %v450 = vpop.f32.mrf.mxu0
  %v451 = vadd.f32 %v118, %v450
  %v452 = vpop.f32.mrf.mxu0
  %453 = vmatprep.mubr.bf16.mxu0 0
  %454 = vmatmul.mubr.bf16.gmra.mxu0 %v197
  %v455 = vpop.f32.mrf.mxu0
  %v456 = vadd.f32 %v118, %v455
  %v457 = vpop.f32.mrf.mxu0
  %v458 = vpop.f32.mrf.mxu0
  %v459 = vadd.f32 %v118, %v458
  %v460 = vpop.f32.mrf.mxu0
  %461 = vmatprep.mubr.bf16.mxu0 0
  %462 = vmatmul.mubr.bf16.gmra.mxu0 %v200
  %v463 = vpop.f32.mrf.mxu0
  %v464 = vadd.f32 %v118, %v463
  %v465 = vpop.f32.mrf.mxu0
  %v466 = vpop.f32.mrf.mxu0
  %v467 = vadd.f32 %v118, %v466
  %v468 = vpop.f32.mrf.mxu0
  %469 = vmatprep.mubr.bf16.mxu0 0
  %470 = vmatmul.mubr.bf16.gmra.mxu0 %v203
  %v471 = vpop.f32.mrf.mxu0
  %v472 = vadd.f32 %v118, %v471
  %v473 = vpop.f32.mrf.mxu0
  %v474 = vpop.f32.mrf.mxu0
  %v475 = vadd.f32 %v118, %v474
  %v476 = vpop.f32.mrf.mxu0
  %477 = vmatprep.mubr.bf16.mxu0 0
  %478 = vmatmul.mubr.bf16.gmra.mxu0 %v206
  %v479 = vpop.f32.mrf.mxu0
  %v480 = vadd.f32 %v118, %v479
  %v481 = vpop.f32.mrf.mxu0
  %v482 = vpop.f32.mrf.mxu0
  %v483 = vadd.f32 %v118, %v482
  %v484 = vpop.f32.mrf.mxu0
  %485 = vmatprep.mubr.bf16.mxu0 0
  %486 = vmatmul.mubr.bf16.gmra.mxu0 %v209
  %v487 = vpop.f32.mrf.mxu0
  %v488 = vadd.f32 %v118, %v487
  %v489 = vpop.f32.mrf.mxu0
  %v490 = vpop.f32.mrf.mxu0
  %v491 = vadd.f32 %v118, %v490
  %v492 = vpop.f32.mrf.mxu0
  %493 = vmatprep.mubr.bf16.mxu0 0
  %494 = vmatmul.mubr.bf16.gmra.mxu0 %v212
  %v495 = vpop.f32.mrf.mxu0
  %v496 = vadd.f32 %v118, %v495
  %v497 = vpop.f32.mrf.mxu0
  %v498 = vpop.f32.mrf.mxu0
  %v499 = vadd.f32 %v118, %v498
  %v500 = vpop.f32.mrf.mxu0
  %501 = vmatprep.mubr.bf16.mxu0 0
  %502 = vmatmul.mubr.bf16.gmra.mxu0 %v215
  %v503 = vpop.f32.mrf.mxu0
  %v504 = vadd.f32 %v118, %v503
  %v505 = vpop.f32.mrf.mxu0
  %v506 = vpop.f32.mrf.mxu0
  %v507 = vadd.f32 %v118, %v506
  %v508 = vpop.f32.mrf.mxu0
  %509 = vdwg.mxu0
  %vm510 = vcmask 130048
  %511 = vst.msk [vmem:[%s3] sm:$0xff] %vm510, %v256
  %512 = vst.msk [vmem:[%s3 + $0x8] sm:$0xff] %vm510, %v259
  %513 = vst.msk [vmem:[%s3 + $0x10] sm:$0xff] %vm510, %v264
  %514 = vst.msk [vmem:[%s3 + $0x18] sm:$0xff] %vm510, %v267
  %515 = vst.msk [vmem:[%s3 + $0x20] sm:$0xff] %vm510, %v272
  %516 = vst.msk [vmem:[%s3 + $0x28] sm:$0xff] %vm510, %v275
  %517 = vst.msk [vmem:[%s3 + $0x30] sm:$0xff] %vm510, %v280
  %518 = vst.msk [vmem:[%s3 + $0x38] sm:$0xff] %vm510, %v283
  %519 = vst.msk [vmem:[%s3 + $0x40] sm:$0xff] %vm510, %v288
  %520 = vst.msk [vmem:[%s3 + $0x48] sm:$0xff] %vm510, %v291
  %521 = vst.msk [vmem:[%s3 + $0x50] sm:$0xff] %vm510, %v296
  %522 = vst.msk [vmem:[%s3 + $0x58] sm:$0xff] %vm510, %v299
  %523 = vst.msk [vmem:[%s3 + $0x60] sm:$0xff] %vm510, %v304
  %524 = vst.msk [vmem:[%s3 + $0x68] sm:$0xff] %vm510, %v307
  %525 = vst.msk [vmem:[%s3 + $0x70] sm:$0xff] %vm510, %v312
  %526 = vst.msk [vmem:[%s3 + $0x78] sm:$0xff] %vm510, %v315
  %527 = vst.msk [vmem:[%s3 + $0x80] sm:$0xff] %vm510, %v320
  %528 = vst.msk [vmem:[%s3 + $0x88] sm:$0xff] %vm510, %v323
  %529 = vst.msk [vmem:[%s3 + $0x90] sm:$0xff] %vm510, %v328
  %530 = vst.msk [vmem:[%s3 + $0x98] sm:$0xff] %vm510, %v331
  %531 = vst.msk [vmem:[%s3 + $0xa0] sm:$0xff] %vm510, %v336
  %532 = vst.msk [vmem:[%s3 + $0xa8] sm:$0xff] %vm510, %v339
  %533 = vst.msk [vmem:[%s3 + $0xb0] sm:$0xff] %vm510, %v344
  %534 = vst.msk [vmem:[%s3 + $0xb8] sm:$0xff] %vm510, %v347
  %535 = vst.msk [vmem:[%s3 + $0xc0] sm:$0xff] %vm510, %v352
  %536 = vst.msk [vmem:[%s3 + $0xc8] sm:$0xff] %vm510, %v355
  %537 = vst.msk [vmem:[%s3 + $0xd0] sm:$0xff] %vm510, %v360
  %538 = vst.msk [vmem:[%s3 + $0xd8] sm:$0xff] %vm510, %v363
  %539 = vst.msk [vmem:[%s3 + $0xe0] sm:$0xff] %vm510, %v368
  %540 = vst.msk [vmem:[%s3 + $0xe8] sm:$0xff] %vm510, %v371
  %541 = vst.msk [vmem:[%s3 + $0xf0] sm:$0xff] %vm510, %v376
  %542 = vst.msk [vmem:[%s3 + $0xf8] sm:$0xff] %vm510, %v379
  %543 = vst.msk [vmem:[%s3 + $0x100] sm:$0xff] %vm510, %v384
  %544 = vst.msk [vmem:[%s3 + $0x108] sm:$0xff] %vm510, %v387
  %545 = vst.msk [vmem:[%s3 + $0x110] sm:$0xff] %vm510, %v392
  %546 = vst.msk [vmem:[%s3 + $0x118] sm:$0xff] %vm510, %v395
  %547 = vst.msk [vmem:[%s3 + $0x120] sm:$0xff] %vm510, %v400
  %548 = vst.msk [vmem:[%s3 + $0x128] sm:$0xff] %vm510, %v403
  %549 = vst.msk [vmem:[%s3 + $0x130] sm:$0xff] %vm510, %v408
  %550 = vst.msk [vmem:[%s3 + $0x138] sm:$0xff] %vm510, %v411
  %551 = vst.msk [vmem:[%s3 + $0x140] sm:$0xff] %vm510, %v416
  %552 = vst.msk [vmem:[%s3 + $0x148] sm:$0xff] %vm510, %v419
  %553 = vst.msk [vmem:[%s3 + $0x150] sm:$0xff] %vm510, %v424
  %554 = vst.msk [vmem:[%s3 + $0x158] sm:$0xff] %vm510, %v427
  %555 = vst.msk [vmem:[%s3 + $0x160] sm:$0xff] %vm510, %v432
  %556 = vst.msk [vmem:[%s3 + $0x168] sm:$0xff] %vm510, %v435
  %557 = vst.msk [vmem:[%s3 + $0x170] sm:$0xff] %vm510, %v440
  %558 = vst.msk [vmem:[%s3 + $0x178] sm:$0xff] %vm510, %v443
  %559 = vst.msk [vmem:[%s3 + $0x180] sm:$0xff] %vm510, %v448
  %560 = vst.msk [vmem:[%s3 + $0x188] sm:$0xff] %vm510, %v451
  %561 = vst.msk [vmem:[%s3 + $0x190] sm:$0xff] %vm510, %v456
  %562 = vst.msk [vmem:[%s3 + $0x198] sm:$0xff] %vm510, %v459
  %563 = vst.msk [vmem:[%s3 + $0x1a0] sm:$0xff] %vm510, %v464
  %564 = vst.msk [vmem:[%s3 + $0x1a8] sm:$0xff] %vm510, %v467
  %565 = vst.msk [vmem:[%s3 + $0x1b0] sm:$0xff] %vm510, %v472
  %566 = vst.msk [vmem:[%s3 + $0x1b8] sm:$0xff] %vm510, %v475
  %567 = vst.msk [vmem:[%s3 + $0x1c0] sm:$0xff] %vm510, %v480
  %568 = vst.msk [vmem:[%s3 + $0x1c8] sm:$0xff] %vm510, %v483
  %569 = vst.msk [vmem:[%s3 + $0x1d0] sm:$0xff] %vm510, %v488
  %570 = vst.msk [vmem:[%s3 + $0x1d8] sm:$0xff] %vm510, %v491
  %571 = vst.msk [vmem:[%s3 + $0x1e0] sm:$0xff] %vm510, %v496
  %572 = vst.msk [vmem:[%s3 + $0x1e8] sm:$0xff] %vm510, %v499
  %573 = vst.msk [vmem:[%s3 + $0x1f0] sm:$0xff] %vm510, %v504
  %574 = vst.msk [vmem:[%s3 + $0x1f8] sm:$0xff] %vm510, %v507
  // Predicated region
  $region14: #{spectral_mamba_forward.4} parent=0 // pred_check
    _
  $region15: #{spectral_mamba_forward.4} parent=0 // pred_check_branch
    %576 = sbr.rel (0) target = $region17
  $region16: #{spectral_mamba_forward.4} parent=0 // pred_region
    _
  $region17: #{spectral_mamba_forward.4} parent=0 // pred_fallthru
    _
  // Predicated region
  $region18: #{spectral_mamba_forward.4} parent=0 // pred_check
    _
  $region19: #{spectral_mamba_forward.4} parent=0 // pred_check_branch
    %578 = sbr.rel (0) target = $region21
  $region20: #{spectral_mamba_forward.4} parent=0 // pred_region
    _
  $region21: #{spectral_mamba_forward.4} parent=0 // pred_fallthru
    _

// kernel: spectral_mamba_forward.5
$region0: #{spectral_mamba_forward.5}
  #allocation0 [shape = 'u32[]', space=smem, size = 0x4, offset = 0x4, fixed_abs, tag = 'smem constant byte address 0x4 - core index']
  #allocation1 [shape = 'u32[144,128]{1,0:T(1,128)}', space=vmem, size = 0x12000, scoped, tag = 'internal scratch']
  %s0 = inlined_call_operand.vmem [shape: f32[2,16,16,8], index: 0, kind: input, shape index: {}]
  %s1 = inlined_call_operand.vmem [shape: f32[9,8], index: 1, kind: input, shape index: {}]
  %s2 = inlined_call_operand.vmem [shape: f32[1,8], index: 2, kind: input, shape index: {}]
  %s3 = inlined_call_operand.vmem [shape: f32[2,16,16,8], index: 3, kind: output, shape index: {}]
  %s4 = sld [smem:[#allocation0]]
  $region45: #{spectral_mamba_forward.5} parent=0
    _
  %s6 = ssub.s32 1, %s4
  %s7 = scalar_select 0, %s6, %s4
  loop: start=0, step=1, limit=4
  $region2: #{spectral_mamba_forward.5} parent=0 // loop_pre_header
    _
  $region3: #{spectral_mamba_forward.5} parent=0 // loop_header
    %s9 = sphi 0, %s13
    %p10 = scmp.ge.s32.totalorder %s9, 4
    %s19 = sphi 0, %s21
    %s22 = sphi 0, %s19
    %s23 = sphi 0, %s22
    %s39 = sphi 0, %s23
    %s43 = sphi 0, %s43
    %s45 = sphi 0, %s43
    %s46 = sphi 0, %s45
    %s60 = sphi 0, %s46
    %s64 = sphi 0, %s64
    %s66 = sphi 0, %s64
    %s67 = sphi 0, %s66
    %s81 = sphi 0, %s67
    %s87 = sphi 0, %s89
    %s90 = sphi 0, %s87
    %s91 = sphi 0, %s90
    %s107 = sphi 0, %s91
  $region4: #{spectral_mamba_forward.5} parent=0 // loop_header_branch
    %12 = sbr.rel (%p10) target = $region8
  $region5: #{spectral_mamba_forward.5} parent=0 // loop_body
    %s14 = ssub.s32 %s9, 1
    %s15 = ssub.s32 %s9, 2
    %s16 = sadd.s32 %s9, 1
    %s17 = ssub.s32 %s9, %s16
    %p18 = scmp.eq.s32.totalorder %s17, 0
    %s20 = sadd.s32 %s19, 1
    %s21 = scalar_select %p18, %s19, %s20
    %p24 = pneg %p18
    %p25 = scmp.eq.s32.totalorder %s9, 1
    %p26 = por %p24, %p25
    %p27 = scmp.ne.s32.totalorder %s19, %s22
    %p28 = scmp.eq.s32.totalorder %s9, 0
    %p29 = por %p27, %p28
    %p30 = scmp.ne.s32.totalorder %s19, %s22
    %p31 = scmp.eq.s32.totalorder %s14, 1
    %p32 = por %p30, %p31
    %p33 = scmp.ne.s32.totalorder %s22, %s23
    %p34 = scmp.eq.s32.totalorder %s14, 0
    %p35 = por %p33, %p34
    %p36 = scmp.ne.s32.totalorder %s22, %s23
    %p37 = scmp.eq.s32.totalorder %s15, 1
    %p38 = por %p36, %p37
    %p40 = scmp.ne.s32.totalorder %s23, %s39
    %p41 = scmp.eq.s32.totalorder %s15, 0
    %p42 = por %p40, %p41
    %s44 = sadd.s32 %s43, 1
    %p47 = scmp.eq.s32.totalorder %s9, 1
    %p48 = scmp.ne.s32.totalorder %s43, %s45
    %p49 = scmp.eq.s32.totalorder %s9, 0
    %p50 = por %p48, %p49
    %p51 = scmp.ne.s32.totalorder %s43, %s45
    %p52 = scmp.eq.s32.totalorder %s14, 1
    %p53 = por %p51, %p52
    %p54 = scmp.ne.s32.totalorder %s45, %s46
    %p55 = scmp.eq.s32.totalorder %s14, 0
    %p56 = por %p54, %p55
    %p57 = scmp.ne.s32.totalorder %s45, %s46
    %p58 = scmp.eq.s32.totalorder %s15, 1
    %p59 = por %p57, %p58
    %p61 = scmp.ne.s32.totalorder %s46, %s60
    %p62 = scmp.eq.s32.totalorder %s15, 0
    %p63 = por %p61, %p62
    %s65 = sadd.s32 %s64, 1
    %p68 = scmp.eq.s32.totalorder %s9, 1
    %p69 = scmp.ne.s32.totalorder %s64, %s66
    %p70 = scmp.eq.s32.totalorder %s9, 0
    %p71 = por %p69, %p70
    %p72 = scmp.ne.s32.totalorder %s64, %s66
    %p73 = scmp.eq.s32.totalorder %s14, 1
    %p74 = por %p72, %p73
    %p75 = scmp.ne.s32.totalorder %s66, %s67
    %p76 = scmp.eq.s32.totalorder %s14, 0
    %p77 = por %p75, %p76
    %p78 = scmp.ne.s32.totalorder %s66, %s67
    %p79 = scmp.eq.s32.totalorder %s15, 1
    %p80 = por %p78, %p79
    %p82 = scmp.ne.s32.totalorder %s67, %s81
    %p83 = scmp.eq.s32.totalorder %s15, 0
    %p84 = por %p82, %p83
    %s85 = ssub.s32 %s9, %s16
    %p86 = scmp.eq.s32.totalorder %s85, 0
    %s88 = sadd.s32 %s87, 1
    %s89 = scalar_select %p86, %s87, %s88
    %p92 = pneg %p86
    %p93 = scmp.eq.s32.totalorder %s9, 1
    %p94 = por %p92, %p93
    %p95 = scmp.ne.s32.totalorder %s87, %s90
    %p96 = scmp.eq.s32.totalorder %s9, 0
    %p97 = por %p95, %p96
    %p98 = scmp.ne.s32.totalorder %s87, %s90
    %p99 = scmp.eq.s32.totalorder %s14, 1
    %p100 = por %p98, %p99
    %p101 = scmp.ne.s32.totalorder %s90, %s91
    %p102 = scmp.eq.s32.totalorder %s14, 0
    %p103 = por %p101, %p102
    %p104 = scmp.ne.s32.totalorder %s90, %s91
    %p105 = scmp.eq.s32.totalorder %s15, 1
    %p106 = por %p104, %p105
    %p108 = scmp.ne.s32.totalorder %s91, %s107
    %p109 = scmp.eq.s32.totalorder %s15, 0
    %p110 = por %p108, %p109
    %p111 = scmp.le.s32.totalorder 1, %s9
    %p112 = scmp.lt.s32.totalorder %s9, 3
    %p113 = pnand %p111, %p112
    %p114 = pneg %p113
    // Predicated region
    $region9: #{spectral_mamba_forward.5} parent=5 // pred_check
      _
    $region10: #{spectral_mamba_forward.5} parent=5 // pred_check_branch
      %116 = sbr.rel (%p113) target = $region12
    $region11: #{spectral_mamba_forward.5} parent=5 // pred_region
      %s117 = ssub.s32 %s9, 1
      // Predicated region
      $region13: #{spectral_mamba_forward.5} parent=11 // pred_check
        %p118 = pneg %p56
      $region14: #{spectral_mamba_forward.5} parent=11 // pred_check_branch
        %120 = sbr.rel (%p118) target = $region16
      $region15: #{spectral_mamba_forward.5} parent=11 // pred_region
        _
      $region16: #{spectral_mamba_forward.5} parent=11 // pred_fallthru
        _
      // Predicated region
      $region17: #{spectral_mamba_forward.5} parent=11 // pred_check
        %p121 = pneg %p77
      $region18: #{spectral_mamba_forward.5} parent=11 // pred_check_branch
        %123 = sbr.rel (%p121) target = $region20
      $region19: #{spectral_mamba_forward.5} parent=11 // pred_region
        _
      $region20: #{spectral_mamba_forward.5} parent=11 // pred_fallthru
        _
    $region12: #{spectral_mamba_forward.5} parent=5 // pred_fallthru
      _
    %p124 = scmp.lt.s32.totalorder %s9, 2
    // Predicated region
    $region21: #{spectral_mamba_forward.5} parent=5 // pred_check
      %p125 = pneg %p124
    $region22: #{spectral_mamba_forward.5} parent=5 // pred_check_branch
      %127 = sbr.rel (%p125) target = $region24
    $region23: #{spectral_mamba_forward.5} parent=5 // pred_region
      // Predicated region
      $region25: #{spectral_mamba_forward.5} parent=23 // pred_check
        %p128 = pneg %p29
      $region26: #{spectral_mamba_forward.5} parent=23 // pred_check_branch
        %130 = sbr.rel (%p128) target = $region28
      $region27: #{spectral_mamba_forward.5} parent=23 // pred_region
        %p131 = scmp.lt.s32.totalorder %s9, 1
        %s132 = scalar_select %p131, %s9, 1
        %s133 = smul.addr %s132, 32
        %s134 = smul.addr %s133, 8
        %s135 = scalar_lea.vmem %s0, %s134
      $region28: #{spectral_mamba_forward.5} parent=23 // pred_fallthru
        _
    $region24: #{spectral_mamba_forward.5} parent=5 // pred_fallthru
      _
    %p136 = scmp.le.s32.totalorder 1, %s9
    %p137 = scmp.lt.s32.totalorder %s9, 3
    %p138 = pnand %p136, %p137
    %p139 = pneg %p138
    // Predicated region
    $region29: #{spectral_mamba_forward.5} parent=5 // pred_check
      _
    $region30: #{spectral_mamba_forward.5} parent=5 // pred_check_branch
      %141 = sbr.rel (%p138) target = $region32
    $region31: #{spectral_mamba_forward.5} parent=5 // pred_region
      %s142 = ssub.s32 %s9, 1
      %p143 = scmp.lt.s32.totalorder %s14, 1
      %s144 = scalar_select %p143, %s14, 1
      %s145 = smul.addr %s144, 32
      %s146 = smul.addr %s145, 8
      %s147 = scalar_lea.vmem %s0, %s146
      %p148 = pneg %p35
      %p149 = pneg %p32
      %p150 = pneg %p56
      %p151 = pneg %p53
      %p152 = pneg %p77
      %p153 = pneg %p74
      %p154 = pneg %p103
      %p155 = pneg %p100
      %p156 = scmp.lt.s32.totalorder %s14, 1
      %s157 = scalar_select %p156, %s14, 1
      %s158 = smul.addr %s157, 32
      %s159 = smul.addr %s158, 8
      %s160 = scalar_lea.vmem %s3, %s159
      %p161 = scmp.lt.s32.totalorder %s14, 1
      %s162 = scalar_select %p161, %s14, 1
      %s163 = smul.addr %s162, 32
      %s164 = smul.addr %s163, 8
      %s165 = scalar_lea.vmem %s0, %s164
      %p166 = scmp.lt.s32.totalorder %s14, 1
      %s167 = scalar_select %p166, %s14, 1
      %s168 = smul.addr %s167, 32
      %s169 = smul.addr %s168, 8
      %s170 = scalar_lea.vmem %s3, %s169
      %v171 = vld [vmem:[%s165] sm:$0xff]
      %v172 = vld [vmem:[%s165 + $0x8] sm:$0xff]
      %v173 = vld [vmem:[%s165 + $0x10] sm:$0xff]
      %v174 = vld [vmem:[%s165 + $0x18] sm:$0xff]
      %v175 = vld [vmem:[%s165 + $0x20] sm:$0xff]
      %v176 = vld [vmem:[%s165 + $0x28] sm:$0xff]
      %v177 = vld [vmem:[%s165 + $0x30] sm:$0xff]
      %v178 = vld [vmem:[%s165 + $0x38] sm:$0xff]
      %v179 = vld [vmem:[%s165 + $0x40] sm:$0xff]
      %v180 = vld [vmem:[%s165 + $0x48] sm:$0xff]
      %v181 = vld [vmem:[%s165 + $0x50] sm:$0xff]
      %v182 = vld [vmem:[%s165 + $0x58] sm:$0xff]
      %v183 = vld [vmem:[%s165 + $0x60] sm:$0xff]
      %v184 = vld [vmem:[%s165 + $0x68] sm:$0xff]
      %v185 = vld [vmem:[%s165 + $0x70] sm:$0xff]
      %v186 = vld [vmem:[%s165 + $0x78] sm:$0xff]
      %v187 = vld [vmem:[%s165 + $0x80] sm:$0xff]
      %v188 = vld [vmem:[%s165 + $0x88] sm:$0xff]
      %v189 = vld [vmem:[%s165 + $0x90] sm:$0xff]
      %v190 = vld [vmem:[%s165 + $0x98] sm:$0xff]
      %v191 = vld [vmem:[%s165 + $0xa0] sm:$0xff]
      %v192 = vld [vmem:[%s165 + $0xa8] sm:$0xff]
      %v193 = vld [vmem:[%s165 + $0xb0] sm:$0xff]
      %v194 = vld [vmem:[%s165 + $0xb8] sm:$0xff]
      %v195 = vld [vmem:[%s165 + $0xc0] sm:$0xff]
      %v196 = vld [vmem:[%s165 + $0xc8] sm:$0xff]
      %v197 = vld [vmem:[%s165 + $0xd0] sm:$0xff]
      %v198 = vld [vmem:[%s165 + $0xd8] sm:$0xff]
      %v199 = vld [vmem:[%s165 + $0xe0] sm:$0xff]
      %v200 = vld [vmem:[%s165 + $0xe8] sm:$0xff]
      %v201 = vld [vmem:[%s165 + $0xf0] sm:$0xff]
      %v202 = vld [vmem:[%s165 + $0xf8] sm:$0xff]
      %v203 = vld [vmem:[%s1] sm:$0xff]
      %v204 = vld [vmem:[%s1 + $0x8] sm:$0x1]
      %v205 = vlaneseq
      %v206 = vshrl.u32 %v205, 7
      %v207 = vadd.s32 %v206, 8
      %vm208 = vcmp.lt.s32.totalorder %v206, 15
      %vm209 = vcmp.lt.s32.totalorder %v207, 15
      %v210 = vrot.slane %v171, 1
      %v211 = vrot.slane %v173, 1
      %v212 = vrot.slane %v175, 1
      %v213 = vrot.slane %v177, 1
      %v214 = vrot.slane %v179, 1
      %v215 = vrot.slane %v181, 1
      %v216 = vrot.slane %v183, 1
      %v217 = vrot.slane %v185, 1
      %v218 = vrot.slane %v187, 1
      %v219 = vrot.slane %v189, 1
      %v220 = vrot.slane %v191, 1
      %v221 = vrot.slane %v193, 1
      %v222 = vrot.slane %v195, 1
      %v223 = vrot.slane %v197, 1
      %v224 = vrot.slane %v199, 1
      %v225 = vrot.slane %v201, 1
      %v226 = vrot.slane %v172, 1
      %v227 = vrot.slane %v174, 1
      %v228 = vrot.slane %v176, 1
      %v229 = vrot.slane %v178, 1
      %v230 = vrot.slane %v180, 1
      %v231 = vrot.slane %v182, 1
      %v232 = vrot.slane %v184, 1
      %v233 = vrot.slane %v186, 1
      %v234 = vrot.slane %v188, 1
      %v235 = vrot.slane %v190, 1
      %v236 = vrot.slane %v192, 1
      %v237 = vrot.slane %v194, 1
      %v238 = vrot.slane %v196, 1
      %v239 = vrot.slane %v198, 1
      %v240 = vrot.slane %v200, 1
      %v241 = vrot.slane %v202, 1
      %vm242 = vcmp.lt.s32.totalorder %v206, 7
      %v243 = vsel %vm242, %v210, %v226
      %v244 = vsel %vm242, %v211, %v227
      %v245 = vsel %vm242, %v212, %v228
      %v246 = vsel %vm242, %v213, %v229
      %v247 = vsel %vm242, %v214, %v230
      %v248 = vsel %vm242, %v215, %v231
      %v249 = vsel %vm242, %v216, %v232
      %v250 = vsel %vm242, %v217, %v233
      %v251 = vsel %vm242, %v218, %v234
      %v252 = vsel %vm242, %v219, %v235
      %v253 = vsel %vm242, %v220, %v236
      %v254 = vsel %vm242, %v221, %v237
      %v255 = vsel %vm242, %v222, %v238
      %v256 = vsel %vm242, %v223, %v239
      %v257 = vsel %vm242, %v224, %v240
      %v258 = vsel %vm242, %v225, %v241
      %v259 = vsel %vm242, %v226, %v210
      %v260 = vsel %vm242, %v227, %v211
      %v261 = vsel %vm242, %v228, %v212
      %v262 = vsel %vm242, %v229, %v213
      %v263 = vsel %vm242, %v230, %v214
      %v264 = vsel %vm242, %v231, %v215
      %v265 = vsel %vm242, %v232, %v216
      %v266 = vsel %vm242, %v233, %v217
      %v267 = vsel %vm242, %v234, %v218
      %v268 = vsel %vm242, %v235, %v219
      %v269 = vsel %vm242, %v236, %v220
      %v270 = vsel %vm242, %v237, %v221
      %v271 = vsel %vm242, %v238, %v222
      %v272 = vsel %vm242, %v239, %v223
      %v273 = vsel %vm242, %v240, %v224
      %v274 = vsel %vm242, %v241, %v225
      %v275 = vsel %vm208, %v243, 0.0
      %v276 = vsel %vm209, %v259, 0.0
      %v277 = vsel %vm208, %v244, 0.0
      %v278 = vsel %vm209, %v260, 0.0
      %v279 = vsel %vm208, %v245, 0.0
      %v280 = vsel %vm209, %v261, 0.0
      %v281 = vsel %vm208, %v246, 0.0
      %v282 = vsel %vm209, %v262, 0.0
      %v283 = vsel %vm208, %v247, 0.0
      %v284 = vsel %vm209, %v263, 0.0
      %v285 = vsel %vm208, %v248, 0.0
      %v286 = vsel %vm209, %v264, 0.0
      %v287 = vsel %vm208, %v249, 0.0
      %v288 = vsel %vm209, %v265, 0.0
      %v289 = vsel %vm208, %v250, 0.0
      %v290 = vsel %vm209, %v266, 0.0
      %v291 = vsel %vm208, %v251, 0.0
      %v292 = vsel %vm209, %v267, 0.0
      %v293 = vsel %vm208, %v252, 0.0
      %v294 = vsel %vm209, %v268, 0.0
      %v295 = vsel %vm208, %v253, 0.0
      %v296 = vsel %vm209, %v269, 0.0
      %v297 = vsel %vm208, %v254, 0.0
      %v298 = vsel %vm209, %v270, 0.0
      %v299 = vsel %vm208, %v255, 0.0
      %v300 = vsel %vm209, %v271, 0.0
      %v301 = vsel %vm208, %v256, 0.0
      %v302 = vsel %vm209, %v272, 0.0
      %v303 = vsel %vm208, %v257, 0.0
      %v304 = vsel %vm209, %v273, 0.0
      %v305 = vsel %vm208, %v258, 0.0
      %v306 = vsel %vm209, %v274, 0.0
      %vm307 = vcmp.ge.s32.totalorder %v206, 1
      %vm308 = vcmp.ge.s32.totalorder %v207, 1
      %v309 = vrot.slane %v171, 7
      %v310 = vrot.slane %v173, 7
      %v311 = vrot.slane %v175, 7
      %v312 = vrot.slane %v177, 7
      %v313 = vrot.slane %v179, 7
      %v314 = vrot.slane %v181, 7
      %v315 = vrot.slane %v183, 7
      %v316 = vrot.slane %v185, 7
      %v317 = vrot.slane %v187, 7
      %v318 = vrot.slane %v189, 7
      %v319 = vrot.slane %v191, 7
      %v320 = vrot.slane %v193, 7
      %v321 = vrot.slane %v195, 7
      %v322 = vrot.slane %v197, 7
      %v323 = vrot.slane %v199, 7
      %v324 = vrot.slane %v201, 7
      %v325 = vrot.slane %v172, 7
      %v326 = vrot.slane %v174, 7
      %v327 = vrot.slane %v176, 7
      %v328 = vrot.slane %v178, 7
      %v329 = vrot.slane %v180, 7
      %v330 = vrot.slane %v182, 7
      %v331 = vrot.slane %v184, 7
      %v332 = vrot.slane %v186, 7
      %v333 = vrot.slane %v188, 7
      %v334 = vrot.slane %v190, 7
      %v335 = vrot.slane %v192, 7
      %v336 = vrot.slane %v194, 7
      %v337 = vrot.slane %v196, 7
      %v338 = vrot.slane %v198, 7
      %v339 = vrot.slane %v200, 7
      %v340 = vrot.slane %v202, 7
      %vm341 = vcmp.lt.s32.totalorder %v206, 1
      %v342 = vsel %vm341, %v309, %v325
      %v343 = vsel %vm341, %v310, %v326
      %v344 = vsel %vm341, %v311, %v327
      %v345 = vsel %vm341, %v312, %v328
      %v346 = vsel %vm341, %v313, %v329
      %v347 = vsel %vm341, %v314, %v330
      %v348 = vsel %vm341, %v315, %v331
      %v349 = vsel %vm341, %v316, %v332
      %v350 = vsel %vm341, %v317, %v333
      %v351 = vsel %vm341, %v318, %v334
      %v352 = vsel %vm341, %v319, %v335
      %v353 = vsel %vm341, %v320, %v336
      %v354 = vsel %vm341, %v321, %v337
      %v355 = vsel %vm341, %v322, %v338
      %v356 = vsel %vm341, %v323, %v339
      %v357 = vsel %vm341, %v324, %v340
      %v358 = vsel %vm341, %v325, %v309
      %v359 = vsel %vm341, %v326, %v310
      %v360 = vsel %vm341, %v327, %v311
      %v361 = vsel %vm341, %v328, %v312
      %v362 = vsel %vm341, %v329, %v313
      %v363 = vsel %vm341, %v330, %v314
      %v364 = vsel %vm341, %v331, %v315
      %v365 = vsel %vm341, %v332, %v316
      %v366 = vsel %vm341, %v333, %v317
      %v367 = vsel %vm341, %v334, %v318
      %v368 = vsel %vm341, %v335, %v319
      %v369 = vsel %vm341, %v336, %v320
      %v370 = vsel %vm341, %v337, %v321
      %v371 = vsel %vm341, %v338, %v322
      %v372 = vsel %vm341, %v339, %v323
      %v373 = vsel %vm341, %v340, %v324
      %v374 = vsel %vm307, %v358, 0.0
      %v375 = vsel %vm308, %v342, 0.0
      %v376 = vsel %vm307, %v359, 0.0
      %v377 = vsel %vm308, %v343, 0.0
      %v378 = vsel %vm307, %v360, 0.0
      %v379 = vsel %vm308, %v344, 0.0
      %v380 = vsel %vm307, %v361, 0.0
      %v381 = vsel %vm308, %v345, 0.0
      %v382 = vsel %vm307, %v362, 0.0
      %v383 = vsel %vm308, %v346, 0.0
      %v384 = vsel %vm307, %v363, 0.0
      %v385 = vsel %vm308, %v347, 0.0
      %v386 = vsel %vm307, %v364, 0.0
      %v387 = vsel %vm308, %v348, 0.0
      %v388 = vsel %vm307, %v365, 0.0
      %v389 = vsel %vm308, %v349, 0.0
      %v390 = vsel %vm307, %v366, 0.0
      %v391 = vsel %vm308, %v350, 0.0
      %v392 = vsel %vm307, %v367, 0.0
      %v393 = vsel %vm308, %v351, 0.0
      %v394 = vsel %vm307, %v368, 0.0
      %v395 = vsel %vm308, %v352, 0.0
      %v396 = vsel %vm307, %v369, 0.0
      %v397 = vsel %vm308, %v353, 0.0
      %v398 = vsel %vm307, %v370, 0.0
      %v399 = vsel %vm308, %v354, 0.0
      %v400 = vsel %vm307, %v371, 0.0
      %v401 = vsel %vm308, %v355, 0.0
      %v402 = vsel %vm307, %v372, 0.0
      %v403 = vsel %vm308, %v356, 0.0
      %v404 = vsel %vm307, %v373, 0.0
      %v405 = vsel %vm308, %v357, 0.0
      %v406 = vlaneseq
      %v407 = vshrl.u32 %v406, 7
      %v408 = vsub.s32 0, %v407
      %v409 = vrot.slane %v203, %v408
      %v410 = vmul.f32 %v409, 0.0
      %v411 = vmul.f32 %v374, %v409
      %v412 = vmul.f32 %v375, %v409
      %v413 = vmul.f32 %v376, %v409
      %v414 = vmul.f32 %v377, %v409
      %v415 = vmul.f32 %v378, %v409
      %v416 = vmul.f32 %v379, %v409
      %v417 = vmul.f32 %v380, %v409
      %v418 = vmul.f32 %v381, %v409
      %v419 = vmul.f32 %v382, %v409
      %v420 = vmul.f32 %v383, %v409
      %v421 = vmul.f32 %v384, %v409
      %v422 = vmul.f32 %v385, %v409
      %v423 = vmul.f32 %v386, %v409
      %v424 = vmul.f32 %v387, %v409
      %v425 = vmul.f32 %v388, %v409
      %v426 = vmul.f32 %v389, %v409
      %v427 = vmul.f32 %v390, %v409
      %v428 = vmul.f32 %v391, %v409
      %v429 = vmul.f32 %v392, %v409
      %v430 = vmul.f32 %v393, %v409
      %v431 = vmul.f32 %v394, %v409
      %v432 = vmul.f32 %v395, %v409
      %v433 = vmul.f32 %v396, %v409
      %v434 = vmul.f32 %v397, %v409
      %v435 = vmul.f32 %v398, %v409
      %v436 = vmul.f32 %v399, %v409
      %v437 = vmul.f32 %v400, %v409
      %v438 = vmul.f32 %v401, %v409
      %v439 = vmul.f32 %v402, %v409
      %v440 = vmul.f32 %v403, %v409
      %v441 = vadd.f32 %v410, 0.0
      %v442 = vadd.f32 %v411, 0.0
      %v443 = vadd.f32 %v412, 0.0
      %v444 = vadd.f32 %v413, 0.0
      %v445 = vadd.f32 %v414, 0.0
      %v446 = vadd.f32 %v415, 0.0
      %v447 = vadd.f32 %v416, 0.0
      %v448 = vadd.f32 %v417, 0.0
      %v449 = vadd.f32 %v418, 0.0
      %v450 = vadd.f32 %v419, 0.0
      %v451 = vadd.f32 %v420, 0.0
      %v452 = vadd.f32 %v421, 0.0
      %v453 = vadd.f32 %v422, 0.0
      %v454 = vadd.f32 %v423, 0.0
      %v455 = vadd.f32 %v424, 0.0
      %v456 = vadd.f32 %v425, 0.0
      %v457 = vadd.f32 %v426, 0.0
      %v458 = vadd.f32 %v427, 0.0
      %v459 = vadd.f32 %v428, 0.0
      %v460 = vadd.f32 %v429, 0.0
      %v461 = vadd.f32 %v430, 0.0
      %v462 = vadd.f32 %v431, 0.0
      %v463 = vadd.f32 %v432, 0.0
      %v464 = vadd.f32 %v433, 0.0
      %v465 = vadd.f32 %v434, 0.0
      %v466 = vadd.f32 %v435, 0.0
      %v467 = vadd.f32 %v436, 0.0
      %v468 = vadd.f32 %v437, 0.0
      %v469 = vadd.f32 %v438, 0.0
      %v470 = vadd.f32 %v439, 0.0
      %v471 = vadd.f32 %v440, 0.0
      %v472 = vlaneseq
      %v473 = vshrl.u32 %v472, 7
      %v474 = vsub.s32 1, %v473
      %v475 = vrot.slane %v203, %v474
      %v476 = vmul.f32 %v475, 0.0
      %v477 = vmul.f32 %v171, %v475
      %v478 = vmul.f32 %v172, %v475
      %v479 = vmul.f32 %v173, %v475
      %v480 = vmul.f32 %v174, %v475
      %v481 = vmul.f32 %v175, %v475
      %v482 = vmul.f32 %v176, %v475
      %v483 = vmul.f32 %v177, %v475
      %v484 = vmul.f32 %v178, %v475
      %v485 = vmul.f32 %v179, %v475
      %v486 = vmul.f32 %v180, %v475
      %v487 = vmul.f32 %v181, %v475
      %v488 = vmul.f32 %v182, %v475
      %v489 = vmul.f32 %v183, %v475
      %v490 = vmul.f32 %v184, %v475
      %v491 = vmul.f32 %v185, %v475
      %v492 = vmul.f32 %v186, %v475
      %v493 = vmul.f32 %v187, %v475
      %v494 = vmul.f32 %v188, %v475
      %v495 = vmul.f32 %v189, %v475
      %v496 = vmul.f32 %v190, %v475
      %v497 = vmul.f32 %v191, %v475
      %v498 = vmul.f32 %v192, %v475
      %v499 = vmul.f32 %v193, %v475
      %v500 = vmul.f32 %v194, %v475
      %v501 = vmul.f32 %v195, %v475
      %v502 = vmul.f32 %v196, %v475
      %v503 = vmul.f32 %v197, %v475
      %v504 = vmul.f32 %v198, %v475
      %v505 = vmul.f32 %v199, %v475
      %v506 = vmul.f32 %v200, %v475
      %v507 = vadd.f32 %v441, %v476
      %v508 = vadd.f32 %v442, %v477
      %v509 = vadd.f32 %v443, %v478
      %v510 = vadd.f32 %v444, %v479
      %v511 = vadd.f32 %v445, %v480
      %v512 = vadd.f32 %v446, %v481
      %v513 = vadd.f32 %v447, %v482
      %v514 = vadd.f32 %v448, %v483
      %v515 = vadd.f32 %v449, %v484
      %v516 = vadd.f32 %v450, %v485
      %v517 = vadd.f32 %v451, %v486
      %v518 = vadd.f32 %v452, %v487
      %v519 = vadd.f32 %v453, %v488
      %v520 = vadd.f32 %v454, %v489
      %v521 = vadd.f32 %v455, %v490
      %v522 = vadd.f32 %v456, %v491
      %v523 = vadd.f32 %v457, %v492
      %v524 = vadd.f32 %v458, %v493
      %v525 = vadd.f32 %v459, %v494
      %v526 = vadd.f32 %v460, %v495
      %v527 = vadd.f32 %v461, %v496
      %v528 = vadd.f32 %v462, %v497
      %v529 = vadd.f32 %v463, %v498
      %v530 = vadd.f32 %v464, %v499
      %v531 = vadd.f32 %v465, %v500
      %v532 = vadd.f32 %v466, %v501
      %v533 = vadd.f32 %v467, %v502
      %v534 = vadd.f32 %v468, %v503
      %v535 = vadd.f32 %v469, %v504
      %v536 = vadd.f32 %v470, %v505
      %v537 = vadd.f32 %v471, %v506
      %v538 = vlaneseq
      %v539 = vshrl.u32 %v538, 7
      %v540 = vsub.s32 2, %v539
      %v541 = vrot.slane %v203, %v540
      %v542 = vmul.f32 %v541, 0.0
      %v543 = vmul.f32 %v275, %v541
      %v544 = vmul.f32 %v276, %v541
      %v545 = vmul.f32 %v277, %v541
      %v546 = vmul.f32 %v278, %v541
      %v547 = vmul.f32 %v279, %v541
      %v548 = vmul.f32 %v280, %v541
      %v549 = vmul.f32 %v281, %v541
      %v550 = vmul.f32 %v282, %v541
      %v551 = vmul.f32 %v283, %v541
      %v552 = vmul.f32 %v284, %v541
      %v553 = vmul.f32 %v285, %v541
      %v554 = vmul.f32 %v286, %v541
      %v555 = vmul.f32 %v287, %v541
      %v556 = vmul.f32 %v288, %v541
      %v557 = vmul.f32 %v289, %v541
      %v558 = vmul.f32 %v290, %v541
      %v559 = vmul.f32 %v291, %v541
      %v560 = vmul.f32 %v292, %v541
      %v561 = vmul.f32 %v293, %v541
      %v562 = vmul.f32 %v294, %v541
      %v563 = vmul.f32 %v295, %v541
      %v564 = vmul.f32 %v296, %v541
      %v565 = vmul.f32 %v297, %v541
      %v566 = vmul.f32 %v298, %v541
      %v567 = vmul.f32 %v299, %v541
      %v568 = vmul.f32 %v300, %v541
      %v569 = vmul.f32 %v301, %v541
      %v570 = vmul.f32 %v302, %v541
      %v571 = vmul.f32 %v303, %v541
      %v572 = vmul.f32 %v304, %v541
      %v573 = vadd.f32 %v507, %v542
      %v574 = vadd.f32 %v508, %v543
      %v575 = vadd.f32 %v509, %v544
      %v576 = vadd.f32 %v510, %v545
      %v577 = vadd.f32 %v511, %v546
      %v578 = vadd.f32 %v512, %v547
      %v579 = vadd.f32 %v513, %v548
      %v580 = vadd.f32 %v514, %v549
      %v581 = vadd.f32 %v515, %v550
      %v582 = vadd.f32 %v516, %v551
      %v583 = vadd.f32 %v517, %v552
      %v584 = vadd.f32 %v518, %v553
      %v585 = vadd.f32 %v519, %v554
      %v586 = vadd.f32 %v520, %v555
      %v587 = vadd.f32 %v521, %v556
      %v588 = vadd.f32 %v522, %v557
      %v589 = vadd.f32 %v523, %v558
      %v590 = vadd.f32 %v524, %v559
      %v591 = vadd.f32 %v525, %v560
      %v592 = vadd.f32 %v526, %v561
      %v593 = vadd.f32 %v527, %v562
      %v594 = vadd.f32 %v528, %v563
      %v595 = vadd.f32 %v529, %v564
      %v596 = vadd.f32 %v530, %v565
      %v597 = vadd.f32 %v531, %v566
      %v598 = vadd.f32 %v532, %v567
      %v599 = vadd.f32 %v533, %v568
      %v600 = vadd.f32 %v534, %v569
      %v601 = vadd.f32 %v535, %v570
      %v602 = vadd.f32 %v536, %v571
      %v603 = vadd.f32 %v537, %v572
      %v604 = vlaneseq
      %v605 = vshrl.u32 %v604, 7
      %v606 = vsub.s32 3, %v605
      %v607 = vrot.slane %v203, %v606
      %v608 = vmul.f32 %v374, %v607
      %v609 = vmul.f32 %v375, %v607
      %v610 = vmul.f32 %v376, %v607
      %v611 = vmul.f32 %v377, %v607
      %v612 = vmul.f32 %v378, %v607
      %v613 = vmul.f32 %v379, %v607
      %v614 = vmul.f32 %v380, %v607
      %v615 = vmul.f32 %v381, %v607
      %v616 = vmul.f32 %v382, %v607
      %v617 = vmul.f32 %v383, %v607
      %v618 = vmul.f32 %v384, %v607
      %v619 = vmul.f32 %v385, %v607
      %v620 = vmul.f32 %v386, %v607
      %v621 = vmul.f32 %v387, %v607
      %v622 = vmul.f32 %v388, %v607
      %v623 = vmul.f32 %v389, %v607
      %v624 = vmul.f32 %v390, %v607
      %v625 = vmul.f32 %v391, %v607
      %v626 = vmul.f32 %v392, %v607
      %v627 = vmul.f32 %v393, %v607
      %v628 = vmul.f32 %v394, %v607
      %v629 = vmul.f32 %v395, %v607
      %v630 = vmul.f32 %v396, %v607
      %v631 = vmul.f32 %v397, %v607
      %v632 = vmul.f32 %v398, %v607
      %v633 = vmul.f32 %v399, %v607
      %v634 = vmul.f32 %v400, %v607
      %v635 = vmul.f32 %v401, %v607
      %v636 = vmul.f32 %v402, %v607
      %v637 = vmul.f32 %v403, %v607
      %v638 = vmul.f32 %v404, %v607
      %v639 = vmul.f32 %v405, %v607
      %v640 = vadd.f32 %v573, %v608
      %v641 = vadd.f32 %v573, %v609
      %v642 = vadd.f32 %v574, %v610
      %v643 = vadd.f32 %v575, %v611
      %v644 = vadd.f32 %v576, %v612
      %v645 = vadd.f32 %v577, %v613
      %v646 = vadd.f32 %v578, %v614
      %v647 = vadd.f32 %v579, %v615
      %v648 = vadd.f32 %v580, %v616
      %v649 = vadd.f32 %v581, %v617
      %v650 = vadd.f32 %v582, %v618
      %v651 = vadd.f32 %v583, %v619
      %v652 = vadd.f32 %v584, %v620
      %v653 = vadd.f32 %v585, %v621
      %v654 = vadd.f32 %v586, %v622
      %v655 = vadd.f32 %v587, %v623
      %v656 = vadd.f32 %v588, %v624
      %v657 = vadd.f32 %v589, %v625
      %v658 = vadd.f32 %v590, %v626
      %v659 = vadd.f32 %v591, %v627
      %v660 = vadd.f32 %v592, %v628
      %v661 = vadd.f32 %v593, %v629
      %v662 = vadd.f32 %v594, %v630
      %v663 = vadd.f32 %v595, %v631
      %v664 = vadd.f32 %v596, %v632
      %v665 = vadd.f32 %v597, %v633
      %v666 = vadd.f32 %v598, %v634
      %v667 = vadd.f32 %v599, %v635
      %v668 = vadd.f32 %v600, %v636
      %v669 = vadd.f32 %v601, %v637
      %v670 = vadd.f32 %v602, %v638
      %v671 = vadd.f32 %v603, %v639
      %v672 = vlaneseq
      %v673 = vshrl.u32 %v672, 7
      %v674 = vsub.s32 4, %v673
      %v675 = vrot.slane %v203, %v674
      %v676 = vmul.f32 %v171, %v675
      %v677 = vmul.f32 %v172, %v675
      %v678 = vmul.f32 %v173, %v675
      %v679 = vmul.f32 %v174, %v675
      %v680 = vmul.f32 %v175, %v675
      %v681 = vmul.f32 %v176, %v675
      %v682 = vmul.f32 %v177, %v675
      %v683 = vmul.f32 %v178, %v675
      %v684 = vmul.f32 %v179, %v675
      %v685 = vmul.f32 %v180, %v675
      %v686 = vmul.f32 %v181, %v675
      %v687 = vmul.f32 %v182, %v675
      %v688 = vmul.f32 %v183, %v675
      %v689 = vmul.f32 %v184, %v675
      %v690 = vmul.f32 %v185, %v675
      %v691 = vmul.f32 %v186, %v675
      %v692 = vmul.f32 %v187, %v675
      %v693 = vmul.f32 %v188, %v675
      %v694 = vmul.f32 %v189, %v675
      %v695 = vmul.f32 %v190, %v675
      %v696 = vmul.f32 %v191, %v675
      %v697 = vmul.f32 %v192, %v675
      %v698 = vmul.f32 %v193, %v675
      %v699 = vmul.f32 %v194, %v675
      %v700 = vmul.f32 %v195, %v675
      %v701 = vmul.f32 %v196, %v675
      %v702 = vmul.f32 %v197, %v675
      %v703 = vmul.f32 %v198, %v675
      %v704 = vmul.f32 %v199, %v675
      %v705 = vmul.f32 %v200, %v675
      %v706 = vmul.f32 %v201, %v675
      %v707 = vmul.f32 %v202, %v675
      %v708 = vadd.f32 %v640, %v676
      %v709 = vadd.f32 %v641, %v677
      %v710 = vadd.f32 %v642, %v678
      %v711 = vadd.f32 %v643, %v679
      %v712 = vadd.f32 %v644, %v680
      %v713 = vadd.f32 %v645, %v681
      %v714 = vadd.f32 %v646, %v682
      %v715 = vadd.f32 %v647, %v683
      %v716 = vadd.f32 %v648, %v684
      %v717 = vadd.f32 %v649, %v685
      %v718 = vadd.f32 %v650, %v686
      %v719 = vadd.f32 %v651, %v687
      %v720 = vadd.f32 %v652, %v688
      %v721 = vadd.f32 %v653, %v689
      %v722 = vadd.f32 %v654, %v690
      %v723 = vadd.f32 %v655, %v691
      %v724 = vadd.f32 %v656, %v692
      %v725 = vadd.f32 %v657, %v693
      %v726 = vadd.f32 %v658, %v694
      %v727 = vadd.f32 %v659, %v695
      %v728 = vadd.f32 %v660, %v696
      %v729 = vadd.f32 %v661, %v697
      %v730 = vadd.f32 %v662, %v698
      %v731 = vadd.f32 %v663, %v699
      %v732 = vadd.f32 %v664, %v700
      %v733 = vadd.f32 %v665, %v701
      %v734 = vadd.f32 %v666, %v702
      %v735 = vadd.f32 %v667, %v703
      %v736 = vadd.f32 %v668, %v704
      %v737 = vadd.f32 %v669, %v705
      %v738 = vadd.f32 %v670, %v706
      %v739 = vadd.f32 %v671, %v707
      %v740 = vlaneseq
      %v741 = vshrl.u32 %v740, 7
      %v742 = vsub.s32 5, %v741
      %v743 = vrot.slane %v203, %v742
      %v744 = vmul.f32 %v275, %v743
      %v745 = vmul.f32 %v276, %v743
      %v746 = vmul.f32 %v277, %v743
      %v747 = vmul.f32 %v278, %v743
      %v748 = vmul.f32 %v279, %v743
      %v749 = vmul.f32 %v280, %v743
      %v750 = vmul.f32 %v281, %v743
      %v751 = vmul.f32 %v282, %v743
      %v752 = vmul.f32 %v283, %v743
      %v753 = vmul.f32 %v284, %v743
      %v754 = vmul.f32 %v285, %v743
      %v755 = vmul.f32 %v286, %v743
      %v756 = vmul.f32 %v287, %v743
      %v757 = vmul.f32 %v288, %v743
      %v758 = vmul.f32 %v289, %v743
      %v759 = vmul.f32 %v290, %v743
      %v760 = vmul.f32 %v291, %v743
      %v761 = vmul.f32 %v292, %v743
      %v762 = vmul.f32 %v293, %v743
      %v763 = vmul.f32 %v294, %v743
      %v764 = vmul.f32 %v295, %v743
      %v765 = vmul.f32 %v296, %v743
      %v766 = vmul.f32 %v297, %v743
      %v767 = vmul.f32 %v298, %v743
      %v768 = vmul.f32 %v299, %v743
      %v769 = vmul.f32 %v300, %v743
      %v770 = vmul.f32 %v301, %v743
      %v771 = vmul.f32 %v302, %v743
      %v772 = vmul.f32 %v303, %v743
      %v773 = vmul.f32 %v304, %v743
      %v774 = vmul.f32 %v305, %v743
      %v775 = vmul.f32 %v306, %v743
      %v776 = vadd.f32 %v708, %v744
      %v777 = vadd.f32 %v709, %v745
      %v778 = vadd.f32 %v710, %v746
      %v779 = vadd.f32 %v711, %v747
      %v780 = vadd.f32 %v712, %v748
      %v781 = vadd.f32 %v713, %v749
      %v782 = vadd.f32 %v714, %v750
      %v783 = vadd.f32 %v715, %v751
      %v784 = vadd.f32 %v716, %v752
      %v785 = vadd.f32 %v717, %v753
      %v786 = vadd.f32 %v718, %v754
      %v787 = vadd.f32 %v719, %v755
      %v788 = vadd.f32 %v720, %v756
      %v789 = vadd.f32 %v721, %v757
      %v790 = vadd.f32 %v722, %v758
      %v791 = vadd.f32 %v723, %v759
      %v792 = vadd.f32 %v724, %v760
      %v793 = vadd.f32 %v725, %v761
      %v794 = vadd.f32 %v726, %v762
      %v795 = vadd.f32 %v727, %v763
      %v796 = vadd.f32 %v728, %v764
      %v797 = vadd.f32 %v729, %v765
      %v798 = vadd.f32 %v730, %v766
      %v799 = vadd.f32 %v731, %v767
      %v800 = vadd.f32 %v732, %v768
      %v801 = vadd.f32 %v733, %v769
      %v802 = vadd.f32 %v734, %v770
      %v803 = vadd.f32 %v735, %v771
      %v804 = vadd.f32 %v736, %v772
      %v805 = vadd.f32 %v737, %v773
      %v806 = vadd.f32 %v738, %v774
      %v807 = vadd.f32 %v739, %v775
      %v808 = vlaneseq
      %v809 = vshrl.u32 %v808, 7
      %v810 = vsub.s32 6, %v809
      %v811 = vrot.slane %v203, %v810
      %v812 = vmul.f32 %v376, %v811
      %v813 = vmul.f32 %v377, %v811
      %v814 = vmul.f32 %v378, %v811
      %v815 = vmul.f32 %v379, %v811
      %v816 = vmul.f32 %v380, %v811
      %v817 = vmul.f32 %v381, %v811
      %v818 = vmul.f32 %v382, %v811
      %v819 = vmul.f32 %v383, %v811
      %v820 = vmul.f32 %v384, %v811
      %v821 = vmul.f32 %v385, %v811
      %v822 = vmul.f32 %v386, %v811
      %v823 = vmul.f32 %v387, %v811
      %v824 = vmul.f32 %v388, %v811
      %v825 = vmul.f32 %v389, %v811
      %v826 = vmul.f32 %v390, %v811
      %v827 = vmul.f32 %v391, %v811
      %v828 = vmul.f32 %v392, %v811
      %v829 = vmul.f32 %v393, %v811
      %v830 = vmul.f32 %v394, %v811
      %v831 = vmul.f32 %v395, %v811
      %v832 = vmul.f32 %v396, %v811
      %v833 = vmul.f32 %v397, %v811
      %v834 = vmul.f32 %v398, %v811
      %v835 = vmul.f32 %v399, %v811
      %v836 = vmul.f32 %v400, %v811
      %v837 = vmul.f32 %v401, %v811
      %v838 = vmul.f32 %v402, %v811
      %v839 = vmul.f32 %v403, %v811
      %v840 = vmul.f32 %v404, %v811
      %v841 = vmul.f32 %v405, %v811
      %v842 = vmul.f32 %v811, 0.0
      %v843 = vadd.f32 %v776, %v812
      %v844 = vadd.f32 %v777, %v813
      %v845 = vadd.f32 %v778, %v814
      %v846 = vadd.f32 %v779, %v815
      %v847 = vadd.f32 %v780, %v816
      %v848 = vadd.f32 %v781, %v817
      %v849 = vadd.f32 %v782, %v818
      %v850 = vadd.f32 %v783, %v819
      %v851 = vadd.f32 %v784, %v820
      %v852 = vadd.f32 %v785, %v821
      %v853 = vadd.f32 %v786, %v822
      %v854 = vadd.f32 %v787, %v823
      %v855 = vadd.f32 %v788, %v824
      %v856 = vadd.f32 %v789, %v825
      %v857 = vadd.f32 %v790, %v826
      %v858 = vadd.f32 %v791, %v827
      %v859 = vadd.f32 %v792, %v828
      %v860 = vadd.f32 %v793, %v829
      %v861 = vadd.f32 %v794, %v830
      %v862 = vadd.f32 %v795, %v831
      %v863 = vadd.f32 %v796, %v832
      %v864 = vadd.f32 %v797, %v833
      %v865 = vadd.f32 %v798, %v834
      %v866 = vadd.f32 %v799, %v835
      %v867 = vadd.f32 %v800, %v836
      %v868 = vadd.f32 %v801, %v837
      %v869 = vadd.f32 %v802, %v838
      %v870 = vadd.f32 %v803, %v839
      %v871 = vadd.f32 %v804, %v840
      %v872 = vadd.f32 %v805, %v841
      %v873 = vadd.f32 %v806, %v842
      %v874 = vadd.f32 %v807, %v842
      %v875 = vlaneseq
      %v876 = vshrl.u32 %v875, 7
      %v877 = vsub.s32 7, %v876
      %v878 = vrot.slane %v203, %v877
      %v879 = vmul.f32 %v173, %v878
      %v880 = vmul.f32 %v174, %v878
      %v881 = vmul.f32 %v175, %v878
      %v882 = vmul.f32 %v176, %v878
      %v883 = vmul.f32 %v177, %v878
      %v884 = vmul.f32 %v178, %v878
      %v885 = vmul.f32 %v179, %v878
      %v886 = vmul.f32 %v180, %v878
      %v887 = vmul.f32 %v181, %v878
      %v888 = vmul.f32 %v182, %v878
      %v889 = vmul.f32 %v183, %v878
      %v890 = vmul.f32 %v184, %v878
      %v891 = vmul.f32 %v185, %v878
      %v892 = vmul.f32 %v186, %v878
      %v893 = vmul.f32 %v187, %v878
      %v894 = vmul.f32 %v188, %v878
      %v895 = vmul.f32 %v189, %v878
      %v896 = vmul.f32 %v190, %v878
      %v897 = vmul.f32 %v191, %v878
      %v898 = vmul.f32 %v192, %v878
      %v899 = vmul.f32 %v193, %v878
      %v900 = vmul.f32 %v194, %v878
      %v901 = vmul.f32 %v195, %v878
      %v902 = vmul.f32 %v196, %v878
      %v903 = vmul.f32 %v197, %v878
      %v904 = vmul.f32 %v198, %v878
      %v905 = vmul.f32 %v199, %v878
      %v906 = vmul.f32 %v200, %v878
      %v907 = vmul.f32 %v201, %v878
      %v908 = vmul.f32 %v202, %v878
      %v909 = vmul.f32 %v878, 0.0
      %v910 = vadd.f32 %v843, %v879
      %v911 = vadd.f32 %v844, %v880
      %v912 = vadd.f32 %v845, %v881
      %v913 = vadd.f32 %v846, %v882
      %v914 = vadd.f32 %v847, %v883
      %v915 = vadd.f32 %v848, %v884
      %v916 = vadd.f32 %v849, %v885
      %v917 = vadd.f32 %v850, %v886
      %v918 = vadd.f32 %v851, %v887
      %v919 = vadd.f32 %v852, %v888
      %v920 = vadd.f32 %v853, %v889
      %v921 = vadd.f32 %v854, %v890
      %v922 = vadd.f32 %v855, %v891
      %v923 = vadd.f32 %v856, %v892
      %v924 = vadd.f32 %v857, %v893
      %v925 = vadd.f32 %v858, %v894
      %v926 = vadd.f32 %v859, %v895
      %v927 = vadd.f32 %v860, %v896
      %v928 = vadd.f32 %v861, %v897
      %v929 = vadd.f32 %v862, %v898
      %v930 = vadd.f32 %v863, %v899
      %v931 = vadd.f32 %v864, %v900
      %v932 = vadd.f32 %v865, %v901
      %v933 = vadd.f32 %v866, %v902
      %v934 = vadd.f32 %v867, %v903
      %v935 = vadd.f32 %v868, %v904
      %v936 = vadd.f32 %v869, %v905
      %v937 = vadd.f32 %v870, %v906
      %v938 = vadd.f32 %v871, %v907
      %v939 = vadd.f32 %v872, %v908
      %v940 = vadd.f32 %v873, %v909
      %v941 = vadd.f32 %v874, %v909
      %v942 = vlaneseq
      %v943 = vshrl.u32 %v942, 7
      %v944 = vsub.s32 0, %v943
      %v945 = vrot.slane %v204, %v944
      %v946 = vmul.f32 %v277, %v945
      %v947 = vmul.f32 %v278, %v945
      %v948 = vmul.f32 %v279, %v945
      %v949 = vmul.f32 %v280, %v945
      %v950 = vmul.f32 %v281, %v945
      %v951 = vmul.f32 %v282, %v945
      %v952 = vmul.f32 %v283, %v945
      %v953 = vmul.f32 %v284, %v945
      %v954 = vmul.f32 %v285, %v945
      %v955 = vmul.f32 %v286, %v945
      %v956 = vmul.f32 %v287, %v945
      %v957 = vmul.f32 %v288, %v945
      %v958 = vmul.f32 %v289, %v945
      %v959 = vmul.f32 %v290, %v945
      %v960 = vmul.f32 %v291, %v945
      %v961 = vmul.f32 %v292, %v945
      %v962 = vmul.f32 %v293, %v945
      %v963 = vmul.f32 %v294, %v945
      %v964 = vmul.f32 %v295, %v945
      %v965 = vmul.f32 %v296, %v945
      %v966 = vmul.f32 %v297, %v945
      %v967 = vmul.f32 %v298, %v945
      %v968 = vmul.f32 %v299, %v945
      %v969 = vmul.f32 %v300, %v945
      %v970 = vmul.f32 %v301, %v945
      %v971 = vmul.f32 %v302, %v945
      %v972 = vmul.f32 %v303, %v945
      %v973 = vmul.f32 %v304, %v945
      %v974 = vmul.f32 %v305, %v945
      %v975 = vmul.f32 %v306, %v945
      %v976 = vmul.f32 %v945, 0.0
      %v977 = vadd.f32 %v910, %v946
      %v978 = vadd.f32 %v911, %v947
      %v979 = vadd.f32 %v912, %v948
      %v980 = vadd.f32 %v913, %v949
      %v981 = vadd.f32 %v914, %v950
      %v982 = vadd.f32 %v915, %v951
      %v983 = vadd.f32 %v916, %v952
      %v984 = vadd.f32 %v917, %v953
      %v985 = vadd.f32 %v918, %v954
      %v986 = vadd.f32 %v919, %v955
      %v987 = vadd.f32 %v920, %v956
      %v988 = vadd.f32 %v921, %v957
      %v989 = vadd.f32 %v922, %v958
      %v990 = vadd.f32 %v923, %v959
      %v991 = vadd.f32 %v924, %v960
      %v992 = vadd.f32 %v925, %v961
      %v993 = vadd.f32 %v926, %v962
      %v994 = vadd.f32 %v927, %v963
      %v995 = vadd.f32 %v928, %v964
      %v996 = vadd.f32 %v929, %v965
      %v997 = vadd.f32 %v930, %v966
      %v998 = vadd.f32 %v931, %v967
      %v999 = vadd.f32 %v932, %v968
      %v1000 = vadd.f32 %v933, %v969
      %v1001 = vadd.f32 %v934, %v970
      %v1002 = vadd.f32 %v935, %v971
      %v1003 = vadd.f32 %v936, %v972
      %v1004 = vadd.f32 %v937, %v973
      %v1005 = vadd.f32 %v938, %v974
      %v1006 = vadd.f32 %v939, %v975
      %v1007 = vadd.f32 %v940, %v976
      %v1008 = vadd.f32 %v941, %v976
      %v1009 = vld [vmem:[%s2] sm:$0x1]
      %v1011 = vlaneseq
      %v1012 = vshrl.u32 %v1011, 7
      %v1013 = vsub.s32 0, %v1012
      %v1014 = vrot.slane %v1009, %v1013
      %v1016 = vadd.f32 %v977, %v1014
      %v1017 = vadd.f32 %v978, %v1014
      %v1018 = vadd.f32 %v979, %v1014
      %v1019 = vadd.f32 %v980, %v1014
      %v1020 = vadd.f32 %v981, %v1014
      %v1021 = vadd.f32 %v982, %v1014
      %v1022 = vadd.f32 %v983, %v1014
      %v1023 = vadd.f32 %v984, %v1014
      %v1024 = vadd.f32 %v985, %v1014
      %v1025 = vadd.f32 %v986, %v1014
      %v1026 = vadd.f32 %v987, %v1014
      %v1027 = vadd.f32 %v988, %v1014
      %v1028 = vadd.f32 %v989, %v1014
      %v1029 = vadd.f32 %v990, %v1014
      %v1030 = vadd.f32 %v991, %v1014
      %v1031 = vadd.f32 %v992, %v1014
      %v1032 = vadd.f32 %v993, %v1014
      %v1033 = vadd.f32 %v994, %v1014
      %v1034 = vadd.f32 %v995, %v1014
      %v1035 = vadd.f32 %v996, %v1014
      %v1036 = vadd.f32 %v997, %v1014
      %v1037 = vadd.f32 %v998, %v1014
      %v1038 = vadd.f32 %v999, %v1014
      %v1039 = vadd.f32 %v1000, %v1014
      %v1040 = vadd.f32 %v1001, %v1014
      %v1041 = vadd.f32 %v1002, %v1014
      %v1042 = vadd.f32 %v1003, %v1014
      %v1043 = vadd.f32 %v1004, %v1014
      %v1044 = vadd.f32 %v1005, %v1014
      %v1045 = vadd.f32 %v1006, %v1014
      %v1046 = vadd.f32 %v1007, %v1014
      %v1047 = vadd.f32 %v1008, %v1014
      %v1048 = vsub.f32 0.0, %v1016
      %v1049 = vsub.f32 0.0, %v1017
      %v1050 = vsub.f32 0.0, %v1018
      %v1051 = vsub.f32 0.0, %v1019
      %v1052 = vsub.f32 0.0, %v1020
      %v1053 = vsub.f32 0.0, %v1021
      %v1054 = vsub.f32 0.0, %v1022
      %v1055 = vsub.f32 0.0, %v1023
      %v1056 = vsub.f32 0.0, %v1024
      %v1057 = vsub.f32 0.0, %v1025
      %v1058 = vsub.f32 0.0, %v1026
      %v1059 = vsub.f32 0.0, %v1027
      %v1060 = vsub.f32 0.0, %v1028
      %v1061 = vsub.f32 0.0, %v1029
      %v1062 = vsub.f32 0.0, %v1030
      %v1063 = vsub.f32 0.0, %v1031
      %v1064 = vsub.f32 0.0, %v1032
      %v1065 = vsub.f32 0.0, %v1033
      %v1066 = vsub.f32 0.0, %v1034
      %v1067 = vsub.f32 0.0, %v1035
      %v1068 = vsub.f32 0.0, %v1036
      %v1069 = vsub.f32 0.0, %v1037
      %v1070 = vsub.f32 0.0, %v1038
      %v1071 = vsub.f32 0.0, %v1039
      %v1072 = vsub.f32 0.0, %v1040
      %v1073 = vsub.f32 0.0, %v1041
      %v1074 = vsub.f32 0.0, %v1042
      %v1075 = vsub.f32 0.0, %v1043
      %v1076 = vsub.f32 0.0, %v1044
      %v1077 = vsub.f32 0.0, %v1045
      %v1078 = vsub.f32 0.0, %v1046
      %v1079 = vsub.f32 0.0, %v1047
      %v1080 = vmul.f32 %v1048, 1.442695
      %v1081 = vpow.pop %v1080
      %v1082 = vmul.f32 %v1049, 1.442695
      %v1083 = vpow.pop %v1082
      %v1084 = vmul.f32 %v1050, 1.442695
      %v1085 = vpow.pop %v1084
      %v1086 = vmul.f32 %v1051, 1.442695
      %v1087 = vpow.pop %v1086
      %v1088 = vmul.f32 %v1052, 1.442695
      %v1089 = vpow.pop %v1088
      %v1090 = vmul.f32 %v1053, 1.442695
      %v1091 = vpow.pop %v1090
      %v1092 = vmul.f32 %v1054, 1.442695
      %v1093 = vpow.pop %v1092
      %v1094 = vmul.f32 %v1055, 1.442695
      %v1095 = vpow.pop %v1094
      %v1096 = vmul.f32 %v1056, 1.442695
      %v1097 = vpow.pop %v1096
      %v1098 = vmul.f32 %v1057, 1.442695
      %v1099 = vpow.pop %v1098
      %v1100 = vmul.f32 %v1058, 1.442695
      %v1101 = vpow.pop %v1100
      %v1102 = vmul.f32 %v1059, 1.442695
      %v1103 = vpow.pop %v1102
      %v1104 = vmul.f32 %v1060, 1.442695
      %v1105 = vpow.pop %v1104
      %v1106 = vmul.f32 %v1061, 1.442695
      %v1107 = vpow.pop %v1106
      %v1108 = vmul.f32 %v1062, 1.442695
      %v1109 = vpow.pop %v1108
      %v1110 = vmul.f32 %v1063, 1.442695
      %v1111 = vpow.pop %v1110
      %v1112 = vmul.f32 %v1064, 1.442695
      %v1113 = vpow.pop %v1112
      %v1114 = vmul.f32 %v1065, 1.442695
      %v1115 = vpow.pop %v1114
      %v1116 = vmul.f32 %v1066, 1.442695
      %v1117 = vpow.pop %v1116
      %v1118 = vmul.f32 %v1067, 1.442695
      %v1119 = vpow.pop %v1118
      %v1120 = vmul.f32 %v1068, 1.442695
      %v1121 = vpow.pop %v1120
      %v1122 = vmul.f32 %v1069, 1.442695
      %v1123 = vpow.pop %v1122
      %v1124 = vmul.f32 %v1070, 1.442695
      %v1125 = vpow.pop %v1124
      %v1126 = vmul.f32 %v1071, 1.442695
      %v1127 = vpow.pop %v1126
      %v1128 = vmul.f32 %v1072, 1.442695
      %v1129 = vpow.pop %v1128
      %v1130 = vmul.f32 %v1073, 1.442695
      %v1131 = vpow.pop %v1130
      %v1132 = vmul.f32 %v1074, 1.442695
      %v1133 = vpow.pop %v1132
      %v1134 = vmul.f32 %v1075, 1.442695
      %v1135 = vpow.pop %v1134
      %v1136 = vmul.f32 %v1076, 1.442695
      %v1137 = vpow.pop %v1136
      %v1138 = vmul.f32 %v1077, 1.442695
      %v1139 = vpow.pop %v1138
      %v1140 = vmul.f32 %v1078, 1.442695
      %v1141 = vpow.pop %v1140
      %v1142 = vmul.f32 %v1079, 1.442695
      %v1143 = vpow.pop %v1142
      %v1144 = vadd.f32 %v1081, 1.0
      %v1145 = vadd.f32 %v1083, 1.0
      %v1146 = vadd.f32 %v1085, 1.0
      %v1147 = vadd.f32 %v1087, 1.0
      %v1148 = vadd.f32 %v1089, 1.0
      %v1149 = vadd.f32 %v1091, 1.0
      %v1150 = vadd.f32 %v1093, 1.0
      %v1151 = vadd.f32 %v1095, 1.0
      %v1152 = vadd.f32 %v1097, 1.0
      %v1153 = vadd.f32 %v1099, 1.0
      %v1154 = vadd.f32 %v1101, 1.0
      %v1155 = vadd.f32 %v1103, 1.0
      %v1156 = vadd.f32 %v1105, 1.0
      %v1157 = vadd.f32 %v1107, 1.0
      %v1158 = vadd.f32 %v1109, 1.0
      %v1159 = vadd.f32 %v1111, 1.0
      %v1160 = vadd.f32 %v1113, 1.0
      %v1161 = vadd.f32 %v1115, 1.0
      %v1162 = vadd.f32 %v1117, 1.0
      %v1163 = vadd.f32 %v1119, 1.0
      %v1164 = vadd.f32 %v1121, 1.0
      %v1165 = vadd.f32 %v1123, 1.0
      %v1166 = vadd.f32 %v1125, 1.0
      %v1167 = vadd.f32 %v1127, 1.0
      %v1168 = vadd.f32 %v1129, 1.0
      %v1169 = vadd.f32 %v1131, 1.0
      %v1170 = vadd.f32 %v1133, 1.0
      %v1171 = vadd.f32 %v1135, 1.0
      %v1172 = vadd.f32 %v1137, 1.0
      %v1173 = vadd.f32 %v1139, 1.0
      %v1174 = vadd.f32 %v1141, 1.0
      %v1175 = vadd.f32 %v1143, 1.0
      %v1176 = vrcp.pop %v1144
      %v1177 = vmul.f32 1.0, %v1176
      %v1178 = vrcp.pop %v1145
      %v1179 = vmul.f32 1.0, %v1178
      %v1180 = vrcp.pop %v1146
      %v1181 = vmul.f32 1.0, %v1180
      %v1182 = vrcp.pop %v1147
      %v1183 = vmul.f32 1.0, %v1182
      %v1184 = vrcp.pop %v1148
      %v1185 = vmul.f32 1.0, %v1184
      %v1186 = vrcp.pop %v1149
      %v1187 = vmul.f32 1.0, %v1186
      %v1188 = vrcp.pop %v1150
      %v1189 = vmul.f32 1.0, %v1188
      %v1190 = vrcp.pop %v1151
      %v1191 = vmul.f32 1.0, %v1190
      %v1192 = vrcp.pop %v1152
      %v1193 = vmul.f32 1.0, %v1192
      %v1194 = vrcp.pop %v1153
      %v1195 = vmul.f32 1.0, %v1194
      %v1196 = vrcp.pop %v1154
      %v1197 = vmul.f32 1.0, %v1196
      %v1198 = vrcp.pop %v1155
      %v1199 = vmul.f32 1.0, %v1198
      %v1200 = vrcp.pop %v1156
      %v1201 = vmul.f32 1.0, %v1200
      %v1202 = vrcp.pop %v1157
      %v1203 = vmul.f32 1.0, %v1202
      %v1204 = vrcp.pop %v1158
      %v1205 = vmul.f32 1.0, %v1204
      %v1206 = vrcp.pop %v1159
      %v1207 = vmul.f32 1.0, %v1206
      %v1208 = vrcp.pop %v1160
      %v1209 = vmul.f32 1.0, %v1208
      %v1210 = vrcp.pop %v1161
      %v1211 = vmul.f32 1.0, %v1210
      %v1212 = vrcp.pop %v1162
      %v1213 = vmul.f32 1.0, %v1212
      %v1214 = vrcp.pop %v1163
      %v1215 = vmul.f32 1.0, %v1214
      %v1216 = vrcp.pop %v1164
      %v1217 = vmul.f32 1.0, %v1216
      %v1218 = vrcp.pop %v1165
      %v1219 = vmul.f32 1.0, %v1218
      %v1220 = vrcp.pop %v1166
      %v1221 = vmul.f32 1.0, %v1220
      %v1222 = vrcp.pop %v1167
      %v1223 = vmul.f32 1.0, %v1222
      %v1224 = vrcp.pop %v1168
      %v1225 = vmul.f32 1.0, %v1224
      %v1226 = vrcp.pop %v1169
      %v1227 = vmul.f32 1.0, %v1226
      %v1228 = vrcp.pop %v1170
      %v1229 = vmul.f32 1.0, %v1228
      %v1230 = vrcp.pop %v1171
      %v1231 = vmul.f32 1.0, %v1230
      %v1232 = vrcp.pop %v1172
      %v1233 = vmul.f32 1.0, %v1232
      %v1234 = vrcp.pop %v1173
      %v1235 = vmul.f32 1.0, %v1234
      %v1236 = vrcp.pop %v1174
      %v1237 = vmul.f32 1.0, %v1236
      %v1238 = vrcp.pop %v1175
      %v1239 = vmul.f32 1.0, %v1238
      %v1240 = vmul.f32 %v1016, %v1177
      %v1241 = vmul.f32 %v1017, %v1179
      %v1242 = vmul.f32 %v1018, %v1181
      %v1243 = vmul.f32 %v1019, %v1183
      %v1244 = vmul.f32 %v1020, %v1185
      %v1245 = vmul.f32 %v1021, %v1187
      %v1246 = vmul.f32 %v1022, %v1189
      %v1247 = vmul.f32 %v1023, %v1191
      %v1248 = vmul.f32 %v1024, %v1193
      %v1249 = vmul.f32 %v1025, %v1195
      %v1250 = vmul.f32 %v1026, %v1197
      %v1251 = vmul.f32 %v1027, %v1199
      %v1252 = vmul.f32 %v1028, %v1201
      %v1253 = vmul.f32 %v1029, %v1203
      %v1254 = vmul.f32 %v1030, %v1205
      %v1255 = vmul.f32 %v1031, %v1207
      %v1256 = vmul.f32 %v1032, %v1209
      %v1257 = vmul.f32 %v1033, %v1211
      %v1258 = vmul.f32 %v1034, %v1213
      %v1259 = vmul.f32 %v1035, %v1215
      %v1260 = vmul.f32 %v1036, %v1217
      %v1261 = vmul.f32 %v1037, %v1219
      %v1262 = vmul.f32 %v1038, %v1221
      %v1263 = vmul.f32 %v1039, %v1223
      %v1264 = vmul.f32 %v1040, %v1225
      %v1265 = vmul.f32 %v1041, %v1227
      %v1266 = vmul.f32 %v1042, %v1229
      %v1267 = vmul.f32 %v1043, %v1231
      %v1268 = vmul.f32 %v1044, %v1233
      %v1269 = vmul.f32 %v1045, %v1235
      %v1270 = vmul.f32 %v1046, %v1237
      %v1271 = vmul.f32 %v1047, %v1239
      %vm1272 = vcmask 64512
      %1273 = vst.msk [vmem:[%s170] sm:$0xff] %vm1272, %v1240
      %1274 = vst.msk [vmem:[%s170 + $0x8] sm:$0xff] %vm1272, %v1241
      %1275 = vst.msk [vmem:[%s170 + $0x10] sm:$0xff] %vm1272, %v1242
      %1276 = vst.msk [vmem:[%s170 + $0x18] sm:$0xff] %vm1272, %v1243
      %1277 = vst.msk [vmem:[%s170 + $0x20] sm:$0xff] %vm1272, %v1244
      %1278 = vst.msk [vmem:[%s170 + $0x28] sm:$0xff] %vm1272, %v1245
      %1279 = vst.msk [vmem:[%s170 + $0x30] sm:$0xff] %vm1272, %v1246
      %1280 = vst.msk [vmem:[%s170 + $0x38] sm:$0xff] %vm1272, %v1247
      %1281 = vst.msk [vmem:[%s170 + $0x40] sm:$0xff] %vm1272, %v1248
      %1282 = vst.msk [vmem:[%s170 + $0x48] sm:$0xff] %vm1272, %v1249
      %1283 = vst.msk [vmem:[%s170 + $0x50] sm:$0xff] %vm1272, %v1250
      %1284 = vst.msk [vmem:[%s170 + $0x58] sm:$0xff] %vm1272, %v1251
      %1285 = vst.msk [vmem:[%s170 + $0x60] sm:$0xff] %vm1272, %v1252
      %1286 = vst.msk [vmem:[%s170 + $0x68] sm:$0xff] %vm1272, %v1253
      %1287 = vst.msk [vmem:[%s170 + $0x70] sm:$0xff] %vm1272, %v1254
      %1288 = vst.msk [vmem:[%s170 + $0x78] sm:$0xff] %vm1272, %v1255
      %1289 = vst.msk [vmem:[%s170 + $0x80] sm:$0xff] %vm1272, %v1256
      %1290 = vst.msk [vmem:[%s170 + $0x88] sm:$0xff] %vm1272, %v1257
      %1291 = vst.msk [vmem:[%s170 + $0x90] sm:$0xff] %vm1272, %v1258
      %1292 = vst.msk [vmem:[%s170 + $0x98] sm:$0xff] %vm1272, %v1259
      %1293 = vst.msk [vmem:[%s170 + $0xa0] sm:$0xff] %vm1272, %v1260
      %1294 = vst.msk [vmem:[%s170 + $0xa8] sm:$0xff] %vm1272, %v1261
      %1295 = vst.msk [vmem:[%s170 + $0xb0] sm:$0xff] %vm1272, %v1262
      %1296 = vst.msk [vmem:[%s170 + $0xb8] sm:$0xff] %vm1272, %v1263
      %1297 = vst.msk [vmem:[%s170 + $0xc0] sm:$0xff] %vm1272, %v1264
      %1298 = vst.msk [vmem:[%s170 + $0xc8] sm:$0xff] %vm1272, %v1265
      %1299 = vst.msk [vmem:[%s170 + $0xd0] sm:$0xff] %vm1272, %v1266
      %1300 = vst.msk [vmem:[%s170 + $0xd8] sm:$0xff] %vm1272, %v1267
      %1301 = vst.msk [vmem:[%s170 + $0xe0] sm:$0xff] %vm1272, %v1268
      %1302 = vst.msk [vmem:[%s170 + $0xe8] sm:$0xff] %vm1272, %v1269
      %1303 = vst.msk [vmem:[%s170 + $0xf0] sm:$0xff] %vm1272, %v1270
      %1304 = vst.msk [vmem:[%s170 + $0xf8] sm:$0xff] %vm1272, %v1271
      %p1305 = scmp.lt.s32.totalorder %s14, 1
      %s1306 = scalar_select %p1305, %s14, 1
      %s1307 = smul.addr %s1306, 32
      %s1308 = smul.addr %s1307, 8
      %s1309 = scalar_lea.vmem %s3, %s1308
      // Predicated region
      $region33: #{spectral_mamba_forward.5} parent=31 // pred_check
        %p1310 = pneg %p100
      $region34: #{spectral_mamba_forward.5} parent=31 // pred_check_branch
        %1312 = sbr.rel (%p1310) target = $region36
      $region35: #{spectral_mamba_forward.5} parent=31 // pred_region
        _
      $region36: #{spectral_mamba_forward.5} parent=31 // pred_fallthru
        _
    $region32: #{spectral_mamba_forward.5} parent=5 // pred_fallthru
      _
    %p1313 = scmp.le.s32.totalorder 2, %s9
    // Predicated region
    $region37: #{spectral_mamba_forward.5} parent=5 // pred_check
      %p1314 = pneg %p1313
    $region38: #{spectral_mamba_forward.5} parent=5 // pred_check_branch
      %1316 = sbr.rel (%p1314) target = $region40
    $region39: #{spectral_mamba_forward.5} parent=5 // pred_region
      %s1317 = ssub.s32 %s9, 2
      // Predicated region
      $region41: #{spectral_mamba_forward.5} parent=39 // pred_check
        %p1318 = pneg %p106
      $region42: #{spectral_mamba_forward.5} parent=39 // pred_check_branch
        %1320 = sbr.rel (%p1318) target = $region44
      $region43: #{spectral_mamba_forward.5} parent=39 // pred_region
        %p1321 = scmp.lt.s32.totalorder %s15, 1
        %s1322 = scalar_select %p1321, %s15, 1
        %s1323 = smul.addr %s1322, 32
        %s1324 = smul.addr %s1323, 8
        %s1325 = scalar_lea.vmem %s3, %s1324
      $region44: #{spectral_mamba_forward.5} parent=39 // pred_fallthru
        _
    $region40: #{spectral_mamba_forward.5} parent=5 // pred_fallthru
      _
  $region6: #{spectral_mamba_forward.5} parent=0 // loop_footer
    %s13 = sadd.s32 1, %s9
  $region7: #{spectral_mamba_forward.5} parent=0 // loop_footer_branch
    %8 = sbr.rel target = $region3
  $region8: #{spectral_mamba_forward.5} parent=0 // loop_exit
    _

// kernel: spectral_mamba_forward.6
$region0: #{spectral_mamba_forward.6}
  #allocation0 [shape = 'u32[]', space=smem, size = 0x4, offset = 0x4, fixed_abs, tag = 'smem constant byte address 0x4 - core index']
  #allocation1 [shape = 'u32[144,128]{1,0:T(1,128)}', space=vmem, size = 0x12000, scoped, tag = 'internal scratch']
  #allocation2 [shape = 'f32[256,32]{1,0:T(8,128)}', space=vmem, size = 0x20000, scoped, tag = 'scratch operand']
  #allocation3 [shape = 'f32[256,32]{1,0:T(8,128)}', space=vmem, size = 0x20000, scoped, tag = 'scratch operand']
  #allocation4 [shape = 'f32[256,16]{1,0:T(8,128)}', space=vmem, size = 0x20000, scoped, tag = 'scratch operand']
  #allocation5 [shape = 'f32[256,16]{1,0:T(8,128)}', space=vmem, size = 0x20000, scoped, tag = 'scratch operand']
  #allocation6 [shape = 'f32[8,32]{1,0:T(8,128)}', space=vmem, size = 0x1000, scoped, tag = 'scratch operand']
  %s0 = inlined_call_operand.vmem [shape: f32[2,256,8], index: 0, kind: input, shape index: {}]
  %s1 = inlined_call_operand.vmem [shape: f32[2,256,8], index: 1, kind: input, shape index: {}]
  %s2 = inlined_call_operand.vmem [shape: f32[2,256,8], index: 2, kind: input, shape index: {}]
  %s3 = inlined_call_operand.vmem [shape: f32[2,256,8], index: 3, kind: input, shape index: {}]
  %s4 = inlined_call_operand.vmem [shape: f32[32,32], index: 4, kind: input, shape index: {}]
  %s5 = inlined_call_operand.vmem [shape: f32[32,32], index: 5, kind: input, shape index: {}]
  %s6 = inlined_call_operand.vmem [shape: f32[1,32], index: 6, kind: input, shape index: {}]
  %s7 = inlined_call_operand.vmem [shape: f32[32,16], index: 7, kind: input, shape index: {}]
  %s8 = inlined_call_operand.vmem [shape: f32[1,32], index: 8, kind: input, shape index: {}]
  %s9 = inlined_call_operand.vmem [shape: f32[2,256,8], index: 9, kind: output, shape index: {0}]
  %s10 = inlined_call_operand.vmem [shape: f32[2,256,8], index: 10, kind: output, shape index: {1}]
  %s11 = inlined_call_operand.vmem [shape: f32[2,256,8], index: 11, kind: output, shape index: {2}]
  %s12 = inlined_call_operand.vmem [shape: f32[2,256,8], index: 12, kind: output, shape index: {3}]
  %13 = xla_tuple %s9, %s10, %s11, %s12
  %s14 = sld [smem:[#allocation0]]
  $region100: #{spectral_mamba_forward.6} parent=0
    _
  %s16 = ssub.s32 1, %s14
  %s17 = scalar_select 0, %s16, %s14
  loop: start=0, step=1, limit=4
  $region2: #{spectral_mamba_forward.6} parent=0 // loop_pre_header
    _
  $region3: #{spectral_mamba_forward.6} parent=0 // loop_header
    %s19 = sphi 0, %s23
    %p20 = scmp.ge.s32.totalorder %s19, 4
    %s29 = sphi 0, %s31
    %s32 = sphi 0, %s29
    %s33 = sphi 0, %s32
    %s49 = sphi 0, %s33
    %s55 = sphi 0, %s57
    %s58 = sphi 0, %s55
    %s59 = sphi 0, %s58
    %s75 = sphi 0, %s59
    %s81 = sphi 0, %s83
    %s84 = sphi 0, %s81
    %s85 = sphi 0, %s84
    %s101 = sphi 0, %s85
    %s107 = sphi 0, %s109
    %s110 = sphi 0, %s107
    %s111 = sphi 0, %s110
    %s127 = sphi 0, %s111
    %s131 = sphi 0, %s131
    %s133 = sphi 0, %s131
    %s134 = sphi 0, %s133
    %s148 = sphi 0, %s134
    %s152 = sphi 0, %s152
    %s154 = sphi 0, %s152
    %s155 = sphi 0, %s154
    %s169 = sphi 0, %s155
    %s173 = sphi 0, %s173
    %s175 = sphi 0, %s173
    %s176 = sphi 0, %s175
    %s190 = sphi 0, %s176
    %s194 = sphi 0, %s194
    %s196 = sphi 0, %s194
    %s197 = sphi 0, %s196
    %s211 = sphi 0, %s197
    %s215 = sphi 0, %s215
    %s217 = sphi 0, %s215
    %s218 = sphi 0, %s217
    %s232 = sphi 0, %s218
    %s238 = sphi 0, %s240
    %s241 = sphi 0, %s238
    %s242 = sphi 0, %s241
    %s258 = sphi 0, %s242
    %s264 = sphi 0, %s266
    %s267 = sphi 0, %s264
    %s268 = sphi 0, %s267
    %s284 = sphi 0, %s268
    %s290 = sphi 0, %s292
    %s293 = sphi 0, %s290
    %s294 = sphi 0, %s293
    %s310 = sphi 0, %s294
    %s316 = sphi 0, %s318
    %s319 = sphi 0, %s316
    %s320 = sphi 0, %s319
    %s336 = sphi 0, %s320
  $region4: #{spectral_mamba_forward.6} parent=0 // loop_header_branch
    %22 = sbr.rel (%p20) target = $region8
  $region5: #{spectral_mamba_forward.6} parent=0 // loop_body
    %s24 = ssub.s32 %s19, 1
    %s25 = ssub.s32 %s19, 2
    %s26 = sadd.s32 %s19, 1
    %s27 = ssub.s32 %s19, %s26
    %p28 = scmp.eq.s32.totalorder %s27, 0
    %s30 = sadd.s32 %s29, 1
    %s31 = scalar_select %p28, %s29, %s30
    %p34 = pneg %p28
    %p35 = scmp.eq.s32.totalorder %s19, 1
    %p36 = por %p34, %p35
    %p37 = scmp.ne.s32.totalorder %s29, %s32
    %p38 = scmp.eq.s32.totalorder %s19, 0
    %p39 = por %p37, %p38
    %p40 = scmp.ne.s32.totalorder %s29, %s32
    %p41 = scmp.eq.s32.totalorder %s24, 1
    %p42 = por %p40, %p41
    %p43 = scmp.ne.s32.totalorder %s32, %s33
    %p44 = scmp.eq.s32.totalorder %s24, 0
    %p45 = por %p43, %p44
    %p46 = scmp.ne.s32.totalorder %s32, %s33
    %p47 = scmp.eq.s32.totalorder %s25, 1
    %p48 = por %p46, %p47
    %p50 = scmp.ne.s32.totalorder %s33, %s49
    %p51 = scmp.eq.s32.totalorder %s25, 0
    %p52 = por %p50, %p51
    %s53 = ssub.s32 %s19, %s26
    %p54 = scmp.eq.s32.totalorder %s53, 0
    %s56 = sadd.s32 %s55, 1
    %s57 = scalar_select %p54, %s55, %s56
    %p60 = pneg %p54
    %p61 = scmp.eq.s32.totalorder %s19, 1
    %p62 = por %p60, %p61
    %p63 = scmp.ne.s32.totalorder %s55, %s58
    %p64 = scmp.eq.s32.totalorder %s19, 0
    %p65 = por %p63, %p64
    %p66 = scmp.ne.s32.totalorder %s55, %s58
    %p67 = scmp.eq.s32.totalorder %s24, 1
    %p68 = por %p66, %p67
    %p69 = scmp.ne.s32.totalorder %s58, %s59
    %p70 = scmp.eq.s32.totalorder %s24, 0
    %p71 = por %p69, %p70
    %p72 = scmp.ne.s32.totalorder %s58, %s59
    %p73 = scmp.eq.s32.totalorder %s25, 1
    %p74 = por %p72, %p73
    %p76 = scmp.ne.s32.totalorder %s59, %s75
    %p77 = scmp.eq.s32.totalorder %s25, 0
    %p78 = por %p76, %p77
    %s79 = ssub.s32 %s19, %s26
    %p80 = scmp.eq.s32.totalorder %s79, 0
    %s82 = sadd.s32 %s81, 1
    %s83 = scalar_select %p80, %s81, %s82
    %p86 = pneg %p80
    %p87 = scmp.eq.s32.totalorder %s19, 1
    %p88 = por %p86, %p87
    %p89 = scmp.ne.s32.totalorder %s81, %s84
    %p90 = scmp.eq.s32.totalorder %s19, 0
    %p91 = por %p89, %p90
    %p92 = scmp.ne.s32.totalorder %s81, %s84
    %p93 = scmp.eq.s32.totalorder %s24, 1
    %p94 = por %p92, %p93
    %p95 = scmp.ne.s32.totalorder %s84, %s85
    %p96 = scmp.eq.s32.totalorder %s24, 0
    %p97 = por %p95, %p96
    %p98 = scmp.ne.s32.totalorder %s84, %s85
    %p99 = scmp.eq.s32.totalorder %s25, 1
    %p100 = por %p98, %p99
    %p102 = scmp.ne.s32.totalorder %s85, %s101
    %p103 = scmp.eq.s32.totalorder %s25, 0
    %p104 = por %p102, %p103
    %s105 = ssub.s32 %s19, %s26
    %p106 = scmp.eq.s32.totalorder %s105, 0
    %s108 = sadd.s32 %s107, 1
    %s109 = scalar_select %p106, %s107, %s108
    %p112 = pneg %p106
    %p113 = scmp.eq.s32.totalorder %s19, 1
    %p114 = por %p112, %p113
    %p115 = scmp.ne.s32.totalorder %s107, %s110
    %p116 = scmp.eq.s32.totalorder %s19, 0
    %p117 = por %p115, %p116
    %p118 = scmp.ne.s32.totalorder %s107, %s110
    %p119 = scmp.eq.s32.totalorder %s24, 1
    %p120 = por %p118, %p119
    %p121 = scmp.ne.s32.totalorder %s110, %s111
    %p122 = scmp.eq.s32.totalorder %s24, 0
    %p123 = por %p121, %p122
    %p124 = scmp.ne.s32.totalorder %s110, %s111
    %p125 = scmp.eq.s32.totalorder %s25, 1
    %p126 = por %p124, %p125
    %p128 = scmp.ne.s32.totalorder %s111, %s127
    %p129 = scmp.eq.s32.totalorder %s25, 0
    %p130 = por %p128, %p129
    %s132 = sadd.s32 %s131, 1
    %p135 = scmp.eq.s32.totalorder %s19, 1
    %p136 = scmp.ne.s32.totalorder %s131, %s133
    %p137 = scmp.eq.s32.totalorder %s19, 0
    %p138 = por %p136, %p137
    %p139 = scmp.ne.s32.totalorder %s131, %s133
    %p140 = scmp.eq.s32.totalorder %s24, 1
    %p141 = por %p139, %p140
    %p142 = scmp.ne.s32.totalorder %s133, %s134
    %p143 = scmp.eq.s32.totalorder %s24, 0
    %p144 = por %p142, %p143
    %p145 = scmp.ne.s32.totalorder %s133, %s134
    %p146 = scmp.eq.s32.totalorder %s25, 1
    %p147 = por %p145, %p146
    %p149 = scmp.ne.s32.totalorder %s134, %s148
    %p150 = scmp.eq.s32.totalorder %s25, 0
    %p151 = por %p149, %p150
    %s153 = sadd.s32 %s152, 1
    %p156 = scmp.eq.s32.totalorder %s19, 1
    %p157 = scmp.ne.s32.totalorder %s152, %s154
    %p158 = scmp.eq.s32.totalorder %s19, 0
    %p159 = por %p157, %p158
    %p160 = scmp.ne.s32.totalorder %s152, %s154
    %p161 = scmp.eq.s32.totalorder %s24, 1
    %p162 = por %p160, %p161
    %p163 = scmp.ne.s32.totalorder %s154, %s155
    %p164 = scmp.eq.s32.totalorder %s24, 0
    %p165 = por %p163, %p164
    %p166 = scmp.ne.s32.totalorder %s154, %s155
    %p167 = scmp.eq.s32.totalorder %s25, 1
    %p168 = por %p166, %p167
    %p170 = scmp.ne.s32.totalorder %s155, %s169
    %p171 = scmp.eq.s32.totalorder %s25, 0
    %p172 = por %p170, %p171
    %s174 = sadd.s32 %s173, 1
    %p177 = scmp.eq.s32.totalorder %s19, 1
    %p178 = scmp.ne.s32.totalorder %s173, %s175
    %p179 = scmp.eq.s32.totalorder %s19, 0
    %p180 = por %p178, %p179
    %p181 = scmp.ne.s32.totalorder %s173, %s175
    %p182 = scmp.eq.s32.totalorder %s24, 1
    %p183 = por %p181, %p182
    %p184 = scmp.ne.s32.totalorder %s175, %s176
    %p185 = scmp.eq.s32.totalorder %s24, 0
    %p186 = por %p184, %p185
    %p187 = scmp.ne.s32.totalorder %s175, %s176
    %p188 = scmp.eq.s32.totalorder %s25, 1
    %p189 = por %p187, %p188
    %p191 = scmp.ne.s32.totalorder %s176, %s190
    %p192 = scmp.eq.s32.totalorder %s25, 0
    %p193 = por %p191, %p192
    %s195 = sadd.s32 %s194, 1
    %p198 = scmp.eq.s32.totalorder %s19, 1
    %p199 = scmp.ne.s32.totalorder %s194, %s196
    %p200 = scmp.eq.s32.totalorder %s19, 0
    %p201 = por %p199, %p200
    %p202 = scmp.ne.s32.totalorder %s194, %s196
    %p203 = scmp.eq.s32.totalorder %s24, 1
    %p204 = por %p202, %p203
    %p205 = scmp.ne.s32.totalorder %s196, %s197
    %p206 = scmp.eq.s32.totalorder %s24, 0
    %p207 = por %p205, %p206
    %p208 = scmp.ne.s32.totalorder %s196, %s197
    %p209 = scmp.eq.s32.totalorder %s25, 1
    %p210 = por %p208, %p209
    %p212 = scmp.ne.s32.totalorder %s197, %s211
    %p213 = scmp.eq.s32.totalorder %s25, 0
    %p214 = por %p212, %p213
    %s216 = sadd.s32 %s215, 1
    %p219 = scmp.eq.s32.totalorder %s19, 1
    %p220 = scmp.ne.s32.totalorder %s215, %s217
    %p221 = scmp.eq.s32.totalorder %s19, 0
    %p222 = por %p220, %p221
    %p223 = scmp.ne.s32.totalorder %s215, %s217
    %p224 = scmp.eq.s32.totalorder %s24, 1
    %p225 = por %p223, %p224
    %p226 = scmp.ne.s32.totalorder %s217, %s218
    %p227 = scmp.eq.s32.totalorder %s24, 0
    %p228 = por %p226, %p227
    %p229 = scmp.ne.s32.totalorder %s217, %s218
    %p230 = scmp.eq.s32.totalorder %s25, 1
    %p231 = por %p229, %p230
    %p233 = scmp.ne.s32.totalorder %s218, %s232
    %p234 = scmp.eq.s32.totalorder %s25, 0
    %p235 = por %p233, %p234
    %s236 = ssub.s32 %s19, %s26
    %p237 = scmp.eq.s32.totalorder %s236, 0
    %s239 = sadd.s32 %s238, 1
    %s240 = scalar_select %p237, %s238, %s239
    %p243 = pneg %p237
    %p244 = scmp.eq.s32.totalorder %s19, 1
    %p245 = por %p243, %p244
    %p246 = scmp.ne.s32.totalorder %s238, %s241
    %p247 = scmp.eq.s32.totalorder %s19, 0
    %p248 = por %p246, %p247
    %p249 = scmp.ne.s32.totalorder %s238, %s241
    %p250 = scmp.eq.s32.totalorder %s24, 1
    %p251 = por %p249, %p250
    %p252 = scmp.ne.s32.totalorder %s241, %s242
    %p253 = scmp.eq.s32.totalorder %s24, 0
    %p254 = por %p252, %p253
    %p255 = scmp.ne.s32.totalorder %s241, %s242
    %p256 = scmp.eq.s32.totalorder %s25, 1
    %p257 = por %p255, %p256
    %p259 = scmp.ne.s32.totalorder %s242, %s258
    %p260 = scmp.eq.s32.totalorder %s25, 0
    %p261 = por %p259, %p260
    %s262 = ssub.s32 %s19, %s26
    %p263 = scmp.eq.s32.totalorder %s262, 0
    %s265 = sadd.s32 %s264, 1
    %s266 = scalar_select %p263, %s264, %s265
    %p269 = pneg %p263
    %p270 = scmp.eq.s32.totalorder %s19, 1
    %p271 = por %p269, %p270
    %p272 = scmp.ne.s32.totalorder %s264, %s267
    %p273 = scmp.eq.s32.totalorder %s19, 0
    %p274 = por %p272, %p273
    %p275 = scmp.ne.s32.totalorder %s264, %s267
    %p276 = scmp.eq.s32.totalorder %s24, 1
    %p277 = por %p275, %p276
    %p278 = scmp.ne.s32.totalorder %s267, %s268
    %p279 = scmp.eq.s32.totalorder %s24, 0
    %p280 = por %p278, %p279
    %p281 = scmp.ne.s32.totalorder %s267, %s268
    %p282 = scmp.eq.s32.totalorder %s25, 1
    %p283 = por %p281, %p282
    %p285 = scmp.ne.s32.totalorder %s268, %s284
    %p286 = scmp.eq.s32.totalorder %s25, 0
    %p287 = por %p285, %p286
    %s288 = ssub.s32 %s19, %s26
    %p289 = scmp.eq.s32.totalorder %s288, 0
    %s291 = sadd.s32 %s290, 1
    %s292 = scalar_select %p289, %s290, %s291
    %p295 = pneg %p289
    %p296 = scmp.eq.s32.totalorder %s19, 1
    %p297 = por %p295, %p296
    %p298 = scmp.ne.s32.totalorder %s290, %s293
    %p299 = scmp.eq.s32.totalorder %s19, 0
    %p300 = por %p298, %p299
    %p301 = scmp.ne.s32.totalorder %s290, %s293
    %p302 = scmp.eq.s32.totalorder %s24, 1
    %p303 = por %p301, %p302
    %p304 = scmp.ne.s32.totalorder %s293, %s294
    %p305 = scmp.eq.s32.totalorder %s24, 0
    %p306 = por %p304, %p305
    %p307 = scmp.ne.s32.totalorder %s293, %s294
    %p308 = scmp.eq.s32.totalorder %s25, 1
    %p309 = por %p307, %p308
    %p311 = scmp.ne.s32.totalorder %s294, %s310
    %p312 = scmp.eq.s32.totalorder %s25, 0
    %p313 = por %p311, %p312
    %s314 = ssub.s32 %s19, %s26
    %p315 = scmp.eq.s32.totalorder %s314, 0
    %s317 = sadd.s32 %s316, 1
    %s318 = scalar_select %p315, %s316, %s317
    %p321 = pneg %p315
    %p322 = scmp.eq.s32.totalorder %s19, 1
    %p323 = por %p321, %p322
    %p324 = scmp.ne.s32.totalorder %s316, %s319
    %p325 = scmp.eq.s32.totalorder %s19, 0
    %p326 = por %p324, %p325
    %p327 = scmp.ne.s32.totalorder %s316, %s319
    %p328 = scmp.eq.s32.totalorder %s24, 1
    %p329 = por %p327, %p328
    %p330 = scmp.ne.s32.totalorder %s319, %s320
    %p331 = scmp.eq.s32.totalorder %s24, 0
    %p332 = por %p330, %p331
    %p333 = scmp.ne.s32.totalorder %s319, %s320
    %p334 = scmp.eq.s32.totalorder %s25, 1
    %p335 = por %p333, %p334
    %p337 = scmp.ne.s32.totalorder %s320, %s336
    %p338 = scmp.eq.s32.totalorder %s25, 0
    %p339 = por %p337, %p338
    %p340 = scmp.le.s32.totalorder 1, %s19
    %p341 = scmp.lt.s32.totalorder %s19, 3
    %p342 = pnand %p340, %p341
    %p343 = pneg %p342
    // Predicated region
    $region9: #{spectral_mamba_forward.6} parent=5 // pred_check
      _
    $region10: #{spectral_mamba_forward.6} parent=5 // pred_check_branch
      %345 = sbr.rel (%p342) target = $region12
    $region11: #{spectral_mamba_forward.6} parent=5 // pred_region
      %s346 = ssub.s32 %s19, 1
      // Predicated region
      $region13: #{spectral_mamba_forward.6} parent=11 // pred_check
        %p347 = pneg %p144
      $region14: #{spectral_mamba_forward.6} parent=11 // pred_check_branch
        %349 = sbr.rel (%p347) target = $region16
      $region15: #{spectral_mamba_forward.6} parent=11 // pred_region
        _
      $region16: #{spectral_mamba_forward.6} parent=11 // pred_fallthru
        _
      // Predicated region
      $region17: #{spectral_mamba_forward.6} parent=11 // pred_check
        %p350 = pneg %p165
      $region18: #{spectral_mamba_forward.6} parent=11 // pred_check_branch
        %352 = sbr.rel (%p350) target = $region20
      $region19: #{spectral_mamba_forward.6} parent=11 // pred_region
        _
      $region20: #{spectral_mamba_forward.6} parent=11 // pred_fallthru
        _
      // Predicated region
      $region21: #{spectral_mamba_forward.6} parent=11 // pred_check
        %p353 = pneg %p186
      $region22: #{spectral_mamba_forward.6} parent=11 // pred_check_branch
        %355 = sbr.rel (%p353) target = $region24
      $region23: #{spectral_mamba_forward.6} parent=11 // pred_region
        _
      $region24: #{spectral_mamba_forward.6} parent=11 // pred_fallthru
        _
      // Predicated region
      $region25: #{spectral_mamba_forward.6} parent=11 // pred_check
        %p356 = pneg %p207
      $region26: #{spectral_mamba_forward.6} parent=11 // pred_check_branch
        %358 = sbr.rel (%p356) target = $region28
      $region27: #{spectral_mamba_forward.6} parent=11 // pred_region
        _
      $region28: #{spectral_mamba_forward.6} parent=11 // pred_fallthru
        _
      // Predicated region
      $region29: #{spectral_mamba_forward.6} parent=11 // pred_check
        %p359 = pneg %p228
      $region30: #{spectral_mamba_forward.6} parent=11 // pred_check_branch
        %361 = sbr.rel (%p359) target = $region32
      $region31: #{spectral_mamba_forward.6} parent=11 // pred_region
        _
      $region32: #{spectral_mamba_forward.6} parent=11 // pred_fallthru
        _
    $region12: #{spectral_mamba_forward.6} parent=5 // pred_fallthru
      _
    %p362 = scmp.lt.s32.totalorder %s19, 2
    // Predicated region
    $region33: #{spectral_mamba_forward.6} parent=5 // pred_check
      %p363 = pneg %p362
    $region34: #{spectral_mamba_forward.6} parent=5 // pred_check_branch
      %365 = sbr.rel (%p363) target = $region36
    $region35: #{spectral_mamba_forward.6} parent=5 // pred_region
      // Predicated region
      $region37: #{spectral_mamba_forward.6} parent=35 // pred_check
        %p366 = pneg %p39
      $region38: #{spectral_mamba_forward.6} parent=35 // pred_check_branch
        %368 = sbr.rel (%p366) target = $region40
      $region39: #{spectral_mamba_forward.6} parent=35 // pred_region
        %p369 = scmp.lt.s32.totalorder %s19, 1
        %s370 = scalar_select %p369, %s19, 1
        %s371 = smul.addr %s370, 32
        %s372 = smul.addr %s371, 8
        %s373 = scalar_lea.vmem %s0, %s372
      $region40: #{spectral_mamba_forward.6} parent=35 // pred_fallthru
        _
      // Predicated region
      $region41: #{spectral_mamba_forward.6} parent=35 // pred_check
        %p374 = pneg %p65
      $region42: #{spectral_mamba_forward.6} parent=35 // pred_check_branch
        %376 = sbr.rel (%p374) target = $region44
      $region43: #{spectral_mamba_forward.6} parent=35 // pred_region
        %p377 = scmp.lt.s32.totalorder %s19, 1
        %s378 = scalar_select %p377, %s19, 1
        %s379 = smul.addr %s378, 32
        %s380 = smul.addr %s379, 8
        %s381 = scalar_lea.vmem %s1, %s380
      $region44: #{spectral_mamba_forward.6} parent=35 // pred_fallthru
        _
      // Predicated region
      $region45: #{spectral_mamba_forward.6} parent=35 // pred_check
        %p382 = pneg %p91
      $region46: #{spectral_mamba_forward.6} parent=35 // pred_check_branch
        %384 = sbr.rel (%p382) target = $region48
      $region47: #{spectral_mamba_forward.6} parent=35 // pred_region
        %p385 = scmp.lt.s32.totalorder %s19, 1
        %s386 = scalar_select %p385, %s19, 1
        %s387 = smul.addr %s386, 32
        %s388 = smul.addr %s387, 8
        %s389 = scalar_lea.vmem %s2, %s388
      $region48: #{spectral_mamba_forward.6} parent=35 // pred_fallthru
        _
      // Predicated region
      $region49: #{spectral_mamba_forward.6} parent=35 // pred_check
        %p390 = pneg %p117
      $region50: #{spectral_mamba_forward.6} parent=35 // pred_check_branch
        %392 = sbr.rel (%p390) target = $region52
      $region51: #{spectral_mamba_forward.6} parent=35 // pred_region
        %p393 = scmp.lt.s32.totalorder %s19, 1
        %s394 = scalar_select %p393, %s19, 1
        %s395 = smul.addr %s394, 32
        %s396 = smul.addr %s395, 8
        %s397 = scalar_lea.vmem %s3, %s396
      $region52: #{spectral_mamba_forward.6} parent=35 // pred_fallthru
        _
    $region36: #{spectral_mamba_forward.6} parent=5 // pred_fallthru
      _
    %p398 = scmp.le.s32.totalorder 1, %s19
    %p399 = scmp.lt.s32.totalorder %s19, 3
    %p400 = pnand %p398, %p399
    %p401 = pneg %p400
    // Predicated region
    $region53: #{spectral_mamba_forward.6} parent=5 // pred_check
      _
    $region54: #{spectral_mamba_forward.6} parent=5 // pred_check_branch
      %403 = sbr.rel (%p400) target = $region56
    $region55: #{spectral_mamba_forward.6} parent=5 // pred_region
      %s404 = ssub.s32 %s19, 1
      %p405 = scmp.lt.s32.totalorder %s24, 1
      %s406 = scalar_select %p405, %s24, 1
      %s407 = smul.addr %s406, 32
      %s408 = smul.addr %s407, 8
      %s409 = scalar_lea.vmem %s0, %s408
      %p410 = pneg %p45
      %p411 = pneg %p42
      %p412 = scmp.lt.s32.totalorder %s24, 1
      %s413 = scalar_select %p412, %s24, 1
      %s414 = smul.addr %s413, 32
      %s415 = smul.addr %s414, 8
      %s416 = scalar_lea.vmem %s1, %s415
      %p417 = pneg %p71
      %p418 = pneg %p68
      %p419 = scmp.lt.s32.totalorder %s24, 1
      %s420 = scalar_select %p419, %s24, 1
      %s421 = smul.addr %s420, 32
      %s422 = smul.addr %s421, 8
      %s423 = scalar_lea.vmem %s2, %s422
      %p424 = pneg %p97
      %p425 = pneg %p94
      %p426 = scmp.lt.s32.totalorder %s24, 1
      %s427 = scalar_select %p426, %s24, 1
      %s428 = smul.addr %s427, 32
      %s429 = smul.addr %s428, 8
      %s430 = scalar_lea.vmem %s3, %s429
      %p431 = pneg %p123
      %p432 = pneg %p120
      %p433 = pneg %p144
      %p434 = pneg %p141
      %p435 = pneg %p165
      %p436 = pneg %p162
      %p437 = pneg %p186
      %p438 = pneg %p183
      %p439 = pneg %p207
      %p440 = pneg %p204
      %p441 = pneg %p228
      %p442 = pneg %p225
      %p443 = pneg %p254
      %p444 = pneg %p251
      %p445 = scmp.lt.s32.totalorder %s24, 1
      %s446 = scalar_select %p445, %s24, 1
      %s447 = smul.addr %s446, 32
      %s448 = smul.addr %s447, 8
      %s449 = scalar_lea.vmem %s9, %s448
      %p450 = pneg %p280
      %p451 = pneg %p277
      %p452 = scmp.lt.s32.totalorder %s24, 1
      %s453 = scalar_select %p452, %s24, 1
      %s454 = smul.addr %s453, 32
      %s455 = smul.addr %s454, 8
      %s456 = scalar_lea.vmem %s10, %s455
      %p457 = pneg %p306
      %p458 = pneg %p303
      %p459 = scmp.lt.s32.totalorder %s24, 1
      %s460 = scalar_select %p459, %s24, 1
      %s461 = smul.addr %s460, 32
      %s462 = smul.addr %s461, 8
      %s463 = scalar_lea.vmem %s11, %s462
      %p464 = pneg %p332
      %p465 = pneg %p329
      %p466 = scmp.lt.s32.totalorder %s24, 1
      %s467 = scalar_select %p466, %s24, 1
      %s468 = smul.addr %s467, 32
      %s469 = smul.addr %s468, 8
      %s470 = scalar_lea.vmem %s12, %s469
      %p471 = scmp.lt.s32.totalorder %s24, 1
      %s472 = scalar_select %p471, %s24, 1
      %s473 = smul.addr %s472, 32
      %s474 = smul.addr %s473, 8
      %s475 = scalar_lea.vmem %s0, %s474
      %p476 = scmp.lt.s32.totalorder %s24, 1
      %s477 = scalar_select %p476, %s24, 1
      %s478 = smul.addr %s477, 32
      %s479 = smul.addr %s478, 8
      %s480 = scalar_lea.vmem %s1, %s479
      %p481 = scmp.lt.s32.totalorder %s24, 1
      %s482 = scalar_select %p481, %s24, 1
      %s483 = smul.addr %s482, 32
      %s484 = smul.addr %s483, 8
      %s485 = scalar_lea.vmem %s2, %s484
      %p486 = scmp.lt.s32.totalorder %s24, 1
      %s487 = scalar_select %p486, %s24, 1
      %s488 = smul.addr %s487, 32
      %s489 = smul.addr %s488, 8
      %s490 = scalar_lea.vmem %s3, %s489
      %p491 = scmp.lt.s32.totalorder %s24, 1
      %s492 = scalar_select %p491, %s24, 1
      %s493 = smul.addr %s492, 32
      %s494 = smul.addr %s493, 8
      %s495 = scalar_lea.vmem %s9, %s494
      %p496 = scmp.lt.s32.totalorder %s24, 1
      %s497 = scalar_select %p496, %s24, 1
      %s498 = smul.addr %s497, 32
      %s499 = smul.addr %s498, 8
      %s500 = scalar_lea.vmem %s10, %s499
      %p501 = scmp.lt.s32.totalorder %s24, 1
      %s502 = scalar_select %p501, %s24, 1
      %s503 = smul.addr %s502, 32
      %s504 = smul.addr %s503, 8
      %s505 = scalar_lea.vmem %s11, %s504
      %p506 = scmp.lt.s32.totalorder %s24, 1
      %s507 = scalar_select %p506, %s24, 1
      %s508 = smul.addr %s507, 32
      %s509 = smul.addr %s508, 8
      %s510 = scalar_lea.vmem %s12, %s509
      %v512 = vld [vmem:[%s475] sm:$0xff]
      %v513 = vld [vmem:[%s475 + $0x8] sm:$0xff]
      %v514 = vld [vmem:[%s475 + $0x10] sm:$0xff]
      %v515 = vld [vmem:[%s475 + $0x18] sm:$0xff]
      %v516 = vld [vmem:[%s475 + $0x20] sm:$0xff]
      %v517 = vld [vmem:[%s475 + $0x28] sm:$0xff]
      %v518 = vld [vmem:[%s475 + $0x30] sm:$0xff]
      %v519 = vld [vmem:[%s475 + $0x38] sm:$0xff]
      %v520 = vld [vmem:[%s475 + $0x40] sm:$0xff]
      %v521 = vld [vmem:[%s475 + $0x48] sm:$0xff]
      %v522 = vld [vmem:[%s475 + $0x50] sm:$0xff]
      %v523 = vld [vmem:[%s475 + $0x58] sm:$0xff]
      %v524 = vld [vmem:[%s475 + $0x60] sm:$0xff]
      %v525 = vld [vmem:[%s475 + $0x68] sm:$0xff]
      %v526 = vld [vmem:[%s475 + $0x70] sm:$0xff]
      %v527 = vld [vmem:[%s475 + $0x78] sm:$0xff]
      %v528 = vld [vmem:[%s475 + $0x80] sm:$0xff]
      %v529 = vld [vmem:[%s475 + $0x88] sm:$0xff]
      %v530 = vld [vmem:[%s475 + $0x90] sm:$0xff]
      %v531 = vld [vmem:[%s475 + $0x98] sm:$0xff]
      %v532 = vld [vmem:[%s475 + $0xa0] sm:$0xff]
      %v533 = vld [vmem:[%s475 + $0xa8] sm:$0xff]
      %v534 = vld [vmem:[%s475 + $0xb0] sm:$0xff]
      %v535 = vld [vmem:[%s475 + $0xb8] sm:$0xff]
      %v536 = vld [vmem:[%s475 + $0xc0] sm:$0xff]
      %v537 = vld [vmem:[%s475 + $0xc8] sm:$0xff]
      %v538 = vld [vmem:[%s475 + $0xd0] sm:$0xff]
      %v539 = vld [vmem:[%s475 + $0xd8] sm:$0xff]
      %v540 = vld [vmem:[%s475 + $0xe0] sm:$0xff]
      %v541 = vld [vmem:[%s475 + $0xe8] sm:$0xff]
      %v542 = vld [vmem:[%s475 + $0xf0] sm:$0xff]
      %v543 = vld [vmem:[%s475 + $0xf8] sm:$0xff]
      %v544 = vld [vmem:[%s480] sm:$0xff]
      %v545 = vld [vmem:[%s480 + $0x8] sm:$0xff]
      %v546 = vld [vmem:[%s480 + $0x10] sm:$0xff]
      %v547 = vld [vmem:[%s480 + $0x18] sm:$0xff]
      %v548 = vld [vmem:[%s480 + $0x20] sm:$0xff]
      %v549 = vld [vmem:[%s480 + $0x28] sm:$0xff]
      %v550 = vld [vmem:[%s480 + $0x30] sm:$0xff]
      %v551 = vld [vmem:[%s480 + $0x38] sm:$0xff]
      %v552 = vld [vmem:[%s480 + $0x40] sm:$0xff]
      %v553 = vld [vmem:[%s480 + $0x48] sm:$0xff]
      %v554 = vld [vmem:[%s480 + $0x50] sm:$0xff]
      %v555 = vld [vmem:[%s480 + $0x58] sm:$0xff]
      %v556 = vld [vmem:[%s480 + $0x60] sm:$0xff]
      %v557 = vld [vmem:[%s480 + $0x68] sm:$0xff]
      %v558 = vld [vmem:[%s480 + $0x70] sm:$0xff]
      %v559 = vld [vmem:[%s480 + $0x78] sm:$0xff]
      %v560 = vld [vmem:[%s480 + $0x80] sm:$0xff]
      %v561 = vld [vmem:[%s480 + $0x88] sm:$0xff]
      %v562 = vld [vmem:[%s480 + $0x90] sm:$0xff]
      %v563 = vld [vmem:[%s480 + $0x98] sm:$0xff]
      %v564 = vld [vmem:[%s480 + $0xa0] sm:$0xff]
      %v565 = vld [vmem:[%s480 + $0xa8] sm:$0xff]
      %v566 = vld [vmem:[%s480 + $0xb0] sm:$0xff]
      %v567 = vld [vmem:[%s480 + $0xb8] sm:$0xff]
      %v568 = vld [vmem:[%s480 + $0xc0] sm:$0xff]
      %v569 = vld [vmem:[%s480 + $0xc8] sm:$0xff]
      %v570 = vld [vmem:[%s480 + $0xd0] sm:$0xff]
      %v571 = vld [vmem:[%s480 + $0xd8] sm:$0xff]
      %v572 = vld [vmem:[%s480 + $0xe0] sm:$0xff]
      %v573 = vld [vmem:[%s480 + $0xe8] sm:$0xff]
      %v574 = vld [vmem:[%s480 + $0xf0] sm:$0xff]
      %v575 = vld [vmem:[%s480 + $0xf8] sm:$0xff]
      %v576 = vld [vmem:[%s485] sm:$0xff]
      %v577 = vld [vmem:[%s485 + $0x8] sm:$0xff]
      %v578 = vld [vmem:[%s485 + $0x10] sm:$0xff]
      %v579 = vld [vmem:[%s485 + $0x18] sm:$0xff]
      %v580 = vld [vmem:[%s485 + $0x20] sm:$0xff]
      %v581 = vld [vmem:[%s485 + $0x28] sm:$0xff]
      %v582 = vld [vmem:[%s485 + $0x30] sm:$0xff]
      %v583 = vld [vmem:[%s485 + $0x38] sm:$0xff]
      %v584 = vld [vmem:[%s485 + $0x40] sm:$0xff]
      %v585 = vld [vmem:[%s485 + $0x48] sm:$0xff]
      %v586 = vld [vmem:[%s485 + $0x50] sm:$0xff]
      %v587 = vld [vmem:[%s485 + $0x58] sm:$0xff]
      %v588 = vld [vmem:[%s485 + $0x60] sm:$0xff]
      %v589 = vld [vmem:[%s485 + $0x68] sm:$0xff]
      %v590 = vld [vmem:[%s485 + $0x70] sm:$0xff]
      %v591 = vld [vmem:[%s485 + $0x78] sm:$0xff]
      %v592 = vld [vmem:[%s485 + $0x80] sm:$0xff]
      %v593 = vld [vmem:[%s485 + $0x88] sm:$0xff]
      %v594 = vld [vmem:[%s485 + $0x90] sm:$0xff]
      %v595 = vld [vmem:[%s485 + $0x98] sm:$0xff]
      %v596 = vld [vmem:[%s485 + $0xa0] sm:$0xff]
      %v597 = vld [vmem:[%s485 + $0xa8] sm:$0xff]
      %v598 = vld [vmem:[%s485 + $0xb0] sm:$0xff]
      %v599 = vld [vmem:[%s485 + $0xb8] sm:$0xff]
      %v600 = vld [vmem:[%s485 + $0xc0] sm:$0xff]
      %v601 = vld [vmem:[%s485 + $0xc8] sm:$0xff]
      %v602 = vld [vmem:[%s485 + $0xd0] sm:$0xff]
      %v603 = vld [vmem:[%s485 + $0xd8] sm:$0xff]
      %v604 = vld [vmem:[%s485 + $0xe0] sm:$0xff]
      %v605 = vld [vmem:[%s485 + $0xe8] sm:$0xff]
      %v606 = vld [vmem:[%s485 + $0xf0] sm:$0xff]
      %v607 = vld [vmem:[%s485 + $0xf8] sm:$0xff]
      %v608 = vld [vmem:[%s490] sm:$0xff]
      %v609 = vld [vmem:[%s490 + $0x8] sm:$0xff]
      %v610 = vld [vmem:[%s490 + $0x10] sm:$0xff]
      %v611 = vld [vmem:[%s490 + $0x18] sm:$0xff]
      %v612 = vld [vmem:[%s490 + $0x20] sm:$0xff]
      %v613 = vld [vmem:[%s490 + $0x28] sm:$0xff]
      %v614 = vld [vmem:[%s490 + $0x30] sm:$0xff]
      %v615 = vld [vmem:[%s490 + $0x38] sm:$0xff]
      %v616 = vld [vmem:[%s490 + $0x40] sm:$0xff]
      %v617 = vld [vmem:[%s490 + $0x48] sm:$0xff]
      %v618 = vld [vmem:[%s490 + $0x50] sm:$0xff]
      %v619 = vld [vmem:[%s490 + $0x58] sm:$0xff]
      %v620 = vld [vmem:[%s490 + $0x60] sm:$0xff]
      %v621 = vld [vmem:[%s490 + $0x68] sm:$0xff]
      %v622 = vld [vmem:[%s490 + $0x70] sm:$0xff]
      %v623 = vld [vmem:[%s490 + $0x78] sm:$0xff]
      %v624 = vld [vmem:[%s490 + $0x80] sm:$0xff]
      %v625 = vld [vmem:[%s490 + $0x88] sm:$0xff]
      %v626 = vld [vmem:[%s490 + $0x90] sm:$0xff]
      %v627 = vld [vmem:[%s490 + $0x98] sm:$0xff]
      %v628 = vld [vmem:[%s490 + $0xa0] sm:$0xff]
      %v629 = vld [vmem:[%s490 + $0xa8] sm:$0xff]
      %v630 = vld [vmem:[%s490 + $0xb0] sm:$0xff]
      %v631 = vld [vmem:[%s490 + $0xb8] sm:$0xff]
      %v632 = vld [vmem:[%s490 + $0xc0] sm:$0xff]
      %v633 = vld [vmem:[%s490 + $0xc8] sm:$0xff]
      %v634 = vld [vmem:[%s490 + $0xd0] sm:$0xff]
      %v635 = vld [vmem:[%s490 + $0xd8] sm:$0xff]
      %v636 = vld [vmem:[%s490 + $0xe0] sm:$0xff]
      %v637 = vld [vmem:[%s490 + $0xe8] sm:$0xff]
      %v638 = vld [vmem:[%s490 + $0xf0] sm:$0xff]
      %v639 = vld [vmem:[%s490 + $0xf8] sm:$0xff]
      %672 = vrot.lane.b32.xlu0 %v544, 8
      %v673 = vpop.permute.xlu0 %672
      %674 = vrot.lane.b32.xlu0 %v545, 8
      %v675 = vpop.permute.xlu0 %674
      %676 = vrot.lane.b32.xlu0 %v546, 8
      %v677 = vpop.permute.xlu0 %676
      %678 = vrot.lane.b32.xlu0 %v547, 8
      %v679 = vpop.permute.xlu0 %678
      %680 = vrot.lane.b32.xlu0 %v548, 8
      %v681 = vpop.permute.xlu0 %680
      %682 = vrot.lane.b32.xlu0 %v549, 8
      %v683 = vpop.permute.xlu0 %682
      %684 = vrot.lane.b32.xlu0 %v550, 8
      %v685 = vpop.permute.xlu0 %684
      %686 = vrot.lane.b32.xlu0 %v551, 8
      %v687 = vpop.permute.xlu0 %686
      %688 = vrot.lane.b32.xlu0 %v552, 8
      %v689 = vpop.permute.xlu0 %688
      %690 = vrot.lane.b32.xlu0 %v553, 8
      %v691 = vpop.permute.xlu0 %690
      %692 = vrot.lane.b32.xlu0 %v554, 8
      %v693 = vpop.permute.xlu0 %692
      %694 = vrot.lane.b32.xlu0 %v555, 8
      %v695 = vpop.permute.xlu0 %694
      %696 = vrot.lane.b32.xlu0 %v556, 8
      %v697 = vpop.permute.xlu0 %696
      %698 = vrot.lane.b32.xlu0 %v557, 8
      %v699 = vpop.permute.xlu0 %698
      %700 = vrot.lane.b32.xlu0 %v558, 8
      %v701 = vpop.permute.xlu0 %700
      %702 = vrot.lane.b32.xlu0 %v559, 8
      %v703 = vpop.permute.xlu0 %702
      %704 = vrot.lane.b32.xlu0 %v560, 8
      %v705 = vpop.permute.xlu0 %704
      %706 = vrot.lane.b32.xlu0 %v561, 8
      %v707 = vpop.permute.xlu0 %706
      %708 = vrot.lane.b32.xlu0 %v562, 8
      %v709 = vpop.permute.xlu0 %708
      %710 = vrot.lane.b32.xlu0 %v563, 8
      %v711 = vpop.permute.xlu0 %710
      %712 = vrot.lane.b32.xlu0 %v564, 8
      %v713 = vpop.permute.xlu0 %712
      %714 = vrot.lane.b32.xlu0 %v565, 8
      %v715 = vpop.permute.xlu0 %714
      %716 = vrot.lane.b32.xlu0 %v566, 8
      %v717 = vpop.permute.xlu0 %716
      %718 = vrot.lane.b32.xlu0 %v567, 8
      %v719 = vpop.permute.xlu0 %718
      %720 = vrot.lane.b32.xlu0 %v568, 8
      %v721 = vpop.permute.xlu0 %720
      %722 = vrot.lane.b32.xlu0 %v569, 8
      %v723 = vpop.permute.xlu0 %722
      %724 = vrot.lane.b32.xlu0 %v570, 8
      %v725 = vpop.permute.xlu0 %724
      %726 = vrot.lane.b32.xlu0 %v571, 8
      %v727 = vpop.permute.xlu0 %726
      %728 = vrot.lane.b32.xlu0 %v572, 8
      %v729 = vpop.permute.xlu0 %728
      %730 = vrot.lane.b32.xlu0 %v573, 8
      %v731 = vpop.permute.xlu0 %730
      %732 = vrot.lane.b32.xlu0 %v574, 8
      %v733 = vpop.permute.xlu0 %732
      %734 = vrot.lane.b32.xlu0 %v575, 8
      %v735 = vpop.permute.xlu0 %734
      %800 = vrot.lane.b32.xlu0 %v576, 16
      %v801 = vpop.permute.xlu0 %800
      %802 = vrot.lane.b32.xlu0 %v577, 16
      %v803 = vpop.permute.xlu0 %802
      %804 = vrot.lane.b32.xlu0 %v578, 16
      %v805 = vpop.permute.xlu0 %804
      %806 = vrot.lane.b32.xlu0 %v579, 16
      %v807 = vpop.permute.xlu0 %806
      %808 = vrot.lane.b32.xlu0 %v580, 16
      %v809 = vpop.permute.xlu0 %808
      %810 = vrot.lane.b32.xlu0 %v581, 16
      %v811 = vpop.permute.xlu0 %810
      %812 = vrot.lane.b32.xlu0 %v582, 16
      %v813 = vpop.permute.xlu0 %812
      %814 = vrot.lane.b32.xlu0 %v583, 16
      %v815 = vpop.permute.xlu0 %814
      %816 = vrot.lane.b32.xlu0 %v584, 16
      %v817 = vpop.permute.xlu0 %816
      %818 = vrot.lane.b32.xlu0 %v585, 16
      %v819 = vpop.permute.xlu0 %818
      %820 = vrot.lane.b32.xlu0 %v586, 16
      %v821 = vpop.permute.xlu0 %820
      %822 = vrot.lane.b32.xlu0 %v587, 16
      %v823 = vpop.permute.xlu0 %822
      %824 = vrot.lane.b32.xlu0 %v588, 16
      %v825 = vpop.permute.xlu0 %824
      %826 = vrot.lane.b32.xlu0 %v589, 16
      %v827 = vpop.permute.xlu0 %826
      %828 = vrot.lane.b32.xlu0 %v590, 16
      %v829 = vpop.permute.xlu0 %828
      %830 = vrot.lane.b32.xlu0 %v591, 16
      %v831 = vpop.permute.xlu0 %830
      %832 = vrot.lane.b32.xlu0 %v592, 16
      %v833 = vpop.permute.xlu0 %832
      %834 = vrot.lane.b32.xlu0 %v593, 16
      %v835 = vpop.permute.xlu0 %834
      %836 = vrot.lane.b32.xlu0 %v594, 16
      %v837 = vpop.permute.xlu0 %836
      %838 = vrot.lane.b32.xlu0 %v595, 16
      %v839 = vpop.permute.xlu0 %838
      %840 = vrot.lane.b32.xlu0 %v596, 16
      %v841 = vpop.permute.xlu0 %840
      %842 = vrot.lane.b32.xlu0 %v597, 16
      %v843 = vpop.permute.xlu0 %842
      %844 = vrot.lane.b32.xlu0 %v598, 16
      %v845 = vpop.permute.xlu0 %844
      %846 = vrot.lane.b32.xlu0 %v599, 16
      %v847 = vpop.permute.xlu0 %846
      %848 = vrot.lane.b32.xlu0 %v600, 16
      %v849 = vpop.permute.xlu0 %848
      %850 = vrot.lane.b32.xlu0 %v601, 16
      %v851 = vpop.permute.xlu0 %850
      %852 = vrot.lane.b32.xlu0 %v602, 16
      %v853 = vpop.permute.xlu0 %852
      %854 = vrot.lane.b32.xlu0 %v603, 16
      %v855 = vpop.permute.xlu0 %854
      %856 = vrot.lane.b32.xlu0 %v604, 16
      %v857 = vpop.permute.xlu0 %856
      %858 = vrot.lane.b32.xlu0 %v605, 16
      %v859 = vpop.permute.xlu0 %858
      %860 = vrot.lane.b32.xlu0 %v606, 16
      %v861 = vpop.permute.xlu0 %860
      %862 = vrot.lane.b32.xlu0 %v607, 16
      %v863 = vpop.permute.xlu0 %862
      %928 = vrot.lane.b32.xlu0 %v608, 24
      %v929 = vpop.permute.xlu0 %928
      %930 = vrot.lane.b32.xlu0 %v609, 24
      %v931 = vpop.permute.xlu0 %930
      %932 = vrot.lane.b32.xlu0 %v610, 24
      %v933 = vpop.permute.xlu0 %932
      %934 = vrot.lane.b32.xlu0 %v611, 24
      %v935 = vpop.permute.xlu0 %934
      %936 = vrot.lane.b32.xlu0 %v612, 24
      %v937 = vpop.permute.xlu0 %936
      %938 = vrot.lane.b32.xlu0 %v613, 24
      %v939 = vpop.permute.xlu0 %938
      %940 = vrot.lane.b32.xlu0 %v614, 24
      %v941 = vpop.permute.xlu0 %940
      %942 = vrot.lane.b32.xlu0 %v615, 24
      %v943 = vpop.permute.xlu0 %942
      %944 = vrot.lane.b32.xlu0 %v616, 24
      %v945 = vpop.permute.xlu0 %944
      %946 = vrot.lane.b32.xlu0 %v617, 24
      %v947 = vpop.permute.xlu0 %946
      %948 = vrot.lane.b32.xlu0 %v618, 24
      %v949 = vpop.permute.xlu0 %948
      %950 = vrot.lane.b32.xlu0 %v619, 24
      %v951 = vpop.permute.xlu0 %950
      %952 = vrot.lane.b32.xlu0 %v620, 24
      %v953 = vpop.permute.xlu0 %952
      %954 = vrot.lane.b32.xlu0 %v621, 24
      %v955 = vpop.permute.xlu0 %954
      %956 = vrot.lane.b32.xlu0 %v622, 24
      %v957 = vpop.permute.xlu0 %956
      %958 = vrot.lane.b32.xlu0 %v623, 24
      %v959 = vpop.permute.xlu0 %958
      %960 = vrot.lane.b32.xlu0 %v624, 24
      %v961 = vpop.permute.xlu0 %960
      %962 = vrot.lane.b32.xlu0 %v625, 24
      %v963 = vpop.permute.xlu0 %962
      %964 = vrot.lane.b32.xlu0 %v626, 24
      %v965 = vpop.permute.xlu0 %964
      %966 = vrot.lane.b32.xlu0 %v627, 24
      %v967 = vpop.permute.xlu0 %966
      %968 = vrot.lane.b32.xlu0 %v628, 24
      %v969 = vpop.permute.xlu0 %968
      %970 = vrot.lane.b32.xlu0 %v629, 24
      %v971 = vpop.permute.xlu0 %970
      %972 = vrot.lane.b32.xlu0 %v630, 24
      %v973 = vpop.permute.xlu0 %972
      %974 = vrot.lane.b32.xlu0 %v631, 24
      %v975 = vpop.permute.xlu0 %974
      %976 = vrot.lane.b32.xlu0 %v632, 24
      %v977 = vpop.permute.xlu0 %976
      %978 = vrot.lane.b32.xlu0 %v633, 24
      %v979 = vpop.permute.xlu0 %978
      %980 = vrot.lane.b32.xlu0 %v634, 24
      %v981 = vpop.permute.xlu0 %980
      %982 = vrot.lane.b32.xlu0 %v635, 24
      %v983 = vpop.permute.xlu0 %982
      %984 = vrot.lane.b32.xlu0 %v636, 24
      %v985 = vpop.permute.xlu0 %984
      %986 = vrot.lane.b32.xlu0 %v637, 24
      %v987 = vpop.permute.xlu0 %986
      %988 = vrot.lane.b32.xlu0 %v638, 24
      %v989 = vpop.permute.xlu0 %988
      %990 = vrot.lane.b32.xlu0 %v639, 24
      %v991 = vpop.permute.xlu0 %990
      %vm1024 = vcmask 64512
      %v1025 = vsel %vm1024, %v512, %v673
      %v1026 = vsel %vm1024, %v513, %v675
      %v1027 = vsel %vm1024, %v514, %v677
      %v1028 = vsel %vm1024, %v515, %v679
      %v1029 = vsel %vm1024, %v516, %v681
      %v1030 = vsel %vm1024, %v517, %v683
      %v1031 = vsel %vm1024, %v518, %v685
      %v1032 = vsel %vm1024, %v519, %v687
      %v1033 = vsel %vm1024, %v520, %v689
      %v1034 = vsel %vm1024, %v521, %v691
      %v1035 = vsel %vm1024, %v522, %v693
      %v1036 = vsel %vm1024, %v523, %v695
      %v1037 = vsel %vm1024, %v524, %v697
      %v1038 = vsel %vm1024, %v525, %v699
      %v1039 = vsel %vm1024, %v526, %v701
      %v1040 = vsel %vm1024, %v527, %v703
      %v1041 = vsel %vm1024, %v528, %v705
      %v1042 = vsel %vm1024, %v529, %v707
      %v1043 = vsel %vm1024, %v530, %v709
      %v1044 = vsel %vm1024, %v531, %v711
      %v1045 = vsel %vm1024, %v532, %v713
      %v1046 = vsel %vm1024, %v533, %v715
      %v1047 = vsel %vm1024, %v534, %v717
      %v1048 = vsel %vm1024, %v535, %v719
      %v1049 = vsel %vm1024, %v536, %v721
      %v1050 = vsel %vm1024, %v537, %v723
      %v1051 = vsel %vm1024, %v538, %v725
      %v1052 = vsel %vm1024, %v539, %v727
      %v1053 = vsel %vm1024, %v540, %v729
      %v1054 = vsel %vm1024, %v541, %v731
      %v1055 = vsel %vm1024, %v542, %v733
      %v1056 = vsel %vm1024, %v543, %v735
      %vm1057 = vcmask 130048
      %v1058 = vsel %vm1057, %v1025, %v801
      %v1059 = vsel %vm1057, %v1026, %v803
      %v1060 = vsel %vm1057, %v1027, %v805
      %v1061 = vsel %vm1057, %v1028, %v807
      %v1062 = vsel %vm1057, %v1029, %v809
      %v1063 = vsel %vm1057, %v1030, %v811
      %v1064 = vsel %vm1057, %v1031, %v813
      %v1065 = vsel %vm1057, %v1032, %v815
      %v1066 = vsel %vm1057, %v1033, %v817
      %v1067 = vsel %vm1057, %v1034, %v819
      %v1068 = vsel %vm1057, %v1035, %v821
      %v1069 = vsel %vm1057, %v1036, %v823
      %v1070 = vsel %vm1057, %v1037, %v825
      %v1071 = vsel %vm1057, %v1038, %v827
      %v1072 = vsel %vm1057, %v1039, %v829
      %v1073 = vsel %vm1057, %v1040, %v831
      %v1074 = vsel %vm1057, %v1041, %v833
      %v1075 = vsel %vm1057, %v1042, %v835
      %v1076 = vsel %vm1057, %v1043, %v837
      %v1077 = vsel %vm1057, %v1044, %v839
      %v1078 = vsel %vm1057, %v1045, %v841
      %v1079 = vsel %vm1057, %v1046, %v843
      %v1080 = vsel %vm1057, %v1047, %v845
      %v1081 = vsel %vm1057, %v1048, %v847
      %v1082 = vsel %vm1057, %v1049, %v849
      %v1083 = vsel %vm1057, %v1050, %v851
      %v1084 = vsel %vm1057, %v1051, %v853
      %v1085 = vsel %vm1057, %v1052, %v855
      %v1086 = vsel %vm1057, %v1053, %v857
      %v1087 = vsel %vm1057, %v1054, %v859
      %v1088 = vsel %vm1057, %v1055, %v861
      %v1089 = vsel %vm1057, %v1056, %v863
      %vm1090 = vcmask 195584
      %v1091 = vsel %vm1090, %v1058, %v929
      %v1092 = vsel %vm1090, %v1059, %v931
      %v1093 = vsel %vm1090, %v1060, %v933
      %v1094 = vsel %vm1090, %v1061, %v935
      %v1095 = vsel %vm1090, %v1062, %v937
      %v1096 = vsel %vm1090, %v1063, %v939
      %v1097 = vsel %vm1090, %v1064, %v941
      %v1098 = vsel %vm1090, %v1065, %v943
      %v1099 = vsel %vm1090, %v1066, %v945
      %v1100 = vsel %vm1090, %v1067, %v947
      %v1101 = vsel %vm1090, %v1068, %v949
      %v1102 = vsel %vm1090, %v1069, %v951
      %v1103 = vsel %vm1090, %v1070, %v953
      %v1104 = vsel %vm1090, %v1071, %v955
      %v1105 = vsel %vm1090, %v1072, %v957
      %v1106 = vsel %vm1090, %v1073, %v959
      %v1107 = vsel %vm1090, %v1074, %v961
      %v1108 = vsel %vm1090, %v1075, %v963
      %v1109 = vsel %vm1090, %v1076, %v965
      %v1110 = vsel %vm1090, %v1077, %v967
      %v1111 = vsel %vm1090, %v1078, %v969
      %v1112 = vsel %vm1090, %v1079, %v971
      %v1113 = vsel %vm1090, %v1080, %v973
      %v1114 = vsel %vm1090, %v1081, %v975
      %v1115 = vsel %vm1090, %v1082, %v977
      %v1116 = vsel %vm1090, %v1083, %v979
      %v1117 = vsel %vm1090, %v1084, %v981
      %v1118 = vsel %vm1090, %v1085, %v983
      %v1119 = vsel %vm1090, %v1086, %v985
      %v1120 = vsel %vm1090, %v1087, %v987
      %v1121 = vsel %vm1090, %v1088, %v989
      %v1122 = vsel %vm1090, %v1089, %v991
      %vm1123 = vcmask 261120
      %1124 = vst.msk [vmem:[#allocation2] sm:$0xff] %vm1123, %v1091
      %1125 = vst.msk [vmem:[#allocation2 + $0x8] sm:$0xff] %vm1123, %v1092
      %1126 = vst.msk [vmem:[#allocation2 + $0x10] sm:$0xff] %vm1123, %v1093
      %1127 = vst.msk [vmem:[#allocation2 + $0x18] sm:$0xff] %vm1123, %v1094
      %1128 = vst.msk [vmem:[#allocation2 + $0x20] sm:$0xff] %vm1123, %v1095
      %1129 = vst.msk [vmem:[#allocation2 + $0x28] sm:$0xff] %vm1123, %v1096
      %1130 = vst.msk [vmem:[#allocation2 + $0x30] sm:$0xff] %vm1123, %v1097
      %1131 = vst.msk [vmem:[#allocation2 + $0x38] sm:$0xff] %vm1123, %v1098
      %1132 = vst.msk [vmem:[#allocation2 + $0x40] sm:$0xff] %vm1123, %v1099
      %1133 = vst.msk [vmem:[#allocation2 + $0x48] sm:$0xff] %vm1123, %v1100
      %1134 = vst.msk [vmem:[#allocation2 + $0x50] sm:$0xff] %vm1123, %v1101
      %1135 = vst.msk [vmem:[#allocation2 + $0x58] sm:$0xff] %vm1123, %v1102
      %1136 = vst.msk [vmem:[#allocation2 + $0x60] sm:$0xff] %vm1123, %v1103
      %1137 = vst.msk [vmem:[#allocation2 + $0x68] sm:$0xff] %vm1123, %v1104
      %1138 = vst.msk [vmem:[#allocation2 + $0x70] sm:$0xff] %vm1123, %v1105
      %1139 = vst.msk [vmem:[#allocation2 + $0x78] sm:$0xff] %vm1123, %v1106
      %1140 = vst.msk [vmem:[#allocation2 + $0x80] sm:$0xff] %vm1123, %v1107
      %1141 = vst.msk [vmem:[#allocation2 + $0x88] sm:$0xff] %vm1123, %v1108
      %1142 = vst.msk [vmem:[#allocation2 + $0x90] sm:$0xff] %vm1123, %v1109
      %1143 = vst.msk [vmem:[#allocation2 + $0x98] sm:$0xff] %vm1123, %v1110
      %1144 = vst.msk [vmem:[#allocation2 + $0xa0] sm:$0xff] %vm1123, %v1111
      %1145 = vst.msk [vmem:[#allocation2 + $0xa8] sm:$0xff] %vm1123, %v1112
      %1146 = vst.msk [vmem:[#allocation2 + $0xb0] sm:$0xff] %vm1123, %v1113
      %1147 = vst.msk [vmem:[#allocation2 + $0xb8] sm:$0xff] %vm1123, %v1114
      %1148 = vst.msk [vmem:[#allocation2 + $0xc0] sm:$0xff] %vm1123, %v1115
      %1149 = vst.msk [vmem:[#allocation2 + $0xc8] sm:$0xff] %vm1123, %v1116
      %1150 = vst.msk [vmem:[#allocation2 + $0xd0] sm:$0xff] %vm1123, %v1117
      %1151 = vst.msk [vmem:[#allocation2 + $0xd8] sm:$0xff] %vm1123, %v1118
      %1152 = vst.msk [vmem:[#allocation2 + $0xe0] sm:$0xff] %vm1123, %v1119
      %1153 = vst.msk [vmem:[#allocation2 + $0xe8] sm:$0xff] %vm1123, %v1120
      %1154 = vst.msk [vmem:[#allocation2 + $0xf0] sm:$0xff] %vm1123, %v1121
      %1155 = vst.msk [vmem:[#allocation2 + $0xf8] sm:$0xff] %vm1123, %v1122
      %v1156 = vpack.c.bf16 %v1092, %v1091
      %v1157 = vpack.c.bf16 %v1094, %v1093
      %v1158 = vpack.c.bf16 %v1096, %v1095
      %v1159 = vpack.c.bf16 %v1098, %v1097
      %v1160 = vpack.c.bf16 %v1100, %v1099
      %v1161 = vpack.c.bf16 %v1102, %v1101
      %v1162 = vpack.c.bf16 %v1104, %v1103
      %v1163 = vpack.c.bf16 %v1106, %v1105
      %v1164 = vpack.c.bf16 %v1108, %v1107
      %v1165 = vpack.c.bf16 %v1110, %v1109
      %v1166 = vpack.c.bf16 %v1112, %v1111
      %v1167 = vpack.c.bf16 %v1114, %v1113
      %v1168 = vpack.c.bf16 %v1116, %v1115
      %v1169 = vpack.c.bf16 %v1118, %v1117
      %v1170 = vpack.c.bf16 %v1120, %v1119
      %v1171 = vpack.c.bf16 %v1122, %v1121
      %v1172 = vld [vmem:[%s4] sm:$0xff]
      %v1173 = vld [vmem:[%s4 + $0x8] sm:$0xff]
      %v1174 = vld [vmem:[%s4 + $0x10] sm:$0xff]
      %v1175 = vld [vmem:[%s4 + $0x18] sm:$0xff]
      %v1176 = vpack.c.bf16 %v1173, %v1172
      %v1177 = vpack.c.bf16 %v1175, %v1174
      %v1179 = vsel %vm1123, %v1156, 0
      %v1182 = vsel %vm1123, %v1157, 0
      %v1185 = vsel %vm1123, %v1158, 0
      %v1188 = vsel %vm1123, %v1159, 0
      %v1191 = vsel %vm1123, %v1160, 0
      %v1194 = vsel %vm1123, %v1161, 0
      %v1197 = vsel %vm1123, %v1162, 0
      %v1200 = vsel %vm1123, %v1163, 0
      %v1203 = vsel %vm1123, %v1164, 0
      %v1206 = vsel %vm1123, %v1165, 0
      %v1209 = vsel %vm1123, %v1166, 0
      %v1212 = vsel %vm1123, %v1167, 0
      %v1215 = vsel %vm1123, %v1168, 0
      %v1218 = vsel %vm1123, %v1169, 0
      %v1221 = vsel %vm1123, %v1170, 0
      %v1224 = vsel %vm1123, %v1171, 0
      %1226 = vmatprep.subr.bf16.mxu0 0
      %1227 = vmatpush1.bf16.msra.mxu0 0
      %1228 = vmatprep.subr.bf16.mxu0 0
      %1229 = vmatpush1.bf16.msra.mxu0 0
      %1230 = vmatprep.subr.bf16.mxu0 0
      %1231 = vmatpush1.bf16.msra.mxu0 0
      %1232 = vmatprep.subr.bf16.mxu0 0
      %1233 = vmatpush1.bf16.msra.mxu0 0
      %1234 = vmatprep.subr.bf16.mxu0 0
      %1235 = vmatpush1.bf16.msra.mxu0 0
      %1236 = vmatprep.subr.bf16.mxu0 0
      %1237 = vmatpush1.bf16.msra.mxu0 0
      %1238 = vmatprep.subr.bf16.mxu0 0
      %1239 = vmatpush1.bf16.msra.mxu0 %v1177
      %1240 = vmatprep.subr.bf16.mxu0 0
      %1241 = vmatpush1.bf16.msra.mxu0 %v1176
      %1242 = vmatprep.subr.bf16.mxu0 0
      %1243 = vmatpush2.bf16.msra.mxu0 0
      %1244 = vmatprep.subr.bf16.mxu0 0
      %1245 = vmatpush2.bf16.msra.mxu0 0
      %1246 = vmatprep.subr.bf16.mxu0 0
      %1247 = vmatpush2.bf16.msra.mxu0 0
      %1248 = vmatprep.subr.bf16.mxu0 0
      %1249 = vmatpush2.bf16.msra.mxu0 0
      %1250 = vmatprep.subr.bf16.mxu0 0
      %1251 = vmatpush2.bf16.msra.mxu0 0
      %1252 = vmatprep.subr.bf16.mxu0 0
      %1253 = vmatpush2.bf16.msra.mxu0 0
      %1254 = vmatprep.subr.bf16.mxu0 0
      %1255 = vmatpush2.bf16.msra.mxu0 0
      %1256 = vmatprep.subr.bf16.mxu0 0
      %1257 = vmatpush2.bf16.msra.mxu0 0
      %1258 = vmatprep.mubr.bf16.mxu0 0
      %1259 = vmatmul.mubr.bf16.gmra.mxu0 %v1179
      %v1260 = vpop.f32.mrf.mxu0
      %v1261 = vadd.f32 0.0, %v1260
      %v1262 = vpop.f32.mrf.mxu0
      %v1263 = vpop.f32.mrf.mxu0
      %v1264 = vadd.f32 0.0, %v1263
      %v1265 = vpop.f32.mrf.mxu0
      %1266 = vmatprep.mubr.bf16.mxu0 0
      %1267 = vmatmul.mubr.bf16.gmra.mxu0 %v1182
      %v1268 = vpop.f32.mrf.mxu0
      %v1269 = vadd.f32 0.0, %v1268
      %v1270 = vpop.f32.mrf.mxu0
      %v1271 = vpop.f32.mrf.mxu0
      %v1272 = vadd.f32 0.0, %v1271
      %v1273 = vpop.f32.mrf.mxu0
      %1274 = vmatprep.mubr.bf16.mxu0 0
      %1275 = vmatmul.mubr.bf16.gmra.mxu0 %v1185
      %v1276 = vpop.f32.mrf.mxu0
      %v1277 = vadd.f32 0.0, %v1276
      %v1278 = vpop.f32.mrf.mxu0
      %v1279 = vpop.f32.mrf.mxu0
      %v1280 = vadd.f32 0.0, %v1279
      %v1281 = vpop.f32.mrf.mxu0
      %1282 = vmatprep.mubr.bf16.mxu0 0
      %1283 = vmatmul.mubr.bf16.gmra.mxu0 %v1188
      %v1284 = vpop.f32.mrf.mxu0
      %v1285 = vadd.f32 0.0, %v1284
      %v1286 = vpop.f32.mrf.mxu0
      %v1287 = vpop.f32.mrf.mxu0
      %v1288 = vadd.f32 0.0, %v1287
      %v1289 = vpop.f32.mrf.mxu0
      %1290 = vmatprep.mubr.bf16.mxu0 0
      %1291 = vmatmul.mubr.bf16.gmra.mxu0 %v1191
      %v1292 = vpop.f32.mrf.mxu0
      %v1293 = vadd.f32 0.0, %v1292
      %v1294 = vpop.f32.mrf.mxu0
      %v1295 = vpop.f32.mrf.mxu0
      %v1296 = vadd.f32 0.0, %v1295
      %v1297 = vpop.f32.mrf.mxu0
      %1298 = vmatprep.mubr.bf16.mxu0 0
      %1299 = vmatmul.mubr.bf16.gmra.mxu0 %v1194
      %v1300 = vpop.f32.mrf.mxu0
      %v1301 = vadd.f32 0.0, %v1300
      %v1302 = vpop.f32.mrf.mxu0
      %v1303 = vpop.f32.mrf.mxu0
      %v1304 = vadd.f32 0.0, %v1303
      %v1305 = vpop.f32.mrf.mxu0
      %1306 = vmatprep.mubr.bf16.mxu0 0
      %1307 = vmatmul.mubr.bf16.gmra.mxu0 %v1197
      %v1308 = vpop.f32.mrf.mxu0
      %v1309 = vadd.f32 0.0, %v1308
      %v1310 = vpop.f32.mrf.mxu0
      %v1311 = vpop.f32.mrf.mxu0
      %v1312 = vadd.f32 0.0, %v1311
      %v1313 = vpop.f32.mrf.mxu0
      %1314 = vmatprep.mubr.bf16.mxu0 0
      %1315 = vmatmul.mubr.bf16.gmra.mxu0 %v1200
      %v1316 = vpop.f32.mrf.mxu0
      %v1317 = vadd.f32 0.0, %v1316
      %v1318 = vpop.f32.mrf.mxu0
      %v1319 = vpop.f32.mrf.mxu0
      %v1320 = vadd.f32 0.0, %v1319
      %v1321 = vpop.f32.mrf.mxu0
      %1322 = vmatprep.mubr.bf16.mxu0 0
      %1323 = vmatmul.mubr.bf16.gmra.mxu0 %v1203
      %v1324 = vpop.f32.mrf.mxu0
      %v1325 = vadd.f32 0.0, %v1324
      %v1326 = vpop.f32.mrf.mxu0
      %v1327 = vpop.f32.mrf.mxu0
      %v1328 = vadd.f32 0.0, %v1327
      %v1329 = vpop.f32.mrf.mxu0
      %1330 = vmatprep.mubr.bf16.mxu0 0
      %1331 = vmatmul.mubr.bf16.gmra.mxu0 %v1206
      %v1332 = vpop.f32.mrf.mxu0
      %v1333 = vadd.f32 0.0, %v1332
      %v1334 = vpop.f32.mrf.mxu0
      %v1335 = vpop.f32.mrf.mxu0
      %v1336 = vadd.f32 0.0, %v1335
      %v1337 = vpop.f32.mrf.mxu0
      %1338 = vmatprep.mubr.bf16.mxu0 0
      %1339 = vmatmul.mubr.bf16.gmra.mxu0 %v1209
      %v1340 = vpop.f32.mrf.mxu0
      %v1341 = vadd.f32 0.0, %v1340
      %v1342 = vpop.f32.mrf.mxu0
      %v1343 = vpop.f32.mrf.mxu0
      %v1344 = vadd.f32 0.0, %v1343
      %v1345 = vpop.f32.mrf.mxu0
      %1346 = vmatprep.mubr.bf16.mxu0 0
      %1347 = vmatmul.mubr.bf16.gmra.mxu0 %v1212
      %v1348 = vpop.f32.mrf.mxu0
      %v1349 = vadd.f32 0.0, %v1348
      %v1350 = vpop.f32.mrf.mxu0
      %v1351 = vpop.f32.mrf.mxu0
      %v1352 = vadd.f32 0.0, %v1351
      %v1353 = vpop.f32.mrf.mxu0
      %1354 = vmatprep.mubr.bf16.mxu0 0
      %1355 = vmatmul.mubr.bf16.gmra.mxu0 %v1215
      %v1356 = vpop.f32.mrf.mxu0
      %v1357 = vadd.f32 0.0, %v1356
      %v1358 = vpop.f32.mrf.mxu0
      %v1359 = vpop.f32.mrf.mxu0
      %v1360 = vadd.f32 0.0, %v1359
      %v1361 = vpop.f32.mrf.mxu0
      %1362 = vmatprep.mubr.bf16.mxu0 0
      %1363 = vmatmul.mubr.bf16.gmra.mxu0 %v1218
      %v1364 = vpop.f32.mrf.mxu0
      %v1365 = vadd.f32 0.0, %v1364
      %v1366 = vpop.f32.mrf.mxu0
      %v1367 = vpop.f32.mrf.mxu0
      %v1368 = vadd.f32 0.0, %v1367
      %v1369 = vpop.f32.mrf.mxu0
      %1370 = vmatprep.mubr.bf16.mxu0 0
      %1371 = vmatmul.mubr.bf16.gmra.mxu0 %v1221
      %v1372 = vpop.f32.mrf.mxu0
      %v1373 = vadd.f32 0.0, %v1372
      %v1374 = vpop.f32.mrf.mxu0
      %v1375 = vpop.f32.mrf.mxu0
      %v1376 = vadd.f32 0.0, %v1375
      %v1377 = vpop.f32.mrf.mxu0
      %1378 = vmatprep.mubr.bf16.mxu0 0
      %1379 = vmatmul.mubr.bf16.gmra.mxu0 %v1224
      %v1380 = vpop.f32.mrf.mxu0
      %v1381 = vadd.f32 0.0, %v1380
      %v1382 = vpop.f32.mrf.mxu0
      %v1383 = vpop.f32.mrf.mxu0
      %v1384 = vadd.f32 0.0, %v1383
      %v1385 = vpop.f32.mrf.mxu0
      %1386 = vdwg.mxu0
      %1387 = vst.msk [vmem:[#allocation4] sm:$0xff] %vm1057, %v1261
      %1388 = vst.msk [vmem:[#allocation4 + $0x8] sm:$0xff] %vm1057, %v1264
      %1389 = vst.msk [vmem:[#allocation4 + $0x10] sm:$0xff] %vm1057, %v1269
      %1390 = vst.msk [vmem:[#allocation4 + $0x18] sm:$0xff] %vm1057, %v1272
      %1391 = vst.msk [vmem:[#allocation4 + $0x20] sm:$0xff] %vm1057, %v1277
      %1392 = vst.msk [vmem:[#allocation4 + $0x28] sm:$0xff] %vm1057, %v1280
      %1393 = vst.msk [vmem:[#allocation4 + $0x30] sm:$0xff] %vm1057, %v1285
      %1394 = vst.msk [vmem:[#allocation4 + $0x38] sm:$0xff] %vm1057, %v1288
      %1395 = vst.msk [vmem:[#allocation4 + $0x40] sm:$0xff] %vm1057, %v1293
      %1396 = vst.msk [vmem:[#allocation4 + $0x48] sm:$0xff] %vm1057, %v1296
      %1397 = vst.msk [vmem:[#allocation4 + $0x50] sm:$0xff] %vm1057, %v1301
      %1398 = vst.msk [vmem:[#allocation4 + $0x58] sm:$0xff] %vm1057, %v1304
      %1399 = vst.msk [vmem:[#allocation4 + $0x60] sm:$0xff] %vm1057, %v1309
      %1400 = vst.msk [vmem:[#allocation4 + $0x68] sm:$0xff] %vm1057, %v1312
      %1401 = vst.msk [vmem:[#allocation4 + $0x70] sm:$0xff] %vm1057, %v1317
      %1402 = vst.msk [vmem:[#allocation4 + $0x78] sm:$0xff] %vm1057, %v1320
      %1403 = vst.msk [vmem:[#allocation4 + $0x80] sm:$0xff] %vm1057, %v1325
      %1404 = vst.msk [vmem:[#allocation4 + $0x88] sm:$0xff] %vm1057, %v1328
      %1405 = vst.msk [vmem:[#allocation4 + $0x90] sm:$0xff] %vm1057, %v1333
      %1406 = vst.msk [vmem:[#allocation4 + $0x98] sm:$0xff] %vm1057, %v1336
      %1407 = vst.msk [vmem:[#allocation4 + $0xa0] sm:$0xff] %vm1057, %v1341
      %1408 = vst.msk [vmem:[#allocation4 + $0xa8] sm:$0xff] %vm1057, %v1344
      %1409 = vst.msk [vmem:[#allocation4 + $0xb0] sm:$0xff] %vm1057, %v1349
      %1410 = vst.msk [vmem:[#allocation4 + $0xb8] sm:$0xff] %vm1057, %v1352
      %1411 = vst.msk [vmem:[#allocation4 + $0xc0] sm:$0xff] %vm1057, %v1357
      %1412 = vst.msk [vmem:[#allocation4 + $0xc8] sm:$0xff] %vm1057, %v1360
      %1413 = vst.msk [vmem:[#allocation4 + $0xd0] sm:$0xff] %vm1057, %v1365
      %1414 = vst.msk [vmem:[#allocation4 + $0xd8] sm:$0xff] %vm1057, %v1368
      %1415 = vst.msk [vmem:[#allocation4 + $0xe0] sm:$0xff] %vm1057, %v1373
      %1416 = vst.msk [vmem:[#allocation4 + $0xe8] sm:$0xff] %vm1057, %v1376
      %1417 = vst.msk [vmem:[#allocation4 + $0xf0] sm:$0xff] %vm1057, %v1381
      %1418 = vst.msk [vmem:[#allocation4 + $0xf8] sm:$0xff] %vm1057, %v1384
      %1451 = vrot.lane.b32.xlu0 %v1261, 112
      %v1452 = vpop.permute.xlu0 %1451
      %1453 = vrot.lane.b32.xlu0 %v1264, 112
      %v1454 = vpop.permute.xlu0 %1453
      %1455 = vrot.lane.b32.xlu0 %v1269, 112
      %v1456 = vpop.permute.xlu0 %1455
      %1457 = vrot.lane.b32.xlu0 %v1272, 112
      %v1458 = vpop.permute.xlu0 %1457
      %1459 = vrot.lane.b32.xlu0 %v1277, 112
      %v1460 = vpop.permute.xlu0 %1459
      %1461 = vrot.lane.b32.xlu0 %v1280, 112
      %v1462 = vpop.permute.xlu0 %1461
      %1463 = vrot.lane.b32.xlu0 %v1285, 112
      %v1464 = vpop.permute.xlu0 %1463
      %1465 = vrot.lane.b32.xlu0 %v1288, 112
      %v1466 = vpop.permute.xlu0 %1465
      %1467 = vrot.lane.b32.xlu0 %v1293, 112
      %v1468 = vpop.permute.xlu0 %1467
      %1469 = vrot.lane.b32.xlu0 %v1296, 112
      %v1470 = vpop.permute.xlu0 %1469
      %1471 = vrot.lane.b32.xlu0 %v1301, 112
      %v1472 = vpop.permute.xlu0 %1471
      %1473 = vrot.lane.b32.xlu0 %v1304, 112
      %v1474 = vpop.permute.xlu0 %1473
      %1475 = vrot.lane.b32.xlu0 %v1309, 112
      %v1476 = vpop.permute.xlu0 %1475
      %1477 = vrot.lane.b32.xlu0 %v1312, 112
      %v1478 = vpop.permute.xlu0 %1477
      %1479 = vrot.lane.b32.xlu0 %v1317, 112
      %v1480 = vpop.permute.xlu0 %1479
      %1481 = vrot.lane.b32.xlu0 %v1320, 112
      %v1482 = vpop.permute.xlu0 %1481
      %1483 = vrot.lane.b32.xlu0 %v1325, 112
      %v1484 = vpop.permute.xlu0 %1483
      %1485 = vrot.lane.b32.xlu0 %v1328, 112
      %v1486 = vpop.permute.xlu0 %1485
      %1487 = vrot.lane.b32.xlu0 %v1333, 112
      %v1488 = vpop.permute.xlu0 %1487
      %1489 = vrot.lane.b32.xlu0 %v1336, 112
      %v1490 = vpop.permute.xlu0 %1489
      %1491 = vrot.lane.b32.xlu0 %v1341, 112
      %v1492 = vpop.permute.xlu0 %1491
      %1493 = vrot.lane.b32.xlu0 %v1344, 112
      %v1494 = vpop.permute.xlu0 %1493
      %1495 = vrot.lane.b32.xlu0 %v1349, 112
      %v1496 = vpop.permute.xlu0 %1495
      %1497 = vrot.lane.b32.xlu0 %v1352, 112
      %v1498 = vpop.permute.xlu0 %1497
      %1499 = vrot.lane.b32.xlu0 %v1357, 112
      %v1500 = vpop.permute.xlu0 %1499
      %1501 = vrot.lane.b32.xlu0 %v1360, 112
      %v1502 = vpop.permute.xlu0 %1501
      %1503 = vrot.lane.b32.xlu0 %v1365, 112
      %v1504 = vpop.permute.xlu0 %1503
      %1505 = vrot.lane.b32.xlu0 %v1368, 112
      %v1506 = vpop.permute.xlu0 %1505
      %1507 = vrot.lane.b32.xlu0 %v1373, 112
      %v1508 = vpop.permute.xlu0 %1507
      %1509 = vrot.lane.b32.xlu0 %v1376, 112
      %v1510 = vpop.permute.xlu0 %1509
      %1511 = vrot.lane.b32.xlu0 %v1381, 112
      %v1512 = vpop.permute.xlu0 %1511
      %1513 = vrot.lane.b32.xlu0 %v1384, 112
      %v1514 = vpop.permute.xlu0 %1513
      %1547 = vst.msk [vmem:[#allocation5] sm:$0xff] %vm1057, %v1452
      %1548 = vst.msk [vmem:[#allocation5 + $0x8] sm:$0xff] %vm1057, %v1454
      %1549 = vst.msk [vmem:[#allocation5 + $0x10] sm:$0xff] %vm1057, %v1456
      %1550 = vst.msk [vmem:[#allocation5 + $0x18] sm:$0xff] %vm1057, %v1458
      %1551 = vst.msk [vmem:[#allocation5 + $0x20] sm:$0xff] %vm1057, %v1460
      %1552 = vst.msk [vmem:[#allocation5 + $0x28] sm:$0xff] %vm1057, %v1462
      %1553 = vst.msk [vmem:[#allocation5 + $0x30] sm:$0xff] %vm1057, %v1464
      %1554 = vst.msk [vmem:[#allocation5 + $0x38] sm:$0xff] %vm1057, %v1466
      %1555 = vst.msk [vmem:[#allocation5 + $0x40] sm:$0xff] %vm1057, %v1468
      %1556 = vst.msk [vmem:[#allocation5 + $0x48] sm:$0xff] %vm1057, %v1470
      %1557 = vst.msk [vmem:[#allocation5 + $0x50] sm:$0xff] %vm1057, %v1472
      %1558 = vst.msk [vmem:[#allocation5 + $0x58] sm:$0xff] %vm1057, %v1474
      %1559 = vst.msk [vmem:[#allocation5 + $0x60] sm:$0xff] %vm1057, %v1476
      %1560 = vst.msk [vmem:[#allocation5 + $0x68] sm:$0xff] %vm1057, %v1478
      %1561 = vst.msk [vmem:[#allocation5 + $0x70] sm:$0xff] %vm1057, %v1480
      %1562 = vst.msk [vmem:[#allocation5 + $0x78] sm:$0xff] %vm1057, %v1482
      %1563 = vst.msk [vmem:[#allocation5 + $0x80] sm:$0xff] %vm1057, %v1484
      %1564 = vst.msk [vmem:[#allocation5 + $0x88] sm:$0xff] %vm1057, %v1486
      %1565 = vst.msk [vmem:[#allocation5 + $0x90] sm:$0xff] %vm1057, %v1488
      %1566 = vst.msk [vmem:[#allocation5 + $0x98] sm:$0xff] %vm1057, %v1490
      %1567 = vst.msk [vmem:[#allocation5 + $0xa0] sm:$0xff] %vm1057, %v1492
      %1568 = vst.msk [vmem:[#allocation5 + $0xa8] sm:$0xff] %vm1057, %v1494
      %1569 = vst.msk [vmem:[#allocation5 + $0xb0] sm:$0xff] %vm1057, %v1496
      %1570 = vst.msk [vmem:[#allocation5 + $0xb8] sm:$0xff] %vm1057, %v1498
      %1571 = vst.msk [vmem:[#allocation5 + $0xc0] sm:$0xff] %vm1057, %v1500
      %1572 = vst.msk [vmem:[#allocation5 + $0xc8] sm:$0xff] %vm1057, %v1502
      %1573 = vst.msk [vmem:[#allocation5 + $0xd0] sm:$0xff] %vm1057, %v1504
      %1574 = vst.msk [vmem:[#allocation5 + $0xd8] sm:$0xff] %vm1057, %v1506
      %1575 = vst.msk [vmem:[#allocation5 + $0xe0] sm:$0xff] %vm1057, %v1508
      %1576 = vst.msk [vmem:[#allocation5 + $0xe8] sm:$0xff] %vm1057, %v1510
      %1577 = vst.msk [vmem:[#allocation5 + $0xf0] sm:$0xff] %vm1057, %v1512
      %1578 = vst.msk [vmem:[#allocation5 + $0xf8] sm:$0xff] %vm1057, %v1514
      %v1579 = vld [vmem:[%s5] sm:$0xff]
      %v1580 = vld [vmem:[%s5 + $0x8] sm:$0xff]
      %v1581 = vld [vmem:[%s5 + $0x10] sm:$0xff]
      %v1582 = vld [vmem:[%s5 + $0x18] sm:$0xff]
      %v1583 = vpack.c.bf16 %v1580, %v1579
      %v1584 = vpack.c.bf16 %v1582, %v1581
      %v1585 = vld [vmem:[%s6] sm:$0x1]
      %v1587 = vlaneseq
      %v1588 = vshrl.u32 %v1587, 7
      %v1589 = vsub.s32 0, %v1588
      %v1590 = vrot.slane %v1585, %v1589
      %1592 = vmatprep.subr.bf16.mxu0 0
      %1593 = vmatpush1.bf16.msra.mxu0 0
      %1594 = vmatprep.subr.bf16.mxu0 0
      %1595 = vmatpush1.bf16.msra.mxu0 0
      %1596 = vmatprep.subr.bf16.mxu0 0
      %1597 = vmatpush1.bf16.msra.mxu0 0
      %1598 = vmatprep.subr.bf16.mxu0 0
      %1599 = vmatpush1.bf16.msra.mxu0 0
      %1600 = vmatprep.subr.bf16.mxu0 0
      %1601 = vmatpush1.bf16.msra.mxu0 0
      %1602 = vmatprep.subr.bf16.mxu0 0
      %1603 = vmatpush1.bf16.msra.mxu0 0
      %1604 = vmatprep.subr.bf16.mxu0 0
      %1605 = vmatpush1.bf16.msra.mxu0 %v1584
      %1606 = vmatprep.subr.bf16.mxu0 0
      %1607 = vmatpush1.bf16.msra.mxu0 %v1583
      %1608 = vmatprep.subr.bf16.mxu0 0
      %1609 = vmatpush2.bf16.msra.mxu0 0
      %1610 = vmatprep.subr.bf16.mxu0 0
      %1611 = vmatpush2.bf16.msra.mxu0 0
      %1612 = vmatprep.subr.bf16.mxu0 0
      %1613 = vmatpush2.bf16.msra.mxu0 0
      %1614 = vmatprep.subr.bf16.mxu0 0
      %1615 = vmatpush2.bf16.msra.mxu0 0
      %1616 = vmatprep.subr.bf16.mxu0 0
      %1617 = vmatpush2.bf16.msra.mxu0 0
      %1618 = vmatprep.subr.bf16.mxu0 0
      %1619 = vmatpush2.bf16.msra.mxu0 0
      %1620 = vmatprep.subr.bf16.mxu0 0
      %1621 = vmatpush2.bf16.msra.mxu0 0
      %1622 = vmatprep.subr.bf16.mxu0 0
      %1623 = vmatpush2.bf16.msra.mxu0 0
      %1624 = vmatprep.mubr.bf16.mxu0 0
      %1625 = vmatmul.mubr.bf16.gmra.mxu0 %v1179
      %v1626 = vpop.f32.mrf.mxu0
      %v1627 = vadd.f32 %v1590, %v1626
      %v1628 = vpop.f32.mrf.mxu0
      %v1629 = vpop.f32.mrf.mxu0
      %v1630 = vadd.f32 %v1590, %v1629
      %v1631 = vpop.f32.mrf.mxu0
      %1632 = vmatprep.mubr.bf16.mxu0 0
      %1633 = vmatmul.mubr.bf16.gmra.mxu0 %v1182
      %v1634 = vpop.f32.mrf.mxu0
      %v1635 = vadd.f32 %v1590, %v1634
      %v1636 = vpop.f32.mrf.mxu0
      %v1637 = vpop.f32.mrf.mxu0
      %v1638 = vadd.f32 %v1590, %v1637
      %v1639 = vpop.f32.mrf.mxu0
      %1640 = vmatprep.mubr.bf16.mxu0 0
      %1641 = vmatmul.mubr.bf16.gmra.mxu0 %v1185
      %v1642 = vpop.f32.mrf.mxu0
      %v1643 = vadd.f32 %v1590, %v1642
      %v1644 = vpop.f32.mrf.mxu0
      %v1645 = vpop.f32.mrf.mxu0
      %v1646 = vadd.f32 %v1590, %v1645
      %v1647 = vpop.f32.mrf.mxu0
      %1648 = vmatprep.mubr.bf16.mxu0 0
      %1649 = vmatmul.mubr.bf16.gmra.mxu0 %v1188
      %v1650 = vpop.f32.mrf.mxu0
      %v1651 = vadd.f32 %v1590, %v1650
      %v1652 = vpop.f32.mrf.mxu0
      %v1653 = vpop.f32.mrf.mxu0
      %v1654 = vadd.f32 %v1590, %v1653
      %v1655 = vpop.f32.mrf.mxu0
      %1656 = vmatprep.mubr.bf16.mxu0 0
      %1657 = vmatmul.mubr.bf16.gmra.mxu0 %v1191
      %v1658 = vpop.f32.mrf.mxu0
      %v1659 = vadd.f32 %v1590, %v1658
      %v1660 = vpop.f32.mrf.mxu0
      %v1661 = vpop.f32.mrf.mxu0
      %v1662 = vadd.f32 %v1590, %v1661
      %v1663 = vpop.f32.mrf.mxu0
      %1664 = vmatprep.mubr.bf16.mxu0 0
      %1665 = vmatmul.mubr.bf16.gmra.mxu0 %v1194
      %v1666 = vpop.f32.mrf.mxu0
      %v1667 = vadd.f32 %v1590, %v1666
      %v1668 = vpop.f32.mrf.mxu0
      %v1669 = vpop.f32.mrf.mxu0
      %v1670 = vadd.f32 %v1590, %v1669
      %v1671 = vpop.f32.mrf.mxu0
      %1672 = vmatprep.mubr.bf16.mxu0 0
      %1673 = vmatmul.mubr.bf16.gmra.mxu0 %v1197
      %v1674 = vpop.f32.mrf.mxu0
      %v1675 = vadd.f32 %v1590, %v1674
      %v1676 = vpop.f32.mrf.mxu0
      %v1677 = vpop.f32.mrf.mxu0
      %v1678 = vadd.f32 %v1590, %v1677
      %v1679 = vpop.f32.mrf.mxu0
      %1680 = vmatprep.mubr.bf16.mxu0 0
      %1681 = vmatmul.mubr.bf16.gmra.mxu0 %v1200
      %v1682 = vpop.f32.mrf.mxu0
      %v1683 = vadd.f32 %v1590, %v1682
      %v1684 = vpop.f32.mrf.mxu0
      %v1685 = vpop.f32.mrf.mxu0
      %v1686 = vadd.f32 %v1590, %v1685
      %v1687 = vpop.f32.mrf.mxu0
      %1688 = vmatprep.mubr.bf16.mxu0 0
      %1689 = vmatmul.mubr.bf16.gmra.mxu0 %v1203
      %v1690 = vpop.f32.mrf.mxu0
      %v1691 = vadd.f32 %v1590, %v1690
      %v1692 = vpop.f32.mrf.mxu0
      %v1693 = vpop.f32.mrf.mxu0
      %v1694 = vadd.f32 %v1590, %v1693
      %v1695 = vpop.f32.mrf.mxu0
      %1696 = vmatprep.mubr.bf16.mxu0 0
      %1697 = vmatmul.mubr.bf16.gmra.mxu0 %v1206
      %v1698 = vpop.f32.mrf.mxu0
      %v1699 = vadd.f32 %v1590, %v1698
      %v1700 = vpop.f32.mrf.mxu0
      %v1701 = vpop.f32.mrf.mxu0
      %v1702 = vadd.f32 %v1590, %v1701
      %v1703 = vpop.f32.mrf.mxu0
      %1704 = vmatprep.mubr.bf16.mxu0 0
      %1705 = vmatmul.mubr.bf16.gmra.mxu0 %v1209
      %v1706 = vpop.f32.mrf.mxu0
      %v1707 = vadd.f32 %v1590, %v1706
      %v1708 = vpop.f32.mrf.mxu0
      %v1709 = vpop.f32.mrf.mxu0
      %v1710 = vadd.f32 %v1590, %v1709
      %v1711 = vpop.f32.mrf.mxu0
      %1712 = vmatprep.mubr.bf16.mxu0 0
      %1713 = vmatmul.mubr.bf16.gmra.mxu0 %v1212
      %v1714 = vpop.f32.mrf.mxu0
      %v1715 = vadd.f32 %v1590, %v1714
      %v1716 = vpop.f32.mrf.mxu0
      %v1717 = vpop.f32.mrf.mxu0
      %v1718 = vadd.f32 %v1590, %v1717
      %v1719 = vpop.f32.mrf.mxu0
      %1720 = vmatprep.mubr.bf16.mxu0 0
      %1721 = vmatmul.mubr.bf16.gmra.mxu0 %v1215
      %v1722 = vpop.f32.mrf.mxu0
      %v1723 = vadd.f32 %v1590, %v1722
      %v1724 = vpop.f32.mrf.mxu0
      %v1725 = vpop.f32.mrf.mxu0
      %v1726 = vadd.f32 %v1590, %v1725
      %v1727 = vpop.f32.mrf.mxu0
      %1728 = vmatprep.mubr.bf16.mxu0 0
      %1729 = vmatmul.mubr.bf16.gmra.mxu0 %v1218
      %v1730 = vpop.f32.mrf.mxu0
      %v1731 = vadd.f32 %v1590, %v1730
      %v1732 = vpop.f32.mrf.mxu0
      %v1733 = vpop.f32.mrf.mxu0
      %v1734 = vadd.f32 %v1590, %v1733
      %v1735 = vpop.f32.mrf.mxu0
      %1736 = vmatprep.mubr.bf16.mxu0 0
      %1737 = vmatmul.mubr.bf16.gmra.mxu0 %v1221
      %v1738 = vpop.f32.mrf.mxu0
      %v1739 = vadd.f32 %v1590, %v1738
      %v1740 = vpop.f32.mrf.mxu0
      %v1741 = vpop.f32.mrf.mxu0
      %v1742 = vadd.f32 %v1590, %v1741
      %v1743 = vpop.f32.mrf.mxu0
      %1744 = vmatprep.mubr.bf16.mxu0 0
      %1745 = vmatmul.mubr.bf16.gmra.mxu0 %v1224
      %v1746 = vpop.f32.mrf.mxu0
      %v1747 = vadd.f32 %v1590, %v1746
      %v1748 = vpop.f32.mrf.mxu0
      %v1749 = vpop.f32.mrf.mxu0
      %v1750 = vadd.f32 %v1590, %v1749
      %v1751 = vpop.f32.mrf.mxu0
      %1752 = vdwg.mxu0
      %vm1753 = vcmp.gt.f32.partialorder %v1627, 20.0
      %vm1754 = vcmp.gt.f32.partialorder %v1630, 20.0
      %vm1755 = vcmp.gt.f32.partialorder %v1635, 20.0
      %vm1756 = vcmp.gt.f32.partialorder %v1638, 20.0
      %vm1757 = vcmp.gt.f32.partialorder %v1643, 20.0
      %vm1758 = vcmp.gt.f32.partialorder %v1646, 20.0
      %vm1759 = vcmp.gt.f32.partialorder %v1651, 20.0
      %vm1760 = vcmp.gt.f32.partialorder %v1654, 20.0
      %vm1761 = vcmp.gt.f32.partialorder %v1659, 20.0
      %vm1762 = vcmp.gt.f32.partialorder %v1662, 20.0
      %vm1763 = vcmp.gt.f32.partialorder %v1667, 20.0
      %vm1764 = vcmp.gt.f32.partialorder %v1670, 20.0
      %vm1765 = vcmp.gt.f32.partialorder %v1675, 20.0
      %vm1766 = vcmp.gt.f32.partialorder %v1678, 20.0
      %vm1767 = vcmp.gt.f32.partialorder %v1683, 20.0
      %vm1768 = vcmp.gt.f32.partialorder %v1686, 20.0
      %vm1769 = vcmp.gt.f32.partialorder %v1691, 20.0
      %vm1770 = vcmp.gt.f32.partialorder %v1694, 20.0
      %vm1771 = vcmp.gt.f32.partialorder %v1699, 20.0
      %vm1772 = vcmp.gt.f32.partialorder %v1702, 20.0
      %vm1773 = vcmp.gt.f32.partialorder %v1707, 20.0
      %vm1774 = vcmp.gt.f32.partialorder %v1710, 20.0
      %vm1775 = vcmp.gt.f32.partialorder %v1715, 20.0
      %vm1776 = vcmp.gt.f32.partialorder %v1718, 20.0
      %vm1777 = vcmp.gt.f32.partialorder %v1723, 20.0
      %vm1778 = vcmp.gt.f32.partialorder %v1726, 20.0
      %vm1779 = vcmp.gt.f32.partialorder %v1731, 20.0
      %vm1780 = vcmp.gt.f32.partialorder %v1734, 20.0
      %vm1781 = vcmp.gt.f32.partialorder %v1739, 20.0
      %vm1782 = vcmp.gt.f32.partialorder %v1742, 20.0
      %vm1783 = vcmp.gt.f32.partialorder %v1747, 20.0
      %vm1784 = vcmp.gt.f32.partialorder %v1750, 20.0
      %v1785 = vmin.f32 %v1627, 20.0
      %v1786 = vmin.f32 %v1630, 20.0
      %v1787 = vmin.f32 %v1635, 20.0
      %v1788 = vmin.f32 %v1638, 20.0
      %v1789 = vmin.f32 %v1643, 20.0
      %v1790 = vmin.f32 %v1646, 20.0
      %v1791 = vmin.f32 %v1651, 20.0
      %v1792 = vmin.f32 %v1654, 20.0
      %v1793 = vmin.f32 %v1659, 20.0
      %v1794 = vmin.f32 %v1662, 20.0
      %v1795 = vmin.f32 %v1667, 20.0
      %v1796 = vmin.f32 %v1670, 20.0
      %v1797 = vmin.f32 %v1675, 20.0
      %v1798 = vmin.f32 %v1678, 20.0
      %v1799 = vmin.f32 %v1683, 20.0
      %v1800 = vmin.f32 %v1686, 20.0
      %v1801 = vmin.f32 %v1691, 20.0
      %v1802 = vmin.f32 %v1694, 20.0
      %v1803 = vmin.f32 %v1699, 20.0
      %v1804 = vmin.f32 %v1702, 20.0
      %v1805 = vmin.f32 %v1707, 20.0
      %v1806 = vmin.f32 %v1710, 20.0
      %v1807 = vmin.f32 %v1715, 20.0
      %v1808 = vmin.f32 %v1718, 20.0
      %v1809 = vmin.f32 %v1723, 20.0
      %v1810 = vmin.f32 %v1726, 20.0
      %v1811 = vmin.f32 %v1731, 20.0
      %v1812 = vmin.f32 %v1734, 20.0
      %v1813 = vmin.f32 %v1739, 20.0
      %v1814 = vmin.f32 %v1742, 20.0
      %v1815 = vmin.f32 %v1747, 20.0
      %v1816 = vmin.f32 %v1750, 20.0
      %v1817 = vmul.f32 %v1785, 1.442695
      %v1818 = vpow.pop %v1817
      %v1819 = vmul.f32 %v1786, 1.442695
      %v1820 = vpow.pop %v1819
      %v1821 = vmul.f32 %v1787, 1.442695
      %v1822 = vpow.pop %v1821
      %v1823 = vmul.f32 %v1788, 1.442695
      %v1824 = vpow.pop %v1823
      %v1825 = vmul.f32 %v1789, 1.442695
      %v1826 = vpow.pop %v1825
      %v1827 = vmul.f32 %v1790, 1.442695
      %v1828 = vpow.pop %v1827
      %v1829 = vmul.f32 %v1791, 1.442695
      %v1830 = vpow.pop %v1829
      %v1831 = vmul.f32 %v1792, 1.442695
      %v1832 = vpow.pop %v1831
      %v1833 = vmul.f32 %v1793, 1.442695
      %v1834 = vpow.pop %v1833
      %v1835 = vmul.f32 %v1794, 1.442695
      %v1836 = vpow.pop %v1835
      %v1837 = vmul.f32 %v1795, 1.442695
      %v1838 = vpow.pop %v1837
      %v1839 = vmul.f32 %v1796, 1.442695
      %v1840 = vpow.pop %v1839
      %v1841 = vmul.f32 %v1797, 1.442695
      %v1842 = vpow.pop %v1841
      %v1843 = vmul.f32 %v1798, 1.442695
      %v1844 = vpow.pop %v1843
      %v1845 = vmul.f32 %v1799, 1.442695
      %v1846 = vpow.pop %v1845
      %v1847 = vmul.f32 %v1800, 1.442695
      %v1848 = vpow.pop %v1847
      %v1849 = vmul.f32 %v1801, 1.442695
      %v1850 = vpow.pop %v1849
      %v1851 = vmul.f32 %v1802, 1.442695
      %v1852 = vpow.pop %v1851
      %v1853 = vmul.f32 %v1803, 1.442695
      %v1854 = vpow.pop %v1853
      %v1855 = vmul.f32 %v1804, 1.442695
      %v1856 = vpow.pop %v1855
      %v1857 = vmul.f32 %v1805, 1.442695
      %v1858 = vpow.pop %v1857
      %v1859 = vmul.f32 %v1806, 1.442695
      %v1860 = vpow.pop %v1859
      %v1861 = vmul.f32 %v1807, 1.442695
      %v1862 = vpow.pop %v1861
      %v1863 = vmul.f32 %v1808, 1.442695
      %v1864 = vpow.pop %v1863
      %v1865 = vmul.f32 %v1809, 1.442695
      %v1866 = vpow.pop %v1865
      %v1867 = vmul.f32 %v1810, 1.442695
      %v1868 = vpow.pop %v1867
      %v1869 = vmul.f32 %v1811, 1.442695
      %v1870 = vpow.pop %v1869
      %v1871 = vmul.f32 %v1812, 1.442695
      %v1872 = vpow.pop %v1871
      %v1873 = vmul.f32 %v1813, 1.442695
      %v1874 = vpow.pop %v1873
      %v1875 = vmul.f32 %v1814, 1.442695
      %v1876 = vpow.pop %v1875
      %v1877 = vmul.f32 %v1815, 1.442695
      %v1878 = vpow.pop %v1877
      %v1879 = vmul.f32 %v1816, 1.442695
      %v1880 = vpow.pop %v1879
      %v1881 = vadd.f32 %v1818, 1.0
      %v1882 = vlog2.pop %v1881
      %v1883 = vmul.f32 %v1882, 0.6931472
      %v1884 = vmul.f32 -0.5, %v1818
      %v1885 = vadd.f32 %v1884, 1.0
      %v1886 = vmul.f32 %v1885, %v1818
      %v1887 = vand.u32 2147483647, %v1818
      %vm1888 = vcmp.lt.f32.partialorder %v1887, 0.0004427343
      %v1889 = vsel %vm1888, %v1886, %v1883
      %v1890 = vadd.f32 %v1820, 1.0
      %v1891 = vlog2.pop %v1890
      %v1892 = vmul.f32 %v1891, 0.6931472
      %v1893 = vmul.f32 -0.5, %v1820
      %v1894 = vadd.f32 %v1893, 1.0
      %v1895 = vmul.f32 %v1894, %v1820
      %v1896 = vand.u32 2147483647, %v1820
      %vm1897 = vcmp.lt.f32.partialorder %v1896, 0.0004427343
      %v1898 = vsel %vm1897, %v1895, %v1892
      %v1899 = vadd.f32 %v1822, 1.0
      %v1900 = vlog2.pop %v1899
      %v1901 = vmul.f32 %v1900, 0.6931472
      %v1902 = vmul.f32 -0.5, %v1822
      %v1903 = vadd.f32 %v1902, 1.0
      %v1904 = vmul.f32 %v1903, %v1822
      %v1905 = vand.u32 2147483647, %v1822
      %vm1906 = vcmp.lt.f32.partialorder %v1905, 0.0004427343
      %v1907 = vsel %vm1906, %v1904, %v1901
      %v1908 = vadd.f32 %v1824, 1.0
      %v1909 = vlog2.pop %v1908
      %v1910 = vmul.f32 %v1909, 0.6931472
      %v1911 = vmul.f32 -0.5, %v1824
      %v1912 = vadd.f32 %v1911, 1.0
      %v1913 = vmul.f32 %v1912, %v1824
      %v1914 = vand.u32 2147483647, %v1824
      %vm1915 = vcmp.lt.f32.partialorder %v1914, 0.0004427343
      %v1916 = vsel %vm1915, %v1913, %v1910
      %v1917 = vadd.f32 %v1826, 1.0
      %v1918 = vlog2.pop %v1917
      %v1919 = vmul.f32 %v1918, 0.6931472
      %v1920 = vmul.f32 -0.5, %v1826
      %v1921 = vadd.f32 %v1920, 1.0
      %v1922 = vmul.f32 %v1921, %v1826
      %v1923 = vand.u32 2147483647, %v1826
      %vm1924 = vcmp.lt.f32.partialorder %v1923, 0.0004427343
      %v1925 = vsel %vm1924, %v1922, %v1919
      %v1926 = vadd.f32 %v1828, 1.0
      %v1927 = vlog2.pop %v1926
      %v1928 = vmul.f32 %v1927, 0.6931472
      %v1929 = vmul.f32 -0.5, %v1828
      %v1930 = vadd.f32 %v1929, 1.0
      %v1931 = vmul.f32 %v1930, %v1828
      %v1932 = vand.u32 2147483647, %v1828
      %vm1933 = vcmp.lt.f32.partialorder %v1932, 0.0004427343
      %v1934 = vsel %vm1933, %v1931, %v1928
      %v1935 = vadd.f32 %v1830, 1.0
      %v1936 = vlog2.pop %v1935
      %v1937 = vmul.f32 %v1936, 0.6931472
      %v1938 = vmul.f32 -0.5, %v1830
      %v1939 = vadd.f32 %v1938, 1.0
      %v1940 = vmul.f32 %v1939, %v1830
      %v1941 = vand.u32 2147483647, %v1830
      %vm1942 = vcmp.lt.f32.partialorder %v1941, 0.0004427343
      %v1943 = vsel %vm1942, %v1940, %v1937
      %v1944 = vadd.f32 %v1832, 1.0
      %v1945 = vlog2.pop %v1944
      %v1946 = vmul.f32 %v1945, 0.6931472
      %v1947 = vmul.f32 -0.5, %v1832
      %v1948 = vadd.f32 %v1947, 1.0
      %v1949 = vmul.f32 %v1948, %v1832
      %v1950 = vand.u32 2147483647, %v1832
      %vm1951 = vcmp.lt.f32.partialorder %v1950, 0.0004427343
      %v1952 = vsel %vm1951, %v1949, %v1946
      %v1953 = vadd.f32 %v1834, 1.0
      %v1954 = vlog2.pop %v1953
      %v1955 = vmul.f32 %v1954, 0.6931472
      %v1956 = vmul.f32 -0.5, %v1834
      %v1957 = vadd.f32 %v1956, 1.0
      %v1958 = vmul.f32 %v1957, %v1834
      %v1959 = vand.u32 2147483647, %v1834
      %vm1960 = vcmp.lt.f32.partialorder %v1959, 0.0004427343
      %v1961 = vsel %vm1960, %v1958, %v1955
      %v1962 = vadd.f32 %v1836, 1.0
      %v1963 = vlog2.pop %v1962
      %v1964 = vmul.f32 %v1963, 0.6931472
      %v1965 = vmul.f32 -0.5, %v1836
      %v1966 = vadd.f32 %v1965, 1.0
      %v1967 = vmul.f32 %v1966, %v1836
      %v1968 = vand.u32 2147483647, %v1836
      %vm1969 = vcmp.lt.f32.partialorder %v1968, 0.0004427343
      %v1970 = vsel %vm1969, %v1967, %v1964
      %v1971 = vadd.f32 %v1838, 1.0
      %v1972 = vlog2.pop %v1971
      %v1973 = vmul.f32 %v1972, 0.6931472
      %v1974 = vmul.f32 -0.5, %v1838
      %v1975 = vadd.f32 %v1974, 1.0
      %v1976 = vmul.f32 %v1975, %v1838
      %v1977 = vand.u32 2147483647, %v1838
      %vm1978 = vcmp.lt.f32.partialorder %v1977, 0.0004427343
      %v1979 = vsel %vm1978, %v1976, %v1973
      %v1980 = vadd.f32 %v1840, 1.0
      %v1981 = vlog2.pop %v1980
      %v1982 = vmul.f32 %v1981, 0.6931472
      %v1983 = vmul.f32 -0.5, %v1840
      %v1984 = vadd.f32 %v1983, 1.0
      %v1985 = vmul.f32 %v1984, %v1840
      %v1986 = vand.u32 2147483647, %v1840
      %vm1987 = vcmp.lt.f32.partialorder %v1986, 0.0004427343
      %v1988 = vsel %vm1987, %v1985, %v1982
      %v1989 = vadd.f32 %v1842, 1.0
      %v1990 = vlog2.pop %v1989
      %v1991 = vmul.f32 %v1990, 0.6931472
      %v1992 = vmul.f32 -0.5, %v1842
      %v1993 = vadd.f32 %v1992, 1.0
      %v1994 = vmul.f32 %v1993, %v1842
      %v1995 = vand.u32 2147483647, %v1842
      %vm1996 = vcmp.lt.f32.partialorder %v1995, 0.0004427343
      %v1997 = vsel %vm1996, %v1994, %v1991
      %v1998 = vadd.f32 %v1844, 1.0
      %v1999 = vlog2.pop %v1998
      %v2000 = vmul.f32 %v1999, 0.6931472
      %v2001 = vmul.f32 -0.5, %v1844
      %v2002 = vadd.f32 %v2001, 1.0
      %v2003 = vmul.f32 %v2002, %v1844
      %v2004 = vand.u32 2147483647, %v1844
      %vm2005 = vcmp.lt.f32.partialorder %v2004, 0.0004427343
      %v2006 = vsel %vm2005, %v2003, %v2000
      %v2007 = vadd.f32 %v1846, 1.0
      %v2008 = vlog2.pop %v2007
      %v2009 = vmul.f32 %v2008, 0.6931472
      %v2010 = vmul.f32 -0.5, %v1846
      %v2011 = vadd.f32 %v2010, 1.0
      %v2012 = vmul.f32 %v2011, %v1846
      %v2013 = vand.u32 2147483647, %v1846
      %vm2014 = vcmp.lt.f32.partialorder %v2013, 0.0004427343
      %v2015 = vsel %vm2014, %v2012, %v2009
      %v2016 = vadd.f32 %v1848, 1.0
      %v2017 = vlog2.pop %v2016
      %v2018 = vmul.f32 %v2017, 0.6931472
      %v2019 = vmul.f32 -0.5, %v1848
      %v2020 = vadd.f32 %v2019, 1.0
      %v2021 = vmul.f32 %v2020, %v1848
      %v2022 = vand.u32 2147483647, %v1848
      %vm2023 = vcmp.lt.f32.partialorder %v2022, 0.0004427343
      %v2024 = vsel %vm2023, %v2021, %v2018
      %v2025 = vadd.f32 %v1850, 1.0
      %v2026 = vlog2.pop %v2025
      %v2027 = vmul.f32 %v2026, 0.6931472
      %v2028 = vmul.f32 -0.5, %v1850
      %v2029 = vadd.f32 %v2028, 1.0
      %v2030 = vmul.f32 %v2029, %v1850
      %v2031 = vand.u32 2147483647, %v1850
      %vm2032 = vcmp.lt.f32.partialorder %v2031, 0.0004427343
      %v2033 = vsel %vm2032, %v2030, %v2027
      %v2034 = vadd.f32 %v1852, 1.0
      %v2035 = vlog2.pop %v2034
      %v2036 = vmul.f32 %v2035, 0.6931472
      %v2037 = vmul.f32 -0.5, %v1852
      %v2038 = vadd.f32 %v2037, 1.0
      %v2039 = vmul.f32 %v2038, %v1852
      %v2040 = vand.u32 2147483647, %v1852
      %vm2041 = vcmp.lt.f32.partialorder %v2040, 0.0004427343
      %v2042 = vsel %vm2041, %v2039, %v2036
      %v2043 = vadd.f32 %v1854, 1.0
      %v2044 = vlog2.pop %v2043
      %v2045 = vmul.f32 %v2044, 0.6931472
      %v2046 = vmul.f32 -0.5, %v1854
      %v2047 = vadd.f32 %v2046, 1.0
      %v2048 = vmul.f32 %v2047, %v1854
      %v2049 = vand.u32 2147483647, %v1854
      %vm2050 = vcmp.lt.f32.partialorder %v2049, 0.0004427343
      %v2051 = vsel %vm2050, %v2048, %v2045
      %v2052 = vadd.f32 %v1856, 1.0
      %v2053 = vlog2.pop %v2052
      %v2054 = vmul.f32 %v2053, 0.6931472
      %v2055 = vmul.f32 -0.5, %v1856
      %v2056 = vadd.f32 %v2055, 1.0
      %v2057 = vmul.f32 %v2056, %v1856
      %v2058 = vand.u32 2147483647, %v1856
      %vm2059 = vcmp.lt.f32.partialorder %v2058, 0.0004427343
      %v2060 = vsel %vm2059, %v2057, %v2054
      %v2061 = vadd.f32 %v1858, 1.0
      %v2062 = vlog2.pop %v2061
      %v2063 = vmul.f32 %v2062, 0.6931472
      %v2064 = vmul.f32 -0.5, %v1858
      %v2065 = vadd.f32 %v2064, 1.0
      %v2066 = vmul.f32 %v2065, %v1858
      %v2067 = vand.u32 2147483647, %v1858
      %vm2068 = vcmp.lt.f32.partialorder %v2067, 0.0004427343
      %v2069 = vsel %vm2068, %v2066, %v2063
      %v2070 = vadd.f32 %v1860, 1.0
      %v2071 = vlog2.pop %v2070
      %v2072 = vmul.f32 %v2071, 0.6931472
      %v2073 = vmul.f32 -0.5, %v1860
      %v2074 = vadd.f32 %v2073, 1.0
      %v2075 = vmul.f32 %v2074, %v1860
      %v2076 = vand.u32 2147483647, %v1860
      %vm2077 = vcmp.lt.f32.partialorder %v2076, 0.0004427343
      %v2078 = vsel %vm2077, %v2075, %v2072
      %v2079 = vadd.f32 %v1862, 1.0
      %v2080 = vlog2.pop %v2079
      %v2081 = vmul.f32 %v2080, 0.6931472
      %v2082 = vmul.f32 -0.5, %v1862
      %v2083 = vadd.f32 %v2082, 1.0
      %v2084 = vmul.f32 %v2083, %v1862
      %v2085 = vand.u32 2147483647, %v1862
      %vm2086 = vcmp.lt.f32.partialorder %v2085, 0.0004427343
      %v2087 = vsel %vm2086, %v2084, %v2081
      %v2088 = vadd.f32 %v1864, 1.0
      %v2089 = vlog2.pop %v2088
      %v2090 = vmul.f32 %v2089, 0.6931472
      %v2091 = vmul.f32 -0.5, %v1864
      %v2092 = vadd.f32 %v2091, 1.0
      %v2093 = vmul.f32 %v2092, %v1864
      %v2094 = vand.u32 2147483647, %v1864
      %vm2095 = vcmp.lt.f32.partialorder %v2094, 0.0004427343
      %v2096 = vsel %vm2095, %v2093, %v2090
      %v2097 = vadd.f32 %v1866, 1.0
      %v2098 = vlog2.pop %v2097
      %v2099 = vmul.f32 %v2098, 0.6931472
      %v2100 = vmul.f32 -0.5, %v1866
      %v2101 = vadd.f32 %v2100, 1.0
      %v2102 = vmul.f32 %v2101, %v1866
      %v2103 = vand.u32 2147483647, %v1866
      %vm2104 = vcmp.lt.f32.partialorder %v2103, 0.0004427343
      %v2105 = vsel %vm2104, %v2102, %v2099
      %v2106 = vadd.f32 %v1868, 1.0
      %v2107 = vlog2.pop %v2106
      %v2108 = vmul.f32 %v2107, 0.6931472
      %v2109 = vmul.f32 -0.5, %v1868
      %v2110 = vadd.f32 %v2109, 1.0
      %v2111 = vmul.f32 %v2110, %v1868
      %v2112 = vand.u32 2147483647, %v1868
      %vm2113 = vcmp.lt.f32.partialorder %v2112, 0.0004427343
      %v2114 = vsel %vm2113, %v2111, %v2108
      %v2115 = vadd.f32 %v1870, 1.0
      %v2116 = vlog2.pop %v2115
      %v2117 = vmul.f32 %v2116, 0.6931472
      %v2118 = vmul.f32 -0.5, %v1870
      %v2119 = vadd.f32 %v2118, 1.0
      %v2120 = vmul.f32 %v2119, %v1870
      %v2121 = vand.u32 2147483647, %v1870
      %vm2122 = vcmp.lt.f32.partialorder %v2121, 0.0004427343
      %v2123 = vsel %vm2122, %v2120, %v2117
      %v2124 = vadd.f32 %v1872, 1.0
      %v2125 = vlog2.pop %v2124
      %v2126 = vmul.f32 %v2125, 0.6931472
      %v2127 = vmul.f32 -0.5, %v1872
      %v2128 = vadd.f32 %v2127, 1.0
      %v2129 = vmul.f32 %v2128, %v1872
      %v2130 = vand.u32 2147483647, %v1872
      %vm2131 = vcmp.lt.f32.partialorder %v2130, 0.0004427343
      %v2132 = vsel %vm2131, %v2129, %v2126
      %v2133 = vadd.f32 %v1874, 1.0
      %v2134 = vlog2.pop %v2133
      %v2135 = vmul.f32 %v2134, 0.6931472
      %v2136 = vmul.f32 -0.5, %v1874
      %v2137 = vadd.f32 %v2136, 1.0
      %v2138 = vmul.f32 %v2137, %v1874
      %v2139 = vand.u32 2147483647, %v1874
      %vm2140 = vcmp.lt.f32.partialorder %v2139, 0.0004427343
      %v2141 = vsel %vm2140, %v2138, %v2135
      %v2142 = vadd.f32 %v1876, 1.0
      %v2143 = vlog2.pop %v2142
      %v2144 = vmul.f32 %v2143, 0.6931472
      %v2145 = vmul.f32 -0.5, %v1876
      %v2146 = vadd.f32 %v2145, 1.0
      %v2147 = vmul.f32 %v2146, %v1876
      %v2148 = vand.u32 2147483647, %v1876
      %vm2149 = vcmp.lt.f32.partialorder %v2148, 0.0004427343
      %v2150 = vsel %vm2149, %v2147, %v2144
      %v2151 = vadd.f32 %v1878, 1.0
      %v2152 = vlog2.pop %v2151
      %v2153 = vmul.f32 %v2152, 0.6931472
      %v2154 = vmul.f32 -0.5, %v1878
      %v2155 = vadd.f32 %v2154, 1.0
      %v2156 = vmul.f32 %v2155, %v1878
      %v2157 = vand.u32 2147483647, %v1878
      %vm2158 = vcmp.lt.f32.partialorder %v2157, 0.0004427343
      %v2159 = vsel %vm2158, %v2156, %v2153
      %v2160 = vadd.f32 %v1880, 1.0
      %v2161 = vlog2.pop %v2160
      %v2162 = vmul.f32 %v2161, 0.6931472
      %v2163 = vmul.f32 -0.5, %v1880
      %v2164 = vadd.f32 %v2163, 1.0
      %v2165 = vmul.f32 %v2164, %v1880
      %v2166 = vand.u32 2147483647, %v1880
      %vm2167 = vcmp.lt.f32.partialorder %v2166, 0.0004427343
      %v2168 = vsel %vm2167, %v2165, %v2162
      %v2169 = vsel %vm1753, %v1627, %v1889
      %v2170 = vsel %vm1754, %v1630, %v1898
      %v2171 = vsel %vm1755, %v1635, %v1907
      %v2172 = vsel %vm1756, %v1638, %v1916
      %v2173 = vsel %vm1757, %v1643, %v1925
      %v2174 = vsel %vm1758, %v1646, %v1934
      %v2175 = vsel %vm1759, %v1651, %v1943
      %v2176 = vsel %vm1760, %v1654, %v1952
      %v2177 = vsel %vm1761, %v1659, %v1961
      %v2178 = vsel %vm1762, %v1662, %v1970
      %v2179 = vsel %vm1763, %v1667, %v1979
      %v2180 = vsel %vm1764, %v1670, %v1988
      %v2181 = vsel %vm1765, %v1675, %v1997
      %v2182 = vsel %vm1766, %v1678, %v2006
      %v2183 = vsel %vm1767, %v1683, %v2015
      %v2184 = vsel %vm1768, %v1686, %v2024
      %v2185 = vsel %vm1769, %v1691, %v2033
      %v2186 = vsel %vm1770, %v1694, %v2042
      %v2187 = vsel %vm1771, %v1699, %v2051
      %v2188 = vsel %vm1772, %v1702, %v2060
      %v2189 = vsel %vm1773, %v1707, %v2069
      %v2190 = vsel %vm1774, %v1710, %v2078
      %v2191 = vsel %vm1775, %v1715, %v2087
      %v2192 = vsel %vm1776, %v1718, %v2096
      %v2193 = vsel %vm1777, %v1723, %v2105
      %v2194 = vsel %vm1778, %v1726, %v2114
      %v2195 = vsel %vm1779, %v1731, %v2123
      %v2196 = vsel %vm1780, %v1734, %v2132
      %v2197 = vsel %vm1781, %v1739, %v2141
      %v2198 = vsel %vm1782, %v1742, %v2150
      %v2199 = vsel %vm1783, %v1747, %v2159
      %v2200 = vsel %vm1784, %v1750, %v2168
      %2201 = vst.msk [vmem:[#allocation3] sm:$0xff] %vm1123, %v2169
      %2202 = vst.msk [vmem:[#allocation3 + $0x8] sm:$0xff] %vm1123, %v2170
      %2203 = vst.msk [vmem:[#allocation3 + $0x10] sm:$0xff] %vm1123, %v2171
      %2204 = vst.msk [vmem:[#allocation3 + $0x18] sm:$0xff] %vm1123, %v2172
      %2205 = vst.msk [vmem:[#allocation3 + $0x20] sm:$0xff] %vm1123, %v2173
      %2206 = vst.msk [vmem:[#allocation3 + $0x28] sm:$0xff] %vm1123, %v2174
      %2207 = vst.msk [vmem:[#allocation3 + $0x30] sm:$0xff] %vm1123, %v2175
      %2208 = vst.msk [vmem:[#allocation3 + $0x38] sm:$0xff] %vm1123, %v2176
      %2209 = vst.msk [vmem:[#allocation3 + $0x40] sm:$0xff] %vm1123, %v2177
      %2210 = vst.msk [vmem:[#allocation3 + $0x48] sm:$0xff] %vm1123, %v2178
      %2211 = vst.msk [vmem:[#allocation3 + $0x50] sm:$0xff] %vm1123, %v2179
      %2212 = vst.msk [vmem:[#allocation3 + $0x58] sm:$0xff] %vm1123, %v2180
      %2213 = vst.msk [vmem:[#allocation3 + $0x60] sm:$0xff] %vm1123, %v2181
      %2214 = vst.msk [vmem:[#allocation3 + $0x68] sm:$0xff] %vm1123, %v2182
      %2215 = vst.msk [vmem:[#allocation3 + $0x70] sm:$0xff] %vm1123, %v2183
      %2216 = vst.msk [vmem:[#allocation3 + $0x78] sm:$0xff] %vm1123, %v2184
      %2217 = vst.msk [vmem:[#allocation3 + $0x80] sm:$0xff] %vm1123, %v2185
      %2218 = vst.msk [vmem:[#allocation3 + $0x88] sm:$0xff] %vm1123, %v2186
      %2219 = vst.msk [vmem:[#allocation3 + $0x90] sm:$0xff] %vm1123, %v2187
      %2220 = vst.msk [vmem:[#allocation3 + $0x98] sm:$0xff] %vm1123, %v2188
      %2221 = vst.msk [vmem:[#allocation3 + $0xa0] sm:$0xff] %vm1123, %v2189
      %2222 = vst.msk [vmem:[#allocation3 + $0xa8] sm:$0xff] %vm1123, %v2190
      %2223 = vst.msk [vmem:[#allocation3 + $0xb0] sm:$0xff] %vm1123, %v2191
      %2224 = vst.msk [vmem:[#allocation3 + $0xb8] sm:$0xff] %vm1123, %v2192
      %2225 = vst.msk [vmem:[#allocation3 + $0xc0] sm:$0xff] %vm1123, %v2193
      %2226 = vst.msk [vmem:[#allocation3 + $0xc8] sm:$0xff] %vm1123, %v2194
      %2227 = vst.msk [vmem:[#allocation3 + $0xd0] sm:$0xff] %vm1123, %v2195
      %2228 = vst.msk [vmem:[#allocation3 + $0xd8] sm:$0xff] %vm1123, %v2196
      %2229 = vst.msk [vmem:[#allocation3 + $0xe0] sm:$0xff] %vm1123, %v2197
      %2230 = vst.msk [vmem:[#allocation3 + $0xe8] sm:$0xff] %vm1123, %v2198
      %2231 = vst.msk [vmem:[#allocation3 + $0xf0] sm:$0xff] %vm1123, %v2199
      %2232 = vst.msk [vmem:[#allocation3 + $0xf8] sm:$0xff] %vm1123, %v2200
      %v2233 = vld [vmem:[%s7] sm:$0xff]
      %v2234 = vld [vmem:[%s7 + $0x8] sm:$0xff]
      %v2235 = vld [vmem:[%s7 + $0x10] sm:$0xff]
      %v2236 = vld [vmem:[%s7 + $0x18] sm:$0xff]
      %v2237 = vld [vmem:[%s8] sm:$0x1]
      loop: start=0, step=1, limit=32
      $region57: #{spectral_mamba_forward.6} parent=55 // loop_pre_header
        _
      $region58: #{spectral_mamba_forward.6} parent=55 // loop_header
        %s2239 = sphi 0, %s2243
        %p2240 = scmp.ge.s32.totalorder %s2239, 32
        %v2244 = vphi 0.0, %v3389
        %v2245 = vphi 0.0, %v3390
        %v2246 = vphi 0.0, %v3391
        %v2247 = vphi 0.0, %v3392
      $region59: #{spectral_mamba_forward.6} parent=55 // loop_header_branch
        %2242 = sbr.rel (%p2240) target = $region63
      $region60: #{spectral_mamba_forward.6} parent=55 // loop_body
        %s2248 = smul.u32 %s2239, 8
        %s2249 = scalar_lea.vmem [#allocation3], %s2248
        %v2250 = vld [vmem:[%s2249] sm:$0xff]
        %s2251 = scalar_lea.vmem [#allocation2], %s2248
        %v2252 = vld [vmem:[%s2251] sm:$0xff]
        %s2253 = scalar_lea.vmem [#allocation4], %s2248
        %v2254 = vld [vmem:[%s2253] sm:$0xff]
        %s2255 = scalar_lea.vmem [#allocation5], %s2248
        %v2256 = vld [vmem:[%s2255] sm:$0xff]
        %v2257 = vlaneseq
        %v2258 = vshrl.u32 %v2257, 7
        %v2259 = vsub.s32 0, %v2258
        %v2260 = vrot.slane %v2250, %v2259
        %2262 = vbcast.lane.b32.xlu0 %v2260, 256
        %v2263 = vpop.permute.xlu0 %2262
        %s2265 = sor.u32 256, 8
        %2266 = vbcast.lane.b32.xlu0 %v2260, %s2265
        %v2267 = vpop.permute.xlu0 %2266
        %s2269 = sor.u32 256, 16
        %2270 = vbcast.lane.b32.xlu0 %v2260, %s2269
        %v2271 = vpop.permute.xlu0 %2270
        %s2273 = sor.u32 256, 24
        %2274 = vbcast.lane.b32.xlu0 %v2260, %s2273
        %v2275 = vpop.permute.xlu0 %2274
        %v2276 = vmul.f32 %v2263, %v2233
        %v2277 = vmul.f32 %v2267, %v2234
        %v2278 = vmul.f32 %v2271, %v2235
        %v2279 = vmul.f32 %v2275, %v2236
        %v2280 = vmul.f32 %v2276, 1.442695
        %v2281 = vpow.pop %v2280
        %v2282 = vmul.f32 %v2277, 1.442695
        %v2283 = vpow.pop %v2282
        %v2284 = vmul.f32 %v2278, 1.442695
        %v2285 = vpow.pop %v2284
        %v2286 = vmul.f32 %v2279, 1.442695
        %v2287 = vpow.pop %v2286
        %v2288 = vmul.f32 %v2250, %v2252
        %v2289 = vlaneseq
        %v2290 = vshrl.u32 %v2289, 7
        %v2291 = vsub.s32 0, %v2290
        %v2292 = vrot.slane %v2288, %v2291
        %2294 = vbcast.lane.b32.xlu0 %v2292, 256
        %v2295 = vpop.permute.xlu0 %2294
        %s2297 = sor.u32 256, 8
        %2298 = vbcast.lane.b32.xlu0 %v2292, %s2297
        %v2299 = vpop.permute.xlu0 %2298
        %s2301 = sor.u32 256, 16
        %2302 = vbcast.lane.b32.xlu0 %v2292, %s2301
        %v2303 = vpop.permute.xlu0 %2302
        %s2305 = sor.u32 256, 24
        %2306 = vbcast.lane.b32.xlu0 %v2292, %s2305
        %v2307 = vpop.permute.xlu0 %2306
        %v2308 = vlaneseq
        %v2309 = vshrl.u32 %v2308, 7
        %v2310 = vsub.s32 0, %v2309
        %v2311 = vrot.slane %v2254, %v2310
        %v2312 = vmul.f32 %v2295, %v2311
        %v2313 = vmul.f32 %v2299, %v2311
        %v2314 = vmul.f32 %v2303, %v2311
        %v2315 = vmul.f32 %v2307, %v2311
        %v2316 = vmul.f32 %v2281, %v2244
        %v2317 = vmul.f32 %v2283, %v2245
        %v2318 = vmul.f32 %v2285, %v2246
        %v2319 = vmul.f32 %v2287, %v2247
        %v2320 = vadd.f32 %v2316, %v2312
        %v2321 = vadd.f32 %v2317, %v2313
        %v2322 = vadd.f32 %v2318, %v2314
        %v2323 = vadd.f32 %v2319, %v2315
        %v2324 = vlaneseq
        %v2325 = vshrl.u32 %v2324, 7
        %v2326 = vsub.s32 0, %v2325
        %v2327 = vrot.slane %v2256, %v2326
        %v2328 = vmul.f32 %v2320, %v2327
        %v2329 = vmul.f32 %v2321, %v2327
        %v2330 = vmul.f32 %v2322, %v2327
        %v2331 = vmul.f32 %v2323, %v2327
        %v2332 = vsel %vm1057, %v2328, 0.0
        %2333 = vadd.xlane.f32.xlu0 %v2332
        %v2334 = vpop.xlane.xlu0 %2333
        %v2335 = vsel %vm1057, %v2329, 0.0
        %2336 = vadd.xlane.f32.xlu0 %v2335
        %v2337 = vpop.xlane.xlu0 %2336
        %v2338 = vsel %vm1057, %v2330, 0.0
        %2339 = vadd.xlane.f32.xlu0 %v2338
        %v2340 = vpop.xlane.xlu0 %2339
        %v2341 = vsel %vm1057, %v2331, 0.0
        %2342 = vadd.xlane.f32.xlu0 %v2341
        %v2343 = vpop.xlane.xlu0 %2342
        %v2344 = vmul.f32 %v2252, %v2237
        %v2346 = vlaneseq
        %v2347 = vshrl.u32 %v2346, 7
        %v2348 = vsub.s32 0, %v2347
        %v2349 = vrot.slane %v2344, %v2348
        %2351 = vbcast.lane.b32.xlu0 %v2349, 256
        %v2352 = vpop.permute.xlu0 %2351
        %s2354 = sor.u32 256, 8
        %2355 = vbcast.lane.b32.xlu0 %v2349, %s2354
        %v2356 = vpop.permute.xlu0 %2355
        %s2358 = sor.u32 256, 16
        %2359 = vbcast.lane.b32.xlu0 %v2349, %s2358
        %v2360 = vpop.permute.xlu0 %2359
        %s2362 = sor.u32 256, 24
        %2363 = vbcast.lane.b32.xlu0 %v2349, %s2362
        %v2364 = vpop.permute.xlu0 %2363
        %v2369 = vadd.f32 %v2334, %v2352
        %v2370 = vadd.f32 %v2337, %v2356
        %v2371 = vadd.f32 %v2340, %v2360
        %v2372 = vadd.f32 %v2343, %v2364
        %2377 = vset.pattern.permute.xlu0 0
        %2378 = vperm.xlu0 %2377, %v2369
        %v2379 = vpop.permute.xlu0 %2378
        %2380 = vset.pattern.permute.xlu0 0
        %2381 = vperm.xlu0 %2380, %v2370
        %v2382 = vpop.permute.xlu0 %2381
        %2383 = vset.pattern.permute.xlu0 0
        %2384 = vperm.xlu0 %2383, %v2371
        %v2385 = vpop.permute.xlu0 %2384
        %2386 = vset.pattern.permute.xlu0 0
        %2387 = vperm.xlu0 %2386, %v2372
        %v2388 = vpop.permute.xlu0 %2387
        %v2389 = vlaneseq
        %v2390 = vand.u32 %v2389, 127
        %v2391 = vlaneseq
        %v2392 = vshrl.u32 %v2391, 7
        %v2393 = vsub.s32 %v2390, %v2392
        %v2394 = vrot.slane %v2379, %v2393
        %v2395 = vadd.s32 %v2390, 4294967288
        %v2396 = vlaneseq
        %v2397 = vshrl.u32 %v2396, 7
        %v2398 = vsub.s32 %v2395, %v2397
        %v2399 = vrot.slane %v2382, %v2398
        %vm2400 = vcmask 130112
        %v2401 = vsel %vm2400, %v2399, %v2394
        %v2402 = vadd.s32 %v2390, 4294967280
        %v2403 = vlaneseq
        %v2404 = vshrl.u32 %v2403, 7
        %v2405 = vsub.s32 %v2402, %v2404
        %v2406 = vrot.slane %v2385, %v2405
        %vm2407 = vcmask 195712
        %v2408 = vsel %vm2407, %v2406, %v2401
        %v2409 = vadd.s32 %v2390, 4294967272
        %v2410 = vlaneseq
        %v2411 = vshrl.u32 %v2410, 7
        %v2412 = vsub.s32 %v2409, %v2411
        %v2413 = vrot.slane %v2388, %v2412
        %vm2414 = vcmask 261312
        %v2415 = vsel %vm2414, %v2413, %v2408
        %vm2417 = vcmask 253952
        %2418 = vst.msk [vmem:[#allocation6] sm:$0x1] %vm2417, %v2415
        %v2419 = vlaneseq
        %v2420 = vshrl.u32 %v2419, 7
        %v2421 = vsub.s32 1, %v2420
        %v2422 = vrot.slane %v2250, %v2421
        %2424 = vbcast.lane.b32.xlu0 %v2422, 256
        %v2425 = vpop.permute.xlu0 %2424
        %s2427 = sor.u32 256, 8
        %2428 = vbcast.lane.b32.xlu0 %v2422, %s2427
        %v2429 = vpop.permute.xlu0 %2428
        %s2431 = sor.u32 256, 16
        %2432 = vbcast.lane.b32.xlu0 %v2422, %s2431
        %v2433 = vpop.permute.xlu0 %2432
        %s2435 = sor.u32 256, 24
        %2436 = vbcast.lane.b32.xlu0 %v2422, %s2435
        %v2437 = vpop.permute.xlu0 %2436
        %v2438 = vmul.f32 %v2425, %v2233
        %v2439 = vmul.f32 %v2429, %v2234
        %v2440 = vmul.f32 %v2433, %v2235
        %v2441 = vmul.f32 %v2437, %v2236
        %v2442 = vmul.f32 %v2438, 1.442695
        %v2443 = vpow.pop %v2442
        %v2444 = vmul.f32 %v2439, 1.442695
        %v2445 = vpow.pop %v2444
        %v2446 = vmul.f32 %v2440, 1.442695
        %v2447 = vpow.pop %v2446
        %v2448 = vmul.f32 %v2441, 1.442695
        %v2449 = vpow.pop %v2448
        %v2450 = vlaneseq
        %v2451 = vshrl.u32 %v2450, 7
        %v2452 = vsub.s32 1, %v2451
        %v2453 = vrot.slane %v2288, %v2452
        %2455 = vbcast.lane.b32.xlu0 %v2453, 256
        %v2456 = vpop.permute.xlu0 %2455
        %s2458 = sor.u32 256, 8
        %2459 = vbcast.lane.b32.xlu0 %v2453, %s2458
        %v2460 = vpop.permute.xlu0 %2459
        %s2462 = sor.u32 256, 16
        %2463 = vbcast.lane.b32.xlu0 %v2453, %s2462
        %v2464 = vpop.permute.xlu0 %2463
        %s2466 = sor.u32 256, 24
        %2467 = vbcast.lane.b32.xlu0 %v2453, %s2466
        %v2468 = vpop.permute.xlu0 %2467
        %v2469 = vlaneseq
        %v2470 = vshrl.u32 %v2469, 7
        %v2471 = vsub.s32 1, %v2470
        %v2472 = vrot.slane %v2254, %v2471
        %v2473 = vmul.f32 %v2456, %v2472
        %v2474 = vmul.f32 %v2460, %v2472
        %v2475 = vmul.f32 %v2464, %v2472
        %v2476 = vmul.f32 %v2468, %v2472
        %v2477 = vmul.f32 %v2443, %v2320
        %v2478 = vmul.f32 %v2445, %v2321
        %v2479 = vmul.f32 %v2447, %v2322
        %v2480 = vmul.f32 %v2449, %v2323
        %v2481 = vadd.f32 %v2477, %v2473
        %v2482 = vadd.f32 %v2478, %v2474
        %v2483 = vadd.f32 %v2479, %v2475
        %v2484 = vadd.f32 %v2480, %v2476
        %v2485 = vlaneseq
        %v2486 = vshrl.u32 %v2485, 7
        %v2487 = vsub.s32 1, %v2486
        %v2488 = vrot.slane %v2256, %v2487
        %v2489 = vmul.f32 %v2481, %v2488
        %v2490 = vmul.f32 %v2482, %v2488
        %v2491 = vmul.f32 %v2483, %v2488
        %v2492 = vmul.f32 %v2484, %v2488
        %v2493 = vsel %vm1057, %v2489, 0.0
        %2494 = vadd.xlane.f32.xlu0 %v2493
        %v2495 = vpop.xlane.xlu0 %2494
        %v2496 = vsel %vm1057, %v2490, 0.0
        %2497 = vadd.xlane.f32.xlu0 %v2496
        %v2498 = vpop.xlane.xlu0 %2497
        %v2499 = vsel %vm1057, %v2491, 0.0
        %2500 = vadd.xlane.f32.xlu0 %v2499
        %v2501 = vpop.xlane.xlu0 %2500
        %v2502 = vsel %vm1057, %v2492, 0.0
        %2503 = vadd.xlane.f32.xlu0 %v2502
        %v2504 = vpop.xlane.xlu0 %2503
        %v2506 = vlaneseq
        %v2507 = vshrl.u32 %v2506, 7
        %v2508 = vsub.s32 0, %v2507
        %v2509 = vrot.slane %v2237, %v2508
        %v2511 = vmul.f32 %v2252, %v2509
        %v2513 = vlaneseq
        %v2514 = vshrl.u32 %v2513, 7
        %v2515 = vsub.s32 1, %v2514
        %v2516 = vrot.slane %v2511, %v2515
        %2518 = vbcast.lane.b32.xlu0 %v2516, 256
        %v2519 = vpop.permute.xlu0 %2518
        %s2521 = sor.u32 256, 8
        %2522 = vbcast.lane.b32.xlu0 %v2516, %s2521
        %v2523 = vpop.permute.xlu0 %2522
        %s2525 = sor.u32 256, 16
        %2526 = vbcast.lane.b32.xlu0 %v2516, %s2525
        %v2527 = vpop.permute.xlu0 %2526
        %s2529 = sor.u32 256, 24
        %2530 = vbcast.lane.b32.xlu0 %v2516, %s2529
        %v2531 = vpop.permute.xlu0 %2530
        %v2536 = vadd.f32 %v2495, %v2519
        %v2537 = vadd.f32 %v2498, %v2523
        %v2538 = vadd.f32 %v2501, %v2527
        %v2539 = vadd.f32 %v2504, %v2531
        %2544 = vset.pattern.permute.xlu0 0
        %2545 = vperm.xlu0 %2544, %v2536
        %v2546 = vpop.permute.xlu0 %2545
        %2547 = vset.pattern.permute.xlu0 0
        %2548 = vperm.xlu0 %2547, %v2537
        %v2549 = vpop.permute.xlu0 %2548
        %2550 = vset.pattern.permute.xlu0 0
        %2551 = vperm.xlu0 %2550, %v2538
        %v2552 = vpop.permute.xlu0 %2551
        %2553 = vset.pattern.permute.xlu0 0
        %2554 = vperm.xlu0 %2553, %v2539
        %v2555 = vpop.permute.xlu0 %2554
        %v2556 = vlaneseq
        %v2557 = vshrl.u32 %v2556, 7
        %v2558 = vsub.s32 %v2390, %v2557
        %v2559 = vrot.slane %v2546, %v2558
        %v2560 = vlaneseq
        %v2561 = vshrl.u32 %v2560, 7
        %v2562 = vsub.s32 %v2395, %v2561
        %v2563 = vrot.slane %v2549, %v2562
        %v2564 = vsel %vm2400, %v2563, %v2559
        %v2565 = vlaneseq
        %v2566 = vshrl.u32 %v2565, 7
        %v2567 = vsub.s32 %v2402, %v2566
        %v2568 = vrot.slane %v2552, %v2567
        %v2569 = vsel %vm2407, %v2568, %v2564
        %v2570 = vlaneseq
        %v2571 = vshrl.u32 %v2570, 7
        %v2572 = vsub.s32 %v2409, %v2571
        %v2573 = vrot.slane %v2555, %v2572
        %v2574 = vsel %vm2414, %v2573, %v2569
        %2576 = vst.msk [vmem:[#allocation6 + $0x1] sm:$0x1] %vm2417, %v2574
        %v2577 = vlaneseq
        %v2578 = vshrl.u32 %v2577, 7
        %v2579 = vsub.s32 2, %v2578
        %v2580 = vrot.slane %v2250, %v2579
        %2582 = vbcast.lane.b32.xlu0 %v2580, 256
        %v2583 = vpop.permute.xlu0 %2582
        %s2585 = sor.u32 256, 8
        %2586 = vbcast.lane.b32.xlu0 %v2580, %s2585
        %v2587 = vpop.permute.xlu0 %2586
        %s2589 = sor.u32 256, 16
        %2590 = vbcast.lane.b32.xlu0 %v2580, %s2589
        %v2591 = vpop.permute.xlu0 %2590
        %s2593 = sor.u32 256, 24
        %2594 = vbcast.lane.b32.xlu0 %v2580, %s2593
        %v2595 = vpop.permute.xlu0 %2594
        %v2596 = vmul.f32 %v2583, %v2233
        %v2597 = vmul.f32 %v2587, %v2234
        %v2598 = vmul.f32 %v2591, %v2235
        %v2599 = vmul.f32 %v2595, %v2236
        %v2600 = vmul.f32 %v2596, 1.442695
        %v2601 = vpow.pop %v2600
        %v2602 = vmul.f32 %v2597, 1.442695
        %v2603 = vpow.pop %v2602
        %v2604 = vmul.f32 %v2598, 1.442695
        %v2605 = vpow.pop %v2604
        %v2606 = vmul.f32 %v2599, 1.442695
        %v2607 = vpow.pop %v2606
        %v2608 = vlaneseq
        %v2609 = vshrl.u32 %v2608, 7
        %v2610 = vsub.s32 2, %v2609
        %v2611 = vrot.slane %v2288, %v2610
        %2613 = vbcast.lane.b32.xlu0 %v2611, 256
        %v2614 = vpop.permute.xlu0 %2613
        %s2616 = sor.u32 256, 8
        %2617 = vbcast.lane.b32.xlu0 %v2611, %s2616
        %v2618 = vpop.permute.xlu0 %2617
        %s2620 = sor.u32 256, 16
        %2621 = vbcast.lane.b32.xlu0 %v2611, %s2620
        %v2622 = vpop.permute.xlu0 %2621
        %s2624 = sor.u32 256, 24
        %2625 = vbcast.lane.b32.xlu0 %v2611, %s2624
        %v2626 = vpop.permute.xlu0 %2625
        %v2627 = vlaneseq
        %v2628 = vshrl.u32 %v2627, 7
        %v2629 = vsub.s32 2, %v2628
        %v2630 = vrot.slane %v2254, %v2629
        %v2631 = vmul.f32 %v2614, %v2630
        %v2632 = vmul.f32 %v2618, %v2630
        %v2633 = vmul.f32 %v2622, %v2630
        %v2634 = vmul.f32 %v2626, %v2630
        %v2635 = vmul.f32 %v2601, %v2481
        %v2636 = vmul.f32 %v2603, %v2482
        %v2637 = vmul.f32 %v2605, %v2483
        %v2638 = vmul.f32 %v2607, %v2484
        %v2639 = vadd.f32 %v2635, %v2631
        %v2640 = vadd.f32 %v2636, %v2632
        %v2641 = vadd.f32 %v2637, %v2633
        %v2642 = vadd.f32 %v2638, %v2634
        %v2643 = vlaneseq
        %v2644 = vshrl.u32 %v2643, 7
        %v2645 = vsub.s32 2, %v2644
        %v2646 = vrot.slane %v2256, %v2645
        %v2647 = vmul.f32 %v2639, %v2646
        %v2648 = vmul.f32 %v2640, %v2646
        %v2649 = vmul.f32 %v2641, %v2646
        %v2650 = vmul.f32 %v2642, %v2646
        %v2651 = vsel %vm1057, %v2647, 0.0
        %2652 = vadd.xlane.f32.xlu0 %v2651
        %v2653 = vpop.xlane.xlu0 %2652
        %v2654 = vsel %vm1057, %v2648, 0.0
        %2655 = vadd.xlane.f32.xlu0 %v2654
        %v2656 = vpop.xlane.xlu0 %2655
        %v2657 = vsel %vm1057, %v2649, 0.0
        %2658 = vadd.xlane.f32.xlu0 %v2657
        %v2659 = vpop.xlane.xlu0 %2658
        %v2660 = vsel %vm1057, %v2650, 0.0
        %2661 = vadd.xlane.f32.xlu0 %v2660
        %v2662 = vpop.xlane.xlu0 %2661
        %v2663 = vlaneseq
        %v2664 = vshrl.u32 %v2663, 7
        %v2665 = vsub.s32 2, %v2664
        %v2666 = vrot.slane %v2511, %v2665
        %2668 = vbcast.lane.b32.xlu0 %v2666, 256
        %v2669 = vpop.permute.xlu0 %2668
        %s2671 = sor.u32 256, 8
        %2672 = vbcast.lane.b32.xlu0 %v2666, %s2671
        %v2673 = vpop.permute.xlu0 %2672
        %s2675 = sor.u32 256, 16
        %2676 = vbcast.lane.b32.xlu0 %v2666, %s2675
        %v2677 = vpop.permute.xlu0 %2676
        %s2679 = sor.u32 256, 24
        %2680 = vbcast.lane.b32.xlu0 %v2666, %s2679
        %v2681 = vpop.permute.xlu0 %2680
        %v2686 = vadd.f32 %v2653, %v2669
        %v2687 = vadd.f32 %v2656, %v2673
        %v2688 = vadd.f32 %v2659, %v2677
        %v2689 = vadd.f32 %v2662, %v2681
        %2694 = vset.pattern.permute.xlu0 0
        %2695 = vperm.xlu0 %2694, %v2686
        %v2696 = vpop.permute.xlu0 %2695
        %2697 = vset.pattern.permute.xlu0 0
        %2698 = vperm.xlu0 %2697, %v2687
        %v2699 = vpop.permute.xlu0 %2698
        %2700 = vset.pattern.permute.xlu0 0
        %2701 = vperm.xlu0 %2700, %v2688
        %v2702 = vpop.permute.xlu0 %2701
        %2703 = vset.pattern.permute.xlu0 0
        %2704 = vperm.xlu0 %2703, %v2689
        %v2705 = vpop.permute.xlu0 %2704
        %v2706 = vlaneseq
        %v2707 = vshrl.u32 %v2706, 7
        %v2708 = vsub.s32 %v2390, %v2707
        %v2709 = vrot.slane %v2696, %v2708
        %v2710 = vlaneseq
        %v2711 = vshrl.u32 %v2710, 7
        %v2712 = vsub.s32 %v2395, %v2711
        %v2713 = vrot.slane %v2699, %v2712
        %v2714 = vsel %vm2400, %v2713, %v2709
        %v2715 = vlaneseq
        %v2716 = vshrl.u32 %v2715, 7
        %v2717 = vsub.s32 %v2402, %v2716
        %v2718 = vrot.slane %v2702, %v2717
        %v2719 = vsel %vm2407, %v2718, %v2714
        %v2720 = vlaneseq
        %v2721 = vshrl.u32 %v2720, 7
        %v2722 = vsub.s32 %v2409, %v2721
        %v2723 = vrot.slane %v2705, %v2722
        %v2724 = vsel %vm2414, %v2723, %v2719
        %2726 = vst.msk [vmem:[#allocation6 + $0x2] sm:$0x1] %vm2417, %v2724
        %v2727 = vlaneseq
        %v2728 = vshrl.u32 %v2727, 7
        %v2729 = vsub.s32 3, %v2728
        %v2730 = vrot.slane %v2250, %v2729
        %2732 = vbcast.lane.b32.xlu0 %v2730, 256
        %v2733 = vpop.permute.xlu0 %2732
        %s2735 = sor.u32 256, 8
        %2736 = vbcast.lane.b32.xlu0 %v2730, %s2735
        %v2737 = vpop.permute.xlu0 %2736
        %s2739 = sor.u32 256, 16
        %2740 = vbcast.lane.b32.xlu0 %v2730, %s2739
        %v2741 = vpop.permute.xlu0 %2740
        %s2743 = sor.u32 256, 24
        %2744 = vbcast.lane.b32.xlu0 %v2730, %s2743
        %v2745 = vpop.permute.xlu0 %2744
        %v2746 = vmul.f32 %v2733, %v2233
        %v2747 = vmul.f32 %v2737, %v2234
        %v2748 = vmul.f32 %v2741, %v2235
        %v2749 = vmul.f32 %v2745, %v2236
        %v2750 = vmul.f32 %v2746, 1.442695
        %v2751 = vpow.pop %v2750
        %v2752 = vmul.f32 %v2747, 1.442695
        %v2753 = vpow.pop %v2752
        %v2754 = vmul.f32 %v2748, 1.442695
        %v2755 = vpow.pop %v2754
        %v2756 = vmul.f32 %v2749, 1.442695
        %v2757 = vpow.pop %v2756
        %v2758 = vlaneseq
        %v2759 = vshrl.u32 %v2758, 7
        %v2760 = vsub.s32 3, %v2759
        %v2761 = vrot.slane %v2288, %v2760
        %2763 = vbcast.lane.b32.xlu0 %v2761, 256
        %v2764 = vpop.permute.xlu0 %2763
        %s2766 = sor.u32 256, 8
        %2767 = vbcast.lane.b32.xlu0 %v2761, %s2766
        %v2768 = vpop.permute.xlu0 %2767
        %s2770 = sor.u32 256, 16
        %2771 = vbcast.lane.b32.xlu0 %v2761, %s2770
        %v2772 = vpop.permute.xlu0 %2771
        %s2774 = sor.u32 256, 24
        %2775 = vbcast.lane.b32.xlu0 %v2761, %s2774
        %v2776 = vpop.permute.xlu0 %2775
        %v2777 = vlaneseq
        %v2778 = vshrl.u32 %v2777, 7
        %v2779 = vsub.s32 3, %v2778
        %v2780 = vrot.slane %v2254, %v2779
        %v2781 = vmul.f32 %v2764, %v2780
        %v2782 = vmul.f32 %v2768, %v2780
        %v2783 = vmul.f32 %v2772, %v2780
        %v2784 = vmul.f32 %v2776, %v2780
        %v2785 = vmul.f32 %v2751, %v2639
        %v2786 = vmul.f32 %v2753, %v2640
        %v2787 = vmul.f32 %v2755, %v2641
        %v2788 = vmul.f32 %v2757, %v2642
        %v2789 = vadd.f32 %v2785, %v2781
        %v2790 = vadd.f32 %v2786, %v2782
        %v2791 = vadd.f32 %v2787, %v2783
        %v2792 = vadd.f32 %v2788, %v2784
        %v2793 = vlaneseq
        %v2794 = vshrl.u32 %v2793, 7
        %v2795 = vsub.s32 3, %v2794
        %v2796 = vrot.slane %v2256, %v2795
        %v2797 = vmul.f32 %v2789, %v2796
        %v2798 = vmul.f32 %v2790, %v2796
        %v2799 = vmul.f32 %v2791, %v2796
        %v2800 = vmul.f32 %v2792, %v2796
        %v2801 = vsel %vm1057, %v2797, 0.0
        %2802 = vadd.xlane.f32.xlu0 %v2801
        %v2803 = vpop.xlane.xlu0 %2802
        %v2804 = vsel %vm1057, %v2798, 0.0
        %2805 = vadd.xlane.f32.xlu0 %v2804
        %v2806 = vpop.xlane.xlu0 %2805
        %v2807 = vsel %vm1057, %v2799, 0.0
        %2808 = vadd.xlane.f32.xlu0 %v2807
        %v2809 = vpop.xlane.xlu0 %2808
        %v2810 = vsel %vm1057, %v2800, 0.0
        %2811 = vadd.xlane.f32.xlu0 %v2810
        %v2812 = vpop.xlane.xlu0 %2811
        %v2813 = vlaneseq
        %v2814 = vshrl.u32 %v2813, 7
        %v2815 = vsub.s32 3, %v2814
        %v2816 = vrot.slane %v2511, %v2815
        %2818 = vbcast.lane.b32.xlu0 %v2816, 256
        %v2819 = vpop.permute.xlu0 %2818
        %s2821 = sor.u32 256, 8
        %2822 = vbcast.lane.b32.xlu0 %v2816, %s2821
        %v2823 = vpop.permute.xlu0 %2822
        %s2825 = sor.u32 256, 16
        %2826 = vbcast.lane.b32.xlu0 %v2816, %s2825
        %v2827 = vpop.permute.xlu0 %2826
        %s2829 = sor.u32 256, 24
        %2830 = vbcast.lane.b32.xlu0 %v2816, %s2829
        %v2831 = vpop.permute.xlu0 %2830
        %v2836 = vadd.f32 %v2803, %v2819
        %v2837 = vadd.f32 %v2806, %v2823
        %v2838 = vadd.f32 %v2809, %v2827
        %v2839 = vadd.f32 %v2812, %v2831
        %2844 = vset.pattern.permute.xlu0 0
        %2845 = vperm.xlu0 %2844, %v2836
        %v2846 = vpop.permute.xlu0 %2845
        %2847 = vset.pattern.permute.xlu0 0
        %2848 = vperm.xlu0 %2847, %v2837
        %v2849 = vpop.permute.xlu0 %2848
        %2850 = vset.pattern.permute.xlu0 0
        %2851 = vperm.xlu0 %2850, %v2838
        %v2852 = vpop.permute.xlu0 %2851
        %2853 = vset.pattern.permute.xlu0 0
        %2854 = vperm.xlu0 %2853, %v2839
        %v2855 = vpop.permute.xlu0 %2854
        %v2856 = vlaneseq
        %v2857 = vshrl.u32 %v2856, 7
        %v2858 = vsub.s32 %v2390, %v2857
        %v2859 = vrot.slane %v2846, %v2858
        %v2860 = vlaneseq
        %v2861 = vshrl.u32 %v2860, 7
        %v2862 = vsub.s32 %v2395, %v2861
        %v2863 = vrot.slane %v2849, %v2862
        %v2864 = vsel %vm2400, %v2863, %v2859
        %v2865 = vlaneseq
        %v2866 = vshrl.u32 %v2865, 7
        %v2867 = vsub.s32 %v2402, %v2866
        %v2868 = vrot.slane %v2852, %v2867
        %v2869 = vsel %vm2407, %v2868, %v2864
        %v2870 = vlaneseq
        %v2871 = vshrl.u32 %v2870, 7
        %v2872 = vsub.s32 %v2409, %v2871
        %v2873 = vrot.slane %v2855, %v2872
        %v2874 = vsel %vm2414, %v2873, %v2869
        %2876 = vst.msk [vmem:[#allocation6 + $0x3] sm:$0x1] %vm2417, %v2874
        %v2877 = vlaneseq
        %v2878 = vshrl.u32 %v2877, 7
        %v2879 = vsub.s32 4, %v2878
        %v2880 = vrot.slane %v2250, %v2879
        %2882 = vbcast.lane.b32.xlu0 %v2880, 256
        %v2883 = vpop.permute.xlu0 %2882
        %s2885 = sor.u32 256, 8
        %2886 = vbcast.lane.b32.xlu0 %v2880, %s2885
        %v2887 = vpop.permute.xlu0 %2886
        %s2889 = sor.u32 256, 16
        %2890 = vbcast.lane.b32.xlu0 %v2880, %s2889
        %v2891 = vpop.permute.xlu0 %2890
        %s2893 = sor.u32 256, 24
        %2894 = vbcast.lane.b32.xlu0 %v2880, %s2893
        %v2895 = vpop.permute.xlu0 %2894
        %v2896 = vmul.f32 %v2883, %v2233
        %v2897 = vmul.f32 %v2887, %v2234
        %v2898 = vmul.f32 %v2891, %v2235
        %v2899 = vmul.f32 %v2895, %v2236
        %v2900 = vmul.f32 %v2896, 1.442695
        %v2901 = vpow.pop %v2900
        %v2902 = vmul.f32 %v2897, 1.442695
        %v2903 = vpow.pop %v2902
        %v2904 = vmul.f32 %v2898, 1.442695
        %v2905 = vpow.pop %v2904
        %v2906 = vmul.f32 %v2899, 1.442695
        %v2907 = vpow.pop %v2906
        %v2908 = vlaneseq
        %v2909 = vshrl.u32 %v2908, 7
        %v2910 = vsub.s32 4, %v2909
        %v2911 = vrot.slane %v2288, %v2910
        %2913 = vbcast.lane.b32.xlu0 %v2911, 256
        %v2914 = vpop.permute.xlu0 %2913
        %s2916 = sor.u32 256, 8
        %2917 = vbcast.lane.b32.xlu0 %v2911, %s2916
        %v2918 = vpop.permute.xlu0 %2917
        %s2920 = sor.u32 256, 16
        %2921 = vbcast.lane.b32.xlu0 %v2911, %s2920
        %v2922 = vpop.permute.xlu0 %2921
        %s2924 = sor.u32 256, 24
        %2925 = vbcast.lane.b32.xlu0 %v2911, %s2924
        %v2926 = vpop.permute.xlu0 %2925
        %v2927 = vlaneseq
        %v2928 = vshrl.u32 %v2927, 7
        %v2929 = vsub.s32 4, %v2928
        %v2930 = vrot.slane %v2254, %v2929
        %v2931 = vmul.f32 %v2914, %v2930
        %v2932 = vmul.f32 %v2918, %v2930
        %v2933 = vmul.f32 %v2922, %v2930
        %v2934 = vmul.f32 %v2926, %v2930
        %v2935 = vmul.f32 %v2901, %v2789
        %v2936 = vmul.f32 %v2903, %v2790
        %v2937 = vmul.f32 %v2905, %v2791
        %v2938 = vmul.f32 %v2907, %v2792
        %v2939 = vadd.f32 %v2935, %v2931
        %v2940 = vadd.f32 %v2936, %v2932
        %v2941 = vadd.f32 %v2937, %v2933
        %v2942 = vadd.f32 %v2938, %v2934
        %v2943 = vlaneseq
        %v2944 = vshrl.u32 %v2943, 7
        %v2945 = vsub.s32 4, %v2944
        %v2946 = vrot.slane %v2256, %v2945
        %v2947 = vmul.f32 %v2939, %v2946
        %v2948 = vmul.f32 %v2940, %v2946
        %v2949 = vmul.f32 %v2941, %v2946
        %v2950 = vmul.f32 %v2942, %v2946
        %v2951 = vsel %vm1057, %v2947, 0.0
        %2952 = vadd.xlane.f32.xlu0 %v2951
        %v2953 = vpop.xlane.xlu0 %2952
        %v2954 = vsel %vm1057, %v2948, 0.0
        %2955 = vadd.xlane.f32.xlu0 %v2954
        %v2956 = vpop.xlane.xlu0 %2955
        %v2957 = vsel %vm1057, %v2949, 0.0
        %2958 = vadd.xlane.f32.xlu0 %v2957
        %v2959 = vpop.xlane.xlu0 %2958
        %v2960 = vsel %vm1057, %v2950, 0.0
        %2961 = vadd.xlane.f32.xlu0 %v2960
        %v2962 = vpop.xlane.xlu0 %2961
        %v2963 = vlaneseq
        %v2964 = vshrl.u32 %v2963, 7
        %v2965 = vsub.s32 4, %v2964
        %v2966 = vrot.slane %v2511, %v2965
        %2968 = vbcast.lane.b32.xlu0 %v2966, 256
        %v2969 = vpop.permute.xlu0 %2968
        %s2971 = sor.u32 256, 8
        %2972 = vbcast.lane.b32.xlu0 %v2966, %s2971
        %v2973 = vpop.permute.xlu0 %2972
        %s2975 = sor.u32 256, 16
        %2976 = vbcast.lane.b32.xlu0 %v2966, %s2975
        %v2977 = vpop.permute.xlu0 %2976
        %s2979 = sor.u32 256, 24
        %2980 = vbcast.lane.b32.xlu0 %v2966, %s2979
        %v2981 = vpop.permute.xlu0 %2980
        %v2986 = vadd.f32 %v2953, %v2969
        %v2987 = vadd.f32 %v2956, %v2973
        %v2988 = vadd.f32 %v2959, %v2977
        %v2989 = vadd.f32 %v2962, %v2981
        %2994 = vset.pattern.permute.xlu0 0
        %2995 = vperm.xlu0 %2994, %v2986
        %v2996 = vpop.permute.xlu0 %2995
        %2997 = vset.pattern.permute.xlu0 0
        %2998 = vperm.xlu0 %2997, %v2987
        %v2999 = vpop.permute.xlu0 %2998
        %3000 = vset.pattern.permute.xlu0 0
        %3001 = vperm.xlu0 %3000, %v2988
        %v3002 = vpop.permute.xlu0 %3001
        %3003 = vset.pattern.permute.xlu0 0
        %3004 = vperm.xlu0 %3003, %v2989
        %v3005 = vpop.permute.xlu0 %3004
        %v3006 = vlaneseq
        %v3007 = vshrl.u32 %v3006, 7
        %v3008 = vsub.s32 %v2390, %v3007
        %v3009 = vrot.slane %v2996, %v3008
        %v3010 = vlaneseq
        %v3011 = vshrl.u32 %v3010, 7
        %v3012 = vsub.s32 %v2395, %v3011
        %v3013 = vrot.slane %v2999, %v3012
        %v3014 = vsel %vm2400, %v3013, %v3009
        %v3015 = vlaneseq
        %v3016 = vshrl.u32 %v3015, 7
        %v3017 = vsub.s32 %v2402, %v3016
        %v3018 = vrot.slane %v3002, %v3017
        %v3019 = vsel %vm2407, %v3018, %v3014
        %v3020 = vlaneseq
        %v3021 = vshrl.u32 %v3020, 7
        %v3022 = vsub.s32 %v2409, %v3021
        %v3023 = vrot.slane %v3005, %v3022
        %v3024 = vsel %vm2414, %v3023, %v3019
        %3026 = vst.msk [vmem:[#allocation6 + $0x4] sm:$0x1] %vm2417, %v3024
        %v3027 = vlaneseq
        %v3028 = vshrl.u32 %v3027, 7
        %v3029 = vsub.s32 5, %v3028
        %v3030 = vrot.slane %v2250, %v3029
        %3032 = vbcast.lane.b32.xlu0 %v3030, 256
        %v3033 = vpop.permute.xlu0 %3032
        %s3035 = sor.u32 256, 8
        %3036 = vbcast.lane.b32.xlu0 %v3030, %s3035
        %v3037 = vpop.permute.xlu0 %3036
        %s3039 = sor.u32 256, 16
        %3040 = vbcast.lane.b32.xlu0 %v3030, %s3039
        %v3041 = vpop.permute.xlu0 %3040
        %s3043 = sor.u32 256, 24
        %3044 = vbcast.lane.b32.xlu0 %v3030, %s3043
        %v3045 = vpop.permute.xlu0 %3044
        %v3046 = vmul.f32 %v3033, %v2233
        %v3047 = vmul.f32 %v3037, %v2234
        %v3048 = vmul.f32 %v3041, %v2235
        %v3049 = vmul.f32 %v3045, %v2236
        %v3050 = vmul.f32 %v3046, 1.442695
        %v3051 = vpow.pop %v3050
        %v3052 = vmul.f32 %v3047, 1.442695
        %v3053 = vpow.pop %v3052
        %v3054 = vmul.f32 %v3048, 1.442695
        %v3055 = vpow.pop %v3054
        %v3056 = vmul.f32 %v3049, 1.442695
        %v3057 = vpow.pop %v3056
        %v3058 = vlaneseq
        %v3059 = vshrl.u32 %v3058, 7
        %v3060 = vsub.s32 5, %v3059
        %v3061 = vrot.slane %v2288, %v3060
        %3063 = vbcast.lane.b32.xlu0 %v3061, 256
        %v3064 = vpop.permute.xlu0 %3063
        %s3066 = sor.u32 256, 8
        %3067 = vbcast.lane.b32.xlu0 %v3061, %s3066
        %v3068 = vpop.permute.xlu0 %3067
        %s3070 = sor.u32 256, 16
        %3071 = vbcast.lane.b32.xlu0 %v3061, %s3070
        %v3072 = vpop.permute.xlu0 %3071
        %s3074 = sor.u32 256, 24
        %3075 = vbcast.lane.b32.xlu0 %v3061, %s3074
        %v3076 = vpop.permute.xlu0 %3075
        %v3077 = vlaneseq
        %v3078 = vshrl.u32 %v3077, 7
        %v3079 = vsub.s32 5, %v3078
        %v3080 = vrot.slane %v2254, %v3079
        %v3081 = vmul.f32 %v3064, %v3080
        %v3082 = vmul.f32 %v3068, %v3080
        %v3083 = vmul.f32 %v3072, %v3080
        %v3084 = vmul.f32 %v3076, %v3080
        %v3085 = vmul.f32 %v3051, %v2939
        %v3086 = vmul.f32 %v3053, %v2940
        %v3087 = vmul.f32 %v3055, %v2941
        %v3088 = vmul.f32 %v3057, %v2942
        %v3089 = vadd.f32 %v3085, %v3081
        %v3090 = vadd.f32 %v3086, %v3082
        %v3091 = vadd.f32 %v3087, %v3083
        %v3092 = vadd.f32 %v3088, %v3084
        %v3093 = vlaneseq
        %v3094 = vshrl.u32 %v3093, 7
        %v3095 = vsub.s32 5, %v3094
        %v3096 = vrot.slane %v2256, %v3095
        %v3097 = vmul.f32 %v3089, %v3096
        %v3098 = vmul.f32 %v3090, %v3096
        %v3099 = vmul.f32 %v3091, %v3096
        %v3100 = vmul.f32 %v3092, %v3096
        %v3101 = vsel %vm1057, %v3097, 0.0
        %3102 = vadd.xlane.f32.xlu0 %v3101
        %v3103 = vpop.xlane.xlu0 %3102
        %v3104 = vsel %vm1057, %v3098, 0.0
        %3105 = vadd.xlane.f32.xlu0 %v3104
        %v3106 = vpop.xlane.xlu0 %3105
        %v3107 = vsel %vm1057, %v3099, 0.0
        %3108 = vadd.xlane.f32.xlu0 %v3107
        %v3109 = vpop.xlane.xlu0 %3108
        %v3110 = vsel %vm1057, %v3100, 0.0
        %3111 = vadd.xlane.f32.xlu0 %v3110
        %v3112 = vpop.xlane.xlu0 %3111
        %v3113 = vlaneseq
        %v3114 = vshrl.u32 %v3113, 7
        %v3115 = vsub.s32 5, %v3114
        %v3116 = vrot.slane %v2511, %v3115
        %3118 = vbcast.lane.b32.xlu0 %v3116, 256
        %v3119 = vpop.permute.xlu0 %3118
        %s3121 = sor.u32 256, 8
        %3122 = vbcast.lane.b32.xlu0 %v3116, %s3121
        %v3123 = vpop.permute.xlu0 %3122
        %s3125 = sor.u32 256, 16
        %3126 = vbcast.lane.b32.xlu0 %v3116, %s3125
        %v3127 = vpop.permute.xlu0 %3126
        %s3129 = sor.u32 256, 24
        %3130 = vbcast.lane.b32.xlu0 %v3116, %s3129
        %v3131 = vpop.permute.xlu0 %3130
        %v3136 = vadd.f32 %v3103, %v3119
        %v3137 = vadd.f32 %v3106, %v3123
        %v3138 = vadd.f32 %v3109, %v3127
        %v3139 = vadd.f32 %v3112, %v3131
        %3144 = vset.pattern.permute.xlu0 0
        %3145 = vperm.xlu0 %3144, %v3136
        %v3146 = vpop.permute.xlu0 %3145
        %3147 = vset.pattern.permute.xlu0 0
        %3148 = vperm.xlu0 %3147, %v3137
        %v3149 = vpop.permute.xlu0 %3148
        %3150 = vset.pattern.permute.xlu0 0
        %3151 = vperm.xlu0 %3150, %v3138
        %v3152 = vpop.permute.xlu0 %3151
        %3153 = vset.pattern.permute.xlu0 0
        %3154 = vperm.xlu0 %3153, %v3139
        %v3155 = vpop.permute.xlu0 %3154
        %v3156 = vlaneseq
        %v3157 = vshrl.u32 %v3156, 7
        %v3158 = vsub.s32 %v2390, %v3157
        %v3159 = vrot.slane %v3146, %v3158
        %v3160 = vlaneseq
        %v3161 = vshrl.u32 %v3160, 7
        %v3162 = vsub.s32 %v2395, %v3161
        %v3163 = vrot.slane %v3149, %v3162
        %v3164 = vsel %vm2400, %v3163, %v3159
        %v3165 = vlaneseq
        %v3166 = vshrl.u32 %v3165, 7
        %v3167 = vsub.s32 %v2402, %v3166
        %v3168 = vrot.slane %v3152, %v3167
        %v3169 = vsel %vm2407, %v3168, %v3164
        %v3170 = vlaneseq
        %v3171 = vshrl.u32 %v3170, 7
        %v3172 = vsub.s32 %v2409, %v3171
        %v3173 = vrot.slane %v3155, %v3172
        %v3174 = vsel %vm2414, %v3173, %v3169
        %3176 = vst.msk [vmem:[#allocation6 + $0x5] sm:$0x1] %vm2417, %v3174
        %v3177 = vlaneseq
        %v3178 = vshrl.u32 %v3177, 7
        %v3179 = vsub.s32 6, %v3178
        %v3180 = vrot.slane %v2250, %v3179
        %3182 = vbcast.lane.b32.xlu0 %v3180, 256
        %v3183 = vpop.permute.xlu0 %3182
        %s3185 = sor.u32 256, 8
        %3186 = vbcast.lane.b32.xlu0 %v3180, %s3185
        %v3187 = vpop.permute.xlu0 %3186
        %s3189 = sor.u32 256, 16
        %3190 = vbcast.lane.b32.xlu0 %v3180, %s3189
        %v3191 = vpop.permute.xlu0 %3190
        %s3193 = sor.u32 256, 24
        %3194 = vbcast.lane.b32.xlu0 %v3180, %s3193
        %v3195 = vpop.permute.xlu0 %3194
        %v3196 = vmul.f32 %v3183, %v2233
        %v3197 = vmul.f32 %v3187, %v2234
        %v3198 = vmul.f32 %v3191, %v2235
        %v3199 = vmul.f32 %v3195, %v2236
        %v3200 = vmul.f32 %v3196, 1.442695
        %v3201 = vpow.pop %v3200
        %v3202 = vmul.f32 %v3197, 1.442695
        %v3203 = vpow.pop %v3202
        %v3204 = vmul.f32 %v3198, 1.442695
        %v3205 = vpow.pop %v3204
        %v3206 = vmul.f32 %v3199, 1.442695
        %v3207 = vpow.pop %v3206
        %v3208 = vlaneseq
        %v3209 = vshrl.u32 %v3208, 7
        %v3210 = vsub.s32 6, %v3209
        %v3211 = vrot.slane %v2288, %v3210
        %3213 = vbcast.lane.b32.xlu0 %v3211, 256
        %v3214 = vpop.permute.xlu0 %3213
        %s3216 = sor.u32 256, 8
        %3217 = vbcast.lane.b32.xlu0 %v3211, %s3216
        %v3218 = vpop.permute.xlu0 %3217
        %s3220 = sor.u32 256, 16
        %3221 = vbcast.lane.b32.xlu0 %v3211, %s3220
        %v3222 = vpop.permute.xlu0 %3221
        %s3224 = sor.u32 256, 24
        %3225 = vbcast.lane.b32.xlu0 %v3211, %s3224
        %v3226 = vpop.permute.xlu0 %3225
        %v3227 = vlaneseq
        %v3228 = vshrl.u32 %v3227, 7
        %v3229 = vsub.s32 6, %v3228
        %v3230 = vrot.slane %v2254, %v3229
        %v3231 = vmul.f32 %v3214, %v3230
        %v3232 = vmul.f32 %v3218, %v3230
        %v3233 = vmul.f32 %v3222, %v3230
        %v3234 = vmul.f32 %v3226, %v3230
        %v3235 = vmul.f32 %v3201, %v3089
        %v3236 = vmul.f32 %v3203, %v3090
        %v3237 = vmul.f32 %v3205, %v3091
        %v3238 = vmul.f32 %v3207, %v3092
        %v3239 = vadd.f32 %v3235, %v3231
        %v3240 = vadd.f32 %v3236, %v3232
        %v3241 = vadd.f32 %v3237, %v3233
        %v3242 = vadd.f32 %v3238, %v3234
        %v3243 = vlaneseq
        %v3244 = vshrl.u32 %v3243, 7
        %v3245 = vsub.s32 6, %v3244
        %v3246 = vrot.slane %v2256, %v3245
        %v3247 = vmul.f32 %v3239, %v3246
        %v3248 = vmul.f32 %v3240, %v3246
        %v3249 = vmul.f32 %v3241, %v3246
        %v3250 = vmul.f32 %v3242, %v3246
        %v3251 = vsel %vm1057, %v3247, 0.0
        %3252 = vadd.xlane.f32.xlu0 %v3251
        %v3253 = vpop.xlane.xlu0 %3252
        %v3254 = vsel %vm1057, %v3248, 0.0
        %3255 = vadd.xlane.f32.xlu0 %v3254
        %v3256 = vpop.xlane.xlu0 %3255
        %v3257 = vsel %vm1057, %v3249, 0.0
        %3258 = vadd.xlane.f32.xlu0 %v3257
        %v3259 = vpop.xlane.xlu0 %3258
        %v3260 = vsel %vm1057, %v3250, 0.0
        %3261 = vadd.xlane.f32.xlu0 %v3260
        %v3262 = vpop.xlane.xlu0 %3261
        %v3263 = vlaneseq
        %v3264 = vshrl.u32 %v3263, 7
        %v3265 = vsub.s32 6, %v3264
        %v3266 = vrot.slane %v2511, %v3265
        %3268 = vbcast.lane.b32.xlu0 %v3266, 256
        %v3269 = vpop.permute.xlu0 %3268
        %s3271 = sor.u32 256, 8
        %3272 = vbcast.lane.b32.xlu0 %v3266, %s3271
        %v3273 = vpop.permute.xlu0 %3272
        %s3275 = sor.u32 256, 16
        %3276 = vbcast.lane.b32.xlu0 %v3266, %s3275
        %v3277 = vpop.permute.xlu0 %3276
        %s3279 = sor.u32 256, 24
        %3280 = vbcast.lane.b32.xlu0 %v3266, %s3279
        %v3281 = vpop.permute.xlu0 %3280
        %v3286 = vadd.f32 %v3253, %v3269
        %v3287 = vadd.f32 %v3256, %v3273
        %v3288 = vadd.f32 %v3259, %v3277
        %v3289 = vadd.f32 %v3262, %v3281
        %3294 = vset.pattern.permute.xlu0 0
        %3295 = vperm.xlu0 %3294, %v3286
        %v3296 = vpop.permute.xlu0 %3295
        %3297 = vset.pattern.permute.xlu0 0
        %3298 = vperm.xlu0 %3297, %v3287
        %v3299 = vpop.permute.xlu0 %3298
        %3300 = vset.pattern.permute.xlu0 0
        %3301 = vperm.xlu0 %3300, %v3288
        %v3302 = vpop.permute.xlu0 %3301
        %3303 = vset.pattern.permute.xlu0 0
        %3304 = vperm.xlu0 %3303, %v3289
        %v3305 = vpop.permute.xlu0 %3304
        %v3306 = vlaneseq
        %v3307 = vshrl.u32 %v3306, 7
        %v3308 = vsub.s32 %v2390, %v3307
        %v3309 = vrot.slane %v3296, %v3308
        %v3310 = vlaneseq
        %v3311 = vshrl.u32 %v3310, 7
        %v3312 = vsub.s32 %v2395, %v3311
        %v3313 = vrot.slane %v3299, %v3312
        %v3314 = vsel %vm2400, %v3313, %v3309
        %v3315 = vlaneseq
        %v3316 = vshrl.u32 %v3315, 7
        %v3317 = vsub.s32 %v2402, %v3316
        %v3318 = vrot.slane %v3302, %v3317
        %v3319 = vsel %vm2407, %v3318, %v3314
        %v3320 = vlaneseq
        %v3321 = vshrl.u32 %v3320, 7
        %v3322 = vsub.s32 %v2409, %v3321
        %v3323 = vrot.slane %v3305, %v3322
        %v3324 = vsel %vm2414, %v3323, %v3319
        %3326 = vst.msk [vmem:[#allocation6 + $0x6] sm:$0x1] %vm2417, %v3324
        %v3327 = vlaneseq
        %v3328 = vshrl.u32 %v3327, 7
        %v3329 = vsub.s32 7, %v3328
        %v3330 = vrot.slane %v2250, %v3329
        %3332 = vbcast.lane.b32.xlu0 %v3330, 256
        %v3333 = vpop.permute.xlu0 %3332
        %s3335 = sor.u32 256, 8
        %3336 = vbcast.lane.b32.xlu0 %v3330, %s3335
        %v3337 = vpop.permute.xlu0 %3336
        %s3339 = sor.u32 256, 16
        %3340 = vbcast.lane.b32.xlu0 %v3330, %s3339
        %v3341 = vpop.permute.xlu0 %3340
        %s3343 = sor.u32 256, 24
        %3344 = vbcast.lane.b32.xlu0 %v3330, %s3343
        %v3345 = vpop.permute.xlu0 %3344
        %v3346 = vmul.f32 %v3333, %v2233
        %v3347 = vmul.f32 %v3337, %v2234
        %v3348 = vmul.f32 %v3341, %v2235
        %v3349 = vmul.f32 %v3345, %v2236
        %v3350 = vmul.f32 %v3346, 1.442695
        %v3351 = vpow.pop %v3350
        %v3352 = vmul.f32 %v3347, 1.442695
        %v3353 = vpow.pop %v3352
        %v3354 = vmul.f32 %v3348, 1.442695
        %v3355 = vpow.pop %v3354
        %v3356 = vmul.f32 %v3349, 1.442695
        %v3357 = vpow.pop %v3356
        %v3358 = vlaneseq
        %v3359 = vshrl.u32 %v3358, 7
        %v3360 = vsub.s32 7, %v3359
        %v3361 = vrot.slane %v2288, %v3360
        %3363 = vbcast.lane.b32.xlu0 %v3361, 256
        %v3364 = vpop.permute.xlu0 %3363
        %s3366 = sor.u32 256, 8
        %3367 = vbcast.lane.b32.xlu0 %v3361, %s3366
        %v3368 = vpop.permute.xlu0 %3367
        %s3370 = sor.u32 256, 16
        %3371 = vbcast.lane.b32.xlu0 %v3361, %s3370
        %v3372 = vpop.permute.xlu0 %3371
        %s3374 = sor.u32 256, 24
        %3375 = vbcast.lane.b32.xlu0 %v3361, %s3374
        %v3376 = vpop.permute.xlu0 %3375
        %v3377 = vlaneseq
        %v3378 = vshrl.u32 %v3377, 7
        %v3379 = vsub.s32 7, %v3378
        %v3380 = vrot.slane %v2254, %v3379
        %v3381 = vmul.f32 %v3364, %v3380
        %v3382 = vmul.f32 %v3368, %v3380
        %v3383 = vmul.f32 %v3372, %v3380
        %v3384 = vmul.f32 %v3376, %v3380
        %v3385 = vmul.f32 %v3351, %v3239
        %v3386 = vmul.f32 %v3353, %v3240
        %v3387 = vmul.f32 %v3355, %v3241
        %v3388 = vmul.f32 %v3357, %v3242
        %v3389 = vadd.f32 %v3385, %v3381
        %v3390 = vadd.f32 %v3386, %v3382
        %v3391 = vadd.f32 %v3387, %v3383
        %v3392 = vadd.f32 %v3388, %v3384
        %v3393 = vlaneseq
        %v3394 = vshrl.u32 %v3393, 7
        %v3395 = vsub.s32 7, %v3394
        %v3396 = vrot.slane %v2256, %v3395
        %v3397 = vmul.f32 %v3389, %v3396
        %v3398 = vmul.f32 %v3390, %v3396
        %v3399 = vmul.f32 %v3391, %v3396
        %v3400 = vmul.f32 %v3392, %v3396
        %v3401 = vsel %vm1057, %v3397, 0.0
        %3402 = vadd.xlane.f32.xlu0 %v3401
        %v3403 = vpop.xlane.xlu0 %3402
        %v3404 = vsel %vm1057, %v3398, 0.0
        %3405 = vadd.xlane.f32.xlu0 %v3404
        %v3406 = vpop.xlane.xlu0 %3405
        %v3407 = vsel %vm1057, %v3399, 0.0
        %3408 = vadd.xlane.f32.xlu0 %v3407
        %v3409 = vpop.xlane.xlu0 %3408
        %v3410 = vsel %vm1057, %v3400, 0.0
        %3411 = vadd.xlane.f32.xlu0 %v3410
        %v3412 = vpop.xlane.xlu0 %3411
        %v3413 = vlaneseq
        %v3414 = vshrl.u32 %v3413, 7
        %v3415 = vsub.s32 7, %v3414
        %v3416 = vrot.slane %v2511, %v3415
        %3418 = vbcast.lane.b32.xlu0 %v3416, 256
        %v3419 = vpop.permute.xlu0 %3418
        %s3421 = sor.u32 256, 8
        %3422 = vbcast.lane.b32.xlu0 %v3416, %s3421
        %v3423 = vpop.permute.xlu0 %3422
        %s3425 = sor.u32 256, 16
        %3426 = vbcast.lane.b32.xlu0 %v3416, %s3425
        %v3427 = vpop.permute.xlu0 %3426
        %s3429 = sor.u32 256, 24
        %3430 = vbcast.lane.b32.xlu0 %v3416, %s3429
        %v3431 = vpop.permute.xlu0 %3430
        %v3436 = vadd.f32 %v3403, %v3419
        %v3437 = vadd.f32 %v3406, %v3423
        %v3438 = vadd.f32 %v3409, %v3427
        %v3439 = vadd.f32 %v3412, %v3431
        %3444 = vset.pattern.permute.xlu0 0
        %3445 = vperm.xlu0 %3444, %v3436
        %v3446 = vpop.permute.xlu0 %3445
        %3447 = vset.pattern.permute.xlu0 0
        %3448 = vperm.xlu0 %3447, %v3437
        %v3449 = vpop.permute.xlu0 %3448
        %3450 = vset.pattern.permute.xlu0 0
        %3451 = vperm.xlu0 %3450, %v3438
        %v3452 = vpop.permute.xlu0 %3451
        %3453 = vset.pattern.permute.xlu0 0
        %3454 = vperm.xlu0 %3453, %v3439
        %v3455 = vpop.permute.xlu0 %3454
        %v3456 = vlaneseq
        %v3457 = vshrl.u32 %v3456, 7
        %v3458 = vsub.s32 %v2390, %v3457
        %v3459 = vrot.slane %v3446, %v3458
        %v3460 = vlaneseq
        %v3461 = vshrl.u32 %v3460, 7
        %v3462 = vsub.s32 %v2395, %v3461
        %v3463 = vrot.slane %v3449, %v3462
        %v3464 = vsel %vm2400, %v3463, %v3459
        %v3465 = vlaneseq
        %v3466 = vshrl.u32 %v3465, 7
        %v3467 = vsub.s32 %v2402, %v3466
        %v3468 = vrot.slane %v3452, %v3467
        %v3469 = vsel %vm2407, %v3468, %v3464
        %v3470 = vlaneseq
        %v3471 = vshrl.u32 %v3470, 7
        %v3472 = vsub.s32 %v2409, %v3471
        %v3473 = vrot.slane %v3455, %v3472
        %v3474 = vsel %vm2414, %v3473, %v3469
        %3476 = vst.msk [vmem:[#allocation6 + $0x7] sm:$0x1] %vm2417, %v3474
        %v3477 = vld [vmem:[#allocation6] sm:$0xff]
        %s3478 = scalar_lea.vmem %s495, %s2248
        %3479 = vst.msk [vmem:[%s3478] sm:$0xff] %vm1024, %v3477
        %3481 = vrot.lane.b32.xlu0 %v3477, 120
        %v3482 = vpop.permute.xlu0 %3481
        %s3484 = scalar_lea.vmem %s500, %s2248
        %3485 = vst.msk [vmem:[%s3484] sm:$0xff] %vm1024, %v3482
        %3486 = vrot.lane.b32.xlu0 %v3477, 112
        %v3487 = vpop.permute.xlu0 %3486
        %s3489 = scalar_lea.vmem %s505, %s2248
        %3490 = vst.msk [vmem:[%s3489] sm:$0xff] %vm1024, %v3487
        %3491 = vrot.lane.b32.xlu0 %v3477, 104
        %v3492 = vpop.permute.xlu0 %3491
        %s3494 = scalar_lea.vmem %s510, %s2248
        %3495 = vst.msk [vmem:[%s3494] sm:$0xff] %vm1024, %v3492
      $region61: #{spectral_mamba_forward.6} parent=55 // loop_footer
        %s2243 = sadd.s32 1, %s2239
      $region62: #{spectral_mamba_forward.6} parent=55 // loop_footer_branch
        %2238 = sbr.rel target = $region58
      $region63: #{spectral_mamba_forward.6} parent=55 // loop_exit
        _
      %p3496 = scmp.lt.s32.totalorder %s24, 1
      %s3497 = scalar_select %p3496, %s24, 1
      %s3498 = smul.addr %s3497, 32
      %s3499 = smul.addr %s3498, 8
      %s3500 = scalar_lea.vmem %s9, %s3499
      %p3501 = scmp.lt.s32.totalorder %s24, 1
      %s3502 = scalar_select %p3501, %s24, 1
      %s3503 = smul.addr %s3502, 32
      %s3504 = smul.addr %s3503, 8
      %s3505 = scalar_lea.vmem %s10, %s3504
      %p3506 = scmp.lt.s32.totalorder %s24, 1
      %s3507 = scalar_select %p3506, %s24, 1
      %s3508 = smul.addr %s3507, 32
      %s3509 = smul.addr %s3508, 8
      %s3510 = scalar_lea.vmem %s11, %s3509
      %p3511 = scmp.lt.s32.totalorder %s24, 1
      %s3512 = scalar_select %p3511, %s24, 1
      %s3513 = smul.addr %s3512, 32
      %s3514 = smul.addr %s3513, 8
      %s3515 = scalar_lea.vmem %s12, %s3514
      // Predicated region
      $region64: #{spectral_mamba_forward.6} parent=55 // pred_check
        %p3516 = pneg %p251
      $region65: #{spectral_mamba_forward.6} parent=55 // pred_check_branch
        %3518 = sbr.rel (%p3516) target = $region67
      $region66: #{spectral_mamba_forward.6} parent=55 // pred_region
        _
      $region67: #{spectral_mamba_forward.6} parent=55 // pred_fallthru
        _
      // Predicated region
      $region68: #{spectral_mamba_forward.6} parent=55 // pred_check
        %p3519 = pneg %p277
      $region69: #{spectral_mamba_forward.6} parent=55 // pred_check_branch
        %3521 = sbr.rel (%p3519) target = $region71
      $region70: #{spectral_mamba_forward.6} parent=55 // pred_region
        _
      $region71: #{spectral_mamba_forward.6} parent=55 // pred_fallthru
        _
      // Predicated region
      $region72: #{spectral_mamba_forward.6} parent=55 // pred_check
        %p3522 = pneg %p303
      $region73: #{spectral_mamba_forward.6} parent=55 // pred_check_branch
        %3524 = sbr.rel (%p3522) target = $region75
      $region74: #{spectral_mamba_forward.6} parent=55 // pred_region
        _
      $region75: #{spectral_mamba_forward.6} parent=55 // pred_fallthru
        _
      // Predicated region
      $region76: #{spectral_mamba_forward.6} parent=55 // pred_check
        %p3525 = pneg %p329
      $region77: #{spectral_mamba_forward.6} parent=55 // pred_check_branch
        %3527 = sbr.rel (%p3525) target = $region79
      $region78: #{spectral_mamba_forward.6} parent=55 // pred_region
        _
      $region79: #{spectral_mamba_forward.6} parent=55 // pred_fallthru
        _
    $region56: #{spectral_mamba_forward.6} parent=5 // pred_fallthru
      _
    %p3528 = scmp.le.s32.totalorder 2, %s19
    // Predicated region
    $region80: #{spectral_mamba_forward.6} parent=5 // pred_check
      %p3529 = pneg %p3528
    $region81: #{spectral_mamba_forward.6} parent=5 // pred_check_branch
      %3531 = sbr.rel (%p3529) target = $region83
    $region82: #{spectral_mamba_forward.6} parent=5 // pred_region
      %s3532 = ssub.s32 %s19, 2
      // Predicated region
      $region84: #{spectral_mamba_forward.6} parent=82 // pred_check
        %p3533 = pneg %p257
      $region85: #{spectral_mamba_forward.6} parent=82 // pred_check_branch
        %3535 = sbr.rel (%p3533) target = $region87
      $region86: #{spectral_mamba_forward.6} parent=82 // pred_region
        %p3536 = scmp.lt.s32.totalorder %s25, 1
        %s3537 = scalar_select %p3536, %s25, 1
        %s3538 = smul.addr %s3537, 32
        %s3539 = smul.addr %s3538, 8
        %s3540 = scalar_lea.vmem %s9, %s3539
      $region87: #{spectral_mamba_forward.6} parent=82 // pred_fallthru
        _
      // Predicated region
      $region88: #{spectral_mamba_forward.6} parent=82 // pred_check
        %p3541 = pneg %p283
      $region89: #{spectral_mamba_forward.6} parent=82 // pred_check_branch
        %3543 = sbr.rel (%p3541) target = $region91
      $region90: #{spectral_mamba_forward.6} parent=82 // pred_region
        %p3544 = scmp.lt.s32.totalorder %s25, 1
        %s3545 = scalar_select %p3544, %s25, 1
        %s3546 = smul.addr %s3545, 32
        %s3547 = smul.addr %s3546, 8
        %s3548 = scalar_lea.vmem %s10, %s3547
      $region91: #{spectral_mamba_forward.6} parent=82 // pred_fallthru
        _
      // Predicated region
      $region92: #{spectral_mamba_forward.6} parent=82 // pred_check
        %p3549 = pneg %p309
      $region93: #{spectral_mamba_forward.6} parent=82 // pred_check_branch
        %3551 = sbr.rel (%p3549) target = $region95
      $region94: #{spectral_mamba_forward.6} parent=82 // pred_region
        %p3552 = scmp.lt.s32.totalorder %s25, 1
        %s3553 = scalar_select %p3552, %s25, 1
        %s3554 = smul.addr %s3553, 32
        %s3555 = smul.addr %s3554, 8
        %s3556 = scalar_lea.vmem %s11, %s3555
      $region95: #{spectral_mamba_forward.6} parent=82 // pred_fallthru
        _
      // Predicated region
      $region96: #{spectral_mamba_forward.6} parent=82 // pred_check
        %p3557 = pneg %p335
      $region97: #{spectral_mamba_forward.6} parent=82 // pred_check_branch
        %3559 = sbr.rel (%p3557) target = $region99
      $region98: #{spectral_mamba_forward.6} parent=82 // pred_region
        %p3560 = scmp.lt.s32.totalorder %s25, 1
        %s3561 = scalar_select %p3560, %s25, 1
        %s3562 = smul.addr %s3561, 32
        %s3563 = smul.addr %s3562, 8
        %s3564 = scalar_lea.vmem %s12, %s3563
      $region99: #{spectral_mamba_forward.6} parent=82 // pred_fallthru
        _
    $region83: #{spectral_mamba_forward.6} parent=5 // pred_fallthru
      _
  $region6: #{spectral_mamba_forward.6} parent=0 // loop_footer
    %s23 = sadd.s32 1, %s19
  $region7: #{spectral_mamba_forward.6} parent=0 // loop_footer_branch
    %18 = sbr.rel target = $region3
  $region8: #{spectral_mamba_forward.6} parent=0 // loop_exit
    _

// kernel: spectral_mamba_forward.7
$region0: #{spectral_mamba_forward.7}
  #allocation0 [shape = 'u32[]', space=smem, size = 0x4, offset = 0x4, fixed_abs, tag = 'smem constant byte address 0x4 - core index']
  #allocation1 [shape = 'u32[144,128]{1,0:T(1,128)}', space=vmem, size = 0x12000, scoped, tag = 'internal scratch']
  %s0 = inlined_call_operand.vmem [shape: f32[512,8], index: 0, kind: input, shape index: {}]
  %s1 = inlined_call_operand.vmem [shape: f32[512,8], index: 1, kind: input, shape index: {}]
  %s2 = inlined_call_operand.vmem [shape: f32[512,8], index: 2, kind: input, shape index: {}]
  %s3 = inlined_call_operand.vmem [shape: f32[512,8], index: 3, kind: input, shape index: {}]
  %s4 = inlined_call_operand.vmem [shape: f32[512,8], index: 4, kind: input, shape index: {}]
  %s5 = inlined_call_operand.vmem [shape: f32[1,8], index: 5, kind: input, shape index: {}]
  %s6 = inlined_call_operand.vmem [shape: f32[1,8], index: 6, kind: input, shape index: {}]
  %s7 = inlined_call_operand.vmem [shape: f32[8,4], index: 7, kind: input, shape index: {}]
  %s8 = inlined_call_operand.vmem [shape: f32[512,4], index: 8, kind: output, shape index: {}]
  %s9 = sld [smem:[#allocation0]]
  $region42: #{spectral_mamba_forward.7} parent=0
    _
  %s11 = ssub.s32 1, %s9
  %s12 = scalar_select 0, %s11, %s9
  // Predicated region
  $region2: #{spectral_mamba_forward.7} parent=0 // pred_check
    _
  $region3: #{spectral_mamba_forward.7} parent=0 // pred_check_branch
    %14 = sbr.rel (0) target = $region5
  $region4: #{spectral_mamba_forward.7} parent=0 // pred_region
    _
  $region5: #{spectral_mamba_forward.7} parent=0 // pred_fallthru
    _
  // Predicated region
  $region6: #{spectral_mamba_forward.7} parent=0 // pred_check
    _
  $region7: #{spectral_mamba_forward.7} parent=0 // pred_check_branch
    %16 = sbr.rel (0) target = $region9
  $region8: #{spectral_mamba_forward.7} parent=0 // pred_region
    _
  $region9: #{spectral_mamba_forward.7} parent=0 // pred_fallthru
    _
  // Predicated region
  $region10: #{spectral_mamba_forward.7} parent=0 // pred_check
    _
  $region11: #{spectral_mamba_forward.7} parent=0 // pred_check_branch
    %18 = sbr.rel (0) target = $region13
  $region12: #{spectral_mamba_forward.7} parent=0 // pred_region
    _
  $region13: #{spectral_mamba_forward.7} parent=0 // pred_fallthru
    _
  // Predicated region
  $region14: #{spectral_mamba_forward.7} parent=0 // pred_check
    _
  $region15: #{spectral_mamba_forward.7} parent=0 // pred_check_branch
    %20 = sbr.rel (0) target = $region17
  $region16: #{spectral_mamba_forward.7} parent=0 // pred_region
    _
  $region17: #{spectral_mamba_forward.7} parent=0 // pred_fallthru
    _
  // Predicated region
  $region18: #{spectral_mamba_forward.7} parent=0 // pred_check
    _
  $region19: #{spectral_mamba_forward.7} parent=0 // pred_check_branch
    %22 = sbr.rel (0) target = $region21
  $region20: #{spectral_mamba_forward.7} parent=0 // pred_region
    _
  $region21: #{spectral_mamba_forward.7} parent=0 // pred_fallthru
    _
  // Predicated region
  $region22: #{spectral_mamba_forward.7} parent=0 // pred_check
    _
  $region23: #{spectral_mamba_forward.7} parent=0 // pred_check_branch
    %24 = sbr.rel (0) target = $region25
  $region24: #{spectral_mamba_forward.7} parent=0 // pred_region
    _
  $region25: #{spectral_mamba_forward.7} parent=0 // pred_fallthru
    _
  // Predicated region
  $region26: #{spectral_mamba_forward.7} parent=0 // pred_check
    _
  $region27: #{spectral_mamba_forward.7} parent=0 // pred_check_branch
    %26 = sbr.rel (0) target = $region29
  $region28: #{spectral_mamba_forward.7} parent=0 // pred_region
    _
  $region29: #{spectral_mamba_forward.7} parent=0 // pred_fallthru
    _
  // Predicated region
  $region30: #{spectral_mamba_forward.7} parent=0 // pred_check
    _
  $region31: #{spectral_mamba_forward.7} parent=0 // pred_check_branch
    %28 = sbr.rel (0) target = $region33
  $region32: #{spectral_mamba_forward.7} parent=0 // pred_region
    _
  $region33: #{spectral_mamba_forward.7} parent=0 // pred_fallthru
    _
  %v30 = vld [vmem:[%s0] sm:$0xff]
  %v31 = vld [vmem:[%s0 + $0x8] sm:$0xff]
  %v32 = vld [vmem:[%s0 + $0x10] sm:$0xff]
  %v33 = vld [vmem:[%s0 + $0x18] sm:$0xff]
  %v34 = vld [vmem:[%s0 + $0x20] sm:$0xff]
  %v35 = vld [vmem:[%s0 + $0x28] sm:$0xff]
  %v36 = vld [vmem:[%s0 + $0x30] sm:$0xff]
  %v37 = vld [vmem:[%s0 + $0x38] sm:$0xff]
  %v38 = vld [vmem:[%s0 + $0x40] sm:$0xff]
  %v39 = vld [vmem:[%s0 + $0x48] sm:$0xff]
  %v40 = vld [vmem:[%s0 + $0x50] sm:$0xff]
  %v41 = vld [vmem:[%s0 + $0x58] sm:$0xff]
  %v42 = vld [vmem:[%s0 + $0x60] sm:$0xff]
  %v43 = vld [vmem:[%s0 + $0x68] sm:$0xff]
  %v44 = vld [vmem:[%s0 + $0x70] sm:$0xff]
  %v45 = vld [vmem:[%s0 + $0x78] sm:$0xff]
  %v46 = vld [vmem:[%s0 + $0x80] sm:$0xff]
  %v47 = vld [vmem:[%s0 + $0x88] sm:$0xff]
  %v48 = vld [vmem:[%s0 + $0x90] sm:$0xff]
  %v49 = vld [vmem:[%s0 + $0x98] sm:$0xff]
  %v50 = vld [vmem:[%s0 + $0xa0] sm:$0xff]
  %v51 = vld [vmem:[%s0 + $0xa8] sm:$0xff]
  %v52 = vld [vmem:[%s0 + $0xb0] sm:$0xff]
  %v53 = vld [vmem:[%s0 + $0xb8] sm:$0xff]
  %v54 = vld [vmem:[%s0 + $0xc0] sm:$0xff]
  %v55 = vld [vmem:[%s0 + $0xc8] sm:$0xff]
  %v56 = vld [vmem:[%s0 + $0xd0] sm:$0xff]
  %v57 = vld [vmem:[%s0 + $0xd8] sm:$0xff]
  %v58 = vld [vmem:[%s0 + $0xe0] sm:$0xff]
  %v59 = vld [vmem:[%s0 + $0xe8] sm:$0xff]
  %v60 = vld [vmem:[%s0 + $0xf0] sm:$0xff]
  %v61 = vld [vmem:[%s0 + $0xf8] sm:$0xff]
  %v62 = vld [vmem:[%s0 + $0x100] sm:$0xff]
  %v63 = vld [vmem:[%s0 + $0x108] sm:$0xff]
  %v64 = vld [vmem:[%s0 + $0x110] sm:$0xff]
  %v65 = vld [vmem:[%s0 + $0x118] sm:$0xff]
  %v66 = vld [vmem:[%s0 + $0x120] sm:$0xff]
  %v67 = vld [vmem:[%s0 + $0x128] sm:$0xff]
  %v68 = vld [vmem:[%s0 + $0x130] sm:$0xff]
  %v69 = vld [vmem:[%s0 + $0x138] sm:$0xff]
  %v70 = vld [vmem:[%s0 + $0x140] sm:$0xff]
  %v71 = vld [vmem:[%s0 + $0x148] sm:$0xff]
  %v72 = vld [vmem:[%s0 + $0x150] sm:$0xff]
  %v73 = vld [vmem:[%s0 + $0x158] sm:$0xff]
  %v74 = vld [vmem:[%s0 + $0x160] sm:$0xff]
  %v75 = vld [vmem:[%s0 + $0x168] sm:$0xff]
  %v76 = vld [vmem:[%s0 + $0x170] sm:$0xff]
  %v77 = vld [vmem:[%s0 + $0x178] sm:$0xff]
  %v78 = vld [vmem:[%s0 + $0x180] sm:$0xff]
  %v79 = vld [vmem:[%s0 + $0x188] sm:$0xff]
  %v80 = vld [vmem:[%s0 + $0x190] sm:$0xff]
  %v81 = vld [vmem:[%s0 + $0x198] sm:$0xff]
  %v82 = vld [vmem:[%s0 + $0x1a0] sm:$0xff]
  %v83 = vld [vmem:[%s0 + $0x1a8] sm:$0xff]
  %v84 = vld [vmem:[%s0 + $0x1b0] sm:$0xff]
  %v85 = vld [vmem:[%s0 + $0x1b8] sm:$0xff]
  %v86 = vld [vmem:[%s0 + $0x1c0] sm:$0xff]
  %v87 = vld [vmem:[%s0 + $0x1c8] sm:$0xff]
  %v88 = vld [vmem:[%s0 + $0x1d0] sm:$0xff]
  %v89 = vld [vmem:[%s0 + $0x1d8] sm:$0xff]
  %v90 = vld [vmem:[%s0 + $0x1e0] sm:$0xff]
  %v91 = vld [vmem:[%s0 + $0x1e8] sm:$0xff]
  %v92 = vld [vmem:[%s0 + $0x1f0] sm:$0xff]
  %v93 = vld [vmem:[%s0 + $0x1f8] sm:$0xff]
  %v94 = vld [vmem:[%s1] sm:$0xff]
  %v95 = vld [vmem:[%s1 + $0x8] sm:$0xff]
  %v96 = vld [vmem:[%s1 + $0x10] sm:$0xff]
  %v97 = vld [vmem:[%s1 + $0x18] sm:$0xff]
  %v98 = vld [vmem:[%s1 + $0x20] sm:$0xff]
  %v99 = vld [vmem:[%s1 + $0x28] sm:$0xff]
  %v100 = vld [vmem:[%s1 + $0x30] sm:$0xff]
  %v101 = vld [vmem:[%s1 + $0x38] sm:$0xff]
  %v102 = vld [vmem:[%s1 + $0x40] sm:$0xff]
  %v103 = vld [vmem:[%s1 + $0x48] sm:$0xff]
  %v104 = vld [vmem:[%s1 + $0x50] sm:$0xff]
  %v105 = vld [vmem:[%s1 + $0x58] sm:$0xff]
  %v106 = vld [vmem:[%s1 + $0x60] sm:$0xff]
  %v107 = vld [vmem:[%s1 + $0x68] sm:$0xff]
  %v108 = vld [vmem:[%s1 + $0x70] sm:$0xff]
  %v109 = vld [vmem:[%s1 + $0x78] sm:$0xff]
  %v110 = vld [vmem:[%s1 + $0x80] sm:$0xff]
  %v111 = vld [vmem:[%s1 + $0x88] sm:$0xff]
  %v112 = vld [vmem:[%s1 + $0x90] sm:$0xff]
  %v113 = vld [vmem:[%s1 + $0x98] sm:$0xff]
  %v114 = vld [vmem:[%s1 + $0xa0] sm:$0xff]
  %v115 = vld [vmem:[%s1 + $0xa8] sm:$0xff]
  %v116 = vld [vmem:[%s1 + $0xb0] sm:$0xff]
  %v117 = vld [vmem:[%s1 + $0xb8] sm:$0xff]
  %v118 = vld [vmem:[%s1 + $0xc0] sm:$0xff]
  %v119 = vld [vmem:[%s1 + $0xc8] sm:$0xff]
  %v120 = vld [vmem:[%s1 + $0xd0] sm:$0xff]
  %v121 = vld [vmem:[%s1 + $0xd8] sm:$0xff]
  %v122 = vld [vmem:[%s1 + $0xe0] sm:$0xff]
  %v123 = vld [vmem:[%s1 + $0xe8] sm:$0xff]
  %v124 = vld [vmem:[%s1 + $0xf0] sm:$0xff]
  %v125 = vld [vmem:[%s1 + $0xf8] sm:$0xff]
  %v126 = vld [vmem:[%s1 + $0x100] sm:$0xff]
  %v127 = vld [vmem:[%s1 + $0x108] sm:$0xff]
  %v128 = vld [vmem:[%s1 + $0x110] sm:$0xff]
  %v129 = vld [vmem:[%s1 + $0x118] sm:$0xff]
  %v130 = vld [vmem:[%s1 + $0x120] sm:$0xff]
  %v131 = vld [vmem:[%s1 + $0x128] sm:$0xff]
  %v132 = vld [vmem:[%s1 + $0x130] sm:$0xff]
  %v133 = vld [vmem:[%s1 + $0x138] sm:$0xff]
  %v134 = vld [vmem:[%s1 + $0x140] sm:$0xff]
  %v135 = vld [vmem:[%s1 + $0x148] sm:$0xff]
  %v136 = vld [vmem:[%s1 + $0x150] sm:$0xff]
  %v137 = vld [vmem:[%s1 + $0x158] sm:$0xff]
  %v138 = vld [vmem:[%s1 + $0x160] sm:$0xff]
  %v139 = vld [vmem:[%s1 + $0x168] sm:$0xff]
  %v140 = vld [vmem:[%s1 + $0x170] sm:$0xff]
  %v141 = vld [vmem:[%s1 + $0x178] sm:$0xff]
  %v142 = vld [vmem:[%s1 + $0x180] sm:$0xff]
  %v143 = vld [vmem:[%s1 + $0x188] sm:$0xff]
  %v144 = vld [vmem:[%s1 + $0x190] sm:$0xff]
  %v145 = vld [vmem:[%s1 + $0x198] sm:$0xff]
  %v146 = vld [vmem:[%s1 + $0x1a0] sm:$0xff]
  %v147 = vld [vmem:[%s1 + $0x1a8] sm:$0xff]
  %v148 = vld [vmem:[%s1 + $0x1b0] sm:$0xff]
  %v149 = vld [vmem:[%s1 + $0x1b8] sm:$0xff]
  %v150 = vld [vmem:[%s1 + $0x1c0] sm:$0xff]
  %v151 = vld [vmem:[%s1 + $0x1c8] sm:$0xff]
  %v152 = vld [vmem:[%s1 + $0x1d0] sm:$0xff]
  %v153 = vld [vmem:[%s1 + $0x1d8] sm:$0xff]
  %v154 = vld [vmem:[%s1 + $0x1e0] sm:$0xff]
  %v155 = vld [vmem:[%s1 + $0x1e8] sm:$0xff]
  %v156 = vld [vmem:[%s1 + $0x1f0] sm:$0xff]
  %v157 = vld [vmem:[%s1 + $0x1f8] sm:$0xff]
  %v158 = vadd.f32 %v30, %v94
  %v159 = vadd.f32 %v31, %v95
  %v160 = vadd.f32 %v32, %v96
  %v161 = vadd.f32 %v33, %v97
  %v162 = vadd.f32 %v34, %v98
  %v163 = vadd.f32 %v35, %v99
  %v164 = vadd.f32 %v36, %v100
  %v165 = vadd.f32 %v37, %v101
  %v166 = vadd.f32 %v38, %v102
  %v167 = vadd.f32 %v39, %v103
  %v168 = vadd.f32 %v40, %v104
  %v169 = vadd.f32 %v41, %v105
  %v170 = vadd.f32 %v42, %v106
  %v171 = vadd.f32 %v43, %v107
  %v172 = vadd.f32 %v44, %v108
  %v173 = vadd.f32 %v45, %v109
  %v174 = vadd.f32 %v46, %v110
  %v175 = vadd.f32 %v47, %v111
  %v176 = vadd.f32 %v48, %v112
  %v177 = vadd.f32 %v49, %v113
  %v178 = vadd.f32 %v50, %v114
  %v179 = vadd.f32 %v51, %v115
  %v180 = vadd.f32 %v52, %v116
  %v181 = vadd.f32 %v53, %v117
  %v182 = vadd.f32 %v54, %v118
  %v183 = vadd.f32 %v55, %v119
  %v184 = vadd.f32 %v56, %v120
  %v185 = vadd.f32 %v57, %v121
  %v186 = vadd.f32 %v58, %v122
  %v187 = vadd.f32 %v59, %v123
  %v188 = vadd.f32 %v60, %v124
  %v189 = vadd.f32 %v61, %v125
  %v190 = vadd.f32 %v62, %v126
  %v191 = vadd.f32 %v63, %v127
  %v192 = vadd.f32 %v64, %v128
  %v193 = vadd.f32 %v65, %v129
  %v194 = vadd.f32 %v66, %v130
  %v195 = vadd.f32 %v67, %v131
  %v196 = vadd.f32 %v68, %v132
  %v197 = vadd.f32 %v69, %v133
  %v198 = vadd.f32 %v70, %v134
  %v199 = vadd.f32 %v71, %v135
  %v200 = vadd.f32 %v72, %v136
  %v201 = vadd.f32 %v73, %v137
  %v202 = vadd.f32 %v74, %v138
  %v203 = vadd.f32 %v75, %v139
  %v204 = vadd.f32 %v76, %v140
  %v205 = vadd.f32 %v77, %v141
  %v206 = vadd.f32 %v78, %v142
  %v207 = vadd.f32 %v79, %v143
  %v208 = vadd.f32 %v80, %v144
  %v209 = vadd.f32 %v81, %v145
  %v210 = vadd.f32 %v82, %v146
  %v211 = vadd.f32 %v83, %v147
  %v212 = vadd.f32 %v84, %v148
  %v213 = vadd.f32 %v85, %v149
  %v214 = vadd.f32 %v86, %v150
  %v215 = vadd.f32 %v87, %v151
  %v216 = vadd.f32 %v88, %v152
  %v217 = vadd.f32 %v89, %v153
  %v218 = vadd.f32 %v90, %v154
  %v219 = vadd.f32 %v91, %v155
  %v220 = vadd.f32 %v92, %v156
  %v221 = vadd.f32 %v93, %v157
  %v222 = vld [vmem:[%s2] sm:$0xff]
  %v223 = vld [vmem:[%s2 + $0x8] sm:$0xff]
  %v224 = vld [vmem:[%s2 + $0x10] sm:$0xff]
  %v225 = vld [vmem:[%s2 + $0x18] sm:$0xff]
  %v226 = vld [vmem:[%s2 + $0x20] sm:$0xff]
  %v227 = vld [vmem:[%s2 + $0x28] sm:$0xff]
  %v228 = vld [vmem:[%s2 + $0x30] sm:$0xff]
  %v229 = vld [vmem:[%s2 + $0x38] sm:$0xff]
  %v230 = vld [vmem:[%s2 + $0x40] sm:$0xff]
  %v231 = vld [vmem:[%s2 + $0x48] sm:$0xff]
  %v232 = vld [vmem:[%s2 + $0x50] sm:$0xff]
  %v233 = vld [vmem:[%s2 + $0x58] sm:$0xff]
  %v234 = vld [vmem:[%s2 + $0x60] sm:$0xff]
  %v235 = vld [vmem:[%s2 + $0x68] sm:$0xff]
  %v236 = vld [vmem:[%s2 + $0x70] sm:$0xff]
  %v237 = vld [vmem:[%s2 + $0x78] sm:$0xff]
  %v238 = vld [vmem:[%s2 + $0x80] sm:$0xff]
  %v239 = vld [vmem:[%s2 + $0x88] sm:$0xff]
  %v240 = vld [vmem:[%s2 + $0x90] sm:$0xff]
  %v241 = vld [vmem:[%s2 + $0x98] sm:$0xff]
  %v242 = vld [vmem:[%s2 + $0xa0] sm:$0xff]
  %v243 = vld [vmem:[%s2 + $0xa8] sm:$0xff]
  %v244 = vld [vmem:[%s2 + $0xb0] sm:$0xff]
  %v245 = vld [vmem:[%s2 + $0xb8] sm:$0xff]
  %v246 = vld [vmem:[%s2 + $0xc0] sm:$0xff]
  %v247 = vld [vmem:[%s2 + $0xc8] sm:$0xff]
  %v248 = vld [vmem:[%s2 + $0xd0] sm:$0xff]
  %v249 = vld [vmem:[%s2 + $0xd8] sm:$0xff]
  %v250 = vld [vmem:[%s2 + $0xe0] sm:$0xff]
  %v251 = vld [vmem:[%s2 + $0xe8] sm:$0xff]
  %v252 = vld [vmem:[%s2 + $0xf0] sm:$0xff]
  %v253 = vld [vmem:[%s2 + $0xf8] sm:$0xff]
  %v254 = vld [vmem:[%s2 + $0x100] sm:$0xff]
  %v255 = vld [vmem:[%s2 + $0x108] sm:$0xff]
  %v256 = vld [vmem:[%s2 + $0x110] sm:$0xff]
  %v257 = vld [vmem:[%s2 + $0x118] sm:$0xff]
  %v258 = vld [vmem:[%s2 + $0x120] sm:$0xff]
  %v259 = vld [vmem:[%s2 + $0x128] sm:$0xff]
  %v260 = vld [vmem:[%s2 + $0x130] sm:$0xff]
  %v261 = vld [vmem:[%s2 + $0x138] sm:$0xff]
  %v262 = vld [vmem:[%s2 + $0x140] sm:$0xff]
  %v263 = vld [vmem:[%s2 + $0x148] sm:$0xff]
  %v264 = vld [vmem:[%s2 + $0x150] sm:$0xff]
  %v265 = vld [vmem:[%s2 + $0x158] sm:$0xff]
  %v266 = vld [vmem:[%s2 + $0x160] sm:$0xff]
  %v267 = vld [vmem:[%s2 + $0x168] sm:$0xff]
  %v268 = vld [vmem:[%s2 + $0x170] sm:$0xff]
  %v269 = vld [vmem:[%s2 + $0x178] sm:$0xff]
  %v270 = vld [vmem:[%s2 + $0x180] sm:$0xff]
  %v271 = vld [vmem:[%s2 + $0x188] sm:$0xff]
  %v272 = vld [vmem:[%s2 + $0x190] sm:$0xff]
  %v273 = vld [vmem:[%s2 + $0x198] sm:$0xff]
  %v274 = vld [vmem:[%s2 + $0x1a0] sm:$0xff]
  %v275 = vld [vmem:[%s2 + $0x1a8] sm:$0xff]
  %v276 = vld [vmem:[%s2 + $0x1b0] sm:$0xff]
  %v277 = vld [vmem:[%s2 + $0x1b8] sm:$0xff]
  %v278 = vld [vmem:[%s2 + $0x1c0] sm:$0xff]
  %v279 = vld [vmem:[%s2 + $0x1c8] sm:$0xff]
  %v280 = vld [vmem:[%s2 + $0x1d0] sm:$0xff]
  %v281 = vld [vmem:[%s2 + $0x1d8] sm:$0xff]
  %v282 = vld [vmem:[%s2 + $0x1e0] sm:$0xff]
  %v283 = vld [vmem:[%s2 + $0x1e8] sm:$0xff]
  %v284 = vld [vmem:[%s2 + $0x1f0] sm:$0xff]
  %v285 = vld [vmem:[%s2 + $0x1f8] sm:$0xff]
  %v286 = vadd.f32 %v158, %v222
  %v287 = vadd.f32 %v159, %v223
  %v288 = vadd.f32 %v160, %v224
  %v289 = vadd.f32 %v161, %v225
  %v290 = vadd.f32 %v162, %v226
  %v291 = vadd.f32 %v163, %v227
  %v292 = vadd.f32 %v164, %v228
  %v293 = vadd.f32 %v165, %v229
  %v294 = vadd.f32 %v166, %v230
  %v295 = vadd.f32 %v167, %v231
  %v296 = vadd.f32 %v168, %v232
  %v297 = vadd.f32 %v169, %v233
  %v298 = vadd.f32 %v170, %v234
  %v299 = vadd.f32 %v171, %v235
  %v300 = vadd.f32 %v172, %v236
  %v301 = vadd.f32 %v173, %v237
  %v302 = vadd.f32 %v174, %v238
  %v303 = vadd.f32 %v175, %v239
  %v304 = vadd.f32 %v176, %v240
  %v305 = vadd.f32 %v177, %v241
  %v306 = vadd.f32 %v178, %v242
  %v307 = vadd.f32 %v179, %v243
  %v308 = vadd.f32 %v180, %v244
  %v309 = vadd.f32 %v181, %v245
  %v310 = vadd.f32 %v182, %v246
  %v311 = vadd.f32 %v183, %v247
  %v312 = vadd.f32 %v184, %v248
  %v313 = vadd.f32 %v185, %v249
  %v314 = vadd.f32 %v186, %v250
  %v315 = vadd.f32 %v187, %v251
  %v316 = vadd.f32 %v188, %v252
  %v317 = vadd.f32 %v189, %v253
  %v318 = vadd.f32 %v190, %v254
  %v319 = vadd.f32 %v191, %v255
  %v320 = vadd.f32 %v192, %v256
  %v321 = vadd.f32 %v193, %v257
  %v322 = vadd.f32 %v194, %v258
  %v323 = vadd.f32 %v195, %v259
  %v324 = vadd.f32 %v196, %v260
  %v325 = vadd.f32 %v197, %v261
  %v326 = vadd.f32 %v198, %v262
  %v327 = vadd.f32 %v199, %v263
  %v328 = vadd.f32 %v200, %v264
  %v329 = vadd.f32 %v201, %v265
  %v330 = vadd.f32 %v202, %v266
  %v331 = vadd.f32 %v203, %v267
  %v332 = vadd.f32 %v204, %v268
  %v333 = vadd.f32 %v205, %v269
  %v334 = vadd.f32 %v206, %v270
  %v335 = vadd.f32 %v207, %v271
  %v336 = vadd.f32 %v208, %v272
  %v337 = vadd.f32 %v209, %v273
  %v338 = vadd.f32 %v210, %v274
  %v339 = vadd.f32 %v211, %v275
  %v340 = vadd.f32 %v212, %v276
  %v341 = vadd.f32 %v213, %v277
  %v342 = vadd.f32 %v214, %v278
  %v343 = vadd.f32 %v215, %v279
  %v344 = vadd.f32 %v216, %v280
  %v345 = vadd.f32 %v217, %v281
  %v346 = vadd.f32 %v218, %v282
  %v347 = vadd.f32 %v219, %v283
  %v348 = vadd.f32 %v220, %v284
  %v349 = vadd.f32 %v221, %v285
  %v350 = vld [vmem:[%s3] sm:$0xff]
  %v351 = vld [vmem:[%s3 + $0x8] sm:$0xff]
  %v352 = vld [vmem:[%s3 + $0x10] sm:$0xff]
  %v353 = vld [vmem:[%s3 + $0x18] sm:$0xff]
  %v354 = vld [vmem:[%s3 + $0x20] sm:$0xff]
  %v355 = vld [vmem:[%s3 + $0x28] sm:$0xff]
  %v356 = vld [vmem:[%s3 + $0x30] sm:$0xff]
  %v357 = vld [vmem:[%s3 + $0x38] sm:$0xff]
  %v358 = vld [vmem:[%s3 + $0x40] sm:$0xff]
  %v359 = vld [vmem:[%s3 + $0x48] sm:$0xff]
  %v360 = vld [vmem:[%s3 + $0x50] sm:$0xff]
  %v361 = vld [vmem:[%s3 + $0x58] sm:$0xff]
  %v362 = vld [vmem:[%s3 + $0x60] sm:$0xff]
  %v363 = vld [vmem:[%s3 + $0x68] sm:$0xff]
  %v364 = vld [vmem:[%s3 + $0x70] sm:$0xff]
  %v365 = vld [vmem:[%s3 + $0x78] sm:$0xff]
  %v366 = vld [vmem:[%s3 + $0x80] sm:$0xff]
  %v367 = vld [vmem:[%s3 + $0x88] sm:$0xff]
  %v368 = vld [vmem:[%s3 + $0x90] sm:$0xff]
  %v369 = vld [vmem:[%s3 + $0x98] sm:$0xff]
  %v370 = vld [vmem:[%s3 + $0xa0] sm:$0xff]
  %v371 = vld [vmem:[%s3 + $0xa8] sm:$0xff]
  %v372 = vld [vmem:[%s3 + $0xb0] sm:$0xff]
  %v373 = vld [vmem:[%s3 + $0xb8] sm:$0xff]
  %v374 = vld [vmem:[%s3 + $0xc0] sm:$0xff]
  %v375 = vld [vmem:[%s3 + $0xc8] sm:$0xff]
  %v376 = vld [vmem:[%s3 + $0xd0] sm:$0xff]
  %v377 = vld [vmem:[%s3 + $0xd8] sm:$0xff]
  %v378 = vld [vmem:[%s3 + $0xe0] sm:$0xff]
  %v379 = vld [vmem:[%s3 + $0xe8] sm:$0xff]
  %v380 = vld [vmem:[%s3 + $0xf0] sm:$0xff]
  %v381 = vld [vmem:[%s3 + $0xf8] sm:$0xff]
  %v382 = vld [vmem:[%s3 + $0x100] sm:$0xff]
  %v383 = vld [vmem:[%s3 + $0x108] sm:$0xff]
  %v384 = vld [vmem:[%s3 + $0x110] sm:$0xff]
  %v385 = vld [vmem:[%s3 + $0x118] sm:$0xff]
  %v386 = vld [vmem:[%s3 + $0x120] sm:$0xff]
  %v387 = vld [vmem:[%s3 + $0x128] sm:$0xff]
  %v388 = vld [vmem:[%s3 + $0x130] sm:$0xff]
  %v389 = vld [vmem:[%s3 + $0x138] sm:$0xff]
  %v390 = vld [vmem:[%s3 + $0x140] sm:$0xff]
  %v391 = vld [vmem:[%s3 + $0x148] sm:$0xff]
  %v392 = vld [vmem:[%s3 + $0x150] sm:$0xff]
  %v393 = vld [vmem:[%s3 + $0x158] sm:$0xff]
  %v394 = vld [vmem:[%s3 + $0x160] sm:$0xff]
  %v395 = vld [vmem:[%s3 + $0x168] sm:$0xff]
  %v396 = vld [vmem:[%s3 + $0x170] sm:$0xff]
  %v397 = vld [vmem:[%s3 + $0x178] sm:$0xff]
  %v398 = vld [vmem:[%s3 + $0x180] sm:$0xff]
  %v399 = vld [vmem:[%s3 + $0x188] sm:$0xff]
  %v400 = vld [vmem:[%s3 + $0x190] sm:$0xff]
  %v401 = vld [vmem:[%s3 + $0x198] sm:$0xff]
  %v402 = vld [vmem:[%s3 + $0x1a0] sm:$0xff]
  %v403 = vld [vmem:[%s3 + $0x1a8] sm:$0xff]
  %v404 = vld [vmem:[%s3 + $0x1b0] sm:$0xff]
  %v405 = vld [vmem:[%s3 + $0x1b8] sm:$0xff]
  %v406 = vld [vmem:[%s3 + $0x1c0] sm:$0xff]
  %v407 = vld [vmem:[%s3 + $0x1c8] sm:$0xff]
  %v408 = vld [vmem:[%s3 + $0x1d0] sm:$0xff]
  %v409 = vld [vmem:[%s3 + $0x1d8] sm:$0xff]
  %v410 = vld [vmem:[%s3 + $0x1e0] sm:$0xff]
  %v411 = vld [vmem:[%s3 + $0x1e8] sm:$0xff]
  %v412 = vld [vmem:[%s3 + $0x1f0] sm:$0xff]
  %v413 = vld [vmem:[%s3 + $0x1f8] sm:$0xff]
  %v414 = vadd.f32 %v286, %v350
  %v415 = vadd.f32 %v287, %v351
  %v416 = vadd.f32 %v288, %v352
  %v417 = vadd.f32 %v289, %v353
  %v418 = vadd.f32 %v290, %v354
  %v419 = vadd.f32 %v291, %v355
  %v420 = vadd.f32 %v292, %v356
  %v421 = vadd.f32 %v293, %v357
  %v422 = vadd.f32 %v294, %v358
  %v423 = vadd.f32 %v295, %v359
  %v424 = vadd.f32 %v296, %v360
  %v425 = vadd.f32 %v297, %v361
  %v426 = vadd.f32 %v298, %v362
  %v427 = vadd.f32 %v299, %v363
  %v428 = vadd.f32 %v300, %v364
  %v429 = vadd.f32 %v301, %v365
  %v430 = vadd.f32 %v302, %v366
  %v431 = vadd.f32 %v303, %v367
  %v432 = vadd.f32 %v304, %v368
  %v433 = vadd.f32 %v305, %v369
  %v434 = vadd.f32 %v306, %v370
  %v435 = vadd.f32 %v307, %v371
  %v436 = vadd.f32 %v308, %v372
  %v437 = vadd.f32 %v309, %v373
  %v438 = vadd.f32 %v310, %v374
  %v439 = vadd.f32 %v311, %v375
  %v440 = vadd.f32 %v312, %v376
  %v441 = vadd.f32 %v313, %v377
  %v442 = vadd.f32 %v314, %v378
  %v443 = vadd.f32 %v315, %v379
  %v444 = vadd.f32 %v316, %v380
  %v445 = vadd.f32 %v317, %v381
  %v446 = vadd.f32 %v318, %v382
  %v447 = vadd.f32 %v319, %v383
  %v448 = vadd.f32 %v320, %v384
  %v449 = vadd.f32 %v321, %v385
  %v450 = vadd.f32 %v322, %v386
  %v451 = vadd.f32 %v323, %v387
  %v452 = vadd.f32 %v324, %v388
  %v453 = vadd.f32 %v325, %v389
  %v454 = vadd.f32 %v326, %v390
  %v455 = vadd.f32 %v327, %v391
  %v456 = vadd.f32 %v328, %v392
  %v457 = vadd.f32 %v329, %v393
  %v458 = vadd.f32 %v330, %v394
  %v459 = vadd.f32 %v331, %v395
  %v460 = vadd.f32 %v332, %v396
  %v461 = vadd.f32 %v333, %v397
  %v462 = vadd.f32 %v334, %v398
  %v463 = vadd.f32 %v335, %v399
  %v464 = vadd.f32 %v336, %v400
  %v465 = vadd.f32 %v337, %v401
  %v466 = vadd.f32 %v338, %v402
  %v467 = vadd.f32 %v339, %v403
  %v468 = vadd.f32 %v340, %v404
  %v469 = vadd.f32 %v341, %v405
  %v470 = vadd.f32 %v342, %v406
  %v471 = vadd.f32 %v343, %v407
  %v472 = vadd.f32 %v344, %v408
  %v473 = vadd.f32 %v345, %v409
  %v474 = vadd.f32 %v346, %v410
  %v475 = vadd.f32 %v347, %v411
  %v476 = vadd.f32 %v348, %v412
  %v477 = vadd.f32 %v349, %v413
  %vm478 = vcmask 64512
  %v479 = vsel %vm478, %v414, 0.0
  %480 = vadd.xlane.f32.xlu0 %v479
  %v481 = vpop.xlane.xlu0 %480
  %v482 = vsel %vm478, %v415, 0.0
  %483 = vadd.xlane.f32.xlu0 %v482
  %v484 = vpop.xlane.xlu0 %483
  %v485 = vsel %vm478, %v416, 0.0
  %486 = vadd.xlane.f32.xlu0 %v485
  %v487 = vpop.xlane.xlu0 %486
  %v488 = vsel %vm478, %v417, 0.0
  %489 = vadd.xlane.f32.xlu0 %v488
  %v490 = vpop.xlane.xlu0 %489
  %v491 = vsel %vm478, %v418, 0.0
  %492 = vadd.xlane.f32.xlu0 %v491
  %v493 = vpop.xlane.xlu0 %492
  %v494 = vsel %vm478, %v419, 0.0
  %495 = vadd.xlane.f32.xlu0 %v494
  %v496 = vpop.xlane.xlu0 %495
  %v497 = vsel %vm478, %v420, 0.0
  %498 = vadd.xlane.f32.xlu0 %v497
  %v499 = vpop.xlane.xlu0 %498
  %v500 = vsel %vm478, %v421, 0.0
  %501 = vadd.xlane.f32.xlu0 %v500
  %v502 = vpop.xlane.xlu0 %501
  %v503 = vsel %vm478, %v422, 0.0
  %504 = vadd.xlane.f32.xlu0 %v503
  %v505 = vpop.xlane.xlu0 %504
  %v506 = vsel %vm478, %v423, 0.0
  %507 = vadd.xlane.f32.xlu0 %v506
  %v508 = vpop.xlane.xlu0 %507
  %v509 = vsel %vm478, %v424, 0.0
  %510 = vadd.xlane.f32.xlu0 %v509
  %v511 = vpop.xlane.xlu0 %510
  %v512 = vsel %vm478, %v425, 0.0
  %513 = vadd.xlane.f32.xlu0 %v512
  %v514 = vpop.xlane.xlu0 %513
  %v515 = vsel %vm478, %v426, 0.0
  %516 = vadd.xlane.f32.xlu0 %v515
  %v517 = vpop.xlane.xlu0 %516
  %v518 = vsel %vm478, %v427, 0.0
  %519 = vadd.xlane.f32.xlu0 %v518
  %v520 = vpop.xlane.xlu0 %519
  %v521 = vsel %vm478, %v428, 0.0
  %522 = vadd.xlane.f32.xlu0 %v521
  %v523 = vpop.xlane.xlu0 %522
  %v524 = vsel %vm478, %v429, 0.0
  %525 = vadd.xlane.f32.xlu0 %v524
  %v526 = vpop.xlane.xlu0 %525
  %v527 = vsel %vm478, %v430, 0.0
  %528 = vadd.xlane.f32.xlu0 %v527
  %v529 = vpop.xlane.xlu0 %528
  %v530 = vsel %vm478, %v431, 0.0
  %531 = vadd.xlane.f32.xlu0 %v530
  %v532 = vpop.xlane.xlu0 %531
  %v533 = vsel %vm478, %v432, 0.0
  %534 = vadd.xlane.f32.xlu0 %v533
  %v535 = vpop.xlane.xlu0 %534
  %v536 = vsel %vm478, %v433, 0.0
  %537 = vadd.xlane.f32.xlu0 %v536
  %v538 = vpop.xlane.xlu0 %537
  %v539 = vsel %vm478, %v434, 0.0
  %540 = vadd.xlane.f32.xlu0 %v539
  %v541 = vpop.xlane.xlu0 %540
  %v542 = vsel %vm478, %v435, 0.0
  %543 = vadd.xlane.f32.xlu0 %v542
  %v544 = vpop.xlane.xlu0 %543
  %v545 = vsel %vm478, %v436, 0.0
  %546 = vadd.xlane.f32.xlu0 %v545
  %v547 = vpop.xlane.xlu0 %546
  %v548 = vsel %vm478, %v437, 0.0
  %549 = vadd.xlane.f32.xlu0 %v548
  %v550 = vpop.xlane.xlu0 %549
  %v551 = vsel %vm478, %v438, 0.0
  %552 = vadd.xlane.f32.xlu0 %v551
  %v553 = vpop.xlane.xlu0 %552
  %v554 = vsel %vm478, %v439, 0.0
  %555 = vadd.xlane.f32.xlu0 %v554
  %v556 = vpop.xlane.xlu0 %555
  %v557 = vsel %vm478, %v440, 0.0
  %558 = vadd.xlane.f32.xlu0 %v557
  %v559 = vpop.xlane.xlu0 %558
  %v560 = vsel %vm478, %v441, 0.0
  %561 = vadd.xlane.f32.xlu0 %v560
  %v562 = vpop.xlane.xlu0 %561
  %v563 = vsel %vm478, %v442, 0.0
  %564 = vadd.xlane.f32.xlu0 %v563
  %v565 = vpop.xlane.xlu0 %564
  %v566 = vsel %vm478, %v443, 0.0
  %567 = vadd.xlane.f32.xlu0 %v566
  %v568 = vpop.xlane.xlu0 %567
  %v569 = vsel %vm478, %v444, 0.0
  %570 = vadd.xlane.f32.xlu0 %v569
  %v571 = vpop.xlane.xlu0 %570
  %v572 = vsel %vm478, %v445, 0.0
  %573 = vadd.xlane.f32.xlu0 %v572
  %v574 = vpop.xlane.xlu0 %573
  %v575 = vsel %vm478, %v446, 0.0
  %576 = vadd.xlane.f32.xlu0 %v575
  %v577 = vpop.xlane.xlu0 %576
  %v578 = vsel %vm478, %v447, 0.0
  %579 = vadd.xlane.f32.xlu0 %v578
  %v580 = vpop.xlane.xlu0 %579
  %v581 = vsel %vm478, %v448, 0.0
  %582 = vadd.xlane.f32.xlu0 %v581
  %v583 = vpop.xlane.xlu0 %582
  %v584 = vsel %vm478, %v449, 0.0
  %585 = vadd.xlane.f32.xlu0 %v584
  %v586 = vpop.xlane.xlu0 %585
  %v587 = vsel %vm478, %v450, 0.0
  %588 = vadd.xlane.f32.xlu0 %v587
  %v589 = vpop.xlane.xlu0 %588
  %v590 = vsel %vm478, %v451, 0.0
  %591 = vadd.xlane.f32.xlu0 %v590
  %v592 = vpop.xlane.xlu0 %591
  %v593 = vsel %vm478, %v452, 0.0
  %594 = vadd.xlane.f32.xlu0 %v593
  %v595 = vpop.xlane.xlu0 %594
  %v596 = vsel %vm478, %v453, 0.0
  %597 = vadd.xlane.f32.xlu0 %v596
  %v598 = vpop.xlane.xlu0 %597
  %v599 = vsel %vm478, %v454, 0.0
  %600 = vadd.xlane.f32.xlu0 %v599
  %v601 = vpop.xlane.xlu0 %600
  %v602 = vsel %vm478, %v455, 0.0
  %603 = vadd.xlane.f32.xlu0 %v602
  %v604 = vpop.xlane.xlu0 %603
  %v605 = vsel %vm478, %v456, 0.0
  %606 = vadd.xlane.f32.xlu0 %v605
  %v607 = vpop.xlane.xlu0 %606
  %v608 = vsel %vm478, %v457, 0.0
  %609 = vadd.xlane.f32.xlu0 %v608
  %v610 = vpop.xlane.xlu0 %609
  %v611 = vsel %vm478, %v458, 0.0
  %612 = vadd.xlane.f32.xlu0 %v611
  %v613 = vpop.xlane.xlu0 %612
  %v614 = vsel %vm478, %v459, 0.0
  %615 = vadd.xlane.f32.xlu0 %v614
  %v616 = vpop.xlane.xlu0 %615
  %v617 = vsel %vm478, %v460, 0.0
  %618 = vadd.xlane.f32.xlu0 %v617
  %v619 = vpop.xlane.xlu0 %618
  %v620 = vsel %vm478, %v461, 0.0
  %621 = vadd.xlane.f32.xlu0 %v620
  %v622 = vpop.xlane.xlu0 %621
  %v623 = vsel %vm478, %v462, 0.0
  %624 = vadd.xlane.f32.xlu0 %v623
  %v625 = vpop.xlane.xlu0 %624
  %v626 = vsel %vm478, %v463, 0.0
  %627 = vadd.xlane.f32.xlu0 %v626
  %v628 = vpop.xlane.xlu0 %627
  %v629 = vsel %vm478, %v464, 0.0
  %630 = vadd.xlane.f32.xlu0 %v629
  %v631 = vpop.xlane.xlu0 %630
  %v632 = vsel %vm478, %v465, 0.0
  %633 = vadd.xlane.f32.xlu0 %v632
  %v634 = vpop.xlane.xlu0 %633
  %v635 = vsel %vm478, %v466, 0.0
  %636 = vadd.xlane.f32.xlu0 %v635
  %v637 = vpop.xlane.xlu0 %636
  %v638 = vsel %vm478, %v467, 0.0
  %639 = vadd.xlane.f32.xlu0 %v638
  %v640 = vpop.xlane.xlu0 %639
  %v641 = vsel %vm478, %v468, 0.0
  %642 = vadd.xlane.f32.xlu0 %v641
  %v643 = vpop.xlane.xlu0 %642
  %v644 = vsel %vm478, %v469, 0.0
  %645 = vadd.xlane.f32.xlu0 %v644
  %v646 = vpop.xlane.xlu0 %645
  %v647 = vsel %vm478, %v470, 0.0
  %648 = vadd.xlane.f32.xlu0 %v647
  %v649 = vpop.xlane.xlu0 %648
  %v650 = vsel %vm478, %v471, 0.0
  %651 = vadd.xlane.f32.xlu0 %v650
  %v652 = vpop.xlane.xlu0 %651
  %v653 = vsel %vm478, %v472, 0.0
  %654 = vadd.xlane.f32.xlu0 %v653
  %v655 = vpop.xlane.xlu0 %654
  %v656 = vsel %vm478, %v473, 0.0
  %657 = vadd.xlane.f32.xlu0 %v656
  %v658 = vpop.xlane.xlu0 %657
  %v659 = vsel %vm478, %v474, 0.0
  %660 = vadd.xlane.f32.xlu0 %v659
  %v661 = vpop.xlane.xlu0 %660
  %v662 = vsel %vm478, %v475, 0.0
  %663 = vadd.xlane.f32.xlu0 %v662
  %v664 = vpop.xlane.xlu0 %663
  %v665 = vsel %vm478, %v476, 0.0
  %666 = vadd.xlane.f32.xlu0 %v665
  %v667 = vpop.xlane.xlu0 %666
  %v668 = vsel %vm478, %v477, 0.0
  %669 = vadd.xlane.f32.xlu0 %v668
  %v670 = vpop.xlane.xlu0 %669
  %v671 = vrcp.pop 8.0
  %v672 = vmul.f32 %v481, %v671
  %v673 = vmul.f32 %v484, %v671
  %v674 = vmul.f32 %v487, %v671
  %v675 = vmul.f32 %v490, %v671
  %v676 = vmul.f32 %v493, %v671
  %v677 = vmul.f32 %v496, %v671
  %v678 = vmul.f32 %v499, %v671
  %v679 = vmul.f32 %v502, %v671
  %v680 = vmul.f32 %v505, %v671
  %v681 = vmul.f32 %v508, %v671
  %v682 = vmul.f32 %v511, %v671
  %v683 = vmul.f32 %v514, %v671
  %v684 = vmul.f32 %v517, %v671
  %v685 = vmul.f32 %v520, %v671
  %v686 = vmul.f32 %v523, %v671
  %v687 = vmul.f32 %v526, %v671
  %v688 = vmul.f32 %v529, %v671
  %v689 = vmul.f32 %v532, %v671
  %v690 = vmul.f32 %v535, %v671
  %v691 = vmul.f32 %v538, %v671
  %v692 = vmul.f32 %v541, %v671
  %v693 = vmul.f32 %v544, %v671
  %v694 = vmul.f32 %v547, %v671
  %v695 = vmul.f32 %v550, %v671
  %v696 = vmul.f32 %v553, %v671
  %v697 = vmul.f32 %v556, %v671
  %v698 = vmul.f32 %v559, %v671
  %v699 = vmul.f32 %v562, %v671
  %v700 = vmul.f32 %v565, %v671
  %v701 = vmul.f32 %v568, %v671
  %v702 = vmul.f32 %v571, %v671
  %v703 = vmul.f32 %v574, %v671
  %v704 = vmul.f32 %v577, %v671
  %v705 = vmul.f32 %v580, %v671
  %v706 = vmul.f32 %v583, %v671
  %v707 = vmul.f32 %v586, %v671
  %v708 = vmul.f32 %v589, %v671
  %v709 = vmul.f32 %v592, %v671
  %v710 = vmul.f32 %v595, %v671
  %v711 = vmul.f32 %v598, %v671
  %v712 = vmul.f32 %v601, %v671
  %v713 = vmul.f32 %v604, %v671
  %v714 = vmul.f32 %v607, %v671
  %v715 = vmul.f32 %v610, %v671
  %v716 = vmul.f32 %v613, %v671
  %v717 = vmul.f32 %v616, %v671
  %v718 = vmul.f32 %v619, %v671
  %v719 = vmul.f32 %v622, %v671
  %v720 = vmul.f32 %v625, %v671
  %v721 = vmul.f32 %v628, %v671
  %v722 = vmul.f32 %v631, %v671
  %v723 = vmul.f32 %v634, %v671
  %v724 = vmul.f32 %v637, %v671
  %v725 = vmul.f32 %v640, %v671
  %v726 = vmul.f32 %v643, %v671
  %v727 = vmul.f32 %v646, %v671
  %v728 = vmul.f32 %v649, %v671
  %v729 = vmul.f32 %v652, %v671
  %v730 = vmul.f32 %v655, %v671
  %v731 = vmul.f32 %v658, %v671
  %v732 = vmul.f32 %v661, %v671
  %v733 = vmul.f32 %v664, %v671
  %v734 = vmul.f32 %v667, %v671
  %v735 = vmul.f32 %v670, %v671
  %v736 = vsub.f32 %v414, %v672
  %v737 = vsub.f32 %v415, %v673
  %v738 = vsub.f32 %v416, %v674
  %v739 = vsub.f32 %v417, %v675
  %v740 = vsub.f32 %v418, %v676
  %v741 = vsub.f32 %v419, %v677
  %v742 = vsub.f32 %v420, %v678
  %v743 = vsub.f32 %v421, %v679
  %v744 = vsub.f32 %v422, %v680
  %v745 = vsub.f32 %v423, %v681
  %v746 = vsub.f32 %v424, %v682
  %v747 = vsub.f32 %v425, %v683
  %v748 = vsub.f32 %v426, %v684
  %v749 = vsub.f32 %v427, %v685
  %v750 = vsub.f32 %v428, %v686
  %v751 = vsub.f32 %v429, %v687
  %v752 = vsub.f32 %v430, %v688
  %v753 = vsub.f32 %v431, %v689
  %v754 = vsub.f32 %v432, %v690
  %v755 = vsub.f32 %v433, %v691
  %v756 = vsub.f32 %v434, %v692
  %v757 = vsub.f32 %v435, %v693
  %v758 = vsub.f32 %v436, %v694
  %v759 = vsub.f32 %v437, %v695
  %v760 = vsub.f32 %v438, %v696
  %v761 = vsub.f32 %v439, %v697
  %v762 = vsub.f32 %v440, %v698
  %v763 = vsub.f32 %v441, %v699
  %v764 = vsub.f32 %v442, %v700
  %v765 = vsub.f32 %v443, %v701
  %v766 = vsub.f32 %v444, %v702
  %v767 = vsub.f32 %v445, %v703
  %v768 = vsub.f32 %v446, %v704
  %v769 = vsub.f32 %v447, %v705
  %v770 = vsub.f32 %v448, %v706
  %v771 = vsub.f32 %v449, %v707
  %v772 = vsub.f32 %v450, %v708
  %v773 = vsub.f32 %v451, %v709
  %v774 = vsub.f32 %v452, %v710
  %v775 = vsub.f32 %v453, %v711
  %v776 = vsub.f32 %v454, %v712
  %v777 = vsub.f32 %v455, %v713
  %v778 = vsub.f32 %v456, %v714
  %v779 = vsub.f32 %v457, %v715
  %v780 = vsub.f32 %v458, %v716
  %v781 = vsub.f32 %v459, %v717
  %v782 = vsub.f32 %v460, %v718
  %v783 = vsub.f32 %v461, %v719
  %v784 = vsub.f32 %v462, %v720
  %v785 = vsub.f32 %v463, %v721
  %v786 = vsub.f32 %v464, %v722
  %v787 = vsub.f32 %v465, %v723
  %v788 = vsub.f32 %v466, %v724
  %v789 = vsub.f32 %v467, %v725
  %v790 = vsub.f32 %v468, %v726
  %v791 = vsub.f32 %v469, %v727
  %v792 = vsub.f32 %v470, %v728
  %v793 = vsub.f32 %v471, %v729
  %v794 = vsub.f32 %v472, %v730
  %v795 = vsub.f32 %v473, %v731
  %v796 = vsub.f32 %v474, %v732
  %v797 = vsub.f32 %v475, %v733
  %v798 = vsub.f32 %v476, %v734
  %v799 = vsub.f32 %v477, %v735
  %v800 = vmul.f32 %v736, %v736
  %v801 = vmul.f32 %v737, %v737
  %v802 = vmul.f32 %v738, %v738
  %v803 = vmul.f32 %v739, %v739
  %v804 = vmul.f32 %v740, %v740
  %v805 = vmul.f32 %v741, %v741
  %v806 = vmul.f32 %v742, %v742
  %v807 = vmul.f32 %v743, %v743
  %v808 = vmul.f32 %v744, %v744
  %v809 = vmul.f32 %v745, %v745
  %v810 = vmul.f32 %v746, %v746
  %v811 = vmul.f32 %v747, %v747
  %v812 = vmul.f32 %v748, %v748
  %v813 = vmul.f32 %v749, %v749
  %v814 = vmul.f32 %v750, %v750
  %v815 = vmul.f32 %v751, %v751
  %v816 = vmul.f32 %v752, %v752
  %v817 = vmul.f32 %v753, %v753
  %v818 = vmul.f32 %v754, %v754
  %v819 = vmul.f32 %v755, %v755
  %v820 = vmul.f32 %v756, %v756
  %v821 = vmul.f32 %v757, %v757
  %v822 = vmul.f32 %v758, %v758
  %v823 = vmul.f32 %v759, %v759
  %v824 = vmul.f32 %v760, %v760
  %v825 = vmul.f32 %v761, %v761
  %v826 = vmul.f32 %v762, %v762
  %v827 = vmul.f32 %v763, %v763
  %v828 = vmul.f32 %v764, %v764
  %v829 = vmul.f32 %v765, %v765
  %v830 = vmul.f32 %v766, %v766
  %v831 = vmul.f32 %v767, %v767
  %v832 = vmul.f32 %v768, %v768
  %v833 = vmul.f32 %v769, %v769
  %v834 = vmul.f32 %v770, %v770
  %v835 = vmul.f32 %v771, %v771
  %v836 = vmul.f32 %v772, %v772
  %v837 = vmul.f32 %v773, %v773
  %v838 = vmul.f32 %v774, %v774
  %v839 = vmul.f32 %v775, %v775
  %v840 = vmul.f32 %v776, %v776
  %v841 = vmul.f32 %v777, %v777
  %v842 = vmul.f32 %v778, %v778
  %v843 = vmul.f32 %v779, %v779
  %v844 = vmul.f32 %v780, %v780
  %v845 = vmul.f32 %v781, %v781
  %v846 = vmul.f32 %v782, %v782
  %v847 = vmul.f32 %v783, %v783
  %v848 = vmul.f32 %v784, %v784
  %v849 = vmul.f32 %v785, %v785
  %v850 = vmul.f32 %v786, %v786
  %v851 = vmul.f32 %v787, %v787
  %v852 = vmul.f32 %v788, %v788
  %v853 = vmul.f32 %v789, %v789
  %v854 = vmul.f32 %v790, %v790
  %v855 = vmul.f32 %v791, %v791
  %v856 = vmul.f32 %v792, %v792
  %v857 = vmul.f32 %v793, %v793
  %v858 = vmul.f32 %v794, %v794
  %v859 = vmul.f32 %v795, %v795
  %v860 = vmul.f32 %v796, %v796
  %v861 = vmul.f32 %v797, %v797
  %v862 = vmul.f32 %v798, %v798
  %v863 = vmul.f32 %v799, %v799
  %v864 = vsel %vm478, %v800, 0.0
  %865 = vadd.xlane.f32.xlu0 %v864
  %v866 = vpop.xlane.xlu0 %865
  %v867 = vsel %vm478, %v801, 0.0
  %868 = vadd.xlane.f32.xlu0 %v867
  %v869 = vpop.xlane.xlu0 %868
  %v870 = vsel %vm478, %v802, 0.0
  %871 = vadd.xlane.f32.xlu0 %v870
  %v872 = vpop.xlane.xlu0 %871
  %v873 = vsel %vm478, %v803, 0.0
  %874 = vadd.xlane.f32.xlu0 %v873
  %v875 = vpop.xlane.xlu0 %874
  %v876 = vsel %vm478, %v804, 0.0
  %877 = vadd.xlane.f32.xlu0 %v876
  %v878 = vpop.xlane.xlu0 %877
  %v879 = vsel %vm478, %v805, 0.0
  %880 = vadd.xlane.f32.xlu0 %v879
  %v881 = vpop.xlane.xlu0 %880
  %v882 = vsel %vm478, %v806, 0.0
  %883 = vadd.xlane.f32.xlu0 %v882
  %v884 = vpop.xlane.xlu0 %883
  %v885 = vsel %vm478, %v807, 0.0
  %886 = vadd.xlane.f32.xlu0 %v885
  %v887 = vpop.xlane.xlu0 %886
  %v888 = vsel %vm478, %v808, 0.0
  %889 = vadd.xlane.f32.xlu0 %v888
  %v890 = vpop.xlane.xlu0 %889
  %v891 = vsel %vm478, %v809, 0.0
  %892 = vadd.xlane.f32.xlu0 %v891
  %v893 = vpop.xlane.xlu0 %892
  %v894 = vsel %vm478, %v810, 0.0
  %895 = vadd.xlane.f32.xlu0 %v894
  %v896 = vpop.xlane.xlu0 %895
  %v897 = vsel %vm478, %v811, 0.0
  %898 = vadd.xlane.f32.xlu0 %v897
  %v899 = vpop.xlane.xlu0 %898
  %v900 = vsel %vm478, %v812, 0.0
  %901 = vadd.xlane.f32.xlu0 %v900
  %v902 = vpop.xlane.xlu0 %901
  %v903 = vsel %vm478, %v813, 0.0
  %904 = vadd.xlane.f32.xlu0 %v903
  %v905 = vpop.xlane.xlu0 %904
  %v906 = vsel %vm478, %v814, 0.0
  %907 = vadd.xlane.f32.xlu0 %v906
  %v908 = vpop.xlane.xlu0 %907
  %v909 = vsel %vm478, %v815, 0.0
  %910 = vadd.xlane.f32.xlu0 %v909
  %v911 = vpop.xlane.xlu0 %910
  %v912 = vsel %vm478, %v816, 0.0
  %913 = vadd.xlane.f32.xlu0 %v912
  %v914 = vpop.xlane.xlu0 %913
  %v915 = vsel %vm478, %v817, 0.0
  %916 = vadd.xlane.f32.xlu0 %v915
  %v917 = vpop.xlane.xlu0 %916
  %v918 = vsel %vm478, %v818, 0.0
  %919 = vadd.xlane.f32.xlu0 %v918
  %v920 = vpop.xlane.xlu0 %919
  %v921 = vsel %vm478, %v819, 0.0
  %922 = vadd.xlane.f32.xlu0 %v921
  %v923 = vpop.xlane.xlu0 %922
  %v924 = vsel %vm478, %v820, 0.0
  %925 = vadd.xlane.f32.xlu0 %v924
  %v926 = vpop.xlane.xlu0 %925
  %v927 = vsel %vm478, %v821, 0.0
  %928 = vadd.xlane.f32.xlu0 %v927
  %v929 = vpop.xlane.xlu0 %928
  %v930 = vsel %vm478, %v822, 0.0
  %931 = vadd.xlane.f32.xlu0 %v930
  %v932 = vpop.xlane.xlu0 %931
  %v933 = vsel %vm478, %v823, 0.0
  %934 = vadd.xlane.f32.xlu0 %v933
  %v935 = vpop.xlane.xlu0 %934
  %v936 = vsel %vm478, %v824, 0.0
  %937 = vadd.xlane.f32.xlu0 %v936
  %v938 = vpop.xlane.xlu0 %937
  %v939 = vsel %vm478, %v825, 0.0
  %940 = vadd.xlane.f32.xlu0 %v939
  %v941 = vpop.xlane.xlu0 %940
  %v942 = vsel %vm478, %v826, 0.0
  %943 = vadd.xlane.f32.xlu0 %v942
  %v944 = vpop.xlane.xlu0 %943
  %v945 = vsel %vm478, %v827, 0.0
  %946 = vadd.xlane.f32.xlu0 %v945
  %v947 = vpop.xlane.xlu0 %946
  %v948 = vsel %vm478, %v828, 0.0
  %949 = vadd.xlane.f32.xlu0 %v948
  %v950 = vpop.xlane.xlu0 %949
  %v951 = vsel %vm478, %v829, 0.0
  %952 = vadd.xlane.f32.xlu0 %v951
  %v953 = vpop.xlane.xlu0 %952
  %v954 = vsel %vm478, %v830, 0.0
  %955 = vadd.xlane.f32.xlu0 %v954
  %v956 = vpop.xlane.xlu0 %955
  %v957 = vsel %vm478, %v831, 0.0
  %958 = vadd.xlane.f32.xlu0 %v957
  %v959 = vpop.xlane.xlu0 %958
  %v960 = vsel %vm478, %v832, 0.0
  %961 = vadd.xlane.f32.xlu0 %v960
  %v962 = vpop.xlane.xlu0 %961
  %v963 = vsel %vm478, %v833, 0.0
  %964 = vadd.xlane.f32.xlu0 %v963
  %v965 = vpop.xlane.xlu0 %964
  %v966 = vsel %vm478, %v834, 0.0
  %967 = vadd.xlane.f32.xlu0 %v966
  %v968 = vpop.xlane.xlu0 %967
  %v969 = vsel %vm478, %v835, 0.0
  %970 = vadd.xlane.f32.xlu0 %v969
  %v971 = vpop.xlane.xlu0 %970
  %v972 = vsel %vm478, %v836, 0.0
  %973 = vadd.xlane.f32.xlu0 %v972
  %v974 = vpop.xlane.xlu0 %973
  %v975 = vsel %vm478, %v837, 0.0
  %976 = vadd.xlane.f32.xlu0 %v975
  %v977 = vpop.xlane.xlu0 %976
  %v978 = vsel %vm478, %v838, 0.0
  %979 = vadd.xlane.f32.xlu0 %v978
  %v980 = vpop.xlane.xlu0 %979
  %v981 = vsel %vm478, %v839, 0.0
  %982 = vadd.xlane.f32.xlu0 %v981
  %v983 = vpop.xlane.xlu0 %982
  %v984 = vsel %vm478, %v840, 0.0
  %985 = vadd.xlane.f32.xlu0 %v984
  %v986 = vpop.xlane.xlu0 %985
  %v987 = vsel %vm478, %v841, 0.0
  %988 = vadd.xlane.f32.xlu0 %v987
  %v989 = vpop.xlane.xlu0 %988
  %v990 = vsel %vm478, %v842, 0.0
  %991 = vadd.xlane.f32.xlu0 %v990
  %v992 = vpop.xlane.xlu0 %991
  %v993 = vsel %vm478, %v843, 0.0
  %994 = vadd.xlane.f32.xlu0 %v993
  %v995 = vpop.xlane.xlu0 %994
  %v996 = vsel %vm478, %v844, 0.0
  %997 = vadd.xlane.f32.xlu0 %v996
  %v998 = vpop.xlane.xlu0 %997
  %v999 = vsel %vm478, %v845, 0.0
  %1000 = vadd.xlane.f32.xlu0 %v999
  %v1001 = vpop.xlane.xlu0 %1000
  %v1002 = vsel %vm478, %v846, 0.0
  %1003 = vadd.xlane.f32.xlu0 %v1002
  %v1004 = vpop.xlane.xlu0 %1003
  %v1005 = vsel %vm478, %v847, 0.0
  %1006 = vadd.xlane.f32.xlu0 %v1005
  %v1007 = vpop.xlane.xlu0 %1006
  %v1008 = vsel %vm478, %v848, 0.0
  %1009 = vadd.xlane.f32.xlu0 %v1008
  %v1010 = vpop.xlane.xlu0 %1009
  %v1011 = vsel %vm478, %v849, 0.0
  %1012 = vadd.xlane.f32.xlu0 %v1011
  %v1013 = vpop.xlane.xlu0 %1012
  %v1014 = vsel %vm478, %v850, 0.0
  %1015 = vadd.xlane.f32.xlu0 %v1014
  %v1016 = vpop.xlane.xlu0 %1015
  %v1017 = vsel %vm478, %v851, 0.0
  %1018 = vadd.xlane.f32.xlu0 %v1017
  %v1019 = vpop.xlane.xlu0 %1018
  %v1020 = vsel %vm478, %v852, 0.0
  %1021 = vadd.xlane.f32.xlu0 %v1020
  %v1022 = vpop.xlane.xlu0 %1021
  %v1023 = vsel %vm478, %v853, 0.0
  %1024 = vadd.xlane.f32.xlu0 %v1023
  %v1025 = vpop.xlane.xlu0 %1024
  %v1026 = vsel %vm478, %v854, 0.0
  %1027 = vadd.xlane.f32.xlu0 %v1026
  %v1028 = vpop.xlane.xlu0 %1027
  %v1029 = vsel %vm478, %v855, 0.0
  %1030 = vadd.xlane.f32.xlu0 %v1029
  %v1031 = vpop.xlane.xlu0 %1030
  %v1032 = vsel %vm478, %v856, 0.0
  %1033 = vadd.xlane.f32.xlu0 %v1032
  %v1034 = vpop.xlane.xlu0 %1033
  %v1035 = vsel %vm478, %v857, 0.0
  %1036 = vadd.xlane.f32.xlu0 %v1035
  %v1037 = vpop.xlane.xlu0 %1036
  %v1038 = vsel %vm478, %v858, 0.0
  %1039 = vadd.xlane.f32.xlu0 %v1038
  %v1040 = vpop.xlane.xlu0 %1039
  %v1041 = vsel %vm478, %v859, 0.0
  %1042 = vadd.xlane.f32.xlu0 %v1041
  %v1043 = vpop.xlane.xlu0 %1042
  %v1044 = vsel %vm478, %v860, 0.0
  %1045 = vadd.xlane.f32.xlu0 %v1044
  %v1046 = vpop.xlane.xlu0 %1045
  %v1047 = vsel %vm478, %v861, 0.0
  %1048 = vadd.xlane.f32.xlu0 %v1047
  %v1049 = vpop.xlane.xlu0 %1048
  %v1050 = vsel %vm478, %v862, 0.0
  %1051 = vadd.xlane.f32.xlu0 %v1050
  %v1052 = vpop.xlane.xlu0 %1051
  %v1053 = vsel %vm478, %v863, 0.0
  %1054 = vadd.xlane.f32.xlu0 %v1053
  %v1055 = vpop.xlane.xlu0 %1054
  %v1056 = vmul.f32 %v866, %v671
  %v1057 = vmul.f32 %v869, %v671
  %v1058 = vmul.f32 %v872, %v671
  %v1059 = vmul.f32 %v875, %v671
  %v1060 = vmul.f32 %v878, %v671
  %v1061 = vmul.f32 %v881, %v671
  %v1062 = vmul.f32 %v884, %v671
  %v1063 = vmul.f32 %v887, %v671
  %v1064 = vmul.f32 %v890, %v671
  %v1065 = vmul.f32 %v893, %v671
  %v1066 = vmul.f32 %v896, %v671
  %v1067 = vmul.f32 %v899, %v671
  %v1068 = vmul.f32 %v902, %v671
  %v1069 = vmul.f32 %v905, %v671
  %v1070 = vmul.f32 %v908, %v671
  %v1071 = vmul.f32 %v911, %v671
  %v1072 = vmul.f32 %v914, %v671
  %v1073 = vmul.f32 %v917, %v671
  %v1074 = vmul.f32 %v920, %v671
  %v1075 = vmul.f32 %v923, %v671
  %v1076 = vmul.f32 %v926, %v671
  %v1077 = vmul.f32 %v929, %v671
  %v1078 = vmul.f32 %v932, %v671
  %v1079 = vmul.f32 %v935, %v671
  %v1080 = vmul.f32 %v938, %v671
  %v1081 = vmul.f32 %v941, %v671
  %v1082 = vmul.f32 %v944, %v671
  %v1083 = vmul.f32 %v947, %v671
  %v1084 = vmul.f32 %v950, %v671
  %v1085 = vmul.f32 %v953, %v671
  %v1086 = vmul.f32 %v956, %v671
  %v1087 = vmul.f32 %v959, %v671
  %v1088 = vmul.f32 %v962, %v671
  %v1089 = vmul.f32 %v965, %v671
  %v1090 = vmul.f32 %v968, %v671
  %v1091 = vmul.f32 %v971, %v671
  %v1092 = vmul.f32 %v974, %v671
  %v1093 = vmul.f32 %v977, %v671
  %v1094 = vmul.f32 %v980, %v671
  %v1095 = vmul.f32 %v983, %v671
  %v1096 = vmul.f32 %v986, %v671
  %v1097 = vmul.f32 %v989, %v671
  %v1098 = vmul.f32 %v992, %v671
  %v1099 = vmul.f32 %v995, %v671
  %v1100 = vmul.f32 %v998, %v671
  %v1101 = vmul.f32 %v1001, %v671
  %v1102 = vmul.f32 %v1004, %v671
  %v1103 = vmul.f32 %v1007, %v671
  %v1104 = vmul.f32 %v1010, %v671
  %v1105 = vmul.f32 %v1013, %v671
  %v1106 = vmul.f32 %v1016, %v671
  %v1107 = vmul.f32 %v1019, %v671
  %v1108 = vmul.f32 %v1022, %v671
  %v1109 = vmul.f32 %v1025, %v671
  %v1110 = vmul.f32 %v1028, %v671
  %v1111 = vmul.f32 %v1031, %v671
  %v1112 = vmul.f32 %v1034, %v671
  %v1113 = vmul.f32 %v1037, %v671
  %v1114 = vmul.f32 %v1040, %v671
  %v1115 = vmul.f32 %v1043, %v671
  %v1116 = vmul.f32 %v1046, %v671
  %v1117 = vmul.f32 %v1049, %v671
  %v1118 = vmul.f32 %v1052, %v671
  %v1119 = vmul.f32 %v1055, %v671
  %v1120 = vadd.f32 %v1056, 1e-05
  %v1121 = vadd.f32 %v1057, 1e-05
  %v1122 = vadd.f32 %v1058, 1e-05
  %v1123 = vadd.f32 %v1059, 1e-05
  %v1124 = vadd.f32 %v1060, 1e-05
  %v1125 = vadd.f32 %v1061, 1e-05
  %v1126 = vadd.f32 %v1062, 1e-05
  %v1127 = vadd.f32 %v1063, 1e-05
  %v1128 = vadd.f32 %v1064, 1e-05
  %v1129 = vadd.f32 %v1065, 1e-05
  %v1130 = vadd.f32 %v1066, 1e-05
  %v1131 = vadd.f32 %v1067, 1e-05
  %v1132 = vadd.f32 %v1068, 1e-05
  %v1133 = vadd.f32 %v1069, 1e-05
  %v1134 = vadd.f32 %v1070, 1e-05
  %v1135 = vadd.f32 %v1071, 1e-05
  %v1136 = vadd.f32 %v1072, 1e-05
  %v1137 = vadd.f32 %v1073, 1e-05
  %v1138 = vadd.f32 %v1074, 1e-05
  %v1139 = vadd.f32 %v1075, 1e-05
  %v1140 = vadd.f32 %v1076, 1e-05
  %v1141 = vadd.f32 %v1077, 1e-05
  %v1142 = vadd.f32 %v1078, 1e-05
  %v1143 = vadd.f32 %v1079, 1e-05
  %v1144 = vadd.f32 %v1080, 1e-05
  %v1145 = vadd.f32 %v1081, 1e-05
  %v1146 = vadd.f32 %v1082, 1e-05
  %v1147 = vadd.f32 %v1083, 1e-05
  %v1148 = vadd.f32 %v1084, 1e-05
  %v1149 = vadd.f32 %v1085, 1e-05
  %v1150 = vadd.f32 %v1086, 1e-05
  %v1151 = vadd.f32 %v1087, 1e-05
  %v1152 = vadd.f32 %v1088, 1e-05
  %v1153 = vadd.f32 %v1089, 1e-05
  %v1154 = vadd.f32 %v1090, 1e-05
  %v1155 = vadd.f32 %v1091, 1e-05
  %v1156 = vadd.f32 %v1092, 1e-05
  %v1157 = vadd.f32 %v1093, 1e-05
  %v1158 = vadd.f32 %v1094, 1e-05
  %v1159 = vadd.f32 %v1095, 1e-05
  %v1160 = vadd.f32 %v1096, 1e-05
  %v1161 = vadd.f32 %v1097, 1e-05
  %v1162 = vadd.f32 %v1098, 1e-05
  %v1163 = vadd.f32 %v1099, 1e-05
  %v1164 = vadd.f32 %v1100, 1e-05
  %v1165 = vadd.f32 %v1101, 1e-05
  %v1166 = vadd.f32 %v1102, 1e-05
  %v1167 = vadd.f32 %v1103, 1e-05
  %v1168 = vadd.f32 %v1104, 1e-05
  %v1169 = vadd.f32 %v1105, 1e-05
  %v1170 = vadd.f32 %v1106, 1e-05
  %v1171 = vadd.f32 %v1107, 1e-05
  %v1172 = vadd.f32 %v1108, 1e-05
  %v1173 = vadd.f32 %v1109, 1e-05
  %v1174 = vadd.f32 %v1110, 1e-05
  %v1175 = vadd.f32 %v1111, 1e-05
  %v1176 = vadd.f32 %v1112, 1e-05
  %v1177 = vadd.f32 %v1113, 1e-05
  %v1178 = vadd.f32 %v1114, 1e-05
  %v1179 = vadd.f32 %v1115, 1e-05
  %v1180 = vadd.f32 %v1116, 1e-05
  %v1181 = vadd.f32 %v1117, 1e-05
  %v1182 = vadd.f32 %v1118, 1e-05
  %v1183 = vadd.f32 %v1119, 1e-05
  %v1184 = vrsqrt.pop %v1120
  %v1185 = vrsqrt.pop %v1121
  %v1186 = vrsqrt.pop %v1122
  %v1187 = vrsqrt.pop %v1123
  %v1188 = vrsqrt.pop %v1124
  %v1189 = vrsqrt.pop %v1125
  %v1190 = vrsqrt.pop %v1126
  %v1191 = vrsqrt.pop %v1127
  %v1192 = vrsqrt.pop %v1128
  %v1193 = vrsqrt.pop %v1129
  %v1194 = vrsqrt.pop %v1130
  %v1195 = vrsqrt.pop %v1131
  %v1196 = vrsqrt.pop %v1132
  %v1197 = vrsqrt.pop %v1133
  %v1198 = vrsqrt.pop %v1134
  %v1199 = vrsqrt.pop %v1135
  %v1200 = vrsqrt.pop %v1136
  %v1201 = vrsqrt.pop %v1137
  %v1202 = vrsqrt.pop %v1138
  %v1203 = vrsqrt.pop %v1139
  %v1204 = vrsqrt.pop %v1140
  %v1205 = vrsqrt.pop %v1141
  %v1206 = vrsqrt.pop %v1142
  %v1207 = vrsqrt.pop %v1143
  %v1208 = vrsqrt.pop %v1144
  %v1209 = vrsqrt.pop %v1145
  %v1210 = vrsqrt.pop %v1146
  %v1211 = vrsqrt.pop %v1147
  %v1212 = vrsqrt.pop %v1148
  %v1213 = vrsqrt.pop %v1149
  %v1214 = vrsqrt.pop %v1150
  %v1215 = vrsqrt.pop %v1151
  %v1216 = vrsqrt.pop %v1152
  %v1217 = vrsqrt.pop %v1153
  %v1218 = vrsqrt.pop %v1154
  %v1219 = vrsqrt.pop %v1155
  %v1220 = vrsqrt.pop %v1156
  %v1221 = vrsqrt.pop %v1157
  %v1222 = vrsqrt.pop %v1158
  %v1223 = vrsqrt.pop %v1159
  %v1224 = vrsqrt.pop %v1160
  %v1225 = vrsqrt.pop %v1161
  %v1226 = vrsqrt.pop %v1162
  %v1227 = vrsqrt.pop %v1163
  %v1228 = vrsqrt.pop %v1164
  %v1229 = vrsqrt.pop %v1165
  %v1230 = vrsqrt.pop %v1166
  %v1231 = vrsqrt.pop %v1167
  %v1232 = vrsqrt.pop %v1168
  %v1233 = vrsqrt.pop %v1169
  %v1234 = vrsqrt.pop %v1170
  %v1235 = vrsqrt.pop %v1171
  %v1236 = vrsqrt.pop %v1172
  %v1237 = vrsqrt.pop %v1173
  %v1238 = vrsqrt.pop %v1174
  %v1239 = vrsqrt.pop %v1175
  %v1240 = vrsqrt.pop %v1176
  %v1241 = vrsqrt.pop %v1177
  %v1242 = vrsqrt.pop %v1178
  %v1243 = vrsqrt.pop %v1179
  %v1244 = vrsqrt.pop %v1180
  %v1245 = vrsqrt.pop %v1181
  %v1246 = vrsqrt.pop %v1182
  %v1247 = vrsqrt.pop %v1183
  %v1248 = vmul.f32 %v736, %v1184
  %v1249 = vmul.f32 %v737, %v1185
  %v1250 = vmul.f32 %v738, %v1186
  %v1251 = vmul.f32 %v739, %v1187
  %v1252 = vmul.f32 %v740, %v1188
  %v1253 = vmul.f32 %v741, %v1189
  %v1254 = vmul.f32 %v742, %v1190
  %v1255 = vmul.f32 %v743, %v1191
  %v1256 = vmul.f32 %v744, %v1192
  %v1257 = vmul.f32 %v745, %v1193
  %v1258 = vmul.f32 %v746, %v1194
  %v1259 = vmul.f32 %v747, %v1195
  %v1260 = vmul.f32 %v748, %v1196
  %v1261 = vmul.f32 %v749, %v1197
  %v1262 = vmul.f32 %v750, %v1198
  %v1263 = vmul.f32 %v751, %v1199
  %v1264 = vmul.f32 %v752, %v1200
  %v1265 = vmul.f32 %v753, %v1201
  %v1266 = vmul.f32 %v754, %v1202
  %v1267 = vmul.f32 %v755, %v1203
  %v1268 = vmul.f32 %v756, %v1204
  %v1269 = vmul.f32 %v757, %v1205
  %v1270 = vmul.f32 %v758, %v1206
  %v1271 = vmul.f32 %v759, %v1207
  %v1272 = vmul.f32 %v760, %v1208
  %v1273 = vmul.f32 %v761, %v1209
  %v1274 = vmul.f32 %v762, %v1210
  %v1275 = vmul.f32 %v763, %v1211
  %v1276 = vmul.f32 %v764, %v1212
  %v1277 = vmul.f32 %v765, %v1213
  %v1278 = vmul.f32 %v766, %v1214
  %v1279 = vmul.f32 %v767, %v1215
  %v1280 = vmul.f32 %v768, %v1216
  %v1281 = vmul.f32 %v769, %v1217
  %v1282 = vmul.f32 %v770, %v1218
  %v1283 = vmul.f32 %v771, %v1219
  %v1284 = vmul.f32 %v772, %v1220
  %v1285 = vmul.f32 %v773, %v1221
  %v1286 = vmul.f32 %v774, %v1222
  %v1287 = vmul.f32 %v775, %v1223
  %v1288 = vmul.f32 %v776, %v1224
  %v1289 = vmul.f32 %v777, %v1225
  %v1290 = vmul.f32 %v778, %v1226
  %v1291 = vmul.f32 %v779, %v1227
  %v1292 = vmul.f32 %v780, %v1228
  %v1293 = vmul.f32 %v781, %v1229
  %v1294 = vmul.f32 %v782, %v1230
  %v1295 = vmul.f32 %v783, %v1231
  %v1296 = vmul.f32 %v784, %v1232
  %v1297 = vmul.f32 %v785, %v1233
  %v1298 = vmul.f32 %v786, %v1234
  %v1299 = vmul.f32 %v787, %v1235
  %v1300 = vmul.f32 %v788, %v1236
  %v1301 = vmul.f32 %v789, %v1237
  %v1302 = vmul.f32 %v790, %v1238
  %v1303 = vmul.f32 %v791, %v1239
  %v1304 = vmul.f32 %v792, %v1240
  %v1305 = vmul.f32 %v793, %v1241
  %v1306 = vmul.f32 %v794, %v1242
  %v1307 = vmul.f32 %v795, %v1243
  %v1308 = vmul.f32 %v796, %v1244
  %v1309 = vmul.f32 %v797, %v1245
  %v1310 = vmul.f32 %v798, %v1246
  %v1311 = vmul.f32 %v799, %v1247
  %v1312 = vld [vmem:[%s5] sm:$0x1]
  %v1314 = vlaneseq
  %v1315 = vshrl.u32 %v1314, 7
  %v1316 = vsub.s32 0, %v1315
  %v1317 = vrot.slane %v1312, %v1316
  %v1319 = vmul.f32 %v1248, %v1317
  %v1320 = vmul.f32 %v1249, %v1317
  %v1321 = vmul.f32 %v1250, %v1317
  %v1322 = vmul.f32 %v1251, %v1317
  %v1323 = vmul.f32 %v1252, %v1317
  %v1324 = vmul.f32 %v1253, %v1317
  %v1325 = vmul.f32 %v1254, %v1317
  %v1326 = vmul.f32 %v1255, %v1317
  %v1327 = vmul.f32 %v1256, %v1317
  %v1328 = vmul.f32 %v1257, %v1317
  %v1329 = vmul.f32 %v1258, %v1317
  %v1330 = vmul.f32 %v1259, %v1317
  %v1331 = vmul.f32 %v1260, %v1317
  %v1332 = vmul.f32 %v1261, %v1317
  %v1333 = vmul.f32 %v1262, %v1317
  %v1334 = vmul.f32 %v1263, %v1317
  %v1335 = vmul.f32 %v1264, %v1317
  %v1336 = vmul.f32 %v1265, %v1317
  %v1337 = vmul.f32 %v1266, %v1317
  %v1338 = vmul.f32 %v1267, %v1317
  %v1339 = vmul.f32 %v1268, %v1317
  %v1340 = vmul.f32 %v1269, %v1317
  %v1341 = vmul.f32 %v1270, %v1317
  %v1342 = vmul.f32 %v1271, %v1317
  %v1343 = vmul.f32 %v1272, %v1317
  %v1344 = vmul.f32 %v1273, %v1317
  %v1345 = vmul.f32 %v1274, %v1317
  %v1346 = vmul.f32 %v1275, %v1317
  %v1347 = vmul.f32 %v1276, %v1317
  %v1348 = vmul.f32 %v1277, %v1317
  %v1349 = vmul.f32 %v1278, %v1317
  %v1350 = vmul.f32 %v1279, %v1317
  %v1351 = vmul.f32 %v1280, %v1317
  %v1352 = vmul.f32 %v1281, %v1317
  %v1353 = vmul.f32 %v1282, %v1317
  %v1354 = vmul.f32 %v1283, %v1317
  %v1355 = vmul.f32 %v1284, %v1317
  %v1356 = vmul.f32 %v1285, %v1317
  %v1357 = vmul.f32 %v1286, %v1317
  %v1358 = vmul.f32 %v1287, %v1317
  %v1359 = vmul.f32 %v1288, %v1317
  %v1360 = vmul.f32 %v1289, %v1317
  %v1361 = vmul.f32 %v1290, %v1317
  %v1362 = vmul.f32 %v1291, %v1317
  %v1363 = vmul.f32 %v1292, %v1317
  %v1364 = vmul.f32 %v1293, %v1317
  %v1365 = vmul.f32 %v1294, %v1317
  %v1366 = vmul.f32 %v1295, %v1317
  %v1367 = vmul.f32 %v1296, %v1317
  %v1368 = vmul.f32 %v1297, %v1317
  %v1369 = vmul.f32 %v1298, %v1317
  %v1370 = vmul.f32 %v1299, %v1317
  %v1371 = vmul.f32 %v1300, %v1317
  %v1372 = vmul.f32 %v1301, %v1317
  %v1373 = vmul.f32 %v1302, %v1317
  %v1374 = vmul.f32 %v1303, %v1317
  %v1375 = vmul.f32 %v1304, %v1317
  %v1376 = vmul.f32 %v1305, %v1317
  %v1377 = vmul.f32 %v1306, %v1317
  %v1378 = vmul.f32 %v1307, %v1317
  %v1379 = vmul.f32 %v1308, %v1317
  %v1380 = vmul.f32 %v1309, %v1317
  %v1381 = vmul.f32 %v1310, %v1317
  %v1382 = vmul.f32 %v1311, %v1317
  %v1383 = vld [vmem:[%s6] sm:$0x1]
  %v1385 = vlaneseq
  %v1386 = vshrl.u32 %v1385, 7
  %v1387 = vsub.s32 0, %v1386
  %v1388 = vrot.slane %v1383, %v1387
  %v1390 = vadd.f32 %v1319, %v1388
  %v1391 = vadd.f32 %v1320, %v1388
  %v1392 = vadd.f32 %v1321, %v1388
  %v1393 = vadd.f32 %v1322, %v1388
  %v1394 = vadd.f32 %v1323, %v1388
  %v1395 = vadd.f32 %v1324, %v1388
  %v1396 = vadd.f32 %v1325, %v1388
  %v1397 = vadd.f32 %v1326, %v1388
  %v1398 = vadd.f32 %v1327, %v1388
  %v1399 = vadd.f32 %v1328, %v1388
  %v1400 = vadd.f32 %v1329, %v1388
  %v1401 = vadd.f32 %v1330, %v1388
  %v1402 = vadd.f32 %v1331, %v1388
  %v1403 = vadd.f32 %v1332, %v1388
  %v1404 = vadd.f32 %v1333, %v1388
  %v1405 = vadd.f32 %v1334, %v1388
  %v1406 = vadd.f32 %v1335, %v1388
  %v1407 = vadd.f32 %v1336, %v1388
  %v1408 = vadd.f32 %v1337, %v1388
  %v1409 = vadd.f32 %v1338, %v1388
  %v1410 = vadd.f32 %v1339, %v1388
  %v1411 = vadd.f32 %v1340, %v1388
  %v1412 = vadd.f32 %v1341, %v1388
  %v1413 = vadd.f32 %v1342, %v1388
  %v1414 = vadd.f32 %v1343, %v1388
  %v1415 = vadd.f32 %v1344, %v1388
  %v1416 = vadd.f32 %v1345, %v1388
  %v1417 = vadd.f32 %v1346, %v1388
  %v1418 = vadd.f32 %v1347, %v1388
  %v1419 = vadd.f32 %v1348, %v1388
  %v1420 = vadd.f32 %v1349, %v1388
  %v1421 = vadd.f32 %v1350, %v1388
  %v1422 = vadd.f32 %v1351, %v1388
  %v1423 = vadd.f32 %v1352, %v1388
  %v1424 = vadd.f32 %v1353, %v1388
  %v1425 = vadd.f32 %v1354, %v1388
  %v1426 = vadd.f32 %v1355, %v1388
  %v1427 = vadd.f32 %v1356, %v1388
  %v1428 = vadd.f32 %v1357, %v1388
  %v1429 = vadd.f32 %v1358, %v1388
  %v1430 = vadd.f32 %v1359, %v1388
  %v1431 = vadd.f32 %v1360, %v1388
  %v1432 = vadd.f32 %v1361, %v1388
  %v1433 = vadd.f32 %v1362, %v1388
  %v1434 = vadd.f32 %v1363, %v1388
  %v1435 = vadd.f32 %v1364, %v1388
  %v1436 = vadd.f32 %v1365, %v1388
  %v1437 = vadd.f32 %v1366, %v1388
  %v1438 = vadd.f32 %v1367, %v1388
  %v1439 = vadd.f32 %v1368, %v1388
  %v1440 = vadd.f32 %v1369, %v1388
  %v1441 = vadd.f32 %v1370, %v1388
  %v1442 = vadd.f32 %v1371, %v1388
  %v1443 = vadd.f32 %v1372, %v1388
  %v1444 = vadd.f32 %v1373, %v1388
  %v1445 = vadd.f32 %v1374, %v1388
  %v1446 = vadd.f32 %v1375, %v1388
  %v1447 = vadd.f32 %v1376, %v1388
  %v1448 = vadd.f32 %v1377, %v1388
  %v1449 = vadd.f32 %v1378, %v1388
  %v1450 = vadd.f32 %v1379, %v1388
  %v1451 = vadd.f32 %v1380, %v1388
  %v1452 = vadd.f32 %v1381, %v1388
  %v1453 = vadd.f32 %v1382, %v1388
  %v1454 = vld [vmem:[%s4] sm:$0xff]
  %v1455 = vld [vmem:[%s4 + $0x8] sm:$0xff]
  %v1456 = vld [vmem:[%s4 + $0x10] sm:$0xff]
  %v1457 = vld [vmem:[%s4 + $0x18] sm:$0xff]
  %v1458 = vld [vmem:[%s4 + $0x20] sm:$0xff]
  %v1459 = vld [vmem:[%s4 + $0x28] sm:$0xff]
  %v1460 = vld [vmem:[%s4 + $0x30] sm:$0xff]
  %v1461 = vld [vmem:[%s4 + $0x38] sm:$0xff]
  %v1462 = vld [vmem:[%s4 + $0x40] sm:$0xff]
  %v1463 = vld [vmem:[%s4 + $0x48] sm:$0xff]
  %v1464 = vld [vmem:[%s4 + $0x50] sm:$0xff]
  %v1465 = vld [vmem:[%s4 + $0x58] sm:$0xff]
  %v1466 = vld [vmem:[%s4 + $0x60] sm:$0xff]
  %v1467 = vld [vmem:[%s4 + $0x68] sm:$0xff]
  %v1468 = vld [vmem:[%s4 + $0x70] sm:$0xff]
  %v1469 = vld [vmem:[%s4 + $0x78] sm:$0xff]
  %v1470 = vld [vmem:[%s4 + $0x80] sm:$0xff]
  %v1471 = vld [vmem:[%s4 + $0x88] sm:$0xff]
  %v1472 = vld [vmem:[%s4 + $0x90] sm:$0xff]
  %v1473 = vld [vmem:[%s4 + $0x98] sm:$0xff]
  %v1474 = vld [vmem:[%s4 + $0xa0] sm:$0xff]
  %v1475 = vld [vmem:[%s4 + $0xa8] sm:$0xff]
  %v1476 = vld [vmem:[%s4 + $0xb0] sm:$0xff]
  %v1477 = vld [vmem:[%s4 + $0xb8] sm:$0xff]
  %v1478 = vld [vmem:[%s4 + $0xc0] sm:$0xff]
  %v1479 = vld [vmem:[%s4 + $0xc8] sm:$0xff]
  %v1480 = vld [vmem:[%s4 + $0xd0] sm:$0xff]
  %v1481 = vld [vmem:[%s4 + $0xd8] sm:$0xff]
  %v1482 = vld [vmem:[%s4 + $0xe0] sm:$0xff]
  %v1483 = vld [vmem:[%s4 + $0xe8] sm:$0xff]
  %v1484 = vld [vmem:[%s4 + $0xf0] sm:$0xff]
  %v1485 = vld [vmem:[%s4 + $0xf8] sm:$0xff]
  %v1486 = vld [vmem:[%s4 + $0x100] sm:$0xff]
  %v1487 = vld [vmem:[%s4 + $0x108] sm:$0xff]
  %v1488 = vld [vmem:[%s4 + $0x110] sm:$0xff]
  %v1489 = vld [vmem:[%s4 + $0x118] sm:$0xff]
  %v1490 = vld [vmem:[%s4 + $0x120] sm:$0xff]
  %v1491 = vld [vmem:[%s4 + $0x128] sm:$0xff]
  %v1492 = vld [vmem:[%s4 + $0x130] sm:$0xff]
  %v1493 = vld [vmem:[%s4 + $0x138] sm:$0xff]
  %v1494 = vld [vmem:[%s4 + $0x140] sm:$0xff]
  %v1495 = vld [vmem:[%s4 + $0x148] sm:$0xff]
  %v1496 = vld [vmem:[%s4 + $0x150] sm:$0xff]
  %v1497 = vld [vmem:[%s4 + $0x158] sm:$0xff]
  %v1498 = vld [vmem:[%s4 + $0x160] sm:$0xff]
  %v1499 = vld [vmem:[%s4 + $0x168] sm:$0xff]
  %v1500 = vld [vmem:[%s4 + $0x170] sm:$0xff]
  %v1501 = vld [vmem:[%s4 + $0x178] sm:$0xff]
  %v1502 = vld [vmem:[%s4 + $0x180] sm:$0xff]
  %v1503 = vld [vmem:[%s4 + $0x188] sm:$0xff]
  %v1504 = vld [vmem:[%s4 + $0x190] sm:$0xff]
  %v1505 = vld [vmem:[%s4 + $0x198] sm:$0xff]
  %v1506 = vld [vmem:[%s4 + $0x1a0] sm:$0xff]
  %v1507 = vld [vmem:[%s4 + $0x1a8] sm:$0xff]
  %v1508 = vld [vmem:[%s4 + $0x1b0] sm:$0xff]
  %v1509 = vld [vmem:[%s4 + $0x1b8] sm:$0xff]
  %v1510 = vld [vmem:[%s4 + $0x1c0] sm:$0xff]
  %v1511 = vld [vmem:[%s4 + $0x1c8] sm:$0xff]
  %v1512 = vld [vmem:[%s4 + $0x1d0] sm:$0xff]
  %v1513 = vld [vmem:[%s4 + $0x1d8] sm:$0xff]
  %v1514 = vld [vmem:[%s4 + $0x1e0] sm:$0xff]
  %v1515 = vld [vmem:[%s4 + $0x1e8] sm:$0xff]
  %v1516 = vld [vmem:[%s4 + $0x1f0] sm:$0xff]
  %v1517 = vld [vmem:[%s4 + $0x1f8] sm:$0xff]
  %v1518 = vsub.f32 0.0, %v1454
  %v1519 = vsub.f32 0.0, %v1455
  %v1520 = vsub.f32 0.0, %v1456
  %v1521 = vsub.f32 0.0, %v1457
  %v1522 = vsub.f32 0.0, %v1458
  %v1523 = vsub.f32 0.0, %v1459
  %v1524 = vsub.f32 0.0, %v1460
  %v1525 = vsub.f32 0.0, %v1461
  %v1526 = vsub.f32 0.0, %v1462
  %v1527 = vsub.f32 0.0, %v1463
  %v1528 = vsub.f32 0.0, %v1464
  %v1529 = vsub.f32 0.0, %v1465
  %v1530 = vsub.f32 0.0, %v1466
  %v1531 = vsub.f32 0.0, %v1467
  %v1532 = vsub.f32 0.0, %v1468
  %v1533 = vsub.f32 0.0, %v1469
  %v1534 = vsub.f32 0.0, %v1470
  %v1535 = vsub.f32 0.0, %v1471
  %v1536 = vsub.f32 0.0, %v1472
  %v1537 = vsub.f32 0.0, %v1473
  %v1538 = vsub.f32 0.0, %v1474
  %v1539 = vsub.f32 0.0, %v1475
  %v1540 = vsub.f32 0.0, %v1476
  %v1541 = vsub.f32 0.0, %v1477
  %v1542 = vsub.f32 0.0, %v1478
  %v1543 = vsub.f32 0.0, %v1479
  %v1544 = vsub.f32 0.0, %v1480
  %v1545 = vsub.f32 0.0, %v1481
  %v1546 = vsub.f32 0.0, %v1482
  %v1547 = vsub.f32 0.0, %v1483
  %v1548 = vsub.f32 0.0, %v1484
  %v1549 = vsub.f32 0.0, %v1485
  %v1550 = vsub.f32 0.0, %v1486
  %v1551 = vsub.f32 0.0, %v1487
  %v1552 = vsub.f32 0.0, %v1488
  %v1553 = vsub.f32 0.0, %v1489
  %v1554 = vsub.f32 0.0, %v1490
  %v1555 = vsub.f32 0.0, %v1491
  %v1556 = vsub.f32 0.0, %v1492
  %v1557 = vsub.f32 0.0, %v1493
  %v1558 = vsub.f32 0.0, %v1494
  %v1559 = vsub.f32 0.0, %v1495
  %v1560 = vsub.f32 0.0, %v1496
  %v1561 = vsub.f32 0.0, %v1497
  %v1562 = vsub.f32 0.0, %v1498
  %v1563 = vsub.f32 0.0, %v1499
  %v1564 = vsub.f32 0.0, %v1500
  %v1565 = vsub.f32 0.0, %v1501
  %v1566 = vsub.f32 0.0, %v1502
  %v1567 = vsub.f32 0.0, %v1503
  %v1568 = vsub.f32 0.0, %v1504
  %v1569 = vsub.f32 0.0, %v1505
  %v1570 = vsub.f32 0.0, %v1506
  %v1571 = vsub.f32 0.0, %v1507
  %v1572 = vsub.f32 0.0, %v1508
  %v1573 = vsub.f32 0.0, %v1509
  %v1574 = vsub.f32 0.0, %v1510
  %v1575 = vsub.f32 0.0, %v1511
  %v1576 = vsub.f32 0.0, %v1512
  %v1577 = vsub.f32 0.0, %v1513
  %v1578 = vsub.f32 0.0, %v1514
  %v1579 = vsub.f32 0.0, %v1515
  %v1580 = vsub.f32 0.0, %v1516
  %v1581 = vsub.f32 0.0, %v1517
  %v1582 = vmul.f32 %v1518, 1.442695
  %v1583 = vpow.pop %v1582
  %v1584 = vmul.f32 %v1519, 1.442695
  %v1585 = vpow.pop %v1584
  %v1586 = vmul.f32 %v1520, 1.442695
  %v1587 = vpow.pop %v1586
  %v1588 = vmul.f32 %v1521, 1.442695
  %v1589 = vpow.pop %v1588
  %v1590 = vmul.f32 %v1522, 1.442695
  %v1591 = vpow.pop %v1590
  %v1592 = vmul.f32 %v1523, 1.442695
  %v1593 = vpow.pop %v1592
  %v1594 = vmul.f32 %v1524, 1.442695
  %v1595 = vpow.pop %v1594
  %v1596 = vmul.f32 %v1525, 1.442695
  %v1597 = vpow.pop %v1596
  %v1598 = vmul.f32 %v1526, 1.442695
  %v1599 = vpow.pop %v1598
  %v1600 = vmul.f32 %v1527, 1.442695
  %v1601 = vpow.pop %v1600
  %v1602 = vmul.f32 %v1528, 1.442695
  %v1603 = vpow.pop %v1602
  %v1604 = vmul.f32 %v1529, 1.442695
  %v1605 = vpow.pop %v1604
  %v1606 = vmul.f32 %v1530, 1.442695
  %v1607 = vpow.pop %v1606
  %v1608 = vmul.f32 %v1531, 1.442695
  %v1609 = vpow.pop %v1608
  %v1610 = vmul.f32 %v1532, 1.442695
  %v1611 = vpow.pop %v1610
  %v1612 = vmul.f32 %v1533, 1.442695
  %v1613 = vpow.pop %v1612
  %v1614 = vmul.f32 %v1534, 1.442695
  %v1615 = vpow.pop %v1614
  %v1616 = vmul.f32 %v1535, 1.442695
  %v1617 = vpow.pop %v1616
  %v1618 = vmul.f32 %v1536, 1.442695
  %v1619 = vpow.pop %v1618
  %v1620 = vmul.f32 %v1537, 1.442695
  %v1621 = vpow.pop %v1620
  %v1622 = vmul.f32 %v1538, 1.442695
  %v1623 = vpow.pop %v1622
  %v1624 = vmul.f32 %v1539, 1.442695
  %v1625 = vpow.pop %v1624
  %v1626 = vmul.f32 %v1540, 1.442695
  %v1627 = vpow.pop %v1626
  %v1628 = vmul.f32 %v1541, 1.442695
  %v1629 = vpow.pop %v1628
  %v1630 = vmul.f32 %v1542, 1.442695
  %v1631 = vpow.pop %v1630
  %v1632 = vmul.f32 %v1543, 1.442695
  %v1633 = vpow.pop %v1632
  %v1634 = vmul.f32 %v1544, 1.442695
  %v1635 = vpow.pop %v1634
  %v1636 = vmul.f32 %v1545, 1.442695
  %v1637 = vpow.pop %v1636
  %v1638 = vmul.f32 %v1546, 1.442695
  %v1639 = vpow.pop %v1638
  %v1640 = vmul.f32 %v1547, 1.442695
  %v1641 = vpow.pop %v1640
  %v1642 = vmul.f32 %v1548, 1.442695
  %v1643 = vpow.pop %v1642
  %v1644 = vmul.f32 %v1549, 1.442695
  %v1645 = vpow.pop %v1644
  %v1646 = vmul.f32 %v1550, 1.442695
  %v1647 = vpow.pop %v1646
  %v1648 = vmul.f32 %v1551, 1.442695
  %v1649 = vpow.pop %v1648
  %v1650 = vmul.f32 %v1552, 1.442695
  %v1651 = vpow.pop %v1650
  %v1652 = vmul.f32 %v1553, 1.442695
  %v1653 = vpow.pop %v1652
  %v1654 = vmul.f32 %v1554, 1.442695
  %v1655 = vpow.pop %v1654
  %v1656 = vmul.f32 %v1555, 1.442695
  %v1657 = vpow.pop %v1656
  %v1658 = vmul.f32 %v1556, 1.442695
  %v1659 = vpow.pop %v1658
  %v1660 = vmul.f32 %v1557, 1.442695
  %v1661 = vpow.pop %v1660
  %v1662 = vmul.f32 %v1558, 1.442695
  %v1663 = vpow.pop %v1662
  %v1664 = vmul.f32 %v1559, 1.442695
  %v1665 = vpow.pop %v1664
  %v1666 = vmul.f32 %v1560, 1.442695
  %v1667 = vpow.pop %v1666
  %v1668 = vmul.f32 %v1561, 1.442695
  %v1669 = vpow.pop %v1668
  %v1670 = vmul.f32 %v1562, 1.442695
  %v1671 = vpow.pop %v1670
  %v1672 = vmul.f32 %v1563, 1.442695
  %v1673 = vpow.pop %v1672
  %v1674 = vmul.f32 %v1564, 1.442695
  %v1675 = vpow.pop %v1674
  %v1676 = vmul.f32 %v1565, 1.442695
  %v1677 = vpow.pop %v1676
  %v1678 = vmul.f32 %v1566, 1.442695
  %v1679 = vpow.pop %v1678
  %v1680 = vmul.f32 %v1567, 1.442695
  %v1681 = vpow.pop %v1680
  %v1682 = vmul.f32 %v1568, 1.442695
  %v1683 = vpow.pop %v1682
  %v1684 = vmul.f32 %v1569, 1.442695
  %v1685 = vpow.pop %v1684
  %v1686 = vmul.f32 %v1570, 1.442695
  %v1687 = vpow.pop %v1686
  %v1688 = vmul.f32 %v1571, 1.442695
  %v1689 = vpow.pop %v1688
  %v1690 = vmul.f32 %v1572, 1.442695
  %v1691 = vpow.pop %v1690
  %v1692 = vmul.f32 %v1573, 1.442695
  %v1693 = vpow.pop %v1692
  %v1694 = vmul.f32 %v1574, 1.442695
  %v1695 = vpow.pop %v1694
  %v1696 = vmul.f32 %v1575, 1.442695
  %v1697 = vpow.pop %v1696
  %v1698 = vmul.f32 %v1576, 1.442695
  %v1699 = vpow.pop %v1698
  %v1700 = vmul.f32 %v1577, 1.442695
  %v1701 = vpow.pop %v1700
  %v1702 = vmul.f32 %v1578, 1.442695
  %v1703 = vpow.pop %v1702
  %v1704 = vmul.f32 %v1579, 1.442695
  %v1705 = vpow.pop %v1704
  %v1706 = vmul.f32 %v1580, 1.442695
  %v1707 = vpow.pop %v1706
  %v1708 = vmul.f32 %v1581, 1.442695
  %v1709 = vpow.pop %v1708
  %v1710 = vadd.f32 %v1583, 1.0
  %v1711 = vadd.f32 %v1585, 1.0
  %v1712 = vadd.f32 %v1587, 1.0
  %v1713 = vadd.f32 %v1589, 1.0
  %v1714 = vadd.f32 %v1591, 1.0
  %v1715 = vadd.f32 %v1593, 1.0
  %v1716 = vadd.f32 %v1595, 1.0
  %v1717 = vadd.f32 %v1597, 1.0
  %v1718 = vadd.f32 %v1599, 1.0
  %v1719 = vadd.f32 %v1601, 1.0
  %v1720 = vadd.f32 %v1603, 1.0
  %v1721 = vadd.f32 %v1605, 1.0
  %v1722 = vadd.f32 %v1607, 1.0
  %v1723 = vadd.f32 %v1609, 1.0
  %v1724 = vadd.f32 %v1611, 1.0
  %v1725 = vadd.f32 %v1613, 1.0
  %v1726 = vadd.f32 %v1615, 1.0
  %v1727 = vadd.f32 %v1617, 1.0
  %v1728 = vadd.f32 %v1619, 1.0
  %v1729 = vadd.f32 %v1621, 1.0
  %v1730 = vadd.f32 %v1623, 1.0
  %v1731 = vadd.f32 %v1625, 1.0
  %v1732 = vadd.f32 %v1627, 1.0
  %v1733 = vadd.f32 %v1629, 1.0
  %v1734 = vadd.f32 %v1631, 1.0
  %v1735 = vadd.f32 %v1633, 1.0
  %v1736 = vadd.f32 %v1635, 1.0
  %v1737 = vadd.f32 %v1637, 1.0
  %v1738 = vadd.f32 %v1639, 1.0
  %v1739 = vadd.f32 %v1641, 1.0
  %v1740 = vadd.f32 %v1643, 1.0
  %v1741 = vadd.f32 %v1645, 1.0
  %v1742 = vadd.f32 %v1647, 1.0
  %v1743 = vadd.f32 %v1649, 1.0
  %v1744 = vadd.f32 %v1651, 1.0
  %v1745 = vadd.f32 %v1653, 1.0
  %v1746 = vadd.f32 %v1655, 1.0
  %v1747 = vadd.f32 %v1657, 1.0
  %v1748 = vadd.f32 %v1659, 1.0
  %v1749 = vadd.f32 %v1661, 1.0
  %v1750 = vadd.f32 %v1663, 1.0
  %v1751 = vadd.f32 %v1665, 1.0
  %v1752 = vadd.f32 %v1667, 1.0
  %v1753 = vadd.f32 %v1669, 1.0
  %v1754 = vadd.f32 %v1671, 1.0
  %v1755 = vadd.f32 %v1673, 1.0
  %v1756 = vadd.f32 %v1675, 1.0
  %v1757 = vadd.f32 %v1677, 1.0
  %v1758 = vadd.f32 %v1679, 1.0
  %v1759 = vadd.f32 %v1681, 1.0
  %v1760 = vadd.f32 %v1683, 1.0
  %v1761 = vadd.f32 %v1685, 1.0
  %v1762 = vadd.f32 %v1687, 1.0
  %v1763 = vadd.f32 %v1689, 1.0
  %v1764 = vadd.f32 %v1691, 1.0
  %v1765 = vadd.f32 %v1693, 1.0
  %v1766 = vadd.f32 %v1695, 1.0
  %v1767 = vadd.f32 %v1697, 1.0
  %v1768 = vadd.f32 %v1699, 1.0
  %v1769 = vadd.f32 %v1701, 1.0
  %v1770 = vadd.f32 %v1703, 1.0
  %v1771 = vadd.f32 %v1705, 1.0
  %v1772 = vadd.f32 %v1707, 1.0
  %v1773 = vadd.f32 %v1709, 1.0
  %v1774 = vrcp.pop %v1710
  %v1775 = vmul.f32 1.0, %v1774
  %v1776 = vrcp.pop %v1711
  %v1777 = vmul.f32 1.0, %v1776
  %v1778 = vrcp.pop %v1712
  %v1779 = vmul.f32 1.0, %v1778
  %v1780 = vrcp.pop %v1713
  %v1781 = vmul.f32 1.0, %v1780
  %v1782 = vrcp.pop %v1714
  %v1783 = vmul.f32 1.0, %v1782
  %v1784 = vrcp.pop %v1715
  %v1785 = vmul.f32 1.0, %v1784
  %v1786 = vrcp.pop %v1716
  %v1787 = vmul.f32 1.0, %v1786
  %v1788 = vrcp.pop %v1717
  %v1789 = vmul.f32 1.0, %v1788
  %v1790 = vrcp.pop %v1718
  %v1791 = vmul.f32 1.0, %v1790
  %v1792 = vrcp.pop %v1719
  %v1793 = vmul.f32 1.0, %v1792
  %v1794 = vrcp.pop %v1720
  %v1795 = vmul.f32 1.0, %v1794
  %v1796 = vrcp.pop %v1721
  %v1797 = vmul.f32 1.0, %v1796
  %v1798 = vrcp.pop %v1722
  %v1799 = vmul.f32 1.0, %v1798
  %v1800 = vrcp.pop %v1723
  %v1801 = vmul.f32 1.0, %v1800
  %v1802 = vrcp.pop %v1724
  %v1803 = vmul.f32 1.0, %v1802
  %v1804 = vrcp.pop %v1725
  %v1805 = vmul.f32 1.0, %v1804
  %v1806 = vrcp.pop %v1726
  %v1807 = vmul.f32 1.0, %v1806
  %v1808 = vrcp.pop %v1727
  %v1809 = vmul.f32 1.0, %v1808
  %v1810 = vrcp.pop %v1728
  %v1811 = vmul.f32 1.0, %v1810
  %v1812 = vrcp.pop %v1729
  %v1813 = vmul.f32 1.0, %v1812
  %v1814 = vrcp.pop %v1730
  %v1815 = vmul.f32 1.0, %v1814
  %v1816 = vrcp.pop %v1731
  %v1817 = vmul.f32 1.0, %v1816
  %v1818 = vrcp.pop %v1732
  %v1819 = vmul.f32 1.0, %v1818
  %v1820 = vrcp.pop %v1733
  %v1821 = vmul.f32 1.0, %v1820
  %v1822 = vrcp.pop %v1734
  %v1823 = vmul.f32 1.0, %v1822
  %v1824 = vrcp.pop %v1735
  %v1825 = vmul.f32 1.0, %v1824
  %v1826 = vrcp.pop %v1736
  %v1827 = vmul.f32 1.0, %v1826
  %v1828 = vrcp.pop %v1737
  %v1829 = vmul.f32 1.0, %v1828
  %v1830 = vrcp.pop %v1738
  %v1831 = vmul.f32 1.0, %v1830
  %v1832 = vrcp.pop %v1739
  %v1833 = vmul.f32 1.0, %v1832
  %v1834 = vrcp.pop %v1740
  %v1835 = vmul.f32 1.0, %v1834
  %v1836 = vrcp.pop %v1741
  %v1837 = vmul.f32 1.0, %v1836
  %v1838 = vrcp.pop %v1742
  %v1839 = vmul.f32 1.0, %v1838
  %v1840 = vrcp.pop %v1743
  %v1841 = vmul.f32 1.0, %v1840
  %v1842 = vrcp.pop %v1744
  %v1843 = vmul.f32 1.0, %v1842
  %v1844 = vrcp.pop %v1745
  %v1845 = vmul.f32 1.0, %v1844
  %v1846 = vrcp.pop %v1746
  %v1847 = vmul.f32 1.0, %v1846
  %v1848 = vrcp.pop %v1747
  %v1849 = vmul.f32 1.0, %v1848
  %v1850 = vrcp.pop %v1748
  %v1851 = vmul.f32 1.0, %v1850
  %v1852 = vrcp.pop %v1749
  %v1853 = vmul.f32 1.0, %v1852
  %v1854 = vrcp.pop %v1750
  %v1855 = vmul.f32 1.0, %v1854
  %v1856 = vrcp.pop %v1751
  %v1857 = vmul.f32 1.0, %v1856
  %v1858 = vrcp.pop %v1752
  %v1859 = vmul.f32 1.0, %v1858
  %v1860 = vrcp.pop %v1753
  %v1861 = vmul.f32 1.0, %v1860
  %v1862 = vrcp.pop %v1754
  %v1863 = vmul.f32 1.0, %v1862
  %v1864 = vrcp.pop %v1755
  %v1865 = vmul.f32 1.0, %v1864
  %v1866 = vrcp.pop %v1756
  %v1867 = vmul.f32 1.0, %v1866
  %v1868 = vrcp.pop %v1757
  %v1869 = vmul.f32 1.0, %v1868
  %v1870 = vrcp.pop %v1758
  %v1871 = vmul.f32 1.0, %v1870
  %v1872 = vrcp.pop %v1759
  %v1873 = vmul.f32 1.0, %v1872
  %v1874 = vrcp.pop %v1760
  %v1875 = vmul.f32 1.0, %v1874
  %v1876 = vrcp.pop %v1761
  %v1877 = vmul.f32 1.0, %v1876
  %v1878 = vrcp.pop %v1762
  %v1879 = vmul.f32 1.0, %v1878
  %v1880 = vrcp.pop %v1763
  %v1881 = vmul.f32 1.0, %v1880
  %v1882 = vrcp.pop %v1764
  %v1883 = vmul.f32 1.0, %v1882
  %v1884 = vrcp.pop %v1765
  %v1885 = vmul.f32 1.0, %v1884
  %v1886 = vrcp.pop %v1766
  %v1887 = vmul.f32 1.0, %v1886
  %v1888 = vrcp.pop %v1767
  %v1889 = vmul.f32 1.0, %v1888
  %v1890 = vrcp.pop %v1768
  %v1891 = vmul.f32 1.0, %v1890
  %v1892 = vrcp.pop %v1769
  %v1893 = vmul.f32 1.0, %v1892
  %v1894 = vrcp.pop %v1770
  %v1895 = vmul.f32 1.0, %v1894
  %v1896 = vrcp.pop %v1771
  %v1897 = vmul.f32 1.0, %v1896
  %v1898 = vrcp.pop %v1772
  %v1899 = vmul.f32 1.0, %v1898
  %v1900 = vrcp.pop %v1773
  %v1901 = vmul.f32 1.0, %v1900
  %v1902 = vmul.f32 %v1454, %v1775
  %v1903 = vmul.f32 %v1455, %v1777
  %v1904 = vmul.f32 %v1456, %v1779
  %v1905 = vmul.f32 %v1457, %v1781
  %v1906 = vmul.f32 %v1458, %v1783
  %v1907 = vmul.f32 %v1459, %v1785
  %v1908 = vmul.f32 %v1460, %v1787
  %v1909 = vmul.f32 %v1461, %v1789
  %v1910 = vmul.f32 %v1462, %v1791
  %v1911 = vmul.f32 %v1463, %v1793
  %v1912 = vmul.f32 %v1464, %v1795
  %v1913 = vmul.f32 %v1465, %v1797
  %v1914 = vmul.f32 %v1466, %v1799
  %v1915 = vmul.f32 %v1467, %v1801
  %v1916 = vmul.f32 %v1468, %v1803
  %v1917 = vmul.f32 %v1469, %v1805
  %v1918 = vmul.f32 %v1470, %v1807
  %v1919 = vmul.f32 %v1471, %v1809
  %v1920 = vmul.f32 %v1472, %v1811
  %v1921 = vmul.f32 %v1473, %v1813
  %v1922 = vmul.f32 %v1474, %v1815
  %v1923 = vmul.f32 %v1475, %v1817
  %v1924 = vmul.f32 %v1476, %v1819
  %v1925 = vmul.f32 %v1477, %v1821
  %v1926 = vmul.f32 %v1478, %v1823
  %v1927 = vmul.f32 %v1479, %v1825
  %v1928 = vmul.f32 %v1480, %v1827
  %v1929 = vmul.f32 %v1481, %v1829
  %v1930 = vmul.f32 %v1482, %v1831
  %v1931 = vmul.f32 %v1483, %v1833
  %v1932 = vmul.f32 %v1484, %v1835
  %v1933 = vmul.f32 %v1485, %v1837
  %v1934 = vmul.f32 %v1486, %v1839
  %v1935 = vmul.f32 %v1487, %v1841
  %v1936 = vmul.f32 %v1488, %v1843
  %v1937 = vmul.f32 %v1489, %v1845
  %v1938 = vmul.f32 %v1490, %v1847
  %v1939 = vmul.f32 %v1491, %v1849
  %v1940 = vmul.f32 %v1492, %v1851
  %v1941 = vmul.f32 %v1493, %v1853
  %v1942 = vmul.f32 %v1494, %v1855
  %v1943 = vmul.f32 %v1495, %v1857
  %v1944 = vmul.f32 %v1496, %v1859
  %v1945 = vmul.f32 %v1497, %v1861
  %v1946 = vmul.f32 %v1498, %v1863
  %v1947 = vmul.f32 %v1499, %v1865
  %v1948 = vmul.f32 %v1500, %v1867
  %v1949 = vmul.f32 %v1501, %v1869
  %v1950 = vmul.f32 %v1502, %v1871
  %v1951 = vmul.f32 %v1503, %v1873
  %v1952 = vmul.f32 %v1504, %v1875
  %v1953 = vmul.f32 %v1505, %v1877
  %v1954 = vmul.f32 %v1506, %v1879
  %v1955 = vmul.f32 %v1507, %v1881
  %v1956 = vmul.f32 %v1508, %v1883
  %v1957 = vmul.f32 %v1509, %v1885
  %v1958 = vmul.f32 %v1510, %v1887
  %v1959 = vmul.f32 %v1511, %v1889
  %v1960 = vmul.f32 %v1512, %v1891
  %v1961 = vmul.f32 %v1513, %v1893
  %v1962 = vmul.f32 %v1514, %v1895
  %v1963 = vmul.f32 %v1515, %v1897
  %v1964 = vmul.f32 %v1516, %v1899
  %v1965 = vmul.f32 %v1517, %v1901
  %v1966 = vmul.f32 %v1390, %v1902
  %v1967 = vmul.f32 %v1391, %v1903
  %v1968 = vmul.f32 %v1392, %v1904
  %v1969 = vmul.f32 %v1393, %v1905
  %v1970 = vmul.f32 %v1394, %v1906
  %v1971 = vmul.f32 %v1395, %v1907
  %v1972 = vmul.f32 %v1396, %v1908
  %v1973 = vmul.f32 %v1397, %v1909
  %v1974 = vmul.f32 %v1398, %v1910
  %v1975 = vmul.f32 %v1399, %v1911
  %v1976 = vmul.f32 %v1400, %v1912
  %v1977 = vmul.f32 %v1401, %v1913
  %v1978 = vmul.f32 %v1402, %v1914
  %v1979 = vmul.f32 %v1403, %v1915
  %v1980 = vmul.f32 %v1404, %v1916
  %v1981 = vmul.f32 %v1405, %v1917
  %v1982 = vmul.f32 %v1406, %v1918
  %v1983 = vmul.f32 %v1407, %v1919
  %v1984 = vmul.f32 %v1408, %v1920
  %v1985 = vmul.f32 %v1409, %v1921
  %v1986 = vmul.f32 %v1410, %v1922
  %v1987 = vmul.f32 %v1411, %v1923
  %v1988 = vmul.f32 %v1412, %v1924
  %v1989 = vmul.f32 %v1413, %v1925
  %v1990 = vmul.f32 %v1414, %v1926
  %v1991 = vmul.f32 %v1415, %v1927
  %v1992 = vmul.f32 %v1416, %v1928
  %v1993 = vmul.f32 %v1417, %v1929
  %v1994 = vmul.f32 %v1418, %v1930
  %v1995 = vmul.f32 %v1419, %v1931
  %v1996 = vmul.f32 %v1420, %v1932
  %v1997 = vmul.f32 %v1421, %v1933
  %v1998 = vmul.f32 %v1422, %v1934
  %v1999 = vmul.f32 %v1423, %v1935
  %v2000 = vmul.f32 %v1424, %v1936
  %v2001 = vmul.f32 %v1425, %v1937
  %v2002 = vmul.f32 %v1426, %v1938
  %v2003 = vmul.f32 %v1427, %v1939
  %v2004 = vmul.f32 %v1428, %v1940
  %v2005 = vmul.f32 %v1429, %v1941
  %v2006 = vmul.f32 %v1430, %v1942
  %v2007 = vmul.f32 %v1431, %v1943
  %v2008 = vmul.f32 %v1432, %v1944
  %v2009 = vmul.f32 %v1433, %v1945
  %v2010 = vmul.f32 %v1434, %v1946
  %v2011 = vmul.f32 %v1435, %v1947
  %v2012 = vmul.f32 %v1436, %v1948
  %v2013 = vmul.f32 %v1437, %v1949
  %v2014 = vmul.f32 %v1438, %v1950
  %v2015 = vmul.f32 %v1439, %v1951
  %v2016 = vmul.f32 %v1440, %v1952
  %v2017 = vmul.f32 %v1441, %v1953
  %v2018 = vmul.f32 %v1442, %v1954
  %v2019 = vmul.f32 %v1443, %v1955
  %v2020 = vmul.f32 %v1444, %v1956
  %v2021 = vmul.f32 %v1445, %v1957
  %v2022 = vmul.f32 %v1446, %v1958
  %v2023 = vmul.f32 %v1447, %v1959
  %v2024 = vmul.f32 %v1448, %v1960
  %v2025 = vmul.f32 %v1449, %v1961
  %v2026 = vmul.f32 %v1450, %v1962
  %v2027 = vmul.f32 %v1451, %v1963
  %v2028 = vmul.f32 %v1452, %v1964
  %v2029 = vmul.f32 %v1453, %v1965
  %v2030 = vpack.c.bf16 %v1967, %v1966
  %v2031 = vpack.c.bf16 %v1969, %v1968
  %v2032 = vpack.c.bf16 %v1971, %v1970
  %v2033 = vpack.c.bf16 %v1973, %v1972
  %v2034 = vpack.c.bf16 %v1975, %v1974
  %v2035 = vpack.c.bf16 %v1977, %v1976
  %v2036 = vpack.c.bf16 %v1979, %v1978
  %v2037 = vpack.c.bf16 %v1981, %v1980
  %v2038 = vpack.c.bf16 %v1983, %v1982
  %v2039 = vpack.c.bf16 %v1985, %v1984
  %v2040 = vpack.c.bf16 %v1987, %v1986
  %v2041 = vpack.c.bf16 %v1989, %v1988
  %v2042 = vpack.c.bf16 %v1991, %v1990
  %v2043 = vpack.c.bf16 %v1993, %v1992
  %v2044 = vpack.c.bf16 %v1995, %v1994
  %v2045 = vpack.c.bf16 %v1997, %v1996
  %v2046 = vpack.c.bf16 %v1999, %v1998
  %v2047 = vpack.c.bf16 %v2001, %v2000
  %v2048 = vpack.c.bf16 %v2003, %v2002
  %v2049 = vpack.c.bf16 %v2005, %v2004
  %v2050 = vpack.c.bf16 %v2007, %v2006
  %v2051 = vpack.c.bf16 %v2009, %v2008
  %v2052 = vpack.c.bf16 %v2011, %v2010
  %v2053 = vpack.c.bf16 %v2013, %v2012
  %v2054 = vpack.c.bf16 %v2015, %v2014
  %v2055 = vpack.c.bf16 %v2017, %v2016
  %v2056 = vpack.c.bf16 %v2019, %v2018
  %v2057 = vpack.c.bf16 %v2021, %v2020
  %v2058 = vpack.c.bf16 %v2023, %v2022
  %v2059 = vpack.c.bf16 %v2025, %v2024
  %v2060 = vpack.c.bf16 %v2027, %v2026
  %v2061 = vpack.c.bf16 %v2029, %v2028
  %v2062 = vld [vmem:[%s7] sm:$0xff]
  %v2063 = vpack.c.bf16 %v2062, %v2062
  %v2065 = vsel %vm478, %v2030, 0
  %v2068 = vsel %vm478, %v2031, 0
  %v2071 = vsel %vm478, %v2032, 0
  %v2074 = vsel %vm478, %v2033, 0
  %v2077 = vsel %vm478, %v2034, 0
  %v2080 = vsel %vm478, %v2035, 0
  %v2083 = vsel %vm478, %v2036, 0
  %v2086 = vsel %vm478, %v2037, 0
  %v2089 = vsel %vm478, %v2038, 0
  %v2092 = vsel %vm478, %v2039, 0
  %v2095 = vsel %vm478, %v2040, 0
  %v2098 = vsel %vm478, %v2041, 0
  %v2101 = vsel %vm478, %v2042, 0
  %v2104 = vsel %vm478, %v2043, 0
  %v2107 = vsel %vm478, %v2044, 0
  %v2110 = vsel %vm478, %v2045, 0
  %v2113 = vsel %vm478, %v2046, 0
  %v2116 = vsel %vm478, %v2047, 0
  %v2119 = vsel %vm478, %v2048, 0
  %v2122 = vsel %vm478, %v2049, 0
  %v2125 = vsel %vm478, %v2050, 0
  %v2128 = vsel %vm478, %v2051, 0
  %v2131 = vsel %vm478, %v2052, 0
  %v2134 = vsel %vm478, %v2053, 0
  %v2137 = vsel %vm478, %v2054, 0
  %v2140 = vsel %vm478, %v2055, 0
  %v2143 = vsel %vm478, %v2056, 0
  %v2146 = vsel %vm478, %v2057, 0
  %v2149 = vsel %vm478, %v2058, 0
  %v2152 = vsel %vm478, %v2059, 0
  %v2155 = vsel %vm478, %v2060, 0
  %v2158 = vsel %vm478, %v2061, 0
  %vm2160 = vcmask 1043456
  %v2162 = vsel %vm2160, %v2063, 0
  %2164 = vmatprep.subr.bf16.mxu0 0
  %2165 = vmatpush1.bf16.msra.mxu0 0
  %2166 = vmatprep.subr.bf16.mxu0 0
  %2167 = vmatpush1.bf16.msra.mxu0 0
  %2168 = vmatprep.subr.bf16.mxu0 0
  %2169 = vmatpush1.bf16.msra.mxu0 0
  %2170 = vmatprep.subr.bf16.mxu0 0
  %2171 = vmatpush1.bf16.msra.mxu0 0
  %2172 = vmatprep.subr.bf16.mxu0 0
  %2173 = vmatpush1.bf16.msra.mxu0 0
  %2174 = vmatprep.subr.bf16.mxu0 0
  %2175 = vmatpush1.bf16.msra.mxu0 0
  %2176 = vmatprep.subr.bf16.mxu0 0
  %2177 = vmatpush1.bf16.msra.mxu0 0
  %2178 = vmatprep.subr.bf16.mxu0 0
  %2179 = vmatpush1.bf16.msra.mxu0 %v2162
  %2180 = vmatprep.subr.bf16.mxu0 0
  %2181 = vmatpush2.bf16.msra.mxu0 0
  %2182 = vmatprep.subr.bf16.mxu0 0
  %2183 = vmatpush2.bf16.msra.mxu0 0
  %2184 = vmatprep.subr.bf16.mxu0 0
  %2185 = vmatpush2.bf16.msra.mxu0 0
  %2186 = vmatprep.subr.bf16.mxu0 0
  %2187 = vmatpush2.bf16.msra.mxu0 0
  %2188 = vmatprep.subr.bf16.mxu0 0
  %2189 = vmatpush2.bf16.msra.mxu0 0
  %2190 = vmatprep.subr.bf16.mxu0 0
  %2191 = vmatpush2.bf16.msra.mxu0 0
  %2192 = vmatprep.subr.bf16.mxu0 0
  %2193 = vmatpush2.bf16.msra.mxu0 0
  %2194 = vmatprep.subr.bf16.mxu0 0
  %2195 = vmatpush2.bf16.msra.mxu0 0
  %2196 = vmatprep.mubr.bf16.mxu0 0
  %2197 = vmatmul.mubr.bf16.gmra.mxu0 %v2065
  %v2198 = vpop.f32.mrf.mxu0
  %v2199 = vadd.f32 0.0, %v2198
  %v2200 = vpop.f32.mrf.mxu0
  %v2201 = vpop.f32.mrf.mxu0
  %v2202 = vadd.f32 0.0, %v2201
  %v2203 = vpop.f32.mrf.mxu0
  %2204 = vmatprep.mubr.bf16.mxu0 0
  %2205 = vmatmul.mubr.bf16.gmra.mxu0 %v2068
  %v2206 = vpop.f32.mrf.mxu0
  %v2207 = vadd.f32 0.0, %v2206
  %v2208 = vpop.f32.mrf.mxu0
  %v2209 = vpop.f32.mrf.mxu0
  %v2210 = vadd.f32 0.0, %v2209
  %v2211 = vpop.f32.mrf.mxu0
  %2212 = vmatprep.mubr.bf16.mxu0 0
  %2213 = vmatmul.mubr.bf16.gmra.mxu0 %v2071
  %v2214 = vpop.f32.mrf.mxu0
  %v2215 = vadd.f32 0.0, %v2214
  %v2216 = vpop.f32.mrf.mxu0
  %v2217 = vpop.f32.mrf.mxu0
  %v2218 = vadd.f32 0.0, %v2217
  %v2219 = vpop.f32.mrf.mxu0
  %2220 = vmatprep.mubr.bf16.mxu0 0
  %2221 = vmatmul.mubr.bf16.gmra.mxu0 %v2074
  %v2222 = vpop.f32.mrf.mxu0
  %v2223 = vadd.f32 0.0, %v2222
  %v2224 = vpop.f32.mrf.mxu0
  %v2225 = vpop.f32.mrf.mxu0
  %v2226 = vadd.f32 0.0, %v2225
  %v2227 = vpop.f32.mrf.mxu0
  %2228 = vmatprep.mubr.bf16.mxu0 0
  %2229 = vmatmul.mubr.bf16.gmra.mxu0 %v2077
  %v2230 = vpop.f32.mrf.mxu0
  %v2231 = vadd.f32 0.0, %v2230
  %v2232 = vpop.f32.mrf.mxu0
  %v2233 = vpop.f32.mrf.mxu0
  %v2234 = vadd.f32 0.0, %v2233
  %v2235 = vpop.f32.mrf.mxu0
  %2236 = vmatprep.mubr.bf16.mxu0 0
  %2237 = vmatmul.mubr.bf16.gmra.mxu0 %v2080
  %v2238 = vpop.f32.mrf.mxu0
  %v2239 = vadd.f32 0.0, %v2238
  %v2240 = vpop.f32.mrf.mxu0
  %v2241 = vpop.f32.mrf.mxu0
  %v2242 = vadd.f32 0.0, %v2241
  %v2243 = vpop.f32.mrf.mxu0
  %2244 = vmatprep.mubr.bf16.mxu0 0
  %2245 = vmatmul.mubr.bf16.gmra.mxu0 %v2083
  %v2246 = vpop.f32.mrf.mxu0
  %v2247 = vadd.f32 0.0, %v2246
  %v2248 = vpop.f32.mrf.mxu0
  %v2249 = vpop.f32.mrf.mxu0
  %v2250 = vadd.f32 0.0, %v2249
  %v2251 = vpop.f32.mrf.mxu0
  %2252 = vmatprep.mubr.bf16.mxu0 0
  %2253 = vmatmul.mubr.bf16.gmra.mxu0 %v2086
  %v2254 = vpop.f32.mrf.mxu0
  %v2255 = vadd.f32 0.0, %v2254
  %v2256 = vpop.f32.mrf.mxu0
  %v2257 = vpop.f32.mrf.mxu0
  %v2258 = vadd.f32 0.0, %v2257
  %v2259 = vpop.f32.mrf.mxu0
  %2260 = vmatprep.mubr.bf16.mxu0 0
  %2261 = vmatmul.mubr.bf16.gmra.mxu0 %v2089
  %v2262 = vpop.f32.mrf.mxu0
  %v2263 = vadd.f32 0.0, %v2262
  %v2264 = vpop.f32.mrf.mxu0
  %v2265 = vpop.f32.mrf.mxu0
  %v2266 = vadd.f32 0.0, %v2265
  %v2267 = vpop.f32.mrf.mxu0
  %2268 = vmatprep.mubr.bf16.mxu0 0
  %2269 = vmatmul.mubr.bf16.gmra.mxu0 %v2092
  %v2270 = vpop.f32.mrf.mxu0
  %v2271 = vadd.f32 0.0, %v2270
  %v2272 = vpop.f32.mrf.mxu0
  %v2273 = vpop.f32.mrf.mxu0
  %v2274 = vadd.f32 0.0, %v2273
  %v2275 = vpop.f32.mrf.mxu0
  %2276 = vmatprep.mubr.bf16.mxu0 0
  %2277 = vmatmul.mubr.bf16.gmra.mxu0 %v2095
  %v2278 = vpop.f32.mrf.mxu0
  %v2279 = vadd.f32 0.0, %v2278
  %v2280 = vpop.f32.mrf.mxu0
  %v2281 = vpop.f32.mrf.mxu0
  %v2282 = vadd.f32 0.0, %v2281
  %v2283 = vpop.f32.mrf.mxu0
  %2284 = vmatprep.mubr.bf16.mxu0 0
  %2285 = vmatmul.mubr.bf16.gmra.mxu0 %v2098
  %v2286 = vpop.f32.mrf.mxu0
  %v2287 = vadd.f32 0.0, %v2286
  %v2288 = vpop.f32.mrf.mxu0
  %v2289 = vpop.f32.mrf.mxu0
  %v2290 = vadd.f32 0.0, %v2289
  %v2291 = vpop.f32.mrf.mxu0
  %2292 = vmatprep.mubr.bf16.mxu0 0
  %2293 = vmatmul.mubr.bf16.gmra.mxu0 %v2101
  %v2294 = vpop.f32.mrf.mxu0
  %v2295 = vadd.f32 0.0, %v2294
  %v2296 = vpop.f32.mrf.mxu0
  %v2297 = vpop.f32.mrf.mxu0
  %v2298 = vadd.f32 0.0, %v2297
  %v2299 = vpop.f32.mrf.mxu0
  %2300 = vmatprep.mubr.bf16.mxu0 0
  %2301 = vmatmul.mubr.bf16.gmra.mxu0 %v2104
  %v2302 = vpop.f32.mrf.mxu0
  %v2303 = vadd.f32 0.0, %v2302
  %v2304 = vpop.f32.mrf.mxu0
  %v2305 = vpop.f32.mrf.mxu0
  %v2306 = vadd.f32 0.0, %v2305
  %v2307 = vpop.f32.mrf.mxu0
  %2308 = vmatprep.mubr.bf16.mxu0 0
  %2309 = vmatmul.mubr.bf16.gmra.mxu0 %v2107
  %v2310 = vpop.f32.mrf.mxu0
  %v2311 = vadd.f32 0.0, %v2310
  %v2312 = vpop.f32.mrf.mxu0
  %v2313 = vpop.f32.mrf.mxu0
  %v2314 = vadd.f32 0.0, %v2313
  %v2315 = vpop.f32.mrf.mxu0
  %2316 = vmatprep.mubr.bf16.mxu0 0
  %2317 = vmatmul.mubr.bf16.gmra.mxu0 %v2110
  %v2318 = vpop.f32.mrf.mxu0
  %v2319 = vadd.f32 0.0, %v2318
  %v2320 = vpop.f32.mrf.mxu0
  %v2321 = vpop.f32.mrf.mxu0
  %v2322 = vadd.f32 0.0, %v2321
  %v2323 = vpop.f32.mrf.mxu0
  %2324 = vmatprep.mubr.bf16.mxu0 0
  %2325 = vmatmul.mubr.bf16.gmra.mxu0 %v2113
  %v2326 = vpop.f32.mrf.mxu0
  %v2327 = vadd.f32 0.0, %v2326
  %v2328 = vpop.f32.mrf.mxu0
  %v2329 = vpop.f32.mrf.mxu0
  %v2330 = vadd.f32 0.0, %v2329
  %v2331 = vpop.f32.mrf.mxu0
  %2332 = vmatprep.mubr.bf16.mxu0 0
  %2333 = vmatmul.mubr.bf16.gmra.mxu0 %v2116
  %v2334 = vpop.f32.mrf.mxu0
  %v2335 = vadd.f32 0.0, %v2334
  %v2336 = vpop.f32.mrf.mxu0
  %v2337 = vpop.f32.mrf.mxu0
  %v2338 = vadd.f32 0.0, %v2337
  %v2339 = vpop.f32.mrf.mxu0
  %2340 = vmatprep.mubr.bf16.mxu0 0
  %2341 = vmatmul.mubr.bf16.gmra.mxu0 %v2119
  %v2342 = vpop.f32.mrf.mxu0
  %v2343 = vadd.f32 0.0, %v2342
  %v2344 = vpop.f32.mrf.mxu0
  %v2345 = vpop.f32.mrf.mxu0
  %v2346 = vadd.f32 0.0, %v2345
  %v2347 = vpop.f32.mrf.mxu0
  %2348 = vmatprep.mubr.bf16.mxu0 0
  %2349 = vmatmul.mubr.bf16.gmra.mxu0 %v2122
  %v2350 = vpop.f32.mrf.mxu0
  %v2351 = vadd.f32 0.0, %v2350
  %v2352 = vpop.f32.mrf.mxu0
  %v2353 = vpop.f32.mrf.mxu0
  %v2354 = vadd.f32 0.0, %v2353
  %v2355 = vpop.f32.mrf.mxu0
  %2356 = vmatprep.mubr.bf16.mxu0 0
  %2357 = vmatmul.mubr.bf16.gmra.mxu0 %v2125
  %v2358 = vpop.f32.mrf.mxu0
  %v2359 = vadd.f32 0.0, %v2358
  %v2360 = vpop.f32.mrf.mxu0
  %v2361 = vpop.f32.mrf.mxu0
  %v2362 = vadd.f32 0.0, %v2361
  %v2363 = vpop.f32.mrf.mxu0
  %2364 = vmatprep.mubr.bf16.mxu0 0
  %2365 = vmatmul.mubr.bf16.gmra.mxu0 %v2128
  %v2366 = vpop.f32.mrf.mxu0
  %v2367 = vadd.f32 0.0, %v2366
  %v2368 = vpop.f32.mrf.mxu0
  %v2369 = vpop.f32.mrf.mxu0
  %v2370 = vadd.f32 0.0, %v2369
  %v2371 = vpop.f32.mrf.mxu0
  %2372 = vmatprep.mubr.bf16.mxu0 0
  %2373 = vmatmul.mubr.bf16.gmra.mxu0 %v2131
  %v2374 = vpop.f32.mrf.mxu0
  %v2375 = vadd.f32 0.0, %v2374
  %v2376 = vpop.f32.mrf.mxu0
  %v2377 = vpop.f32.mrf.mxu0
  %v2378 = vadd.f32 0.0, %v2377
  %v2379 = vpop.f32.mrf.mxu0
  %2380 = vmatprep.mubr.bf16.mxu0 0
  %2381 = vmatmul.mubr.bf16.gmra.mxu0 %v2134
  %v2382 = vpop.f32.mrf.mxu0
  %v2383 = vadd.f32 0.0, %v2382
  %v2384 = vpop.f32.mrf.mxu0
  %v2385 = vpop.f32.mrf.mxu0
  %v2386 = vadd.f32 0.0, %v2385
  %v2387 = vpop.f32.mrf.mxu0
  %2388 = vmatprep.mubr.bf16.mxu0 0
  %2389 = vmatmul.mubr.bf16.gmra.mxu0 %v2137
  %v2390 = vpop.f32.mrf.mxu0
  %v2391 = vadd.f32 0.0, %v2390
  %v2392 = vpop.f32.mrf.mxu0
  %v2393 = vpop.f32.mrf.mxu0
  %v2394 = vadd.f32 0.0, %v2393
  %v2395 = vpop.f32.mrf.mxu0
  %2396 = vmatprep.mubr.bf16.mxu0 0
  %2397 = vmatmul.mubr.bf16.gmra.mxu0 %v2140
  %v2398 = vpop.f32.mrf.mxu0
  %v2399 = vadd.f32 0.0, %v2398
  %v2400 = vpop.f32.mrf.mxu0
  %v2401 = vpop.f32.mrf.mxu0
  %v2402 = vadd.f32 0.0, %v2401
  %v2403 = vpop.f32.mrf.mxu0
  %2404 = vmatprep.mubr.bf16.mxu0 0
  %2405 = vmatmul.mubr.bf16.gmra.mxu0 %v2143
  %v2406 = vpop.f32.mrf.mxu0
  %v2407 = vadd.f32 0.0, %v2406
  %v2408 = vpop.f32.mrf.mxu0
  %v2409 = vpop.f32.mrf.mxu0
  %v2410 = vadd.f32 0.0, %v2409
  %v2411 = vpop.f32.mrf.mxu0
  %2412 = vmatprep.mubr.bf16.mxu0 0
  %2413 = vmatmul.mubr.bf16.gmra.mxu0 %v2146
  %v2414 = vpop.f32.mrf.mxu0
  %v2415 = vadd.f32 0.0, %v2414
  %v2416 = vpop.f32.mrf.mxu0
  %v2417 = vpop.f32.mrf.mxu0
  %v2418 = vadd.f32 0.0, %v2417
  %v2419 = vpop.f32.mrf.mxu0
  %2420 = vmatprep.mubr.bf16.mxu0 0
  %2421 = vmatmul.mubr.bf16.gmra.mxu0 %v2149
  %v2422 = vpop.f32.mrf.mxu0
  %v2423 = vadd.f32 0.0, %v2422
  %v2424 = vpop.f32.mrf.mxu0
  %v2425 = vpop.f32.mrf.mxu0
  %v2426 = vadd.f32 0.0, %v2425
  %v2427 = vpop.f32.mrf.mxu0
  %2428 = vmatprep.mubr.bf16.mxu0 0
  %2429 = vmatmul.mubr.bf16.gmra.mxu0 %v2152
  %v2430 = vpop.f32.mrf.mxu0
  %v2431 = vadd.f32 0.0, %v2430
  %v2432 = vpop.f32.mrf.mxu0
  %v2433 = vpop.f32.mrf.mxu0
  %v2434 = vadd.f32 0.0, %v2433
  %v2435 = vpop.f32.mrf.mxu0
  %2436 = vmatprep.mubr.bf16.mxu0 0
  %2437 = vmatmul.mubr.bf16.gmra.mxu0 %v2155
  %v2438 = vpop.f32.mrf.mxu0
  %v2439 = vadd.f32 0.0, %v2438
  %v2440 = vpop.f32.mrf.mxu0
  %v2441 = vpop.f32.mrf.mxu0
  %v2442 = vadd.f32 0.0, %v2441
  %v2443 = vpop.f32.mrf.mxu0
  %2444 = vmatprep.mubr.bf16.mxu0 0
  %2445 = vmatmul.mubr.bf16.gmra.mxu0 %v2158
  %v2446 = vpop.f32.mrf.mxu0
  %v2447 = vadd.f32 0.0, %v2446
  %v2448 = vpop.f32.mrf.mxu0
  %v2449 = vpop.f32.mrf.mxu0
  %v2450 = vadd.f32 0.0, %v2449
  %v2451 = vpop.f32.mrf.mxu0
  %2452 = vdwg.mxu0
  %vm2453 = vcmask 31744
  %2454 = vst.msk [vmem:[%s8] sm:$0xff] %vm2453, %v2199
  %2455 = vst.msk [vmem:[%s8 + $0x8] sm:$0xff] %vm2453, %v2202
  %2456 = vst.msk [vmem:[%s8 + $0x10] sm:$0xff] %vm2453, %v2207
  %2457 = vst.msk [vmem:[%s8 + $0x18] sm:$0xff] %vm2453, %v2210
  %2458 = vst.msk [vmem:[%s8 + $0x20] sm:$0xff] %vm2453, %v2215
  %2459 = vst.msk [vmem:[%s8 + $0x28] sm:$0xff] %vm2453, %v2218
  %2460 = vst.msk [vmem:[%s8 + $0x30] sm:$0xff] %vm2453, %v2223
  %2461 = vst.msk [vmem:[%s8 + $0x38] sm:$0xff] %vm2453, %v2226
  %2462 = vst.msk [vmem:[%s8 + $0x40] sm:$0xff] %vm2453, %v2231
  %2463 = vst.msk [vmem:[%s8 + $0x48] sm:$0xff] %vm2453, %v2234
  %2464 = vst.msk [vmem:[%s8 + $0x50] sm:$0xff] %vm2453, %v2239
  %2465 = vst.msk [vmem:[%s8 + $0x58] sm:$0xff] %vm2453, %v2242
  %2466 = vst.msk [vmem:[%s8 + $0x60] sm:$0xff] %vm2453, %v2247
  %2467 = vst.msk [vmem:[%s8 + $0x68] sm:$0xff] %vm2453, %v2250
  %2468 = vst.msk [vmem:[%s8 + $0x70] sm:$0xff] %vm2453, %v2255
  %2469 = vst.msk [vmem:[%s8 + $0x78] sm:$0xff] %vm2453, %v2258
  %2470 = vst.msk [vmem:[%s8 + $0x80] sm:$0xff] %vm2453, %v2263
  %2471 = vst.msk [vmem:[%s8 + $0x88] sm:$0xff] %vm2453, %v2266
  %2472 = vst.msk [vmem:[%s8 + $0x90] sm:$0xff] %vm2453, %v2271
  %2473 = vst.msk [vmem:[%s8 + $0x98] sm:$0xff] %vm2453, %v2274
  %2474 = vst.msk [vmem:[%s8 + $0xa0] sm:$0xff] %vm2453, %v2279
  %2475 = vst.msk [vmem:[%s8 + $0xa8] sm:$0xff] %vm2453, %v2282
  %2476 = vst.msk [vmem:[%s8 + $0xb0] sm:$0xff] %vm2453, %v2287
  %2477 = vst.msk [vmem:[%s8 + $0xb8] sm:$0xff] %vm2453, %v2290
  %2478 = vst.msk [vmem:[%s8 + $0xc0] sm:$0xff] %vm2453, %v2295
  %2479 = vst.msk [vmem:[%s8 + $0xc8] sm:$0xff] %vm2453, %v2298
  %2480 = vst.msk [vmem:[%s8 + $0xd0] sm:$0xff] %vm2453, %v2303
  %2481 = vst.msk [vmem:[%s8 + $0xd8] sm:$0xff] %vm2453, %v2306
  %2482 = vst.msk [vmem:[%s8 + $0xe0] sm:$0xff] %vm2453, %v2311
  %2483 = vst.msk [vmem:[%s8 + $0xe8] sm:$0xff] %vm2453, %v2314
  %2484 = vst.msk [vmem:[%s8 + $0xf0] sm:$0xff] %vm2453, %v2319
  %2485 = vst.msk [vmem:[%s8 + $0xf8] sm:$0xff] %vm2453, %v2322
  %2486 = vst.msk [vmem:[%s8 + $0x100] sm:$0xff] %vm2453, %v2327
  %2487 = vst.msk [vmem:[%s8 + $0x108] sm:$0xff] %vm2453, %v2330
  %2488 = vst.msk [vmem:[%s8 + $0x110] sm:$0xff] %vm2453, %v2335
  %2489 = vst.msk [vmem:[%s8 + $0x118] sm:$0xff] %vm2453, %v2338
  %2490 = vst.msk [vmem:[%s8 + $0x120] sm:$0xff] %vm2453, %v2343
  %2491 = vst.msk [vmem:[%s8 + $0x128] sm:$0xff] %vm2453, %v2346
  %2492 = vst.msk [vmem:[%s8 + $0x130] sm:$0xff] %vm2453, %v2351
  %2493 = vst.msk [vmem:[%s8 + $0x138] sm:$0xff] %vm2453, %v2354
  %2494 = vst.msk [vmem:[%s8 + $0x140] sm:$0xff] %vm2453, %v2359
  %2495 = vst.msk [vmem:[%s8 + $0x148] sm:$0xff] %vm2453, %v2362
  %2496 = vst.msk [vmem:[%s8 + $0x150] sm:$0xff] %vm2453, %v2367
  %2497 = vst.msk [vmem:[%s8 + $0x158] sm:$0xff] %vm2453, %v2370
  %2498 = vst.msk [vmem:[%s8 + $0x160] sm:$0xff] %vm2453, %v2375
  %2499 = vst.msk [vmem:[%s8 + $0x168] sm:$0xff] %vm2453, %v2378
  %2500 = vst.msk [vmem:[%s8 + $0x170] sm:$0xff] %vm2453, %v2383
  %2501 = vst.msk [vmem:[%s8 + $0x178] sm:$0xff] %vm2453, %v2386
  %2502 = vst.msk [vmem:[%s8 + $0x180] sm:$0xff] %vm2453, %v2391
  %2503 = vst.msk [vmem:[%s8 + $0x188] sm:$0xff] %vm2453, %v2394
  %2504 = vst.msk [vmem:[%s8 + $0x190] sm:$0xff] %vm2453, %v2399
  %2505 = vst.msk [vmem:[%s8 + $0x198] sm:$0xff] %vm2453, %v2402
  %2506 = vst.msk [vmem:[%s8 + $0x1a0] sm:$0xff] %vm2453, %v2407
  %2507 = vst.msk [vmem:[%s8 + $0x1a8] sm:$0xff] %vm2453, %v2410
  %2508 = vst.msk [vmem:[%s8 + $0x1b0] sm:$0xff] %vm2453, %v2415
  %2509 = vst.msk [vmem:[%s8 + $0x1b8] sm:$0xff] %vm2453, %v2418
  %2510 = vst.msk [vmem:[%s8 + $0x1c0] sm:$0xff] %vm2453, %v2423
  %2511 = vst.msk [vmem:[%s8 + $0x1c8] sm:$0xff] %vm2453, %v2426
  %2512 = vst.msk [vmem:[%s8 + $0x1d0] sm:$0xff] %vm2453, %v2431
  %2513 = vst.msk [vmem:[%s8 + $0x1d8] sm:$0xff] %vm2453, %v2434
  %2514 = vst.msk [vmem:[%s8 + $0x1e0] sm:$0xff] %vm2453, %v2439
  %2515 = vst.msk [vmem:[%s8 + $0x1e8] sm:$0xff] %vm2453, %v2442
  %2516 = vst.msk [vmem:[%s8 + $0x1f0] sm:$0xff] %vm2453, %v2447
  %2517 = vst.msk [vmem:[%s8 + $0x1f8] sm:$0xff] %vm2453, %v2450
  // Predicated region
  $region34: #{spectral_mamba_forward.7} parent=0 // pred_check
    _
  $region35: #{spectral_mamba_forward.7} parent=0 // pred_check_branch
    %2519 = sbr.rel (0) target = $region37
  $region36: #{spectral_mamba_forward.7} parent=0 // pred_region
    _
  $region37: #{spectral_mamba_forward.7} parent=0 // pred_fallthru
    _
  // Predicated region
  $region38: #{spectral_mamba_forward.7} parent=0 // pred_check
    _
  $region39: #{spectral_mamba_forward.7} parent=0 // pred_check_branch
    %2521 = sbr.rel (0) target = $region41
  $region40: #{spectral_mamba_forward.7} parent=0 // pred_region
    _
  $region41: #{spectral_mamba_forward.7} parent=0 // pred_fallthru
    _

</llo_original>
